<compile_context>
chip_gen: v7x
topology: tpu7x:2x2x1
jax: 0.10.0
libtpu: 0.0.40
codegen_flags: <defaults>
</compile_context>

<pallas_src>
import jax
import jax.numpy as jnp
from jax.experimental import pallas as pl
from jax.experimental.pallas import tpu as pltpu

# ---------------------------------------------------------------------------
# Model dimensions
# ---------------------------------------------------------------------------
N_NODES = 30                   # fc expects 64 * 30 flattened features
N_PAD = 32                     # sublane-aligned node count for the GCN matmuls
NUM_NODE_FEATURES = 16
HID1 = 128
HID2 = 64
FC_IN = HID2 * N_NODES         # 1920
FC_OUT = 1728
FC_OUT_PAD = 1792              # 14 * 128 -> lane-aligned, unmasked stores
N_COL_TILES = 2                # "parallel" j axis (both TCs on v7x)
TN = FC_OUT_PAD // N_COL_TILES # 896, multiple of 128
N_ACC = 4                      # independent fc accumulators (break serial chain)


# ---------------------------------------------------------------------------
# Fused Pallas kernel
# ---------------------------------------------------------------------------

def _gnn_fused_kernel(a_ref, x_ref, w1_ref, b1_ref, w2_ref, b2_ref,
                      w3_ref, bf_ref, o_ref):
    """GCNConv -> ReLU -> GCNConv -> ReLU -> flatten -> Linear, fused.

    Grid: (j = output-column tile, "parallel").  One invocation computes the
    tiny GCN stack and the fc partial product for its 896 output columns.
    """
    # --- GCN stack (tiny; recomputed per column tile so each TensorCore is
    # self-contained under megacore splitting) ---
    a = a_ref[...]
    xw1 = jnp.dot(x_ref[...], w1_ref[...], preferred_element_type=jnp.float32)
    h1 = jnp.maximum(
        jnp.dot(a, xw1, preferred_element_type=jnp.float32) + b1_ref[...], 0.0)
    # dropout(p=0.5, training=False) -> identity
    hw2 = jnp.dot(h1, w2_ref[...], preferred_element_type=jnp.float32)
    h2 = jnp.maximum(
        jnp.dot(a, hw2, preferred_element_type=jnp.float32) + b2_ref[...], 0.0)
    # dropout(p=0.5, training=False) -> identity

    # Cast to bf16 once (not per row-slice).
    h2b = h2.astype(jnp.bfloat16)                         # (N_PAD, HID2)

    # fc: flatten(h2[:30]) @ W  ==  sum_n h2[n, :] @ W[n]
    # (padded h2 rows 30..31 are non-zero but never read).
    # Round-robin accumulators break the long serial f32 accumulate chain.
    accs = [bf_ref[...]] + [jnp.zeros((1, TN), jnp.float32)
                            for _ in range(N_ACC - 1)]
    for n in range(N_NODES):                              # static unroll
        accs[n % N_ACC] = accs[n % N_ACC] + jnp.dot(
            h2b[n:n + 1, :], w3_ref[n],                   # (1,64)@(64,TN) bf16
            preferred_element_type=jnp.float32)
    total = accs[0]
    for i in range(1, N_ACC):
        total = total + accs[i]
    o_ref[...] = total


def gnn_fused_pallas(a_hat, x_pad, w1, b1, w2, b2, w3, bf_pad):
    cost = pl.CostEstimate(
        flops=2 * FC_IN * FC_OUT_PAD
        + N_COL_TILES * 2 * (N_PAD * NUM_NODE_FEATURES * HID1
                             + N_PAD * N_PAD * HID1
                             + N_PAD * HID1 * HID2
                             + N_PAD * N_PAD * HID2),
        bytes_accessed=(w3.size * 2 + a_hat.size * 4 + x_pad.size * 4
                        + w1.size * 4 + b1.size * 4 + w2.size * 4
                        + b2.size * 4 + bf_pad.size * 4 + FC_OUT_PAD * 4),
        transcendentals=0,
    )
    return pl.pallas_call(
        _gnn_fused_kernel,
        out_shape=jax.ShapeDtypeStruct((1, FC_OUT_PAD), jnp.float32),
        grid_spec=pltpu.PrefetchScalarGridSpec(
            num_scalar_prefetch=0,
            grid=(N_COL_TILES,),
            in_specs=[
                pl.BlockSpec((N_PAD, N_PAD), lambda j: (0, 0)),             # a_hat
                pl.BlockSpec((N_PAD, NUM_NODE_FEATURES), lambda j: (0, 0)), # x
                pl.BlockSpec((NUM_NODE_FEATURES, HID1), lambda j: (0, 0)),  # w1
                pl.BlockSpec((1, HID1), lambda j: (0, 0)),                  # b1
                pl.BlockSpec((HID1, HID2), lambda j: (0, 0)),               # w2
                pl.BlockSpec((1, HID2), lambda j: (0, 0)),                  # b2
                pl.BlockSpec((N_NODES, HID2, TN), lambda j: (0, 0, j)),     # wf (bf16)
                pl.BlockSpec((1, TN), lambda j: (0, j)),                    # fc bias
            ],
            out_specs=pl.BlockSpec((1, TN), lambda j: (0, j)),
        ),
        compiler_params=pltpu.CompilerParams(
            # TODO(synk): on v7x verify the j axis shards across both
            # TensorCores in xprof; if not, switch to pltpu.CORE_PARALLEL.
            dimension_semantics=("parallel",),
            vmem_limit_bytes=32 * 1024 * 1024,
        ),
        cost_estimate=cost,
    )(a_hat, x_pad, w1, b1, w2, b2, w3, bf_pad)


# ---------------------------------------------------------------------------
# Glue: normalized adjacency + parameter init + forward wrapper
# ---------------------------------------------------------------------------

def build_normalized_adjacency(edge_index, num_nodes, pad_to=None):
    """A_hat = D^-1/2 (A + I) D^-1/2 (GCNConv, add_self_loops=True), optionally
    zero-padded to `pad_to` nodes (padded rows/cols stay exactly zero)."""
    pad_to = num_nodes if pad_to is None else pad_to
    src, dst = edge_index[0], edge_index[1]
    a = jnp.zeros((pad_to, pad_to), jnp.float32)
    a = a.at[src, dst].set(1.0)
    idx = jnp.arange(num_nodes)
    a = a.at[idx, idx].set(1.0)                      # self loops (real nodes)
    deg = a.sum(axis=1)
    d_inv_sqrt = jnp.where(deg > 0, 1.0 / jnp.sqrt(deg), 0.0)
    return d_inv_sqrt[:, None] * a * d_inv_sqrt[None, :]


def init_params(key):
    k1, k2, k3, k4, k5, k6 = jax.random.split(key, 6)

    def glorot(k, shape):
        fan_in, fan_out = shape
        lim = jnp.sqrt(6.0 / (fan_in + fan_out))
        return jax.random.uniform(k, shape, jnp.float32, -lim, lim)

    wf = glorot(k5, (FC_IN, FC_OUT))
    bf = jax.random.normal(k6, (1, FC_OUT), jnp.float32) * 0.01
    # Kernel-format fc params, prepared once: bf16, columns padded to 1792,
    # viewed as [node, feature, out-col] so no in-kernel reshape is needed.
    w3 = (jnp.pad(wf, ((0, 0), (0, FC_OUT_PAD - FC_OUT)))
          .astype(jnp.bfloat16)
          .reshape(N_NODES, HID2, FC_OUT_PAD))
    bf_pad = jnp.pad(bf, ((0, 0), (0, FC_OUT_PAD - FC_OUT)))
    return {
        "w1": glorot(k1, (NUM_NODE_FEATURES, HID1)),
        "b1": jax.random.normal(k2, (1, HID1), jnp.float32) * 0.01,
        "w2": glorot(k3, (HID1, HID2)),
        "b2": jax.random.normal(k4, (1, HID2), jnp.float32) * 0.01,
        "wf": wf,            # f32 master (reference check only)
        "bf": bf,
        "w3": w3,            # kernel fc weight (bf16, padded, node-major view)
        "bf_pad": bf_pad,    # kernel fc bias (f32, padded)
    }


@jax.jit
def gnn_forward(x, edge_index, params):
    """x: [30, num_node_features] f32; edge_index: [2, E] int32 -> [1, 1728]."""
    a_hat = build_normalized_adjacency(edge_index, N_NODES, N_PAD)
    x_pad = jnp.zeros((N_PAD, x.shape[1]), x.dtype).at[:N_NODES, :].set(x)
    out_pad = gnn_fused_pallas(a_hat, x_pad,
                               params["w1"], params["b1"],
                               params["w2"], params["b2"],
                               params["w3"], params["bf_pad"])
    return out_pad[:, :FC_OUT]


# ---------------------------------------------------------------------------
# Main
# ---------------------------------------------------------------------------

if __name__ == "__main__":
    key = jax.random.PRNGKey(0)
    kx, kp = jax.random.split(key)

    # Node features: 30 nodes, 16 features each.
    x = jax.random.normal(kx, (N_NODES, NUM_NODE_FEATURES), jnp.float32)

    # Deterministic ring graph (undirected -> both directions).
    idx = jnp.arange(N_NODES, dtype=jnp.int32)
    nxt = (idx + 1) % N_NODES
    edge_index = jnp.concatenate(
        [jnp.stack([idx, nxt], axis=0), jnp.stack([nxt, idx], axis=0)], axis=1
    )  # [2, 60]

    params = init_params(kp)

    out = gnn_forward(x, edge_index, params)
    jax.block_until_ready(out)
    assert out.shape == (1, FC_OUT), out.shape

    # Pure-JAX reference (same bf16 fc weight the kernel uses).
    a_hat = build_normalized_adjacency(edge_index, N_NODES)
    h1 = jnp.maximum(a_hat @ (x @ params["w1"]) + params["b1"], 0.0)
    h2 = jnp.maximum(a_hat @ (h1 @ params["w2"]) + params["b2"], 0.0)
    flat = h2.reshape(1, FC_IN)
    ref = jnp.dot(flat.astype(jnp.bfloat16),
                  params["wf"].astype(jnp.bfloat16),
                  preferred_element_type=jnp.float32) + params["bf"]
    err = float(jnp.max(jnp.abs(out - ref)))
    assert jnp.allclose(out, ref, atol=5e-3, rtol=5e-3), err

    print("KERNEL_OK")
</pallas_src>

<mosaic_0001>
module attributes {stable_mosaic.version = 11 : i64} {
  func.func @_gnn_fused_kernel(%arg0: i32, %arg1: memref<32x32xf32, #tpu.memory_space<vmem>>, %arg2: memref<32x16xf32, #tpu.memory_space<vmem>>, %arg3: memref<16x128xf32, #tpu.memory_space<vmem>>, %arg4: memref<1x128xf32, #tpu.memory_space<vmem>>, %arg5: memref<128x64xf32, #tpu.memory_space<vmem>>, %arg6: memref<1x64xf32, #tpu.memory_space<vmem>>, %arg7: memref<30x64x896xbf16, #tpu.memory_space<vmem>>, %arg8: memref<1x896xf32, #tpu.memory_space<vmem>>, %arg9: memref<1x896xf32, #tpu.memory_space<vmem>>) attributes {dimension_semantics = [#tpu.dimension_semantics<parallel>], iteration_bounds = array<i64: 2>, scalar_prefetch = 0 : i64, scratch_operands = 0 : i64, tpu.core_type = #tpu.core_type<tc>, window_params = [{pipeline_mode = #tpu.pipeline_mode<synchronous>, transform_indices = @transform_0, window_bounds = array<i64: 32, 32>}, {pipeline_mode = #tpu.pipeline_mode<synchronous>, transform_indices = @transform_1, window_bounds = array<i64: 32, 16>}, {pipeline_mode = #tpu.pipeline_mode<synchronous>, transform_indices = @transform_2, window_bounds = array<i64: 16, 128>}, {pipeline_mode = #tpu.pipeline_mode<synchronous>, transform_indices = @transform_3, window_bounds = array<i64: 1, 128>}, {pipeline_mode = #tpu.pipeline_mode<synchronous>, transform_indices = @transform_4, window_bounds = array<i64: 128, 64>}, {pipeline_mode = #tpu.pipeline_mode<synchronous>, transform_indices = @transform_5, window_bounds = array<i64: 1, 64>}, {transform_indices = @transform_6, window_bounds = array<i64: 30, 64, 896>}, {transform_indices = @transform_7, window_bounds = array<i64: 1, 896>}, {transform_indices = @transform_8, window_bounds = array<i64: 1, 896>}]} {
    %c0 = arith.constant 0 : index
    %c0_0 = arith.constant 0 : index
    %0 = vector.load %arg1[%c0, %c0_0] : memref<32x32xf32, #tpu.memory_space<vmem>>, vector<32x32xf32>
    %c0_1 = arith.constant 0 : index
    %c0_2 = arith.constant 0 : index
    %1 = vector.load %arg2[%c0_1, %c0_2] : memref<32x16xf32, #tpu.memory_space<vmem>>, vector<32x16xf32>
    %c0_3 = arith.constant 0 : index
    %c0_4 = arith.constant 0 : index
    %2 = vector.load %arg3[%c0_3, %c0_4] : memref<16x128xf32, #tpu.memory_space<vmem>>, vector<16x128xf32>
    %cst = arith.constant dense<0.000000e+00> : vector<32x128xf32>
    %3 = tpu.matmul %1, %2, %cst {dimension_numbers = #tpu.dot_dimension_numbers<[1], [0], [0], [1], [0, 0, 1, 1], [], []>} : vector<32x16xf32>, vector<16x128xf32>, vector<32x128xf32> -> vector<32x128xf32>
    %cst_5 = arith.constant dense<0.000000e+00> : vector<32x128xf32>
    %4 = tpu.matmul %0, %3, %cst_5 {dimension_numbers = #tpu.dot_dimension_numbers<[1], [0], [0], [1], [0, 0, 1, 1], [], []>} : vector<32x32xf32>, vector<32x128xf32>, vector<32x128xf32> -> vector<32x128xf32>
    %c0_6 = arith.constant 0 : index
    %c0_7 = arith.constant 0 : index
    %5 = vector.load %arg4[%c0_6, %c0_7] : memref<1x128xf32, #tpu.memory_space<vmem>>, vector<1x128xf32>
    %6 = vector.broadcast %5 : vector<1x128xf32> to vector<32x128xf32>
    %7 = arith.addf %4, %6 : vector<32x128xf32>
    %cst_8 = arith.constant 0.000000e+00 : f32
    %8 = vector.broadcast %cst_8 : f32 to vector<32x128xf32>
    %9 = arith.maximumf %7, %8 : vector<32x128xf32>
    %c0_9 = arith.constant 0 : index
    %c0_10 = arith.constant 0 : index
    %10 = vector.load %arg5[%c0_9, %c0_10] : memref<128x64xf32, #tpu.memory_space<vmem>>, vector<128x64xf32>
    %cst_11 = arith.constant dense<0.000000e+00> : vector<32x64xf32>
    %11 = tpu.matmul %9, %10, %cst_11 {dimension_numbers = #tpu.dot_dimension_numbers<[1], [0], [0], [1], [0, 0, 1, 1], [], []>} : vector<32x128xf32>, vector<128x64xf32>, vector<32x64xf32> -> vector<32x64xf32>
    %cst_12 = arith.constant dense<0.000000e+00> : vector<32x64xf32>
    %12 = tpu.matmul %0, %11, %cst_12 {dimension_numbers = #tpu.dot_dimension_numbers<[1], [0], [0], [1], [0, 0, 1, 1], [], []>} : vector<32x32xf32>, vector<32x64xf32>, vector<32x64xf32> -> vector<32x64xf32>
    %c0_13 = arith.constant 0 : index
    %c0_14 = arith.constant 0 : index
    %13 = vector.load %arg6[%c0_13, %c0_14] : memref<1x64xf32, #tpu.memory_space<vmem>>, vector<1x64xf32>
    %14 = vector.broadcast %13 : vector<1x64xf32> to vector<32x64xf32>
    %15 = arith.addf %12, %14 : vector<32x64xf32>
    %cst_15 = arith.constant 0.000000e+00 : f32
    %16 = vector.broadcast %cst_15 : f32 to vector<32x64xf32>
    %17 = arith.maximumf %15, %16 : vector<32x64xf32>
    %18 = arith.truncf %17 : vector<32x64xf32> to vector<32x64xbf16>
    %c0_16 = arith.constant 0 : index
    %c0_17 = arith.constant 0 : index
    %19 = vector.load %arg8[%c0_16, %c0_17] : memref<1x896xf32, #tpu.memory_space<vmem>>, vector<1x896xf32>
    %cst_18 = arith.constant 0.000000e+00 : f32
    %20 = vector.broadcast %cst_18 : f32 to vector<1x896xf32>
    %cst_19 = arith.constant 0.000000e+00 : f32
    %21 = vector.broadcast %cst_19 : f32 to vector<1x896xf32>
    %cst_20 = arith.constant 0.000000e+00 : f32
    %22 = vector.broadcast %cst_20 : f32 to vector<1x896xf32>
    %23 = vector.extract_strided_slice %18 {offsets = [0, 0], sizes = [1, 64], strides = [1, 1]} : vector<32x64xbf16> to vector<1x64xbf16>
    %c0_21 = arith.constant 0 : index
    %c0_22 = arith.constant 0 : index
    %c0_23 = arith.constant 0 : index
    %24 = vector.load %arg7[%c0_21, %c0_22, %c0_23] : memref<30x64x896xbf16, #tpu.memory_space<vmem>>, vector<1x64x896xbf16>
    %25 = vector.shape_cast %24 : vector<1x64x896xbf16> to vector<64x896xbf16>
    %cst_24 = arith.constant dense<0.000000e+00> : vector<1x896xf32>
    %26 = tpu.matmul %23, %25, %cst_24 {dimension_numbers = #tpu.dot_dimension_numbers<[1], [0], [0], [1], [0, 0, 1, 1], [], []>} : vector<1x64xbf16>, vector<64x896xbf16>, vector<1x896xf32> -> vector<1x896xf32>
    %27 = arith.addf %19, %26 : vector<1x896xf32>
    %28 = vector.extract_strided_slice %18 {offsets = [1, 0], sizes = [1, 64], strides = [1, 1]} : vector<32x64xbf16> to vector<1x64xbf16>
    %c1 = arith.constant 1 : index
    %c0_25 = arith.constant 0 : index
    %c0_26 = arith.constant 0 : index
    %29 = vector.load %arg7[%c1, %c0_25, %c0_26] : memref<30x64x896xbf16, #tpu.memory_space<vmem>>, vector<1x64x896xbf16>
    %30 = vector.shape_cast %29 : vector<1x64x896xbf16> to vector<64x896xbf16>
    %cst_27 = arith.constant dense<0.000000e+00> : vector<1x896xf32>
    %31 = tpu.matmul %28, %30, %cst_27 {dimension_numbers = #tpu.dot_dimension_numbers<[1], [0], [0], [1], [0, 0, 1, 1], [], []>} : vector<1x64xbf16>, vector<64x896xbf16>, vector<1x896xf32> -> vector<1x896xf32>
    %32 = arith.addf %20, %31 : vector<1x896xf32>
    %33 = vector.extract_strided_slice %18 {offsets = [2, 0], sizes = [1, 64], strides = [1, 1]} : vector<32x64xbf16> to vector<1x64xbf16>
    %c2 = arith.constant 2 : index
    %c0_28 = arith.constant 0 : index
    %c0_29 = arith.constant 0 : index
    %34 = vector.load %arg7[%c2, %c0_28, %c0_29] : memref<30x64x896xbf16, #tpu.memory_space<vmem>>, vector<1x64x896xbf16>
    %35 = vector.shape_cast %34 : vector<1x64x896xbf16> to vector<64x896xbf16>
    %cst_30 = arith.constant dense<0.000000e+00> : vector<1x896xf32>
    %36 = tpu.matmul %33, %35, %cst_30 {dimension_numbers = #tpu.dot_dimension_numbers<[1], [0], [0], [1], [0, 0, 1, 1], [], []>} : vector<1x64xbf16>, vector<64x896xbf16>, vector<1x896xf32> -> vector<1x896xf32>
    %37 = arith.addf %21, %36 : vector<1x896xf32>
    %38 = vector.extract_strided_slice %18 {offsets = [3, 0], sizes = [1, 64], strides = [1, 1]} : vector<32x64xbf16> to vector<1x64xbf16>
    %c3 = arith.constant 3 : index
    %c0_31 = arith.constant 0 : index
    %c0_32 = arith.constant 0 : index
    %39 = vector.load %arg7[%c3, %c0_31, %c0_32] : memref<30x64x896xbf16, #tpu.memory_space<vmem>>, vector<1x64x896xbf16>
    %40 = vector.shape_cast %39 : vector<1x64x896xbf16> to vector<64x896xbf16>
    %cst_33 = arith.constant dense<0.000000e+00> : vector<1x896xf32>
    %41 = tpu.matmul %38, %40, %cst_33 {dimension_numbers = #tpu.dot_dimension_numbers<[1], [0], [0], [1], [0, 0, 1, 1], [], []>} : vector<1x64xbf16>, vector<64x896xbf16>, vector<1x896xf32> -> vector<1x896xf32>
    %42 = arith.addf %22, %41 : vector<1x896xf32>
    %43 = vector.extract_strided_slice %18 {offsets = [4, 0], sizes = [1, 64], strides = [1, 1]} : vector<32x64xbf16> to vector<1x64xbf16>
    %c4 = arith.constant 4 : index
    %c0_34 = arith.constant 0 : index
    %c0_35 = arith.constant 0 : index
    %44 = vector.load %arg7[%c4, %c0_34, %c0_35] : memref<30x64x896xbf16, #tpu.memory_space<vmem>>, vector<1x64x896xbf16>
    %45 = vector.shape_cast %44 : vector<1x64x896xbf16> to vector<64x896xbf16>
    %cst_36 = arith.constant dense<0.000000e+00> : vector<1x896xf32>
    %46 = tpu.matmul %43, %45, %cst_36 {dimension_numbers = #tpu.dot_dimension_numbers<[1], [0], [0], [1], [0, 0, 1, 1], [], []>} : vector<1x64xbf16>, vector<64x896xbf16>, vector<1x896xf32> -> vector<1x896xf32>
    %47 = arith.addf %27, %46 : vector<1x896xf32>
    %48 = vector.extract_strided_slice %18 {offsets = [5, 0], sizes = [1, 64], strides = [1, 1]} : vector<32x64xbf16> to vector<1x64xbf16>
    %c5 = arith.constant 5 : index
    %c0_37 = arith.constant 0 : index
    %c0_38 = arith.constant 0 : index
    %49 = vector.load %arg7[%c5, %c0_37, %c0_38] : memref<30x64x896xbf16, #tpu.memory_space<vmem>>, vector<1x64x896xbf16>
    %50 = vector.shape_cast %49 : vector<1x64x896xbf16> to vector<64x896xbf16>
    %cst_39 = arith.constant dense<0.000000e+00> : vector<1x896xf32>
    %51 = tpu.matmul %48, %50, %cst_39 {dimension_numbers = #tpu.dot_dimension_numbers<[1], [0], [0], [1], [0, 0, 1, 1], [], []>} : vector<1x64xbf16>, vector<64x896xbf16>, vector<1x896xf32> -> vector<1x896xf32>
    %52 = arith.addf %32, %51 : vector<1x896xf32>
    %53 = vector.extract_strided_slice %18 {offsets = [6, 0], sizes = [1, 64], strides = [1, 1]} : vector<32x64xbf16> to vector<1x64xbf16>
    %c6 = arith.constant 6 : index
    %c0_40 = arith.constant 0 : index
    %c0_41 = arith.constant 0 : index
    %54 = vector.load %arg7[%c6, %c0_40, %c0_41] : memref<30x64x896xbf16, #tpu.memory_space<vmem>>, vector<1x64x896xbf16>
    %55 = vector.shape_cast %54 : vector<1x64x896xbf16> to vector<64x896xbf16>
    %cst_42 = arith.constant dense<0.000000e+00> : vector<1x896xf32>
    %56 = tpu.matmul %53, %55, %cst_42 {dimension_numbers = #tpu.dot_dimension_numbers<[1], [0], [0], [1], [0, 0, 1, 1], [], []>} : vector<1x64xbf16>, vector<64x896xbf16>, vector<1x896xf32> -> vector<1x896xf32>
    %57 = arith.addf %37, %56 : vector<1x896xf32>
    %58 = vector.extract_strided_slice %18 {offsets = [7, 0], sizes = [1, 64], strides = [1, 1]} : vector<32x64xbf16> to vector<1x64xbf16>
    %c7 = arith.constant 7 : index
    %c0_43 = arith.constant 0 : index
    %c0_44 = arith.constant 0 : index
    %59 = vector.load %arg7[%c7, %c0_43, %c0_44] : memref<30x64x896xbf16, #tpu.memory_space<vmem>>, vector<1x64x896xbf16>
    %60 = vector.shape_cast %59 : vector<1x64x896xbf16> to vector<64x896xbf16>
    %cst_45 = arith.constant dense<0.000000e+00> : vector<1x896xf32>
    %61 = tpu.matmul %58, %60, %cst_45 {dimension_numbers = #tpu.dot_dimension_numbers<[1], [0], [0], [1], [0, 0, 1, 1], [], []>} : vector<1x64xbf16>, vector<64x896xbf16>, vector<1x896xf32> -> vector<1x896xf32>
    %62 = arith.addf %42, %61 : vector<1x896xf32>
    %63 = vector.extract_strided_slice %18 {offsets = [8, 0], sizes = [1, 64], strides = [1, 1]} : vector<32x64xbf16> to vector<1x64xbf16>
    %c8 = arith.constant 8 : index
    %c0_46 = arith.constant 0 : index
    %c0_47 = arith.constant 0 : index
    %64 = vector.load %arg7[%c8, %c0_46, %c0_47] : memref<30x64x896xbf16, #tpu.memory_space<vmem>>, vector<1x64x896xbf16>
    %65 = vector.shape_cast %64 : vector<1x64x896xbf16> to vector<64x896xbf16>
    %cst_48 = arith.constant dense<0.000000e+00> : vector<1x896xf32>
    %66 = tpu.matmul %63, %65, %cst_48 {dimension_numbers = #tpu.dot_dimension_numbers<[1], [0], [0], [1], [0, 0, 1, 1], [], []>} : vector<1x64xbf16>, vector<64x896xbf16>, vector<1x896xf32> -> vector<1x896xf32>
    %67 = arith.addf %47, %66 : vector<1x896xf32>
    %68 = vector.extract_strided_slice %18 {offsets = [9, 0], sizes = [1, 64], strides = [1, 1]} : vector<32x64xbf16> to vector<1x64xbf16>
    %c9 = arith.constant 9 : index
    %c0_49 = arith.constant 0 : index
    %c0_50 = arith.constant 0 : index
    %69 = vector.load %arg7[%c9, %c0_49, %c0_50] : memref<30x64x896xbf16, #tpu.memory_space<vmem>>, vector<1x64x896xbf16>
    %70 = vector.shape_cast %69 : vector<1x64x896xbf16> to vector<64x896xbf16>
    %cst_51 = arith.constant dense<0.000000e+00> : vector<1x896xf32>
    %71 = tpu.matmul %68, %70, %cst_51 {dimension_numbers = #tpu.dot_dimension_numbers<[1], [0], [0], [1], [0, 0, 1, 1], [], []>} : vector<1x64xbf16>, vector<64x896xbf16>, vector<1x896xf32> -> vector<1x896xf32>
    %72 = arith.addf %52, %71 : vector<1x896xf32>
    %73 = vector.extract_strided_slice %18 {offsets = [10, 0], sizes = [1, 64], strides = [1, 1]} : vector<32x64xbf16> to vector<1x64xbf16>
    %c10 = arith.constant 10 : index
    %c0_52 = arith.constant 0 : index
    %c0_53 = arith.constant 0 : index
    %74 = vector.load %arg7[%c10, %c0_52, %c0_53] : memref<30x64x896xbf16, #tpu.memory_space<vmem>>, vector<1x64x896xbf16>
    %75 = vector.shape_cast %74 : vector<1x64x896xbf16> to vector<64x896xbf16>
    %cst_54 = arith.constant dense<0.000000e+00> : vector<1x896xf32>
    %76 = tpu.matmul %73, %75, %cst_54 {dimension_numbers = #tpu.dot_dimension_numbers<[1], [0], [0], [1], [0, 0, 1, 1], [], []>} : vector<1x64xbf16>, vector<64x896xbf16>, vector<1x896xf32> -> vector<1x896xf32>
    %77 = arith.addf %57, %76 : vector<1x896xf32>
    %78 = vector.extract_strided_slice %18 {offsets = [11, 0], sizes = [1, 64], strides = [1, 1]} : vector<32x64xbf16> to vector<1x64xbf16>
    %c11 = arith.constant 11 : index
    %c0_55 = arith.constant 0 : index
    %c0_56 = arith.constant 0 : index
    %79 = vector.load %arg7[%c11, %c0_55, %c0_56] : memref<30x64x896xbf16, #tpu.memory_space<vmem>>, vector<1x64x896xbf16>
    %80 = vector.shape_cast %79 : vector<1x64x896xbf16> to vector<64x896xbf16>
    %cst_57 = arith.constant dense<0.000000e+00> : vector<1x896xf32>
    %81 = tpu.matmul %78, %80, %cst_57 {dimension_numbers = #tpu.dot_dimension_numbers<[1], [0], [0], [1], [0, 0, 1, 1], [], []>} : vector<1x64xbf16>, vector<64x896xbf16>, vector<1x896xf32> -> vector<1x896xf32>
    %82 = arith.addf %62, %81 : vector<1x896xf32>
    %83 = vector.extract_strided_slice %18 {offsets = [12, 0], sizes = [1, 64], strides = [1, 1]} : vector<32x64xbf16> to vector<1x64xbf16>
    %c12 = arith.constant 12 : index
    %c0_58 = arith.constant 0 : index
    %c0_59 = arith.constant 0 : index
    %84 = vector.load %arg7[%c12, %c0_58, %c0_59] : memref<30x64x896xbf16, #tpu.memory_space<vmem>>, vector<1x64x896xbf16>
    %85 = vector.shape_cast %84 : vector<1x64x896xbf16> to vector<64x896xbf16>
    %cst_60 = arith.constant dense<0.000000e+00> : vector<1x896xf32>
    %86 = tpu.matmul %83, %85, %cst_60 {dimension_numbers = #tpu.dot_dimension_numbers<[1], [0], [0], [1], [0, 0, 1, 1], [], []>} : vector<1x64xbf16>, vector<64x896xbf16>, vector<1x896xf32> -> vector<1x896xf32>
    %87 = arith.addf %67, %86 : vector<1x896xf32>
    %88 = vector.extract_strided_slice %18 {offsets = [13, 0], sizes = [1, 64], strides = [1, 1]} : vector<32x64xbf16> to vector<1x64xbf16>
    %c13 = arith.constant 13 : index
    %c0_61 = arith.constant 0 : index
    %c0_62 = arith.constant 0 : index
    %89 = vector.load %arg7[%c13, %c0_61, %c0_62] : memref<30x64x896xbf16, #tpu.memory_space<vmem>>, vector<1x64x896xbf16>
    %90 = vector.shape_cast %89 : vector<1x64x896xbf16> to vector<64x896xbf16>
    %cst_63 = arith.constant dense<0.000000e+00> : vector<1x896xf32>
    %91 = tpu.matmul %88, %90, %cst_63 {dimension_numbers = #tpu.dot_dimension_numbers<[1], [0], [0], [1], [0, 0, 1, 1], [], []>} : vector<1x64xbf16>, vector<64x896xbf16>, vector<1x896xf32> -> vector<1x896xf32>
    %92 = arith.addf %72, %91 : vector<1x896xf32>
    %93 = vector.extract_strided_slice %18 {offsets = [14, 0], sizes = [1, 64], strides = [1, 1]} : vector<32x64xbf16> to vector<1x64xbf16>
    %c14 = arith.constant 14 : index
    %c0_64 = arith.constant 0 : index
    %c0_65 = arith.constant 0 : index
    %94 = vector.load %arg7[%c14, %c0_64, %c0_65] : memref<30x64x896xbf16, #tpu.memory_space<vmem>>, vector<1x64x896xbf16>
    %95 = vector.shape_cast %94 : vector<1x64x896xbf16> to vector<64x896xbf16>
    %cst_66 = arith.constant dense<0.000000e+00> : vector<1x896xf32>
    %96 = tpu.matmul %93, %95, %cst_66 {dimension_numbers = #tpu.dot_dimension_numbers<[1], [0], [0], [1], [0, 0, 1, 1], [], []>} : vector<1x64xbf16>, vector<64x896xbf16>, vector<1x896xf32> -> vector<1x896xf32>
    %97 = arith.addf %77, %96 : vector<1x896xf32>
    %98 = vector.extract_strided_slice %18 {offsets = [15, 0], sizes = [1, 64], strides = [1, 1]} : vector<32x64xbf16> to vector<1x64xbf16>
    %c15 = arith.constant 15 : index
    %c0_67 = arith.constant 0 : index
    %c0_68 = arith.constant 0 : index
    %99 = vector.load %arg7[%c15, %c0_67, %c0_68] : memref<30x64x896xbf16, #tpu.memory_space<vmem>>, vector<1x64x896xbf16>
    %100 = vector.shape_cast %99 : vector<1x64x896xbf16> to vector<64x896xbf16>
    %cst_69 = arith.constant dense<0.000000e+00> : vector<1x896xf32>
    %101 = tpu.matmul %98, %100, %cst_69 {dimension_numbers = #tpu.dot_dimension_numbers<[1], [0], [0], [1], [0, 0, 1, 1], [], []>} : vector<1x64xbf16>, vector<64x896xbf16>, vector<1x896xf32> -> vector<1x896xf32>
    %102 = arith.addf %82, %101 : vector<1x896xf32>
    %103 = vector.extract_strided_slice %18 {offsets = [16, 0], sizes = [1, 64], strides = [1, 1]} : vector<32x64xbf16> to vector<1x64xbf16>
    %c16 = arith.constant 16 : index
    %c0_70 = arith.constant 0 : index
    %c0_71 = arith.constant 0 : index
    %104 = vector.load %arg7[%c16, %c0_70, %c0_71] : memref<30x64x896xbf16, #tpu.memory_space<vmem>>, vector<1x64x896xbf16>
    %105 = vector.shape_cast %104 : vector<1x64x896xbf16> to vector<64x896xbf16>
    %cst_72 = arith.constant dense<0.000000e+00> : vector<1x896xf32>
    %106 = tpu.matmul %103, %105, %cst_72 {dimension_numbers = #tpu.dot_dimension_numbers<[1], [0], [0], [1], [0, 0, 1, 1], [], []>} : vector<1x64xbf16>, vector<64x896xbf16>, vector<1x896xf32> -> vector<1x896xf32>
    %107 = arith.addf %87, %106 : vector<1x896xf32>
    %108 = vector.extract_strided_slice %18 {offsets = [17, 0], sizes = [1, 64], strides = [1, 1]} : vector<32x64xbf16> to vector<1x64xbf16>
    %c17 = arith.constant 17 : index
    %c0_73 = arith.constant 0 : index
    %c0_74 = arith.constant 0 : index
    %109 = vector.load %arg7[%c17, %c0_73, %c0_74] : memref<30x64x896xbf16, #tpu.memory_space<vmem>>, vector<1x64x896xbf16>
    %110 = vector.shape_cast %109 : vector<1x64x896xbf16> to vector<64x896xbf16>
    %cst_75 = arith.constant dense<0.000000e+00> : vector<1x896xf32>
    %111 = tpu.matmul %108, %110, %cst_75 {dimension_numbers = #tpu.dot_dimension_numbers<[1], [0], [0], [1], [0, 0, 1, 1], [], []>} : vector<1x64xbf16>, vector<64x896xbf16>, vector<1x896xf32> -> vector<1x896xf32>
    %112 = arith.addf %92, %111 : vector<1x896xf32>
    %113 = vector.extract_strided_slice %18 {offsets = [18, 0], sizes = [1, 64], strides = [1, 1]} : vector<32x64xbf16> to vector<1x64xbf16>
    %c18 = arith.constant 18 : index
    %c0_76 = arith.constant 0 : index
    %c0_77 = arith.constant 0 : index
    %114 = vector.load %arg7[%c18, %c0_76, %c0_77] : memref<30x64x896xbf16, #tpu.memory_space<vmem>>, vector<1x64x896xbf16>
    %115 = vector.shape_cast %114 : vector<1x64x896xbf16> to vector<64x896xbf16>
    %cst_78 = arith.constant dense<0.000000e+00> : vector<1x896xf32>
    %116 = tpu.matmul %113, %115, %cst_78 {dimension_numbers = #tpu.dot_dimension_numbers<[1], [0], [0], [1], [0, 0, 1, 1], [], []>} : vector<1x64xbf16>, vector<64x896xbf16>, vector<1x896xf32> -> vector<1x896xf32>
    %117 = arith.addf %97, %116 : vector<1x896xf32>
    %118 = vector.extract_strided_slice %18 {offsets = [19, 0], sizes = [1, 64], strides = [1, 1]} : vector<32x64xbf16> to vector<1x64xbf16>
    %c19 = arith.constant 19 : index
    %c0_79 = arith.constant 0 : index
    %c0_80 = arith.constant 0 : index
    %119 = vector.load %arg7[%c19, %c0_79, %c0_80] : memref<30x64x896xbf16, #tpu.memory_space<vmem>>, vector<1x64x896xbf16>
    %120 = vector.shape_cast %119 : vector<1x64x896xbf16> to vector<64x896xbf16>
    %cst_81 = arith.constant dense<0.000000e+00> : vector<1x896xf32>
    %121 = tpu.matmul %118, %120, %cst_81 {dimension_numbers = #tpu.dot_dimension_numbers<[1], [0], [0], [1], [0, 0, 1, 1], [], []>} : vector<1x64xbf16>, vector<64x896xbf16>, vector<1x896xf32> -> vector<1x896xf32>
    %122 = arith.addf %102, %121 : vector<1x896xf32>
    %123 = vector.extract_strided_slice %18 {offsets = [20, 0], sizes = [1, 64], strides = [1, 1]} : vector<32x64xbf16> to vector<1x64xbf16>
    %c20 = arith.constant 20 : index
    %c0_82 = arith.constant 0 : index
    %c0_83 = arith.constant 0 : index
    %124 = vector.load %arg7[%c20, %c0_82, %c0_83] : memref<30x64x896xbf16, #tpu.memory_space<vmem>>, vector<1x64x896xbf16>
    %125 = vector.shape_cast %124 : vector<1x64x896xbf16> to vector<64x896xbf16>
    %cst_84 = arith.constant dense<0.000000e+00> : vector<1x896xf32>
    %126 = tpu.matmul %123, %125, %cst_84 {dimension_numbers = #tpu.dot_dimension_numbers<[1], [0], [0], [1], [0, 0, 1, 1], [], []>} : vector<1x64xbf16>, vector<64x896xbf16>, vector<1x896xf32> -> vector<1x896xf32>
    %127 = arith.addf %107, %126 : vector<1x896xf32>
    %128 = vector.extract_strided_slice %18 {offsets = [21, 0], sizes = [1, 64], strides = [1, 1]} : vector<32x64xbf16> to vector<1x64xbf16>
    %c21 = arith.constant 21 : index
    %c0_85 = arith.constant 0 : index
    %c0_86 = arith.constant 0 : index
    %129 = vector.load %arg7[%c21, %c0_85, %c0_86] : memref<30x64x896xbf16, #tpu.memory_space<vmem>>, vector<1x64x896xbf16>
    %130 = vector.shape_cast %129 : vector<1x64x896xbf16> to vector<64x896xbf16>
    %cst_87 = arith.constant dense<0.000000e+00> : vector<1x896xf32>
    %131 = tpu.matmul %128, %130, %cst_87 {dimension_numbers = #tpu.dot_dimension_numbers<[1], [0], [0], [1], [0, 0, 1, 1], [], []>} : vector<1x64xbf16>, vector<64x896xbf16>, vector<1x896xf32> -> vector<1x896xf32>
    %132 = arith.addf %112, %131 : vector<1x896xf32>
    %133 = vector.extract_strided_slice %18 {offsets = [22, 0], sizes = [1, 64], strides = [1, 1]} : vector<32x64xbf16> to vector<1x64xbf16>
    %c22 = arith.constant 22 : index
    %c0_88 = arith.constant 0 : index
    %c0_89 = arith.constant 0 : index
    %134 = vector.load %arg7[%c22, %c0_88, %c0_89] : memref<30x64x896xbf16, #tpu.memory_space<vmem>>, vector<1x64x896xbf16>
    %135 = vector.shape_cast %134 : vector<1x64x896xbf16> to vector<64x896xbf16>
    %cst_90 = arith.constant dense<0.000000e+00> : vector<1x896xf32>
    %136 = tpu.matmul %133, %135, %cst_90 {dimension_numbers = #tpu.dot_dimension_numbers<[1], [0], [0], [1], [0, 0, 1, 1], [], []>} : vector<1x64xbf16>, vector<64x896xbf16>, vector<1x896xf32> -> vector<1x896xf32>
    %137 = arith.addf %117, %136 : vector<1x896xf32>
    %138 = vector.extract_strided_slice %18 {offsets = [23, 0], sizes = [1, 64], strides = [1, 1]} : vector<32x64xbf16> to vector<1x64xbf16>
    %c23 = arith.constant 23 : index
    %c0_91 = arith.constant 0 : index
    %c0_92 = arith.constant 0 : index
    %139 = vector.load %arg7[%c23, %c0_91, %c0_92] : memref<30x64x896xbf16, #tpu.memory_space<vmem>>, vector<1x64x896xbf16>
    %140 = vector.shape_cast %139 : vector<1x64x896xbf16> to vector<64x896xbf16>
    %cst_93 = arith.constant dense<0.000000e+00> : vector<1x896xf32>
    %141 = tpu.matmul %138, %140, %cst_93 {dimension_numbers = #tpu.dot_dimension_numbers<[1], [0], [0], [1], [0, 0, 1, 1], [], []>} : vector<1x64xbf16>, vector<64x896xbf16>, vector<1x896xf32> -> vector<1x896xf32>
    %142 = arith.addf %122, %141 : vector<1x896xf32>
    %143 = vector.extract_strided_slice %18 {offsets = [24, 0], sizes = [1, 64], strides = [1, 1]} : vector<32x64xbf16> to vector<1x64xbf16>
    %c24 = arith.constant 24 : index
    %c0_94 = arith.constant 0 : index
    %c0_95 = arith.constant 0 : index
    %144 = vector.load %arg7[%c24, %c0_94, %c0_95] : memref<30x64x896xbf16, #tpu.memory_space<vmem>>, vector<1x64x896xbf16>
    %145 = vector.shape_cast %144 : vector<1x64x896xbf16> to vector<64x896xbf16>
    %cst_96 = arith.constant dense<0.000000e+00> : vector<1x896xf32>
    %146 = tpu.matmul %143, %145, %cst_96 {dimension_numbers = #tpu.dot_dimension_numbers<[1], [0], [0], [1], [0, 0, 1, 1], [], []>} : vector<1x64xbf16>, vector<64x896xbf16>, vector<1x896xf32> -> vector<1x896xf32>
    %147 = arith.addf %127, %146 : vector<1x896xf32>
    %148 = vector.extract_strided_slice %18 {offsets = [25, 0], sizes = [1, 64], strides = [1, 1]} : vector<32x64xbf16> to vector<1x64xbf16>
    %c25 = arith.constant 25 : index
    %c0_97 = arith.constant 0 : index
    %c0_98 = arith.constant 0 : index
    %149 = vector.load %arg7[%c25, %c0_97, %c0_98] : memref<30x64x896xbf16, #tpu.memory_space<vmem>>, vector<1x64x896xbf16>
    %150 = vector.shape_cast %149 : vector<1x64x896xbf16> to vector<64x896xbf16>
    %cst_99 = arith.constant dense<0.000000e+00> : vector<1x896xf32>
    %151 = tpu.matmul %148, %150, %cst_99 {dimension_numbers = #tpu.dot_dimension_numbers<[1], [0], [0], [1], [0, 0, 1, 1], [], []>} : vector<1x64xbf16>, vector<64x896xbf16>, vector<1x896xf32> -> vector<1x896xf32>
    %152 = arith.addf %132, %151 : vector<1x896xf32>
    %153 = vector.extract_strided_slice %18 {offsets = [26, 0], sizes = [1, 64], strides = [1, 1]} : vector<32x64xbf16> to vector<1x64xbf16>
    %c26 = arith.constant 26 : index
    %c0_100 = arith.constant 0 : index
    %c0_101 = arith.constant 0 : index
    %154 = vector.load %arg7[%c26, %c0_100, %c0_101] : memref<30x64x896xbf16, #tpu.memory_space<vmem>>, vector<1x64x896xbf16>
    %155 = vector.shape_cast %154 : vector<1x64x896xbf16> to vector<64x896xbf16>
    %cst_102 = arith.constant dense<0.000000e+00> : vector<1x896xf32>
    %156 = tpu.matmul %153, %155, %cst_102 {dimension_numbers = #tpu.dot_dimension_numbers<[1], [0], [0], [1], [0, 0, 1, 1], [], []>} : vector<1x64xbf16>, vector<64x896xbf16>, vector<1x896xf32> -> vector<1x896xf32>
    %157 = arith.addf %137, %156 : vector<1x896xf32>
    %158 = vector.extract_strided_slice %18 {offsets = [27, 0], sizes = [1, 64], strides = [1, 1]} : vector<32x64xbf16> to vector<1x64xbf16>
    %c27 = arith.constant 27 : index
    %c0_103 = arith.constant 0 : index
    %c0_104 = arith.constant 0 : index
    %159 = vector.load %arg7[%c27, %c0_103, %c0_104] : memref<30x64x896xbf16, #tpu.memory_space<vmem>>, vector<1x64x896xbf16>
    %160 = vector.shape_cast %159 : vector<1x64x896xbf16> to vector<64x896xbf16>
    %cst_105 = arith.constant dense<0.000000e+00> : vector<1x896xf32>
    %161 = tpu.matmul %158, %160, %cst_105 {dimension_numbers = #tpu.dot_dimension_numbers<[1], [0], [0], [1], [0, 0, 1, 1], [], []>} : vector<1x64xbf16>, vector<64x896xbf16>, vector<1x896xf32> -> vector<1x896xf32>
    %162 = arith.addf %142, %161 : vector<1x896xf32>
    %163 = vector.extract_strided_slice %18 {offsets = [28, 0], sizes = [1, 64], strides = [1, 1]} : vector<32x64xbf16> to vector<1x64xbf16>
    %c28 = arith.constant 28 : index
    %c0_106 = arith.constant 0 : index
    %c0_107 = arith.constant 0 : index
    %164 = vector.load %arg7[%c28, %c0_106, %c0_107] : memref<30x64x896xbf16, #tpu.memory_space<vmem>>, vector<1x64x896xbf16>
    %165 = vector.shape_cast %164 : vector<1x64x896xbf16> to vector<64x896xbf16>
    %cst_108 = arith.constant dense<0.000000e+00> : vector<1x896xf32>
    %166 = tpu.matmul %163, %165, %cst_108 {dimension_numbers = #tpu.dot_dimension_numbers<[1], [0], [0], [1], [0, 0, 1, 1], [], []>} : vector<1x64xbf16>, vector<64x896xbf16>, vector<1x896xf32> -> vector<1x896xf32>
    %167 = arith.addf %147, %166 : vector<1x896xf32>
    %168 = vector.extract_strided_slice %18 {offsets = [29, 0], sizes = [1, 64], strides = [1, 1]} : vector<32x64xbf16> to vector<1x64xbf16>
    %c29 = arith.constant 29 : index
    %c0_109 = arith.constant 0 : index
    %c0_110 = arith.constant 0 : index
    %169 = vector.load %arg7[%c29, %c0_109, %c0_110] : memref<30x64x896xbf16, #tpu.memory_space<vmem>>, vector<1x64x896xbf16>
    %170 = vector.shape_cast %169 : vector<1x64x896xbf16> to vector<64x896xbf16>
    %cst_111 = arith.constant dense<0.000000e+00> : vector<1x896xf32>
    %171 = tpu.matmul %168, %170, %cst_111 {dimension_numbers = #tpu.dot_dimension_numbers<[1], [0], [0], [1], [0, 0, 1, 1], [], []>} : vector<1x64xbf16>, vector<64x896xbf16>, vector<1x896xf32> -> vector<1x896xf32>
    %172 = arith.addf %152, %171 : vector<1x896xf32>
    %173 = arith.addf %167, %172 : vector<1x896xf32>
    %174 = arith.addf %173, %157 : vector<1x896xf32>
    %175 = arith.addf %174, %162 : vector<1x896xf32>
    %c0_112 = arith.constant 0 : index
    %c0_113 = arith.constant 0 : index
    %176 = vector.load %arg9[%c0_112, %c0_113] : memref<1x896xf32, #tpu.memory_space<vmem>>, vector<1x896xf32>
    tpu.vector_store %arg9[%c0_112, %c0_113], %175 {strides = array<i32>} : memref<1x896xf32, #tpu.memory_space<vmem>>, vector<1x896xf32>,
    return
  }
  func.func @transform_0(%arg0: i32) -> (i32, i32) {
    %c0_i32 = arith.constant 0 : i32
    %c0_i32_0 = arith.constant 0 : i32
    %c0_i32_1 = arith.constant 0 : i32
    return %c0_i32, %c0_i32_0 : i32, i32
  }
  func.func @transform_1(%arg0: i32) -> (i32, i32) {
    %c0_i32 = arith.constant 0 : i32
    %c0_i32_0 = arith.constant 0 : i32
    %c0_i32_1 = arith.constant 0 : i32
    return %c0_i32, %c0_i32_0 : i32, i32
  }
  func.func @transform_2(%arg0: i32) -> (i32, i32) {
    %c0_i32 = arith.constant 0 : i32
    %c0_i32_0 = arith.constant 0 : i32
    %c0_i32_1 = arith.constant 0 : i32
    return %c0_i32, %c0_i32_0 : i32, i32
  }
  func.func @transform_3(%arg0: i32) -> (i32, i32) {
    %c0_i32 = arith.constant 0 : i32
    %c0_i32_0 = arith.constant 0 : i32
    %c0_i32_1 = arith.constant 0 : i32
    return %c0_i32, %c0_i32_0 : i32, i32
  }
  func.func @transform_4(%arg0: i32) -> (i32, i32) {
    %c0_i32 = arith.constant 0 : i32
    %c0_i32_0 = arith.constant 0 : i32
    %c0_i32_1 = arith.constant 0 : i32
    return %c0_i32, %c0_i32_0 : i32, i32
  }
  func.func @transform_5(%arg0: i32) -> (i32, i32) {
    %c0_i32 = arith.constant 0 : i32
    %c0_i32_0 = arith.constant 0 : i32
    %c0_i32_1 = arith.constant 0 : i32
    return %c0_i32, %c0_i32_0 : i32, i32
  }
  func.func @transform_6(%arg0: i32) -> (i32, i32, i32) {
    %c0_i32 = arith.constant 0 : i32
    %c0_i32_0 = arith.constant 0 : i32
    %c0_i32_1 = arith.constant 0 : i32
    return %c0_i32, %c0_i32_0, %arg0 : i32, i32, i32
  }
  func.func @transform_7(%arg0: i32) -> (i32, i32) {
    %c0_i32 = arith.constant 0 : i32
    %c0_i32_0 = arith.constant 0 : i32
    return %c0_i32, %arg0 : i32, i32
  }
  func.func @transform_8(%arg0: i32) -> (i32, i32) {
    %c0_i32 = arith.constant 0 : i32
    %c0_i32_0 = arith.constant 0 : i32
    return %c0_i32, %arg0 : i32, i32
  }
}

</mosaic_0001>

<llo_original>
// kernel: gnn_forward.1
$region0: #{gnn_forward.1}
  #allocation0 [shape = 'u32[]', space=smem, size = 0x4, offset = 0x4, fixed_abs, tag = 'smem constant byte address 0x4 - core index']
  #allocation1 [shape = 'u32[144,128]{1,0:T(1,128)}', space=vmem, size = 0x12000, scoped, tag = 'internal scratch']
  %s0 = inlined_call_operand.vmem [shape: f32[32,32], index: 0, kind: input, shape index: {}]
  %s1 = inlined_call_operand.vmem [shape: f32[32,16], index: 1, kind: input, shape index: {}]
  %s2 = inlined_call_operand.hbm [shape: f32[16,128], index: 2, kind: input, shape index: {}]
  %s3 = inlined_call_operand.hbm [shape: f32[1,128], index: 3, kind: input, shape index: {}]
  %s4 = inlined_call_operand.vmem [shape: f32[128,64], index: 4, kind: input, shape index: {}]
  %s5 = inlined_call_operand.hbm [shape: f32[1,64], index: 5, kind: input, shape index: {}]
  %s6 = inlined_call_operand.hbm [shape: bf16[30,64,1792], index: 6, kind: input, shape index: {}]
  %s7 = inlined_call_operand.hbm [shape: f32[1,1792], index: 7, kind: input, shape index: {}]
  %s8 = inlined_call_operand.hbm [shape: f32[1,1792], index: 8, kind: output, shape index: {}]
  %s9 = sld [smem:[#allocation0]]
  $region85: #{gnn_forward.1} parent=0
    _
  %s11 = ssub.s32 1, %s9
  %s12 = scalar_select 0, %s11, %s9
  $region1: #{gnn_forward.1} parent=0
    #allocation2 [shape = 'u8[8192]{0}', space=vmem, size = 0x2000, scoped, tag = 'input window, operand 2, single buffered']
    #allocation3 [shape = 's32[2]{0}', space=sflag, size = 0x8, scoped, tag = 'scoped memory for gnn_forward.1']
    #allocation4 [shape = 's32[2]{0}', space=sflag, size = 0x8, scoped, tag = 'scoped memory for gnn_forward.1']
    #allocation5 [shape = 'u8[512]{0}', space=vmem, size = 0x400, scoped, tag = 'input window, operand 3, single buffered']
    #allocation6 [shape = 's32[1]{0}', space=sflag, size = 0x4, scoped, tag = 'scoped memory for gnn_forward.1']
    #allocation7 [shape = 'u8[512]{0}', space=vmem, size = 0x400, scoped, tag = 'input window, operand 5, single buffered']
    #allocation8 [shape = 'u8[6881280]{0}', space=vmem, size = 0x690000, scoped, tag = 'input window, operand 6']
    #allocation9 [shape = 's32[2]{0}', space=sflag, size = 0x8, scoped, tag = 'scoped memory for gnn_forward.1']
    #allocation10 [shape = 'u8[7168]{0}', space=vmem, size = 0x1c00, scoped, tag = 'input window, operand 7']
    #allocation11 [shape = 'u8[7168]{0}', space=vmem, size = 0x1c00, scoped, tag = 'output window, operand 0']
    %13 = vsyncpa [#allocation3], 0
    %14 = vsyncpa [#allocation6], 0
    %15 = vsyncpa [#allocation9], 0
    %s16 = scalar_lea.sflag [#allocation9], 1
    %17 = vsyncpa %s16, 0
    %18 = vsyncpa [#allocation4], 0
    %s19 = scalar_lea.sflag [#allocation4], 1
    %20 = vsyncpa %s19, 0
    loop: start=0, step=1, limit=4
    $region2: #{gnn_forward.1} parent=1 // loop_pre_header
      _
    $region3: #{gnn_forward.1} parent=1 // loop_header
      %s22 = sphi 0, %s26
      %p23 = scmp.ge.s32.totalorder %s22, 4
      %s30 = sphi 0, %s30
      %s32 = sphi 0, %s30
      %s33 = sphi 0, %s32
      %s47 = sphi 0, %s33
      %s51 = sphi 0, %s51
      %s53 = sphi 0, %s51
      %s54 = sphi 0, %s53
      %s68 = sphi 0, %s54
      %s72 = sphi 0, %s72
      %s74 = sphi 0, %s72
      %s75 = sphi 0, %s74
      %s89 = sphi 0, %s75
      %s93 = sphi 0, %s93
      %s95 = sphi 0, %s93
      %s96 = sphi 0, %s95
      %s110 = sphi 0, %s96
      %s114 = sphi 0, %s114
      %s116 = sphi 0, %s114
      %s117 = sphi 0, %s116
      %s131 = sphi 0, %s117
      %s135 = sphi 0, %s135
      %s137 = sphi 0, %s135
      %s138 = sphi 0, %s137
      %s152 = sphi 0, %s138
      %s158 = sphi 0, %s160
      %s161 = sphi 0, %s158
      %s162 = sphi 0, %s161
      %s178 = sphi 0, %s162
      %s184 = sphi 0, %s186
      %s187 = sphi 0, %s184
      %s188 = sphi 0, %s187
      %s204 = sphi 0, %s188
      %s210 = sphi 0, %s212
      %s213 = sphi 0, %s210
      %s214 = sphi 0, %s213
      %s230 = sphi 0, %s214
    $region4: #{gnn_forward.1} parent=1 // loop_header_branch
      %25 = sbr.rel (%p23) target = $region8
    $region5: #{gnn_forward.1} parent=1 // loop_body
      %s27 = ssub.s32 %s22, 1
      %s28 = ssub.s32 %s22, 2
      %s29 = sadd.s32 %s22, 1
      %s31 = sadd.s32 %s30, 1
      %p34 = scmp.eq.s32.totalorder %s22, 1
      %p35 = scmp.ne.s32.totalorder %s30, %s32
      %p36 = scmp.eq.s32.totalorder %s22, 0
      %p37 = por %p35, %p36
      %p38 = scmp.ne.s32.totalorder %s30, %s32
      %p39 = scmp.eq.s32.totalorder %s27, 1
      %p40 = por %p38, %p39
      %p41 = scmp.ne.s32.totalorder %s32, %s33
      %p42 = scmp.eq.s32.totalorder %s27, 0
      %p43 = por %p41, %p42
      %p44 = scmp.ne.s32.totalorder %s32, %s33
      %p45 = scmp.eq.s32.totalorder %s28, 1
      %p46 = por %p44, %p45
      %p48 = scmp.ne.s32.totalorder %s33, %s47
      %p49 = scmp.eq.s32.totalorder %s28, 0
      %p50 = por %p48, %p49
      %s52 = sadd.s32 %s51, 1
      %p55 = scmp.eq.s32.totalorder %s22, 1
      %p56 = scmp.ne.s32.totalorder %s51, %s53
      %p57 = scmp.eq.s32.totalorder %s22, 0
      %p58 = por %p56, %p57
      %p59 = scmp.ne.s32.totalorder %s51, %s53
      %p60 = scmp.eq.s32.totalorder %s27, 1
      %p61 = por %p59, %p60
      %p62 = scmp.ne.s32.totalorder %s53, %s54
      %p63 = scmp.eq.s32.totalorder %s27, 0
      %p64 = por %p62, %p63
      %p65 = scmp.ne.s32.totalorder %s53, %s54
      %p66 = scmp.eq.s32.totalorder %s28, 1
      %p67 = por %p65, %p66
      %p69 = scmp.ne.s32.totalorder %s54, %s68
      %p70 = scmp.eq.s32.totalorder %s28, 0
      %p71 = por %p69, %p70
      %s73 = sadd.s32 %s72, 1
      %p76 = scmp.eq.s32.totalorder %s22, 1
      %p77 = scmp.ne.s32.totalorder %s72, %s74
      %p78 = scmp.eq.s32.totalorder %s22, 0
      %p79 = por %p77, %p78
      %p80 = scmp.ne.s32.totalorder %s72, %s74
      %p81 = scmp.eq.s32.totalorder %s27, 1
      %p82 = por %p80, %p81
      %p83 = scmp.ne.s32.totalorder %s74, %s75
      %p84 = scmp.eq.s32.totalorder %s27, 0
      %p85 = por %p83, %p84
      %p86 = scmp.ne.s32.totalorder %s74, %s75
      %p87 = scmp.eq.s32.totalorder %s28, 1
      %p88 = por %p86, %p87
      %p90 = scmp.ne.s32.totalorder %s75, %s89
      %p91 = scmp.eq.s32.totalorder %s28, 0
      %p92 = por %p90, %p91
      %s94 = sadd.s32 %s93, 1
      %p97 = scmp.eq.s32.totalorder %s22, 1
      %p98 = scmp.ne.s32.totalorder %s93, %s95
      %p99 = scmp.eq.s32.totalorder %s22, 0
      %p100 = por %p98, %p99
      %p101 = scmp.ne.s32.totalorder %s93, %s95
      %p102 = scmp.eq.s32.totalorder %s27, 1
      %p103 = por %p101, %p102
      %p104 = scmp.ne.s32.totalorder %s95, %s96
      %p105 = scmp.eq.s32.totalorder %s27, 0
      %p106 = por %p104, %p105
      %p107 = scmp.ne.s32.totalorder %s95, %s96
      %p108 = scmp.eq.s32.totalorder %s28, 1
      %p109 = por %p107, %p108
      %p111 = scmp.ne.s32.totalorder %s96, %s110
      %p112 = scmp.eq.s32.totalorder %s28, 0
      %p113 = por %p111, %p112
      %s115 = sadd.s32 %s114, 1
      %p118 = scmp.eq.s32.totalorder %s22, 1
      %p119 = scmp.ne.s32.totalorder %s114, %s116
      %p120 = scmp.eq.s32.totalorder %s22, 0
      %p121 = por %p119, %p120
      %p122 = scmp.ne.s32.totalorder %s114, %s116
      %p123 = scmp.eq.s32.totalorder %s27, 1
      %p124 = por %p122, %p123
      %p125 = scmp.ne.s32.totalorder %s116, %s117
      %p126 = scmp.eq.s32.totalorder %s27, 0
      %p127 = por %p125, %p126
      %p128 = scmp.ne.s32.totalorder %s116, %s117
      %p129 = scmp.eq.s32.totalorder %s28, 1
      %p130 = por %p128, %p129
      %p132 = scmp.ne.s32.totalorder %s117, %s131
      %p133 = scmp.eq.s32.totalorder %s28, 0
      %p134 = por %p132, %p133
      %s136 = sadd.s32 %s135, 1
      %p139 = scmp.eq.s32.totalorder %s22, 1
      %p140 = scmp.ne.s32.totalorder %s135, %s137
      %p141 = scmp.eq.s32.totalorder %s22, 0
      %p142 = por %p140, %p141
      %p143 = scmp.ne.s32.totalorder %s135, %s137
      %p144 = scmp.eq.s32.totalorder %s27, 1
      %p145 = por %p143, %p144
      %p146 = scmp.ne.s32.totalorder %s137, %s138
      %p147 = scmp.eq.s32.totalorder %s27, 0
      %p148 = por %p146, %p147
      %p149 = scmp.ne.s32.totalorder %s137, %s138
      %p150 = scmp.eq.s32.totalorder %s28, 1
      %p151 = por %p149, %p150
      %p153 = scmp.ne.s32.totalorder %s138, %s152
      %p154 = scmp.eq.s32.totalorder %s28, 0
      %p155 = por %p153, %p154
      %s156 = ssub.s32 %s22, %s29
      %p157 = scmp.eq.s32.totalorder %s156, 0
      %s159 = sadd.s32 %s158, 1
      %s160 = scalar_select %p157, %s158, %s159
      %p163 = pneg %p157
      %p164 = scmp.eq.s32.totalorder %s22, 1
      %p165 = por %p163, %p164
      %p166 = scmp.ne.s32.totalorder %s158, %s161
      %p167 = scmp.eq.s32.totalorder %s22, 0
      %p168 = por %p166, %p167
      %p169 = scmp.ne.s32.totalorder %s158, %s161
      %p170 = scmp.eq.s32.totalorder %s27, 1
      %p171 = por %p169, %p170
      %p172 = scmp.ne.s32.totalorder %s161, %s162
      %p173 = scmp.eq.s32.totalorder %s27, 0
      %p174 = por %p172, %p173
      %p175 = scmp.ne.s32.totalorder %s161, %s162
      %p176 = scmp.eq.s32.totalorder %s28, 1
      %p177 = por %p175, %p176
      %p179 = scmp.ne.s32.totalorder %s162, %s178
      %p180 = scmp.eq.s32.totalorder %s28, 0
      %p181 = por %p179, %p180
      %s182 = ssub.s32 %s22, %s29
      %p183 = scmp.eq.s32.totalorder %s182, 0
      %s185 = sadd.s32 %s184, 1
      %s186 = scalar_select %p183, %s184, %s185
      %p189 = pneg %p183
      %p190 = scmp.eq.s32.totalorder %s22, 1
      %p191 = por %p189, %p190
      %p192 = scmp.ne.s32.totalorder %s184, %s187
      %p193 = scmp.eq.s32.totalorder %s22, 0
      %p194 = por %p192, %p193
      %p195 = scmp.ne.s32.totalorder %s184, %s187
      %p196 = scmp.eq.s32.totalorder %s27, 1
      %p197 = por %p195, %p196
      %p198 = scmp.ne.s32.totalorder %s187, %s188
      %p199 = scmp.eq.s32.totalorder %s27, 0
      %p200 = por %p198, %p199
      %p201 = scmp.ne.s32.totalorder %s187, %s188
      %p202 = scmp.eq.s32.totalorder %s28, 1
      %p203 = por %p201, %p202
      %p205 = scmp.ne.s32.totalorder %s188, %s204
      %p206 = scmp.eq.s32.totalorder %s28, 0
      %p207 = por %p205, %p206
      %s208 = ssub.s32 %s22, %s29
      %p209 = scmp.eq.s32.totalorder %s208, 0
      %s211 = sadd.s32 %s210, 1
      %s212 = scalar_select %p209, %s210, %s211
      %p215 = pneg %p209
      %p216 = scmp.eq.s32.totalorder %s22, 1
      %p217 = por %p215, %p216
      %p218 = scmp.ne.s32.totalorder %s210, %s213
      %p219 = scmp.eq.s32.totalorder %s22, 0
      %p220 = por %p218, %p219
      %p221 = scmp.ne.s32.totalorder %s210, %s213
      %p222 = scmp.eq.s32.totalorder %s27, 1
      %p223 = por %p221, %p222
      %p224 = scmp.ne.s32.totalorder %s213, %s214
      %p225 = scmp.eq.s32.totalorder %s27, 0
      %p226 = por %p224, %p225
      %p227 = scmp.ne.s32.totalorder %s213, %s214
      %p228 = scmp.eq.s32.totalorder %s28, 1
      %p229 = por %p227, %p228
      %p231 = scmp.ne.s32.totalorder %s214, %s230
      %p232 = scmp.eq.s32.totalorder %s28, 0
      %p233 = por %p231, %p232
      %p234 = scmp.le.s32.totalorder 1, %s22
      %p235 = scmp.lt.s32.totalorder %s22, 3
      %p236 = pnand %p234, %p235
      %p237 = pneg %p236
      // Predicated region
      $region9: #{gnn_forward.1} parent=5 // pred_check
        _
      $region10: #{gnn_forward.1} parent=5 // pred_check_branch
        %239 = sbr.rel (%p236) target = $region12
      $region11: #{gnn_forward.1} parent=5 // pred_region
        %s240 = ssub.s32 %s22, 1
        // Predicated region
        $region13: #{gnn_forward.1} parent=11 // pred_check
          %p241 = pneg %p43
        $region14: #{gnn_forward.1} parent=11 // pred_check_branch
          %243 = sbr.rel (%p241) target = $region16
        $region15: #{gnn_forward.1} parent=11 // pred_region
          _
        $region16: #{gnn_forward.1} parent=11 // pred_fallthru
          _
        // Predicated region
        $region17: #{gnn_forward.1} parent=11 // pred_check
          %p244 = pneg %p64
        $region18: #{gnn_forward.1} parent=11 // pred_check_branch
          %246 = sbr.rel (%p244) target = $region20
        $region19: #{gnn_forward.1} parent=11 // pred_region
          _
        $region20: #{gnn_forward.1} parent=11 // pred_fallthru
          _
        // Predicated region
        $region21: #{gnn_forward.1} parent=11 // pred_check
          %p247 = pneg %p85
        $region22: #{gnn_forward.1} parent=11 // pred_check_branch
          %249 = sbr.rel (%p247) target = $region24
        $region23: #{gnn_forward.1} parent=11 // pred_region
          %s251 = ssub.s32 256, 256
          %252 = vsyncadd [#allocation3], %s251
          %s253 = sshll.u32 [#allocation2], 4
          %s254 = int_to_ptr.vmem [resolvable:$true] %s253
          %259 = dma.hbm_to_vmem [thread:$0]  %s2, 256, %s254, [#allocation3], 128, 128, 8
        $region24: #{gnn_forward.1} parent=11 // pred_fallthru
          _
        // Predicated region
        $region25: #{gnn_forward.1} parent=11 // pred_check
          %p260 = pneg %p106
        $region26: #{gnn_forward.1} parent=11 // pred_check_branch
          %262 = sbr.rel (%p260) target = $region28
        $region27: #{gnn_forward.1} parent=11 // pred_region
          %s264 = ssub.s32 16, 16
          %265 = vsyncadd [#allocation6], %s264
          %s267 = sshll.u32 [#allocation5], 4
          %s268 = int_to_ptr.vmem [resolvable:$true] %s267
          %270 = dma.hbm_to_vmem [thread:$0]  %s3, 16, %s268, [#allocation6]
        $region28: #{gnn_forward.1} parent=11 // pred_fallthru
          _
        // Predicated region
        $region29: #{gnn_forward.1} parent=11 // pred_check
          %p271 = pneg %p127
        $region30: #{gnn_forward.1} parent=11 // pred_check_branch
          %273 = sbr.rel (%p271) target = $region32
        $region31: #{gnn_forward.1} parent=11 // pred_region
          _
        $region32: #{gnn_forward.1} parent=11 // pred_fallthru
          _
        // Predicated region
        $region33: #{gnn_forward.1} parent=11 // pred_check
          %p274 = pneg %p148
        $region34: #{gnn_forward.1} parent=11 // pred_check_branch
          %276 = sbr.rel (%p274) target = $region36
        $region35: #{gnn_forward.1} parent=11 // pred_region
          %s278 = ssub.s32 16, 16
          %279 = vsyncadd [#allocation6], %s278
          %s281 = sshll.u32 [#allocation7], 4
          %s282 = int_to_ptr.vmem [resolvable:$true] %s281
          %284 = dma.hbm_to_vmem [thread:$0]  %s5, 16, %s282, [#allocation6]
        $region36: #{gnn_forward.1} parent=11 // pred_fallthru
          _
      $region12: #{gnn_forward.1} parent=5 // pred_fallthru
        _
      %p285 = scmp.lt.s32.totalorder %s22, 2
      // Predicated region
      $region37: #{gnn_forward.1} parent=5 // pred_check
        %p286 = pneg %p285
      $region38: #{gnn_forward.1} parent=5 // pred_check_branch
        %288 = sbr.rel (%p286) target = $region40
      $region39: #{gnn_forward.1} parent=5 // pred_region
        // Predicated region
        $region41: #{gnn_forward.1} parent=39 // pred_check
          %p289 = pneg %p168
        $region42: #{gnn_forward.1} parent=39 // pred_check_branch
          %291 = sbr.rel (%p289) target = $region44
        $region43: #{gnn_forward.1} parent=39 // pred_region
          %s292 = sand.u32 %s22, 1
          %s293 = scalar_lea.sflag [#allocation9], %s292
          %s294 = sand.u32 %s158, 1
          %s295 = smul.addr %s294, 6720
          %s296 = scalar_lea.vmem [#allocation8], %s295
          %s297 = smul.u32 7, %s22
          %s299 = ssub.s32 107520, 107520
          %300 = vsyncadd %s293, %s299
          %s301 = smul.addr %s297, 64
          %s302 = scalar_lea.hbm %s6, %s301
          %s303 = sshll.u32 %s296, 4
          %s304 = int_to_ptr.vmem [resolvable:$true] %s303
          %309 = dma.hbm_to_vmem [thread:$0]  %s302, 107520, %s304, %s293, 896, 448, 28
        $region44: #{gnn_forward.1} parent=39 // pred_fallthru
          _
        // Predicated region
        $region45: #{gnn_forward.1} parent=39 // pred_check
          %p310 = pneg %p194
        $region46: #{gnn_forward.1} parent=39 // pred_check_branch
          %312 = sbr.rel (%p310) target = $region48
        $region47: #{gnn_forward.1} parent=39 // pred_region
          %s313 = sand.u32 %s22, 1
          %s314 = scalar_lea.sflag [#allocation9], %s313
          %s315 = sand.u32 %s184, 1
          %s316 = smul.addr %s315, 7
          %s317 = scalar_lea.vmem [#allocation10], %s316
          %s318 = smul.u32 7, %s22
          %s320 = ssub.s32 112, 112
          %321 = vsyncadd %s314, %s320
          %s322 = smul.addr %s318, 16
          %s323 = scalar_lea.hbm %s7, %s322
          %s325 = sshll.u32 %s317, 4
          %s326 = int_to_ptr.vmem [resolvable:$true] %s325
          %328 = dma.hbm_to_vmem [thread:$0]  %s323, 112, %s326, %s314
        $region48: #{gnn_forward.1} parent=39 // pred_fallthru
          _
      $region40: #{gnn_forward.1} parent=5 // pred_fallthru
        _
      %p329 = scmp.le.s32.totalorder 1, %s22
      %p330 = scmp.lt.s32.totalorder %s22, 3
      %p331 = pnand %p329, %p330
      %p332 = pneg %p331
      // Predicated region
      $region49: #{gnn_forward.1} parent=5 // pred_check
        _
      $region50: #{gnn_forward.1} parent=5 // pred_check_branch
        %334 = sbr.rel (%p331) target = $region52
      $region51: #{gnn_forward.1} parent=5 // pred_region
        %s335 = ssub.s32 %s22, 1
        // Predicated region
        $region53: #{gnn_forward.1} parent=51 // pred_check
          %p336 = pneg %p85
        $region54: #{gnn_forward.1} parent=51 // pred_check_branch
          %338 = sbr.rel (%p336) target = $region56
        $region55: #{gnn_forward.1} parent=51 // pred_region
          %339 = dma.done [#allocation3], 256
        $region56: #{gnn_forward.1} parent=51 // pred_fallthru
          _
        // Predicated region
        $region57: #{gnn_forward.1} parent=51 // pred_check
          %p340 = pneg %p106
        $region58: #{gnn_forward.1} parent=51 // pred_check_branch
          %342 = sbr.rel (%p340) target = $region60
        $region59: #{gnn_forward.1} parent=51 // pred_region
          %343 = dma.done [#allocation6], 16
        $region60: #{gnn_forward.1} parent=51 // pred_fallthru
          _
        // Predicated region
        $region61: #{gnn_forward.1} parent=51 // pred_check
          %p344 = pneg %p148
        $region62: #{gnn_forward.1} parent=51 // pred_check_branch
          %346 = sbr.rel (%p344) target = $region64
        $region63: #{gnn_forward.1} parent=51 // pred_region
          %347 = dma.done [#allocation6], 16
        $region64: #{gnn_forward.1} parent=51 // pred_fallthru
          _
        %s348 = sand.u32 %s27, 1
        %s349 = scalar_lea.sflag [#allocation9], %s348
        %s350 = sand.u32 %s161, 1
        %s351 = smul.addr %s350, 6720
        %s352 = scalar_lea.vmem [#allocation8], %s351
        // Predicated region
        $region65: #{gnn_forward.1} parent=51 // pred_check
          %p353 = pneg %p174
        $region66: #{gnn_forward.1} parent=51 // pred_check_branch
          %355 = sbr.rel (%p353) target = $region68
        $region67: #{gnn_forward.1} parent=51 // pred_region
          %356 = dma.done %s349, 107520
        $region68: #{gnn_forward.1} parent=51 // pred_fallthru
          _
        %s357 = sand.u32 %s27, 1
        %s358 = scalar_lea.sflag [#allocation9], %s357
        %s359 = sand.u32 %s187, 1
        %s360 = smul.addr %s359, 7
        %s361 = scalar_lea.vmem [#allocation10], %s360
        // Predicated region
        $region69: #{gnn_forward.1} parent=51 // pred_check
          %p362 = pneg %p200
        $region70: #{gnn_forward.1} parent=51 // pred_check_branch
          %364 = sbr.rel (%p362) target = $region72
        $region71: #{gnn_forward.1} parent=51 // pred_region
          %365 = dma.done %s358, 112
        $region72: #{gnn_forward.1} parent=51 // pred_fallthru
          _
        %p366 = pneg %p43
        %p367 = pneg %p40
        %p368 = pneg %p64
        %p369 = pneg %p61
        %p370 = pneg %p85
        %p371 = pneg %p82
        %p372 = pneg %p106
        %p373 = pneg %p103
        %p374 = pneg %p127
        %p375 = pneg %p124
        %p376 = pneg %p148
        %p377 = pneg %p145
        %s378 = sand.u32 %s27, 1
        %s379 = scalar_lea.sflag [#allocation9], %s378
        %s380 = sand.u32 %s161, 1
        %s381 = smul.addr %s380, 6720
        %s382 = scalar_lea.vmem [#allocation8], %s381
        %p383 = pneg %p174
        %p384 = pneg %p171
        %s385 = sand.u32 %s27, 1
        %s386 = scalar_lea.sflag [#allocation9], %s385
        %s387 = sand.u32 %s187, 1
        %s388 = smul.addr %s387, 7
        %s389 = scalar_lea.vmem [#allocation10], %s388
        %p390 = pneg %p200
        %p391 = pneg %p197
        %p392 = pneg %p226
        %p393 = pneg %p223
        %s394 = sand.u32 %s213, 1
        %s395 = scalar_lea.sflag [#allocation4], %s394
        %s396 = sand.u32 %s213, 1
        %s397 = smul.addr %s396, 7
        %s398 = scalar_lea.vmem [#allocation11], %s397
        %s399 = smul.u32 7, %s27
        %s400 = smul.u32 7, %s27
        %s401 = smul.u32 7, %s27
        %v403 = vld [vmem:[%s0] sm:$0xff]
        %v404 = vld [vmem:[%s0 + $0x8] sm:$0xff]
        %v405 = vld [vmem:[%s0 + $0x10] sm:$0xff]
        %v406 = vld [vmem:[%s0 + $0x18] sm:$0xff]
        %v407 = vld [vmem:[%s1] sm:$0xff]
        %v408 = vld [vmem:[%s1 + $0x8] sm:$0xff]
        %v409 = vld [vmem:[%s1 + $0x10] sm:$0xff]
        %v410 = vld [vmem:[%s1 + $0x18] sm:$0xff]
        %v411 = vld [vmem:[#allocation2] sm:$0xff]
        %v412 = vld [vmem:[#allocation2 + $0x8] sm:$0xff]
        %vm413 = vcmask 130048
        %v415 = vsel %vm413, %v407, 0
        %v418 = vsel %vm413, %v408, 0
        %v421 = vsel %vm413, %v409, 0
        %v424 = vsel %vm413, %v410, 0
        %426 = vmatprep.subr.mxu0 0.0
        %427 = vmatpush1.msra.mxu0 %v411
        %428 = vmatprep.subr.mxu0 0.0
        %429 = vmatpush1.msra.mxu0 %v412
        %430 = vmatprep.subr.mxu0 0.0
        %431 = vmatpush1.msra.mxu0 0.0
        %432 = vmatprep.subr.mxu0 0.0
        %433 = vmatpush1.msra.mxu0 0.0
        %434 = vmatprep.subr.mxu0 0.0
        %435 = vmatpush1.msra.mxu0 0.0
        %436 = vmatprep.subr.mxu0 0.0
        %437 = vmatpush1.msra.mxu0 0.0
        %438 = vmatprep.subr.mxu0 0.0
        %439 = vmatpush1.msra.mxu0 0.0
        %440 = vmatprep.subr.mxu0 0.0
        %441 = vmatpush1.msra.mxu0 0.0
        %442 = vmatprep.subr.mxu0 0.0
        %443 = vmatpush1.msra.mxu0 0.0
        %444 = vmatprep.subr.mxu0 0.0
        %445 = vmatpush1.msra.mxu0 0.0
        %446 = vmatprep.subr.mxu0 0.0
        %447 = vmatpush1.msra.mxu0 0.0
        %448 = vmatprep.subr.mxu0 0.0
        %449 = vmatpush1.msra.mxu0 0.0
        %450 = vmatprep.subr.mxu0 0.0
        %451 = vmatpush1.msra.mxu0 0.0
        %452 = vmatprep.subr.mxu0 0.0
        %453 = vmatpush1.msra.mxu0 0.0
        %454 = vmatprep.subr.mxu0 0.0
        %455 = vmatpush1.msra.mxu0 0.0
        %456 = vmatprep.subr.mxu0 0.0
        %457 = vmatpush1.msra.mxu0 0.0
        %458 = vmatprep.subr.mxu0 0.0
        %459 = vmatpush1.msra.mxu0 0.0
        %460 = vmatprep.subr.mxu0 0.0
        %461 = vmatpush1.msra.mxu0 0.0
        %462 = vmatprep.subr.mxu0 0.0
        %463 = vmatpush1.msra.mxu0 0.0
        %464 = vmatprep.subr.mxu0 0.0
        %465 = vmatpush1.msra.mxu0 0.0
        %466 = vmatprep.subr.mxu0 0.0
        %467 = vmatpush1.msra.mxu0 0.0
        %468 = vmatprep.subr.mxu0 0.0
        %469 = vmatpush1.msra.mxu0 0.0
        %470 = vmatprep.subr.mxu0 0.0
        %471 = vmatpush1.msra.mxu0 0.0
        %472 = vmatprep.subr.mxu0 0.0
        %473 = vmatpush1.msra.mxu0 0.0
        %474 = vmatprep.subr.mxu0 0.0
        %475 = vmatpush1.msra.mxu0 0.0
        %476 = vmatprep.subr.mxu0 0.0
        %477 = vmatpush1.msra.mxu0 0.0
        %478 = vmatprep.subr.mxu0 0.0
        %479 = vmatpush1.msra.mxu0 0.0
        %480 = vmatprep.subr.mxu0 0.0
        %481 = vmatpush1.msra.mxu0 0.0
        %482 = vmatprep.subr.mxu0 0.0
        %483 = vmatpush1.msra.mxu0 0.0
        %484 = vmatprep.subr.mxu0 0.0
        %485 = vmatpush1.msra.mxu0 0.0
        %486 = vmatprep.subr.mxu0 0.0
        %487 = vmatpush1.msra.mxu0 0.0
        %488 = vmatprep.subr.mxu0 0.0
        %489 = vmatpush1.msra.mxu0 0.0
        %490 = vmatprep.mubr.f32.mxu0 0.0
        %491 = vmatmul.mubr.f32.gmra.mrb[0].mxu0 %v415
        %v492 = vpop.f32.mrb[0].mxu0
        %v493 = vadd.f32 0.0, %v492
        %v494 = vpop.f32.mrb[0].mxu0
        %495 = vmatprep.mubr.f32.mxu0 0.0
        %496 = vmatmul.mubr.f32.gmra.mrb[0].mxu0 %v418
        %v497 = vpop.f32.mrb[0].mxu0
        %v498 = vadd.f32 0.0, %v497
        %v499 = vpop.f32.mrb[0].mxu0
        %500 = vmatprep.mubr.f32.mxu0 0.0
        %501 = vmatmul.mubr.f32.gmra.mrb[0].mxu0 %v421
        %v502 = vpop.f32.mrb[0].mxu0
        %v503 = vadd.f32 0.0, %v502
        %v504 = vpop.f32.mrb[0].mxu0
        %505 = vmatprep.mubr.f32.mxu0 0.0
        %506 = vmatmul.mubr.f32.gmra.mrb[0].mxu0 %v424
        %v507 = vpop.f32.mrb[0].mxu0
        %v508 = vadd.f32 0.0, %v507
        %v509 = vpop.f32.mrb[0].mxu0
        %510 = vdwg.mxu0
        %v511 = vld [vmem:[#allocation5] sm:$0x1]
        %v513 = vlaneseq
        %v514 = vshrl.u32 %v513, 7
        %v515 = vsub.s32 0, %v514
        %v516 = vrot.slane %v511, %v515
        %vm518 = vcmask 261120
        %v520 = vsel %vm518, %v403, 0
        %v523 = vsel %vm518, %v404, 0
        %v526 = vsel %vm518, %v405, 0
        %v529 = vsel %vm518, %v406, 0
        %531 = vmatprep.subr.mxu0 0.0
        %532 = vmatpush1.msra.mxu0 %v493
        %533 = vmatprep.subr.mxu0 0.0
        %534 = vmatpush1.msra.mxu0 %v498
        %535 = vmatprep.subr.mxu0 0.0
        %536 = vmatpush1.msra.mxu0 %v503
        %537 = vmatprep.subr.mxu0 0.0
        %538 = vmatpush1.msra.mxu0 %v508
        %539 = vmatprep.subr.mxu0 0.0
        %540 = vmatpush1.msra.mxu0 0.0
        %541 = vmatprep.subr.mxu0 0.0
        %542 = vmatpush1.msra.mxu0 0.0
        %543 = vmatprep.subr.mxu0 0.0
        %544 = vmatpush1.msra.mxu0 0.0
        %545 = vmatprep.subr.mxu0 0.0
        %546 = vmatpush1.msra.mxu0 0.0
        %547 = vmatprep.subr.mxu0 0.0
        %548 = vmatpush1.msra.mxu0 0.0
        %549 = vmatprep.subr.mxu0 0.0
        %550 = vmatpush1.msra.mxu0 0.0
        %551 = vmatprep.subr.mxu0 0.0
        %552 = vmatpush1.msra.mxu0 0.0
        %553 = vmatprep.subr.mxu0 0.0
        %554 = vmatpush1.msra.mxu0 0.0
        %555 = vmatprep.subr.mxu0 0.0
        %556 = vmatpush1.msra.mxu0 0.0
        %557 = vmatprep.subr.mxu0 0.0
        %558 = vmatpush1.msra.mxu0 0.0
        %559 = vmatprep.subr.mxu0 0.0
        %560 = vmatpush1.msra.mxu0 0.0
        %561 = vmatprep.subr.mxu0 0.0
        %562 = vmatpush1.msra.mxu0 0.0
        %563 = vmatprep.subr.mxu0 0.0
        %564 = vmatpush1.msra.mxu0 0.0
        %565 = vmatprep.subr.mxu0 0.0
        %566 = vmatpush1.msra.mxu0 0.0
        %567 = vmatprep.subr.mxu0 0.0
        %568 = vmatpush1.msra.mxu0 0.0
        %569 = vmatprep.subr.mxu0 0.0
        %570 = vmatpush1.msra.mxu0 0.0
        %571 = vmatprep.subr.mxu0 0.0
        %572 = vmatpush1.msra.mxu0 0.0
        %573 = vmatprep.subr.mxu0 0.0
        %574 = vmatpush1.msra.mxu0 0.0
        %575 = vmatprep.subr.mxu0 0.0
        %576 = vmatpush1.msra.mxu0 0.0
        %577 = vmatprep.subr.mxu0 0.0
        %578 = vmatpush1.msra.mxu0 0.0
        %579 = vmatprep.subr.mxu0 0.0
        %580 = vmatpush1.msra.mxu0 0.0
        %581 = vmatprep.subr.mxu0 0.0
        %582 = vmatpush1.msra.mxu0 0.0
        %583 = vmatprep.subr.mxu0 0.0
        %584 = vmatpush1.msra.mxu0 0.0
        %585 = vmatprep.subr.mxu0 0.0
        %586 = vmatpush1.msra.mxu0 0.0
        %587 = vmatprep.subr.mxu0 0.0
        %588 = vmatpush1.msra.mxu0 0.0
        %589 = vmatprep.subr.mxu0 0.0
        %590 = vmatpush1.msra.mxu0 0.0
        %591 = vmatprep.subr.mxu0 0.0
        %592 = vmatpush1.msra.mxu0 0.0
        %593 = vmatprep.subr.mxu0 0.0
        %594 = vmatpush1.msra.mxu0 0.0
        %595 = vmatprep.mubr.f32.mxu0 0.0
        %596 = vmatmul.mubr.f32.gmra.mrb[0].mxu0 %v520
        %v597 = vpop.f32.mrb[0].mxu0
        %v598 = vadd.f32 %v516, %v597
        %v599 = vpop.f32.mrb[0].mxu0
        %600 = vmatprep.mubr.f32.mxu0 0.0
        %601 = vmatmul.mubr.f32.gmra.mrb[0].mxu0 %v523
        %v602 = vpop.f32.mrb[0].mxu0
        %v603 = vadd.f32 %v516, %v602
        %v604 = vpop.f32.mrb[0].mxu0
        %605 = vmatprep.mubr.f32.mxu0 0.0
        %606 = vmatmul.mubr.f32.gmra.mrb[0].mxu0 %v526
        %v607 = vpop.f32.mrb[0].mxu0
        %v608 = vadd.f32 %v516, %v607
        %v609 = vpop.f32.mrb[0].mxu0
        %610 = vmatprep.mubr.f32.mxu0 0.0
        %611 = vmatmul.mubr.f32.gmra.mrb[0].mxu0 %v529
        %v612 = vpop.f32.mrb[0].mxu0
        %v613 = vadd.f32 %v516, %v612
        %v614 = vpop.f32.mrb[0].mxu0
        %615 = vdwg.mxu0
        %v616 = vmax.f32 %v598, 0.0
        %v617 = vmax.f32 %v603, 0.0
        %v618 = vmax.f32 %v608, 0.0
        %v619 = vmax.f32 %v613, 0.0
        %v620 = vld [vmem:[%s4] sm:$0xff]
        %v621 = vld [vmem:[%s4 + $0x8] sm:$0xff]
        %v622 = vld [vmem:[%s4 + $0x10] sm:$0xff]
        %v623 = vld [vmem:[%s4 + $0x18] sm:$0xff]
        %v624 = vld [vmem:[%s4 + $0x20] sm:$0xff]
        %v625 = vld [vmem:[%s4 + $0x28] sm:$0xff]
        %v626 = vld [vmem:[%s4 + $0x30] sm:$0xff]
        %v627 = vld [vmem:[%s4 + $0x38] sm:$0xff]
        %v628 = vld [vmem:[%s4 + $0x40] sm:$0xff]
        %v629 = vld [vmem:[%s4 + $0x48] sm:$0xff]
        %v630 = vld [vmem:[%s4 + $0x50] sm:$0xff]
        %v631 = vld [vmem:[%s4 + $0x58] sm:$0xff]
        %v632 = vld [vmem:[%s4 + $0x60] sm:$0xff]
        %v633 = vld [vmem:[%s4 + $0x68] sm:$0xff]
        %v634 = vld [vmem:[%s4 + $0x70] sm:$0xff]
        %v635 = vld [vmem:[%s4 + $0x78] sm:$0xff]
        %636 = vmatprep.subr.mxu0 0.0
        %637 = vmatpush1.msra.mxu0 %v620
        %638 = vmatprep.subr.mxu0 0.0
        %639 = vmatpush1.msra.mxu0 %v621
        %640 = vmatprep.subr.mxu0 0.0
        %641 = vmatpush1.msra.mxu0 %v622
        %642 = vmatprep.subr.mxu0 0.0
        %643 = vmatpush1.msra.mxu0 %v623
        %644 = vmatprep.subr.mxu0 0.0
        %645 = vmatpush1.msra.mxu0 %v624
        %646 = vmatprep.subr.mxu0 0.0
        %647 = vmatpush1.msra.mxu0 %v625
        %648 = vmatprep.subr.mxu0 0.0
        %649 = vmatpush1.msra.mxu0 %v626
        %650 = vmatprep.subr.mxu0 0.0
        %651 = vmatpush1.msra.mxu0 %v627
        %652 = vmatprep.subr.mxu0 0.0
        %653 = vmatpush1.msra.mxu0 %v628
        %654 = vmatprep.subr.mxu0 0.0
        %655 = vmatpush1.msra.mxu0 %v629
        %656 = vmatprep.subr.mxu0 0.0
        %657 = vmatpush1.msra.mxu0 %v630
        %658 = vmatprep.subr.mxu0 0.0
        %659 = vmatpush1.msra.mxu0 %v631
        %660 = vmatprep.subr.mxu0 0.0
        %661 = vmatpush1.msra.mxu0 %v632
        %662 = vmatprep.subr.mxu0 0.0
        %663 = vmatpush1.msra.mxu0 %v633
        %664 = vmatprep.subr.mxu0 0.0
        %665 = vmatpush1.msra.mxu0 %v634
        %666 = vmatprep.subr.mxu0 0.0
        %667 = vmatpush1.msra.mxu0 %v635
        %668 = vmatprep.subr.mxu0 0.0
        %669 = vmatpush1.msra.mxu0 0.0
        %670 = vmatprep.subr.mxu0 0.0
        %671 = vmatpush1.msra.mxu0 0.0
        %672 = vmatprep.subr.mxu0 0.0
        %673 = vmatpush1.msra.mxu0 0.0
        %674 = vmatprep.subr.mxu0 0.0
        %675 = vmatpush1.msra.mxu0 0.0
        %676 = vmatprep.subr.mxu0 0.0
        %677 = vmatpush1.msra.mxu0 0.0
        %678 = vmatprep.subr.mxu0 0.0
        %679 = vmatpush1.msra.mxu0 0.0
        %680 = vmatprep.subr.mxu0 0.0
        %681 = vmatpush1.msra.mxu0 0.0
        %682 = vmatprep.subr.mxu0 0.0
        %683 = vmatpush1.msra.mxu0 0.0
        %684 = vmatprep.subr.mxu0 0.0
        %685 = vmatpush1.msra.mxu0 0.0
        %686 = vmatprep.subr.mxu0 0.0
        %687 = vmatpush1.msra.mxu0 0.0
        %688 = vmatprep.subr.mxu0 0.0
        %689 = vmatpush1.msra.mxu0 0.0
        %690 = vmatprep.subr.mxu0 0.0
        %691 = vmatpush1.msra.mxu0 0.0
        %692 = vmatprep.subr.mxu0 0.0
        %693 = vmatpush1.msra.mxu0 0.0
        %694 = vmatprep.subr.mxu0 0.0
        %695 = vmatpush1.msra.mxu0 0.0
        %696 = vmatprep.subr.mxu0 0.0
        %697 = vmatpush1.msra.mxu0 0.0
        %698 = vmatprep.subr.mxu0 0.0
        %699 = vmatpush1.msra.mxu0 0.0
        %700 = vmatprep.mubr.f32.mxu0 0.0
        %701 = vmatmul.mubr.f32.gmra.mrb[0].mxu0 %v616
        %v702 = vpop.f32.mrb[0].mxu0
        %v703 = vadd.f32 0.0, %v702
        %v704 = vpop.f32.mrb[0].mxu0
        %705 = vmatprep.mubr.f32.mxu0 0.0
        %706 = vmatmul.mubr.f32.gmra.mrb[0].mxu0 %v617
        %v707 = vpop.f32.mrb[0].mxu0
        %v708 = vadd.f32 0.0, %v707
        %v709 = vpop.f32.mrb[0].mxu0
        %710 = vmatprep.mubr.f32.mxu0 0.0
        %711 = vmatmul.mubr.f32.gmra.mrb[0].mxu0 %v618
        %v712 = vpop.f32.mrb[0].mxu0
        %v713 = vadd.f32 0.0, %v712
        %v714 = vpop.f32.mrb[0].mxu0
        %715 = vmatprep.mubr.f32.mxu0 0.0
        %716 = vmatmul.mubr.f32.gmra.mrb[0].mxu0 %v619
        %v717 = vpop.f32.mrb[0].mxu0
        %v718 = vadd.f32 0.0, %v717
        %v719 = vpop.f32.mrb[0].mxu0
        %720 = vdwg.mxu0
        %v721 = vld [vmem:[#allocation7] sm:$0x1]
        %v723 = vlaneseq
        %v724 = vshrl.u32 %v723, 7
        %v725 = vsub.s32 0, %v724
        %v726 = vrot.slane %v721, %v725
        %728 = vmatprep.subr.mxu0 0.0
        %729 = vmatpush1.msra.mxu0 %v703
        %730 = vmatprep.subr.mxu0 0.0
        %731 = vmatpush1.msra.mxu0 %v708
        %732 = vmatprep.subr.mxu0 0.0
        %733 = vmatpush1.msra.mxu0 %v713
        %734 = vmatprep.subr.mxu0 0.0
        %735 = vmatpush1.msra.mxu0 %v718
        %736 = vmatprep.subr.mxu0 0.0
        %737 = vmatpush1.msra.mxu0 0.0
        %738 = vmatprep.subr.mxu0 0.0
        %739 = vmatpush1.msra.mxu0 0.0
        %740 = vmatprep.subr.mxu0 0.0
        %741 = vmatpush1.msra.mxu0 0.0
        %742 = vmatprep.subr.mxu0 0.0
        %743 = vmatpush1.msra.mxu0 0.0
        %744 = vmatprep.subr.mxu0 0.0
        %745 = vmatpush1.msra.mxu0 0.0
        %746 = vmatprep.subr.mxu0 0.0
        %747 = vmatpush1.msra.mxu0 0.0
        %748 = vmatprep.subr.mxu0 0.0
        %749 = vmatpush1.msra.mxu0 0.0
        %750 = vmatprep.subr.mxu0 0.0
        %751 = vmatpush1.msra.mxu0 0.0
        %752 = vmatprep.subr.mxu0 0.0
        %753 = vmatpush1.msra.mxu0 0.0
        %754 = vmatprep.subr.mxu0 0.0
        %755 = vmatpush1.msra.mxu0 0.0
        %756 = vmatprep.subr.mxu0 0.0
        %757 = vmatpush1.msra.mxu0 0.0
        %758 = vmatprep.subr.mxu0 0.0
        %759 = vmatpush1.msra.mxu0 0.0
        %760 = vmatprep.subr.mxu0 0.0
        %761 = vmatpush1.msra.mxu0 0.0
        %762 = vmatprep.subr.mxu0 0.0
        %763 = vmatpush1.msra.mxu0 0.0
        %764 = vmatprep.subr.mxu0 0.0
        %765 = vmatpush1.msra.mxu0 0.0
        %766 = vmatprep.subr.mxu0 0.0
        %767 = vmatpush1.msra.mxu0 0.0
        %768 = vmatprep.subr.mxu0 0.0
        %769 = vmatpush1.msra.mxu0 0.0
        %770 = vmatprep.subr.mxu0 0.0
        %771 = vmatpush1.msra.mxu0 0.0
        %772 = vmatprep.subr.mxu0 0.0
        %773 = vmatpush1.msra.mxu0 0.0
        %774 = vmatprep.subr.mxu0 0.0
        %775 = vmatpush1.msra.mxu0 0.0
        %776 = vmatprep.subr.mxu0 0.0
        %777 = vmatpush1.msra.mxu0 0.0
        %778 = vmatprep.subr.mxu0 0.0
        %779 = vmatpush1.msra.mxu0 0.0
        %780 = vmatprep.subr.mxu0 0.0
        %781 = vmatpush1.msra.mxu0 0.0
        %782 = vmatprep.subr.mxu0 0.0
        %783 = vmatpush1.msra.mxu0 0.0
        %784 = vmatprep.subr.mxu0 0.0
        %785 = vmatpush1.msra.mxu0 0.0
        %786 = vmatprep.subr.mxu0 0.0
        %787 = vmatpush1.msra.mxu0 0.0
        %788 = vmatprep.subr.mxu0 0.0
        %789 = vmatpush1.msra.mxu0 0.0
        %790 = vmatprep.subr.mxu0 0.0
        %791 = vmatpush1.msra.mxu0 0.0
        %792 = vmatprep.mubr.f32.mxu0 0.0
        %793 = vmatmul.mubr.f32.gmra.mrb[0].mxu0 %v520
        %v794 = vpop.f32.mrb[0].mxu0
        %v795 = vadd.f32 %v726, %v794
        %v796 = vpop.f32.mrb[0].mxu0
        %797 = vmatprep.mubr.f32.mxu0 0.0
        %798 = vmatmul.mubr.f32.gmra.mrb[0].mxu0 %v523
        %v799 = vpop.f32.mrb[0].mxu0
        %v800 = vadd.f32 %v726, %v799
        %v801 = vpop.f32.mrb[0].mxu0
        %802 = vmatprep.mubr.f32.mxu0 0.0
        %803 = vmatmul.mubr.f32.gmra.mrb[0].mxu0 %v526
        %v804 = vpop.f32.mrb[0].mxu0
        %v805 = vadd.f32 %v726, %v804
        %v806 = vpop.f32.mrb[0].mxu0
        %807 = vmatprep.mubr.f32.mxu0 0.0
        %808 = vmatmul.mubr.f32.gmra.mrb[0].mxu0 %v529
        %v809 = vpop.f32.mrb[0].mxu0
        %v810 = vadd.f32 %v726, %v809
        %v811 = vpop.f32.mrb[0].mxu0
        %812 = vdwg.mxu0
        %v813 = vmax.f32 %v795, 0.0
        %v814 = vmax.f32 %v800, 0.0
        %v815 = vmax.f32 %v805, 0.0
        %v816 = vmax.f32 %v810, 0.0
        %v817 = vpack.c.bf16 %v814, %v813
        %v818 = vpack.c.bf16 %v816, %v815
        %v819 = vld [vmem:[%s361] sm:$0xff]
        %v820 = vld [vmem:[%s352] sm:$0xff]
        %v821 = vld [vmem:[%s352 + $0x8] sm:$0xff]
        %v822 = vld [vmem:[%s352 + $0x10] sm:$0xff]
        %v823 = vld [vmem:[%s352 + $0x18] sm:$0xf]
        %v824 = vld [vmem:[%s352 + $0x1c] sm:$0xff]
        %v825 = vld [vmem:[%s352 + $0x24] sm:$0xff]
        %v826 = vld [vmem:[%s352 + $0x2c] sm:$0xff]
        %v827 = vld [vmem:[%s352 + $0x34] sm:$0xf]
        %v828 = vld [vmem:[%s352 + $0x38] sm:$0xff]
        %v829 = vld [vmem:[%s352 + $0x40] sm:$0xff]
        %v830 = vld [vmem:[%s352 + $0x48] sm:$0xff]
        %v831 = vld [vmem:[%s352 + $0x50] sm:$0xf]
        %v832 = vld [vmem:[%s352 + $0x54] sm:$0xff]
        %v833 = vld [vmem:[%s352 + $0x5c] sm:$0xff]
        %v834 = vld [vmem:[%s352 + $0x64] sm:$0xff]
        %v835 = vld [vmem:[%s352 + $0x6c] sm:$0xf]
        %v836 = vld [vmem:[%s352 + $0x70] sm:$0xff]
        %v837 = vld [vmem:[%s352 + $0x78] sm:$0xff]
        %v838 = vld [vmem:[%s352 + $0x80] sm:$0xff]
        %v839 = vld [vmem:[%s352 + $0x88] sm:$0xf]
        %v840 = vld [vmem:[%s352 + $0x8c] sm:$0xff]
        %v841 = vld [vmem:[%s352 + $0x94] sm:$0xff]
        %v842 = vld [vmem:[%s352 + $0x9c] sm:$0xff]
        %v843 = vld [vmem:[%s352 + $0xa4] sm:$0xf]
        %v844 = vld [vmem:[%s352 + $0xa8] sm:$0xff]
        %v845 = vld [vmem:[%s352 + $0xb0] sm:$0xff]
        %v846 = vld [vmem:[%s352 + $0xb8] sm:$0xff]
        %v847 = vld [vmem:[%s352 + $0xc0] sm:$0xf]
        %v848 = vld [vmem:[%s352 + $0xc4] sm:$0xff]
        %v849 = vld [vmem:[%s352 + $0xcc] sm:$0xff]
        %v850 = vld [vmem:[%s352 + $0xd4] sm:$0xff]
        %v851 = vld [vmem:[%s352 + $0xdc] sm:$0xf]
        %v884 = vunpack.c.l.b16 %v820
        %v885 = vunpack.c.h.b16 %v820
        %v886 = vunpack.c.l.b16 %v821
        %v887 = vunpack.c.h.b16 %v821
        %v888 = vunpack.c.l.b16 %v822
        %v889 = vunpack.c.h.b16 %v822
        %v890 = vunpack.c.l.b16 %v823
        %v891 = vunpack.c.l.b16 %v824
        %v892 = vunpack.c.h.b16 %v824
        %v893 = vunpack.c.l.b16 %v825
        %v894 = vunpack.c.h.b16 %v825
        %v895 = vunpack.c.l.b16 %v826
        %v896 = vunpack.c.h.b16 %v826
        %v897 = vunpack.c.l.b16 %v827
        %v898 = vunpack.c.l.b16 %v828
        %v899 = vunpack.c.h.b16 %v828
        %v900 = vunpack.c.l.b16 %v829
        %v901 = vunpack.c.h.b16 %v829
        %v902 = vunpack.c.l.b16 %v830
        %v903 = vunpack.c.h.b16 %v830
        %v904 = vunpack.c.l.b16 %v831
        %v905 = vunpack.c.l.b16 %v832
        %v906 = vunpack.c.h.b16 %v832
        %v907 = vunpack.c.l.b16 %v833
        %v908 = vunpack.c.h.b16 %v833
        %v909 = vunpack.c.l.b16 %v834
        %v910 = vunpack.c.h.b16 %v834
        %v911 = vunpack.c.l.b16 %v835
        %v912 = vunpack.c.l.b16 %v836
        %v913 = vunpack.c.h.b16 %v836
        %v914 = vunpack.c.l.b16 %v837
        %v915 = vunpack.c.h.b16 %v837
        %v916 = vunpack.c.l.b16 %v838
        %v917 = vunpack.c.h.b16 %v838
        %v918 = vunpack.c.l.b16 %v839
        %v919 = vunpack.c.l.b16 %v840
        %v920 = vunpack.c.h.b16 %v840
        %v921 = vunpack.c.l.b16 %v841
        %v922 = vunpack.c.h.b16 %v841
        %v923 = vunpack.c.l.b16 %v842
        %v924 = vunpack.c.h.b16 %v842
        %v925 = vunpack.c.l.b16 %v843
        %v926 = vunpack.c.l.b16 %v844
        %v927 = vunpack.c.h.b16 %v844
        %v928 = vunpack.c.l.b16 %v845
        %v929 = vunpack.c.h.b16 %v845
        %v930 = vunpack.c.l.b16 %v846
        %v931 = vunpack.c.h.b16 %v846
        %v932 = vunpack.c.l.b16 %v847
        %v933 = vunpack.c.l.b16 %v848
        %v934 = vunpack.c.h.b16 %v848
        %v935 = vunpack.c.l.b16 %v849
        %v936 = vunpack.c.h.b16 %v849
        %v937 = vunpack.c.l.b16 %v850
        %v938 = vunpack.c.h.b16 %v850
        %v939 = vunpack.c.l.b16 %v851
        %v940 = vpack.c.b16 %v891, %v884
        %v941 = vpack.c.b16 %v892, %v885
        %v942 = vpack.c.b16 %v893, %v886
        %v943 = vpack.c.b16 %v894, %v887
        %v944 = vpack.c.b16 %v895, %v888
        %v945 = vpack.c.b16 %v896, %v889
        %v946 = vpack.c.b16 %v897, %v890
        %v947 = vpack.c.b16 %v905, %v898
        %v948 = vpack.c.b16 %v906, %v899
        %v949 = vpack.c.b16 %v907, %v900
        %v950 = vpack.c.b16 %v908, %v901
        %v951 = vpack.c.b16 %v909, %v902
        %v952 = vpack.c.b16 %v910, %v903
        %v953 = vpack.c.b16 %v911, %v904
        %v954 = vpack.c.b16 %v919, %v912
        %v955 = vpack.c.b16 %v920, %v913
        %v956 = vpack.c.b16 %v921, %v914
        %v957 = vpack.c.b16 %v922, %v915
        %v958 = vpack.c.b16 %v923, %v916
        %v959 = vpack.c.b16 %v924, %v917
        %v960 = vpack.c.b16 %v925, %v918
        %v961 = vpack.c.b16 %v933, %v926
        %v962 = vpack.c.b16 %v934, %v927
        %v963 = vpack.c.b16 %v935, %v928
        %v964 = vpack.c.b16 %v936, %v929
        %v965 = vpack.c.b16 %v937, %v930
        %v966 = vpack.c.b16 %v938, %v931
        %v967 = vpack.c.b16 %v939, %v932
        %vm996 = vcmask 523264
        %v998 = vsel %vm996, %v817, 0
        %1000 = vmatprep.subr.bf16.mxu0 %v941
        %1001 = vmatpush1.bf16.msra.mxu0 %v940
        %1002 = vmatprep.subr.bf16.mxu0 %v948
        %1003 = vmatpush1.bf16.msra.mxu0 %v947
        %1004 = vmatprep.subr.bf16.mxu0 %v955
        %1005 = vmatpush1.bf16.msra.mxu0 %v954
        %1006 = vmatprep.subr.bf16.mxu0 %v962
        %1007 = vmatpush1.bf16.msra.mxu0 %v961
        %1008 = vmatprep.subr.bf16.mxu0 0
        %1009 = vmatpush1.bf16.msra.mxu0 0
        %1010 = vmatprep.subr.bf16.mxu0 0
        %1011 = vmatpush1.bf16.msra.mxu0 0
        %1012 = vmatprep.subr.bf16.mxu0 0
        %1013 = vmatpush1.bf16.msra.mxu0 0
        %1014 = vmatprep.subr.bf16.mxu0 0
        %1015 = vmatpush1.bf16.msra.mxu0 0
        %1016 = vmatprep.subr.bf16.mxu0 0
        %1017 = vmatpush1.bf16.msra.mxu0 0
        %1018 = vmatprep.subr.bf16.mxu0 0
        %1019 = vmatpush1.bf16.msra.mxu0 0
        %1020 = vmatprep.subr.bf16.mxu0 0
        %1021 = vmatpush1.bf16.msra.mxu0 0
        %1022 = vmatprep.subr.bf16.mxu0 0
        %1023 = vmatpush1.bf16.msra.mxu0 0
        %1024 = vmatprep.subr.bf16.mxu0 0
        %1025 = vmatpush1.bf16.msra.mxu0 0
        %1026 = vmatprep.subr.bf16.mxu0 0
        %1027 = vmatpush1.bf16.msra.mxu0 0
        %1028 = vmatprep.subr.bf16.mxu0 0
        %1029 = vmatpush1.bf16.msra.mxu0 0
        %1030 = vmatprep.subr.bf16.mxu0 0
        %1031 = vmatpush1.bf16.msra.mxu0 0
        %1032 = vmatprep.mubr.bf16.mxu0 0
        %1033 = vmatmul.mubr.bf16.gmra.mrb[0].mxu0 %v998
        %v1034 = vpop.f32.mrb[0].mxu0
        %v1035 = vadd.f32 0.0, %v1034
        %v1036 = vpop.f32.mrb[0].mxu0
        %v1037 = vadd.f32 0.0, %v1036
        %v1038 = vpop.f32.mrb[0].mxu0
        %v1039 = vpop.f32.mrb[0].mxu0
        %1040 = vdwg.mxu0
        %1041 = vmatprep.subr.bf16.mxu0 %v943
        %1042 = vmatpush1.bf16.msra.mxu0 %v942
        %1043 = vmatprep.subr.bf16.mxu0 %v950
        %1044 = vmatpush1.bf16.msra.mxu0 %v949
        %1045 = vmatprep.subr.bf16.mxu0 %v957
        %1046 = vmatpush1.bf16.msra.mxu0 %v956
        %1047 = vmatprep.subr.bf16.mxu0 %v964
        %1048 = vmatpush1.bf16.msra.mxu0 %v963
        %1049 = vmatprep.subr.bf16.mxu0 0
        %1050 = vmatpush1.bf16.msra.mxu0 0
        %1051 = vmatprep.subr.bf16.mxu0 0
        %1052 = vmatpush1.bf16.msra.mxu0 0
        %1053 = vmatprep.subr.bf16.mxu0 0
        %1054 = vmatpush1.bf16.msra.mxu0 0
        %1055 = vmatprep.subr.bf16.mxu0 0
        %1056 = vmatpush1.bf16.msra.mxu0 0
        %1057 = vmatprep.subr.bf16.mxu0 0
        %1058 = vmatpush1.bf16.msra.mxu0 0
        %1059 = vmatprep.subr.bf16.mxu0 0
        %1060 = vmatpush1.bf16.msra.mxu0 0
        %1061 = vmatprep.subr.bf16.mxu0 0
        %1062 = vmatpush1.bf16.msra.mxu0 0
        %1063 = vmatprep.subr.bf16.mxu0 0
        %1064 = vmatpush1.bf16.msra.mxu0 0
        %1065 = vmatprep.subr.bf16.mxu0 0
        %1066 = vmatpush1.bf16.msra.mxu0 0
        %1067 = vmatprep.subr.bf16.mxu0 0
        %1068 = vmatpush1.bf16.msra.mxu0 0
        %1069 = vmatprep.subr.bf16.mxu0 0
        %1070 = vmatpush1.bf16.msra.mxu0 0
        %1071 = vmatprep.subr.bf16.mxu0 0
        %1072 = vmatpush1.bf16.msra.mxu0 0
        %1073 = vmatprep.mubr.bf16.mxu0 0
        %1074 = vmatmul.mubr.bf16.gmra.mrb[0].mxu0 %v998
        %v1075 = vpop.f32.mrb[0].mxu0
        %v1076 = vadd.f32 0.0, %v1075
        %v1077 = vpop.f32.mrb[0].mxu0
        %v1078 = vadd.f32 0.0, %v1077
        %v1079 = vpop.f32.mrb[0].mxu0
        %v1080 = vpop.f32.mrb[0].mxu0
        %1081 = vdwg.mxu0
        %1082 = vmatprep.subr.bf16.mxu0 %v945
        %1083 = vmatpush1.bf16.msra.mxu0 %v944
        %1084 = vmatprep.subr.bf16.mxu0 %v952
        %1085 = vmatpush1.bf16.msra.mxu0 %v951
        %1086 = vmatprep.subr.bf16.mxu0 %v959
        %1087 = vmatpush1.bf16.msra.mxu0 %v958
        %1088 = vmatprep.subr.bf16.mxu0 %v966
        %1089 = vmatpush1.bf16.msra.mxu0 %v965
        %1090 = vmatprep.subr.bf16.mxu0 0
        %1091 = vmatpush1.bf16.msra.mxu0 0
        %1092 = vmatprep.subr.bf16.mxu0 0
        %1093 = vmatpush1.bf16.msra.mxu0 0
        %1094 = vmatprep.subr.bf16.mxu0 0
        %1095 = vmatpush1.bf16.msra.mxu0 0
        %1096 = vmatprep.subr.bf16.mxu0 0
        %1097 = vmatpush1.bf16.msra.mxu0 0
        %1098 = vmatprep.subr.bf16.mxu0 0
        %1099 = vmatpush1.bf16.msra.mxu0 0
        %1100 = vmatprep.subr.bf16.mxu0 0
        %1101 = vmatpush1.bf16.msra.mxu0 0
        %1102 = vmatprep.subr.bf16.mxu0 0
        %1103 = vmatpush1.bf16.msra.mxu0 0
        %1104 = vmatprep.subr.bf16.mxu0 0
        %1105 = vmatpush1.bf16.msra.mxu0 0
        %1106 = vmatprep.subr.bf16.mxu0 0
        %1107 = vmatpush1.bf16.msra.mxu0 0
        %1108 = vmatprep.subr.bf16.mxu0 0
        %1109 = vmatpush1.bf16.msra.mxu0 0
        %1110 = vmatprep.subr.bf16.mxu0 0
        %1111 = vmatpush1.bf16.msra.mxu0 0
        %1112 = vmatprep.subr.bf16.mxu0 0
        %1113 = vmatpush1.bf16.msra.mxu0 0
        %1114 = vmatprep.mubr.bf16.mxu0 0
        %1115 = vmatmul.mubr.bf16.gmra.mrb[0].mxu0 %v998
        %v1116 = vpop.f32.mrb[0].mxu0
        %v1117 = vadd.f32 0.0, %v1116
        %v1118 = vpop.f32.mrb[0].mxu0
        %v1119 = vadd.f32 0.0, %v1118
        %v1120 = vpop.f32.mrb[0].mxu0
        %v1121 = vpop.f32.mrb[0].mxu0
        %1122 = vdwg.mxu0
        %1123 = vmatprep.subr.bf16.mxu0 0
        %1124 = vmatpush1.bf16.msra.mxu0 %v946
        %1125 = vmatprep.subr.bf16.mxu0 0
        %1126 = vmatpush1.bf16.msra.mxu0 %v953
        %1127 = vmatprep.subr.bf16.mxu0 0
        %1128 = vmatpush1.bf16.msra.mxu0 %v960
        %1129 = vmatprep.subr.bf16.mxu0 0
        %1130 = vmatpush1.bf16.msra.mxu0 %v967
        %1131 = vmatprep.subr.bf16.mxu0 0
        %1132 = vmatpush1.bf16.msra.mxu0 0
        %1133 = vmatprep.subr.bf16.mxu0 0
        %1134 = vmatpush1.bf16.msra.mxu0 0
        %1135 = vmatprep.subr.bf16.mxu0 0
        %1136 = vmatpush1.bf16.msra.mxu0 0
        %1137 = vmatprep.subr.bf16.mxu0 0
        %1138 = vmatpush1.bf16.msra.mxu0 0
        %1139 = vmatprep.subr.bf16.mxu0 0
        %1140 = vmatpush1.bf16.msra.mxu0 0
        %1141 = vmatprep.subr.bf16.mxu0 0
        %1142 = vmatpush1.bf16.msra.mxu0 0
        %1143 = vmatprep.subr.bf16.mxu0 0
        %1144 = vmatpush1.bf16.msra.mxu0 0
        %1145 = vmatprep.subr.bf16.mxu0 0
        %1146 = vmatpush1.bf16.msra.mxu0 0
        %1147 = vmatprep.subr.bf16.mxu0 0
        %1148 = vmatpush1.bf16.msra.mxu0 0
        %1149 = vmatprep.subr.bf16.mxu0 0
        %1150 = vmatpush1.bf16.msra.mxu0 0
        %1151 = vmatprep.subr.bf16.mxu0 0
        %1152 = vmatpush1.bf16.msra.mxu0 0
        %1153 = vmatprep.subr.bf16.mxu0 0
        %1154 = vmatpush1.bf16.msra.mxu0 0
        %1155 = vmatprep.mubr.bf16.mxu0 0
        %1156 = vmatmul.mubr.bf16.gmra.mrb[0].mxu0 %v998
        %v1157 = vpop.f32.mrb[0].mxu0
        %v1158 = vadd.f32 0.0, %v1157
        %v1159 = vpop.f32.mrb[0].mxu0
        %v1160 = vpop.f32.mrb[0].mxu0
        %v1161 = vpop.f32.mrb[0].mxu0
        %1162 = vdwg.mxu0
        %v1170 = vcombine.low %v1035, %v1037
        %v1171 = vcombine.low %v1076, %v1078
        %v1172 = vcombine.low %v1117, %v1119
        %v1174 = vunpack.c.l.s4 1966171168
        %v1175 = vunpack.c.0.s8 %v1174
        %v1176 = vlaneseq
        %v1177 = vshrl.u32 %v1176, 7
        %v1178 = vsub.s32 %v1175, %v1177
        %v1179 = vrot.slane %v1170, %v1178
        %v1181 = vunpack.c.l.s4 1966171168
        %v1182 = vunpack.c.0.s8 %v1181
        %v1183 = vlaneseq
        %v1184 = vshrl.u32 %v1183, 7
        %v1185 = vsub.s32 %v1182, %v1184
        %v1186 = vrot.slane %v1171, %v1185
        %v1188 = vunpack.c.l.s4 1966171168
        %v1189 = vunpack.c.0.s8 %v1188
        %v1190 = vlaneseq
        %v1191 = vshrl.u32 %v1190, 7
        %v1192 = vsub.s32 %v1189, %v1191
        %v1193 = vrot.slane %v1172, %v1192
        %v1195 = vunpack.c.l.s4 1966171168
        %v1196 = vunpack.c.0.s8 %v1195
        %v1197 = vlaneseq
        %v1198 = vshrl.u32 %v1197, 7
        %v1199 = vsub.s32 %v1196, %v1198
        %v1200 = vrot.slane %v1158, %v1199
        %v1201 = vcombine.low %v1179, %v1186
        %v1202 = vcombine.low %v1193, %v1200
        %v1204 = vunpack.c.l.s4 1966171168
        %v1205 = vunpack.c.0.s8 %v1204
        %v1206 = vlaneseq
        %v1207 = vshrl.u32 %v1206, 7
        %v1208 = vsub.s32 %v1205, %v1207
        %v1209 = vrot.slane %v1201, %v1208
        %v1211 = vunpack.c.l.s4 1966171168
        %v1212 = vunpack.c.0.s8 %v1211
        %v1213 = vlaneseq
        %v1214 = vshrl.u32 %v1213, 7
        %v1215 = vsub.s32 %v1212, %v1214
        %v1216 = vrot.slane %v1202, %v1215
        %v1217 = vcombine.low %v1209, %v1216
        %v1219 = vadd.f32 %v819, %v1217
        %s1220 = scalar_lea.vmem %s352, 224 [#allocation8]
        %v1221 = vld [vmem:[%s1220] sm:$0xff]
        %v1222 = vld [vmem:[%s1220 + $0x8] sm:$0xff]
        %v1223 = vld [vmem:[%s1220 + $0x10] sm:$0xff]
        %v1224 = vld [vmem:[%s1220 + $0x18] sm:$0xf]
        %v1225 = vld [vmem:[%s1220 + $0x1c] sm:$0xff]
        %v1226 = vld [vmem:[%s1220 + $0x24] sm:$0xff]
        %v1227 = vld [vmem:[%s1220 + $0x2c] sm:$0xff]
        %v1228 = vld [vmem:[%s1220 + $0x34] sm:$0xf]
        %v1229 = vld [vmem:[%s1220 + $0x38] sm:$0xff]
        %v1230 = vld [vmem:[%s1220 + $0x40] sm:$0xff]
        %v1231 = vld [vmem:[%s1220 + $0x48] sm:$0xff]
        %v1232 = vld [vmem:[%s1220 + $0x50] sm:$0xf]
        %v1233 = vld [vmem:[%s1220 + $0x54] sm:$0xff]
        %v1234 = vld [vmem:[%s1220 + $0x5c] sm:$0xff]
        %v1235 = vld [vmem:[%s1220 + $0x64] sm:$0xff]
        %v1236 = vld [vmem:[%s1220 + $0x6c] sm:$0xf]
        %v1237 = vld [vmem:[%s1220 + $0x70] sm:$0xff]
        %v1238 = vld [vmem:[%s1220 + $0x78] sm:$0xff]
        %v1239 = vld [vmem:[%s1220 + $0x80] sm:$0xff]
        %v1240 = vld [vmem:[%s1220 + $0x88] sm:$0xf]
        %v1241 = vld [vmem:[%s1220 + $0x8c] sm:$0xff]
        %v1242 = vld [vmem:[%s1220 + $0x94] sm:$0xff]
        %v1243 = vld [vmem:[%s1220 + $0x9c] sm:$0xff]
        %v1244 = vld [vmem:[%s1220 + $0xa4] sm:$0xf]
        %v1245 = vld [vmem:[%s1220 + $0xa8] sm:$0xff]
        %v1246 = vld [vmem:[%s1220 + $0xb0] sm:$0xff]
        %v1247 = vld [vmem:[%s1220 + $0xb8] sm:$0xff]
        %v1248 = vld [vmem:[%s1220 + $0xc0] sm:$0xf]
        %v1249 = vld [vmem:[%s1220 + $0xc4] sm:$0xff]
        %v1250 = vld [vmem:[%s1220 + $0xcc] sm:$0xff]
        %v1251 = vld [vmem:[%s1220 + $0xd4] sm:$0xff]
        %v1252 = vld [vmem:[%s1220 + $0xdc] sm:$0xf]
        %s1253 = scalar_lea.vmem %s352, 448 [#allocation8]
        %v1254 = vld [vmem:[%s1253] sm:$0xff]
        %v1255 = vld [vmem:[%s1253 + $0x8] sm:$0xff]
        %v1256 = vld [vmem:[%s1253 + $0x10] sm:$0xff]
        %v1257 = vld [vmem:[%s1253 + $0x18] sm:$0xf]
        %v1258 = vld [vmem:[%s1253 + $0x1c] sm:$0xff]
        %v1259 = vld [vmem:[%s1253 + $0x24] sm:$0xff]
        %v1260 = vld [vmem:[%s1253 + $0x2c] sm:$0xff]
        %v1261 = vld [vmem:[%s1253 + $0x34] sm:$0xf]
        %v1262 = vld [vmem:[%s1253 + $0x38] sm:$0xff]
        %v1263 = vld [vmem:[%s1253 + $0x40] sm:$0xff]
        %v1264 = vld [vmem:[%s1253 + $0x48] sm:$0xff]
        %v1265 = vld [vmem:[%s1253 + $0x50] sm:$0xf]
        %v1266 = vld [vmem:[%s1253 + $0x54] sm:$0xff]
        %v1267 = vld [vmem:[%s1253 + $0x5c] sm:$0xff]
        %v1268 = vld [vmem:[%s1253 + $0x64] sm:$0xff]
        %v1269 = vld [vmem:[%s1253 + $0x6c] sm:$0xf]
        %v1270 = vld [vmem:[%s1253 + $0x70] sm:$0xff]
        %v1271 = vld [vmem:[%s1253 + $0x78] sm:$0xff]
        %v1272 = vld [vmem:[%s1253 + $0x80] sm:$0xff]
        %v1273 = vld [vmem:[%s1253 + $0x88] sm:$0xf]
        %v1274 = vld [vmem:[%s1253 + $0x8c] sm:$0xff]
        %v1275 = vld [vmem:[%s1253 + $0x94] sm:$0xff]
        %v1276 = vld [vmem:[%s1253 + $0x9c] sm:$0xff]
        %v1277 = vld [vmem:[%s1253 + $0xa4] sm:$0xf]
        %v1278 = vld [vmem:[%s1253 + $0xa8] sm:$0xff]
        %v1279 = vld [vmem:[%s1253 + $0xb0] sm:$0xff]
        %v1280 = vld [vmem:[%s1253 + $0xb8] sm:$0xff]
        %v1281 = vld [vmem:[%s1253 + $0xc0] sm:$0xf]
        %v1282 = vld [vmem:[%s1253 + $0xc4] sm:$0xff]
        %v1283 = vld [vmem:[%s1253 + $0xcc] sm:$0xff]
        %v1284 = vld [vmem:[%s1253 + $0xd4] sm:$0xff]
        %v1285 = vld [vmem:[%s1253 + $0xdc] sm:$0xf]
        %s1286 = scalar_lea.vmem %s352, 672 [#allocation8]
        %v1287 = vld [vmem:[%s1286] sm:$0xff]
        %v1288 = vld [vmem:[%s1286 + $0x8] sm:$0xff]
        %v1289 = vld [vmem:[%s1286 + $0x10] sm:$0xff]
        %v1290 = vld [vmem:[%s1286 + $0x18] sm:$0xf]
        %v1291 = vld [vmem:[%s1286 + $0x1c] sm:$0xff]
        %v1292 = vld [vmem:[%s1286 + $0x24] sm:$0xff]
        %v1293 = vld [vmem:[%s1286 + $0x2c] sm:$0xff]
        %v1294 = vld [vmem:[%s1286 + $0x34] sm:$0xf]
        %v1295 = vld [vmem:[%s1286 + $0x38] sm:$0xff]
        %v1296 = vld [vmem:[%s1286 + $0x40] sm:$0xff]
        %v1297 = vld [vmem:[%s1286 + $0x48] sm:$0xff]
        %v1298 = vld [vmem:[%s1286 + $0x50] sm:$0xf]
        %v1299 = vld [vmem:[%s1286 + $0x54] sm:$0xff]
        %v1300 = vld [vmem:[%s1286 + $0x5c] sm:$0xff]
        %v1301 = vld [vmem:[%s1286 + $0x64] sm:$0xff]
        %v1302 = vld [vmem:[%s1286 + $0x6c] sm:$0xf]
        %v1303 = vld [vmem:[%s1286 + $0x70] sm:$0xff]
        %v1304 = vld [vmem:[%s1286 + $0x78] sm:$0xff]
        %v1305 = vld [vmem:[%s1286 + $0x80] sm:$0xff]
        %v1306 = vld [vmem:[%s1286 + $0x88] sm:$0xf]
        %v1307 = vld [vmem:[%s1286 + $0x8c] sm:$0xff]
        %v1308 = vld [vmem:[%s1286 + $0x94] sm:$0xff]
        %v1309 = vld [vmem:[%s1286 + $0x9c] sm:$0xff]
        %v1310 = vld [vmem:[%s1286 + $0xa4] sm:$0xf]
        %v1311 = vld [vmem:[%s1286 + $0xa8] sm:$0xff]
        %v1312 = vld [vmem:[%s1286 + $0xb0] sm:$0xff]
        %v1313 = vld [vmem:[%s1286 + $0xb8] sm:$0xff]
        %v1314 = vld [vmem:[%s1286 + $0xc0] sm:$0xf]
        %v1315 = vld [vmem:[%s1286 + $0xc4] sm:$0xff]
        %v1316 = vld [vmem:[%s1286 + $0xcc] sm:$0xff]
        %v1317 = vld [vmem:[%s1286 + $0xd4] sm:$0xff]
        %v1318 = vld [vmem:[%s1286 + $0xdc] sm:$0xf]
        %s1319 = scalar_lea.vmem %s352, 896 [#allocation8]
        %v1320 = vld [vmem:[%s1319] sm:$0xff]
        %v1321 = vld [vmem:[%s1319 + $0x8] sm:$0xff]
        %v1322 = vld [vmem:[%s1319 + $0x10] sm:$0xff]
        %v1323 = vld [vmem:[%s1319 + $0x18] sm:$0xf]
        %v1324 = vld [vmem:[%s1319 + $0x1c] sm:$0xff]
        %v1325 = vld [vmem:[%s1319 + $0x24] sm:$0xff]
        %v1326 = vld [vmem:[%s1319 + $0x2c] sm:$0xff]
        %v1327 = vld [vmem:[%s1319 + $0x34] sm:$0xf]
        %v1328 = vld [vmem:[%s1319 + $0x38] sm:$0xff]
        %v1329 = vld [vmem:[%s1319 + $0x40] sm:$0xff]
        %v1330 = vld [vmem:[%s1319 + $0x48] sm:$0xff]
        %v1331 = vld [vmem:[%s1319 + $0x50] sm:$0xf]
        %v1332 = vld [vmem:[%s1319 + $0x54] sm:$0xff]
        %v1333 = vld [vmem:[%s1319 + $0x5c] sm:$0xff]
        %v1334 = vld [vmem:[%s1319 + $0x64] sm:$0xff]
        %v1335 = vld [vmem:[%s1319 + $0x6c] sm:$0xf]
        %v1336 = vld [vmem:[%s1319 + $0x70] sm:$0xff]
        %v1337 = vld [vmem:[%s1319 + $0x78] sm:$0xff]
        %v1338 = vld [vmem:[%s1319 + $0x80] sm:$0xff]
        %v1339 = vld [vmem:[%s1319 + $0x88] sm:$0xf]
        %v1340 = vld [vmem:[%s1319 + $0x8c] sm:$0xff]
        %v1341 = vld [vmem:[%s1319 + $0x94] sm:$0xff]
        %v1342 = vld [vmem:[%s1319 + $0x9c] sm:$0xff]
        %v1343 = vld [vmem:[%s1319 + $0xa4] sm:$0xf]
        %v1344 = vld [vmem:[%s1319 + $0xa8] sm:$0xff]
        %v1345 = vld [vmem:[%s1319 + $0xb0] sm:$0xff]
        %v1346 = vld [vmem:[%s1319 + $0xb8] sm:$0xff]
        %v1347 = vld [vmem:[%s1319 + $0xc0] sm:$0xf]
        %v1348 = vld [vmem:[%s1319 + $0xc4] sm:$0xff]
        %v1349 = vld [vmem:[%s1319 + $0xcc] sm:$0xff]
        %v1350 = vld [vmem:[%s1319 + $0xd4] sm:$0xff]
        %v1351 = vld [vmem:[%s1319 + $0xdc] sm:$0xf]
        %v1353 = vrot.slane %v817, 2
        %v1386 = vunpack.c.l.b16 %v1320
        %v1387 = vunpack.c.h.b16 %v1320
        %v1388 = vunpack.c.l.b16 %v1321
        %v1389 = vunpack.c.h.b16 %v1321
        %v1390 = vunpack.c.l.b16 %v1322
        %v1391 = vunpack.c.h.b16 %v1322
        %v1392 = vunpack.c.l.b16 %v1323
        %v1393 = vunpack.c.l.b16 %v1324
        %v1394 = vunpack.c.h.b16 %v1324
        %v1395 = vunpack.c.l.b16 %v1325
        %v1396 = vunpack.c.h.b16 %v1325
        %v1397 = vunpack.c.l.b16 %v1326
        %v1398 = vunpack.c.h.b16 %v1326
        %v1399 = vunpack.c.l.b16 %v1327
        %v1400 = vunpack.c.l.b16 %v1328
        %v1401 = vunpack.c.h.b16 %v1328
        %v1402 = vunpack.c.l.b16 %v1329
        %v1403 = vunpack.c.h.b16 %v1329
        %v1404 = vunpack.c.l.b16 %v1330
        %v1405 = vunpack.c.h.b16 %v1330
        %v1406 = vunpack.c.l.b16 %v1331
        %v1407 = vunpack.c.l.b16 %v1332
        %v1408 = vunpack.c.h.b16 %v1332
        %v1409 = vunpack.c.l.b16 %v1333
        %v1410 = vunpack.c.h.b16 %v1333
        %v1411 = vunpack.c.l.b16 %v1334
        %v1412 = vunpack.c.h.b16 %v1334
        %v1413 = vunpack.c.l.b16 %v1335
        %v1414 = vunpack.c.l.b16 %v1336
        %v1415 = vunpack.c.h.b16 %v1336
        %v1416 = vunpack.c.l.b16 %v1337
        %v1417 = vunpack.c.h.b16 %v1337
        %v1418 = vunpack.c.l.b16 %v1338
        %v1419 = vunpack.c.h.b16 %v1338
        %v1420 = vunpack.c.l.b16 %v1339
        %v1421 = vunpack.c.l.b16 %v1340
        %v1422 = vunpack.c.h.b16 %v1340
        %v1423 = vunpack.c.l.b16 %v1341
        %v1424 = vunpack.c.h.b16 %v1341
        %v1425 = vunpack.c.l.b16 %v1342
        %v1426 = vunpack.c.h.b16 %v1342
        %v1427 = vunpack.c.l.b16 %v1343
        %v1428 = vunpack.c.l.b16 %v1344
        %v1429 = vunpack.c.h.b16 %v1344
        %v1430 = vunpack.c.l.b16 %v1345
        %v1431 = vunpack.c.h.b16 %v1345
        %v1432 = vunpack.c.l.b16 %v1346
        %v1433 = vunpack.c.h.b16 %v1346
        %v1434 = vunpack.c.l.b16 %v1347
        %v1435 = vunpack.c.l.b16 %v1348
        %v1436 = vunpack.c.h.b16 %v1348
        %v1437 = vunpack.c.l.b16 %v1349
        %v1438 = vunpack.c.h.b16 %v1349
        %v1439 = vunpack.c.l.b16 %v1350
        %v1440 = vunpack.c.h.b16 %v1350
        %v1441 = vunpack.c.l.b16 %v1351
        %v1442 = vpack.c.b16 %v1393, %v1386
        %v1443 = vpack.c.b16 %v1394, %v1387
        %v1444 = vpack.c.b16 %v1395, %v1388
        %v1445 = vpack.c.b16 %v1396, %v1389
        %v1446 = vpack.c.b16 %v1397, %v1390
        %v1447 = vpack.c.b16 %v1398, %v1391
        %v1448 = vpack.c.b16 %v1399, %v1392
        %v1449 = vpack.c.b16 %v1407, %v1400
        %v1450 = vpack.c.b16 %v1408, %v1401
        %v1451 = vpack.c.b16 %v1409, %v1402
        %v1452 = vpack.c.b16 %v1410, %v1403
        %v1453 = vpack.c.b16 %v1411, %v1404
        %v1454 = vpack.c.b16 %v1412, %v1405
        %v1455 = vpack.c.b16 %v1413, %v1406
        %v1456 = vpack.c.b16 %v1421, %v1414
        %v1457 = vpack.c.b16 %v1422, %v1415
        %v1458 = vpack.c.b16 %v1423, %v1416
        %v1459 = vpack.c.b16 %v1424, %v1417
        %v1460 = vpack.c.b16 %v1425, %v1418
        %v1461 = vpack.c.b16 %v1426, %v1419
        %v1462 = vpack.c.b16 %v1427, %v1420
        %v1463 = vpack.c.b16 %v1435, %v1428
        %v1464 = vpack.c.b16 %v1436, %v1429
        %v1465 = vpack.c.b16 %v1437, %v1430
        %v1466 = vpack.c.b16 %v1438, %v1431
        %v1467 = vpack.c.b16 %v1439, %v1432
        %v1468 = vpack.c.b16 %v1440, %v1433
        %v1469 = vpack.c.b16 %v1441, %v1434
        %v1499 = vsel %vm996, %v1353, 0
        %1501 = vmatprep.subr.bf16.mxu0 %v1443
        %1502 = vmatpush1.bf16.msra.mxu0 %v1442
        %1503 = vmatprep.subr.bf16.mxu0 %v1450
        %1504 = vmatpush1.bf16.msra.mxu0 %v1449
        %1505 = vmatprep.subr.bf16.mxu0 %v1457
        %1506 = vmatpush1.bf16.msra.mxu0 %v1456
        %1507 = vmatprep.subr.bf16.mxu0 %v1464
        %1508 = vmatpush1.bf16.msra.mxu0 %v1463
        %1509 = vmatprep.subr.bf16.mxu0 0
        %1510 = vmatpush1.bf16.msra.mxu0 0
        %1511 = vmatprep.subr.bf16.mxu0 0
        %1512 = vmatpush1.bf16.msra.mxu0 0
        %1513 = vmatprep.subr.bf16.mxu0 0
        %1514 = vmatpush1.bf16.msra.mxu0 0
        %1515 = vmatprep.subr.bf16.mxu0 0
        %1516 = vmatpush1.bf16.msra.mxu0 0
        %1517 = vmatprep.subr.bf16.mxu0 0
        %1518 = vmatpush1.bf16.msra.mxu0 0
        %1519 = vmatprep.subr.bf16.mxu0 0
        %1520 = vmatpush1.bf16.msra.mxu0 0
        %1521 = vmatprep.subr.bf16.mxu0 0
        %1522 = vmatpush1.bf16.msra.mxu0 0
        %1523 = vmatprep.subr.bf16.mxu0 0
        %1524 = vmatpush1.bf16.msra.mxu0 0
        %1525 = vmatprep.subr.bf16.mxu0 0
        %1526 = vmatpush1.bf16.msra.mxu0 0
        %1527 = vmatprep.subr.bf16.mxu0 0
        %1528 = vmatpush1.bf16.msra.mxu0 0
        %1529 = vmatprep.subr.bf16.mxu0 0
        %1530 = vmatpush1.bf16.msra.mxu0 0
        %1531 = vmatprep.subr.bf16.mxu0 0
        %1532 = vmatpush1.bf16.msra.mxu0 0
        %1533 = vmatprep.mubr.bf16.mxu0 0
        %1534 = vmatmul.mubr.bf16.gmra.mrb[0].mxu0 %v1499
        %v1535 = vpop.f32.mrb[0].mxu0
        %v1536 = vadd.f32 0.0, %v1535
        %v1537 = vpop.f32.mrb[0].mxu0
        %v1538 = vadd.f32 0.0, %v1537
        %v1539 = vpop.f32.mrb[0].mxu0
        %v1540 = vpop.f32.mrb[0].mxu0
        %1541 = vdwg.mxu0
        %1542 = vmatprep.subr.bf16.mxu0 %v1445
        %1543 = vmatpush1.bf16.msra.mxu0 %v1444
        %1544 = vmatprep.subr.bf16.mxu0 %v1452
        %1545 = vmatpush1.bf16.msra.mxu0 %v1451
        %1546 = vmatprep.subr.bf16.mxu0 %v1459
        %1547 = vmatpush1.bf16.msra.mxu0 %v1458
        %1548 = vmatprep.subr.bf16.mxu0 %v1466
        %1549 = vmatpush1.bf16.msra.mxu0 %v1465
        %1550 = vmatprep.subr.bf16.mxu0 0
        %1551 = vmatpush1.bf16.msra.mxu0 0
        %1552 = vmatprep.subr.bf16.mxu0 0
        %1553 = vmatpush1.bf16.msra.mxu0 0
        %1554 = vmatprep.subr.bf16.mxu0 0
        %1555 = vmatpush1.bf16.msra.mxu0 0
        %1556 = vmatprep.subr.bf16.mxu0 0
        %1557 = vmatpush1.bf16.msra.mxu0 0
        %1558 = vmatprep.subr.bf16.mxu0 0
        %1559 = vmatpush1.bf16.msra.mxu0 0
        %1560 = vmatprep.subr.bf16.mxu0 0
        %1561 = vmatpush1.bf16.msra.mxu0 0
        %1562 = vmatprep.subr.bf16.mxu0 0
        %1563 = vmatpush1.bf16.msra.mxu0 0
        %1564 = vmatprep.subr.bf16.mxu0 0
        %1565 = vmatpush1.bf16.msra.mxu0 0
        %1566 = vmatprep.subr.bf16.mxu0 0
        %1567 = vmatpush1.bf16.msra.mxu0 0
        %1568 = vmatprep.subr.bf16.mxu0 0
        %1569 = vmatpush1.bf16.msra.mxu0 0
        %1570 = vmatprep.subr.bf16.mxu0 0
        %1571 = vmatpush1.bf16.msra.mxu0 0
        %1572 = vmatprep.subr.bf16.mxu0 0
        %1573 = vmatpush1.bf16.msra.mxu0 0
        %1574 = vmatprep.mubr.bf16.mxu0 0
        %1575 = vmatmul.mubr.bf16.gmra.mrb[0].mxu0 %v1499
        %v1576 = vpop.f32.mrb[0].mxu0
        %v1577 = vadd.f32 0.0, %v1576
        %v1578 = vpop.f32.mrb[0].mxu0
        %v1579 = vadd.f32 0.0, %v1578
        %v1580 = vpop.f32.mrb[0].mxu0
        %v1581 = vpop.f32.mrb[0].mxu0
        %1582 = vdwg.mxu0
        %1583 = vmatprep.subr.bf16.mxu0 %v1447
        %1584 = vmatpush1.bf16.msra.mxu0 %v1446
        %1585 = vmatprep.subr.bf16.mxu0 %v1454
        %1586 = vmatpush1.bf16.msra.mxu0 %v1453
        %1587 = vmatprep.subr.bf16.mxu0 %v1461
        %1588 = vmatpush1.bf16.msra.mxu0 %v1460
        %1589 = vmatprep.subr.bf16.mxu0 %v1468
        %1590 = vmatpush1.bf16.msra.mxu0 %v1467
        %1591 = vmatprep.subr.bf16.mxu0 0
        %1592 = vmatpush1.bf16.msra.mxu0 0
        %1593 = vmatprep.subr.bf16.mxu0 0
        %1594 = vmatpush1.bf16.msra.mxu0 0
        %1595 = vmatprep.subr.bf16.mxu0 0
        %1596 = vmatpush1.bf16.msra.mxu0 0
        %1597 = vmatprep.subr.bf16.mxu0 0
        %1598 = vmatpush1.bf16.msra.mxu0 0
        %1599 = vmatprep.subr.bf16.mxu0 0
        %1600 = vmatpush1.bf16.msra.mxu0 0
        %1601 = vmatprep.subr.bf16.mxu0 0
        %1602 = vmatpush1.bf16.msra.mxu0 0
        %1603 = vmatprep.subr.bf16.mxu0 0
        %1604 = vmatpush1.bf16.msra.mxu0 0
        %1605 = vmatprep.subr.bf16.mxu0 0
        %1606 = vmatpush1.bf16.msra.mxu0 0
        %1607 = vmatprep.subr.bf16.mxu0 0
        %1608 = vmatpush1.bf16.msra.mxu0 0
        %1609 = vmatprep.subr.bf16.mxu0 0
        %1610 = vmatpush1.bf16.msra.mxu0 0
        %1611 = vmatprep.subr.bf16.mxu0 0
        %1612 = vmatpush1.bf16.msra.mxu0 0
        %1613 = vmatprep.subr.bf16.mxu0 0
        %1614 = vmatpush1.bf16.msra.mxu0 0
        %1615 = vmatprep.mubr.bf16.mxu0 0
        %1616 = vmatmul.mubr.bf16.gmra.mrb[0].mxu0 %v1499
        %v1617 = vpop.f32.mrb[0].mxu0
        %v1618 = vadd.f32 0.0, %v1617
        %v1619 = vpop.f32.mrb[0].mxu0
        %v1620 = vadd.f32 0.0, %v1619
        %v1621 = vpop.f32.mrb[0].mxu0
        %v1622 = vpop.f32.mrb[0].mxu0
        %1623 = vdwg.mxu0
        %1624 = vmatprep.subr.bf16.mxu0 0
        %1625 = vmatpush1.bf16.msra.mxu0 %v1448
        %1626 = vmatprep.subr.bf16.mxu0 0
        %1627 = vmatpush1.bf16.msra.mxu0 %v1455
        %1628 = vmatprep.subr.bf16.mxu0 0
        %1629 = vmatpush1.bf16.msra.mxu0 %v1462
        %1630 = vmatprep.subr.bf16.mxu0 0
        %1631 = vmatpush1.bf16.msra.mxu0 %v1469
        %1632 = vmatprep.subr.bf16.mxu0 0
        %1633 = vmatpush1.bf16.msra.mxu0 0
        %1634 = vmatprep.subr.bf16.mxu0 0
        %1635 = vmatpush1.bf16.msra.mxu0 0
        %1636 = vmatprep.subr.bf16.mxu0 0
        %1637 = vmatpush1.bf16.msra.mxu0 0
        %1638 = vmatprep.subr.bf16.mxu0 0
        %1639 = vmatpush1.bf16.msra.mxu0 0
        %1640 = vmatprep.subr.bf16.mxu0 0
        %1641 = vmatpush1.bf16.msra.mxu0 0
        %1642 = vmatprep.subr.bf16.mxu0 0
        %1643 = vmatpush1.bf16.msra.mxu0 0
        %1644 = vmatprep.subr.bf16.mxu0 0
        %1645 = vmatpush1.bf16.msra.mxu0 0
        %1646 = vmatprep.subr.bf16.mxu0 0
        %1647 = vmatpush1.bf16.msra.mxu0 0
        %1648 = vmatprep.subr.bf16.mxu0 0
        %1649 = vmatpush1.bf16.msra.mxu0 0
        %1650 = vmatprep.subr.bf16.mxu0 0
        %1651 = vmatpush1.bf16.msra.mxu0 0
        %1652 = vmatprep.subr.bf16.mxu0 0
        %1653 = vmatpush1.bf16.msra.mxu0 0
        %1654 = vmatprep.subr.bf16.mxu0 0
        %1655 = vmatpush1.bf16.msra.mxu0 0
        %1656 = vmatprep.mubr.bf16.mxu0 0
        %1657 = vmatmul.mubr.bf16.gmra.mrb[0].mxu0 %v1499
        %v1658 = vpop.f32.mrb[0].mxu0
        %v1659 = vadd.f32 0.0, %v1658
        %v1660 = vpop.f32.mrb[0].mxu0
        %v1661 = vpop.f32.mrb[0].mxu0
        %v1662 = vpop.f32.mrb[0].mxu0
        %1663 = vdwg.mxu0
        %v1671 = vcombine.low %v1536, %v1538
        %v1672 = vcombine.low %v1577, %v1579
        %v1673 = vcombine.low %v1618, %v1620
        %v1675 = vunpack.c.l.s4 1966171168
        %v1676 = vunpack.c.0.s8 %v1675
        %v1677 = vlaneseq
        %v1678 = vshrl.u32 %v1677, 7
        %v1679 = vsub.s32 %v1676, %v1678
        %v1680 = vrot.slane %v1671, %v1679
        %v1682 = vunpack.c.l.s4 1966171168
        %v1683 = vunpack.c.0.s8 %v1682
        %v1684 = vlaneseq
        %v1685 = vshrl.u32 %v1684, 7
        %v1686 = vsub.s32 %v1683, %v1685
        %v1687 = vrot.slane %v1672, %v1686
        %v1689 = vunpack.c.l.s4 1966171168
        %v1690 = vunpack.c.0.s8 %v1689
        %v1691 = vlaneseq
        %v1692 = vshrl.u32 %v1691, 7
        %v1693 = vsub.s32 %v1690, %v1692
        %v1694 = vrot.slane %v1673, %v1693
        %v1696 = vunpack.c.l.s4 1966171168
        %v1697 = vunpack.c.0.s8 %v1696
        %v1698 = vlaneseq
        %v1699 = vshrl.u32 %v1698, 7
        %v1700 = vsub.s32 %v1697, %v1699
        %v1701 = vrot.slane %v1659, %v1700
        %v1702 = vcombine.low %v1680, %v1687
        %v1703 = vcombine.low %v1694, %v1701
        %v1705 = vunpack.c.l.s4 1966171168
        %v1706 = vunpack.c.0.s8 %v1705
        %v1707 = vlaneseq
        %v1708 = vshrl.u32 %v1707, 7
        %v1709 = vsub.s32 %v1706, %v1708
        %v1710 = vrot.slane %v1702, %v1709
        %v1712 = vunpack.c.l.s4 1966171168
        %v1713 = vunpack.c.0.s8 %v1712
        %v1714 = vlaneseq
        %v1715 = vshrl.u32 %v1714, 7
        %v1716 = vsub.s32 %v1713, %v1715
        %v1717 = vrot.slane %v1703, %v1716
        %v1718 = vcombine.low %v1710, %v1717
        %v1720 = vadd.f32 %v1219, %v1718
        %s1721 = scalar_lea.vmem %s352, 1120 [#allocation8]
        %v1722 = vld [vmem:[%s1721] sm:$0xff]
        %v1723 = vld [vmem:[%s1721 + $0x8] sm:$0xff]
        %v1724 = vld [vmem:[%s1721 + $0x10] sm:$0xff]
        %v1725 = vld [vmem:[%s1721 + $0x18] sm:$0xf]
        %v1726 = vld [vmem:[%s1721 + $0x1c] sm:$0xff]
        %v1727 = vld [vmem:[%s1721 + $0x24] sm:$0xff]
        %v1728 = vld [vmem:[%s1721 + $0x2c] sm:$0xff]
        %v1729 = vld [vmem:[%s1721 + $0x34] sm:$0xf]
        %v1730 = vld [vmem:[%s1721 + $0x38] sm:$0xff]
        %v1731 = vld [vmem:[%s1721 + $0x40] sm:$0xff]
        %v1732 = vld [vmem:[%s1721 + $0x48] sm:$0xff]
        %v1733 = vld [vmem:[%s1721 + $0x50] sm:$0xf]
        %v1734 = vld [vmem:[%s1721 + $0x54] sm:$0xff]
        %v1735 = vld [vmem:[%s1721 + $0x5c] sm:$0xff]
        %v1736 = vld [vmem:[%s1721 + $0x64] sm:$0xff]
        %v1737 = vld [vmem:[%s1721 + $0x6c] sm:$0xf]
        %v1738 = vld [vmem:[%s1721 + $0x70] sm:$0xff]
        %v1739 = vld [vmem:[%s1721 + $0x78] sm:$0xff]
        %v1740 = vld [vmem:[%s1721 + $0x80] sm:$0xff]
        %v1741 = vld [vmem:[%s1721 + $0x88] sm:$0xf]
        %v1742 = vld [vmem:[%s1721 + $0x8c] sm:$0xff]
        %v1743 = vld [vmem:[%s1721 + $0x94] sm:$0xff]
        %v1744 = vld [vmem:[%s1721 + $0x9c] sm:$0xff]
        %v1745 = vld [vmem:[%s1721 + $0xa4] sm:$0xf]
        %v1746 = vld [vmem:[%s1721 + $0xa8] sm:$0xff]
        %v1747 = vld [vmem:[%s1721 + $0xb0] sm:$0xff]
        %v1748 = vld [vmem:[%s1721 + $0xb8] sm:$0xff]
        %v1749 = vld [vmem:[%s1721 + $0xc0] sm:$0xf]
        %v1750 = vld [vmem:[%s1721 + $0xc4] sm:$0xff]
        %v1751 = vld [vmem:[%s1721 + $0xcc] sm:$0xff]
        %v1752 = vld [vmem:[%s1721 + $0xd4] sm:$0xff]
        %v1753 = vld [vmem:[%s1721 + $0xdc] sm:$0xf]
        %v1754 = vshrl.u32 %v817, 16
        %v1756 = vrot.slane %v1754, 2
        %v1789 = vunpack.c.l.b16 %v1722
        %v1790 = vunpack.c.h.b16 %v1722
        %v1791 = vunpack.c.l.b16 %v1723
        %v1792 = vunpack.c.h.b16 %v1723
        %v1793 = vunpack.c.l.b16 %v1724
        %v1794 = vunpack.c.h.b16 %v1724
        %v1795 = vunpack.c.l.b16 %v1725
        %v1796 = vunpack.c.l.b16 %v1726
        %v1797 = vunpack.c.h.b16 %v1726
        %v1798 = vunpack.c.l.b16 %v1727
        %v1799 = vunpack.c.h.b16 %v1727
        %v1800 = vunpack.c.l.b16 %v1728
        %v1801 = vunpack.c.h.b16 %v1728
        %v1802 = vunpack.c.l.b16 %v1729
        %v1803 = vunpack.c.l.b16 %v1730
        %v1804 = vunpack.c.h.b16 %v1730
        %v1805 = vunpack.c.l.b16 %v1731
        %v1806 = vunpack.c.h.b16 %v1731
        %v1807 = vunpack.c.l.b16 %v1732
        %v1808 = vunpack.c.h.b16 %v1732
        %v1809 = vunpack.c.l.b16 %v1733
        %v1810 = vunpack.c.l.b16 %v1734
        %v1811 = vunpack.c.h.b16 %v1734
        %v1812 = vunpack.c.l.b16 %v1735
        %v1813 = vunpack.c.h.b16 %v1735
        %v1814 = vunpack.c.l.b16 %v1736
        %v1815 = vunpack.c.h.b16 %v1736
        %v1816 = vunpack.c.l.b16 %v1737
        %v1817 = vunpack.c.l.b16 %v1738
        %v1818 = vunpack.c.h.b16 %v1738
        %v1819 = vunpack.c.l.b16 %v1739
        %v1820 = vunpack.c.h.b16 %v1739
        %v1821 = vunpack.c.l.b16 %v1740
        %v1822 = vunpack.c.h.b16 %v1740
        %v1823 = vunpack.c.l.b16 %v1741
        %v1824 = vunpack.c.l.b16 %v1742
        %v1825 = vunpack.c.h.b16 %v1742
        %v1826 = vunpack.c.l.b16 %v1743
        %v1827 = vunpack.c.h.b16 %v1743
        %v1828 = vunpack.c.l.b16 %v1744
        %v1829 = vunpack.c.h.b16 %v1744
        %v1830 = vunpack.c.l.b16 %v1745
        %v1831 = vunpack.c.l.b16 %v1746
        %v1832 = vunpack.c.h.b16 %v1746
        %v1833 = vunpack.c.l.b16 %v1747
        %v1834 = vunpack.c.h.b16 %v1747
        %v1835 = vunpack.c.l.b16 %v1748
        %v1836 = vunpack.c.h.b16 %v1748
        %v1837 = vunpack.c.l.b16 %v1749
        %v1838 = vunpack.c.l.b16 %v1750
        %v1839 = vunpack.c.h.b16 %v1750
        %v1840 = vunpack.c.l.b16 %v1751
        %v1841 = vunpack.c.h.b16 %v1751
        %v1842 = vunpack.c.l.b16 %v1752
        %v1843 = vunpack.c.h.b16 %v1752
        %v1844 = vunpack.c.l.b16 %v1753
        %v1845 = vpack.c.b16 %v1796, %v1789
        %v1846 = vpack.c.b16 %v1797, %v1790
        %v1847 = vpack.c.b16 %v1798, %v1791
        %v1848 = vpack.c.b16 %v1799, %v1792
        %v1849 = vpack.c.b16 %v1800, %v1793
        %v1850 = vpack.c.b16 %v1801, %v1794
        %v1851 = vpack.c.b16 %v1802, %v1795
        %v1852 = vpack.c.b16 %v1810, %v1803
        %v1853 = vpack.c.b16 %v1811, %v1804
        %v1854 = vpack.c.b16 %v1812, %v1805
        %v1855 = vpack.c.b16 %v1813, %v1806
        %v1856 = vpack.c.b16 %v1814, %v1807
        %v1857 = vpack.c.b16 %v1815, %v1808
        %v1858 = vpack.c.b16 %v1816, %v1809
        %v1859 = vpack.c.b16 %v1824, %v1817
        %v1860 = vpack.c.b16 %v1825, %v1818
        %v1861 = vpack.c.b16 %v1826, %v1819
        %v1862 = vpack.c.b16 %v1827, %v1820
        %v1863 = vpack.c.b16 %v1828, %v1821
        %v1864 = vpack.c.b16 %v1829, %v1822
        %v1865 = vpack.c.b16 %v1830, %v1823
        %v1866 = vpack.c.b16 %v1838, %v1831
        %v1867 = vpack.c.b16 %v1839, %v1832
        %v1868 = vpack.c.b16 %v1840, %v1833
        %v1869 = vpack.c.b16 %v1841, %v1834
        %v1870 = vpack.c.b16 %v1842, %v1835
        %v1871 = vpack.c.b16 %v1843, %v1836
        %v1872 = vpack.c.b16 %v1844, %v1837
        %v1902 = vsel %vm996, %v1756, 0
        %1904 = vmatprep.subr.bf16.mxu0 %v1846
        %1905 = vmatpush1.bf16.msra.mxu0 %v1845
        %1906 = vmatprep.subr.bf16.mxu0 %v1853
        %1907 = vmatpush1.bf16.msra.mxu0 %v1852
        %1908 = vmatprep.subr.bf16.mxu0 %v1860
        %1909 = vmatpush1.bf16.msra.mxu0 %v1859
        %1910 = vmatprep.subr.bf16.mxu0 %v1867
        %1911 = vmatpush1.bf16.msra.mxu0 %v1866
        %1912 = vmatprep.subr.bf16.mxu0 0
        %1913 = vmatpush1.bf16.msra.mxu0 0
        %1914 = vmatprep.subr.bf16.mxu0 0
        %1915 = vmatpush1.bf16.msra.mxu0 0
        %1916 = vmatprep.subr.bf16.mxu0 0
        %1917 = vmatpush1.bf16.msra.mxu0 0
        %1918 = vmatprep.subr.bf16.mxu0 0
        %1919 = vmatpush1.bf16.msra.mxu0 0
        %1920 = vmatprep.subr.bf16.mxu0 0
        %1921 = vmatpush1.bf16.msra.mxu0 0
        %1922 = vmatprep.subr.bf16.mxu0 0
        %1923 = vmatpush1.bf16.msra.mxu0 0
        %1924 = vmatprep.subr.bf16.mxu0 0
        %1925 = vmatpush1.bf16.msra.mxu0 0
        %1926 = vmatprep.subr.bf16.mxu0 0
        %1927 = vmatpush1.bf16.msra.mxu0 0
        %1928 = vmatprep.subr.bf16.mxu0 0
        %1929 = vmatpush1.bf16.msra.mxu0 0
        %1930 = vmatprep.subr.bf16.mxu0 0
        %1931 = vmatpush1.bf16.msra.mxu0 0
        %1932 = vmatprep.subr.bf16.mxu0 0
        %1933 = vmatpush1.bf16.msra.mxu0 0
        %1934 = vmatprep.subr.bf16.mxu0 0
        %1935 = vmatpush1.bf16.msra.mxu0 0
        %1936 = vmatprep.mubr.bf16.mxu0 0
        %1937 = vmatmul.mubr.bf16.gmra.mrb[0].mxu0 %v1902
        %v1938 = vpop.f32.mrb[0].mxu0
        %v1939 = vadd.f32 0.0, %v1938
        %v1940 = vpop.f32.mrb[0].mxu0
        %v1941 = vadd.f32 0.0, %v1940
        %v1942 = vpop.f32.mrb[0].mxu0
        %v1943 = vpop.f32.mrb[0].mxu0
        %1944 = vdwg.mxu0
        %1945 = vmatprep.subr.bf16.mxu0 %v1848
        %1946 = vmatpush1.bf16.msra.mxu0 %v1847
        %1947 = vmatprep.subr.bf16.mxu0 %v1855
        %1948 = vmatpush1.bf16.msra.mxu0 %v1854
        %1949 = vmatprep.subr.bf16.mxu0 %v1862
        %1950 = vmatpush1.bf16.msra.mxu0 %v1861
        %1951 = vmatprep.subr.bf16.mxu0 %v1869
        %1952 = vmatpush1.bf16.msra.mxu0 %v1868
        %1953 = vmatprep.subr.bf16.mxu0 0
        %1954 = vmatpush1.bf16.msra.mxu0 0
        %1955 = vmatprep.subr.bf16.mxu0 0
        %1956 = vmatpush1.bf16.msra.mxu0 0
        %1957 = vmatprep.subr.bf16.mxu0 0
        %1958 = vmatpush1.bf16.msra.mxu0 0
        %1959 = vmatprep.subr.bf16.mxu0 0
        %1960 = vmatpush1.bf16.msra.mxu0 0
        %1961 = vmatprep.subr.bf16.mxu0 0
        %1962 = vmatpush1.bf16.msra.mxu0 0
        %1963 = vmatprep.subr.bf16.mxu0 0
        %1964 = vmatpush1.bf16.msra.mxu0 0
        %1965 = vmatprep.subr.bf16.mxu0 0
        %1966 = vmatpush1.bf16.msra.mxu0 0
        %1967 = vmatprep.subr.bf16.mxu0 0
        %1968 = vmatpush1.bf16.msra.mxu0 0
        %1969 = vmatprep.subr.bf16.mxu0 0
        %1970 = vmatpush1.bf16.msra.mxu0 0
        %1971 = vmatprep.subr.bf16.mxu0 0
        %1972 = vmatpush1.bf16.msra.mxu0 0
        %1973 = vmatprep.subr.bf16.mxu0 0
        %1974 = vmatpush1.bf16.msra.mxu0 0
        %1975 = vmatprep.subr.bf16.mxu0 0
        %1976 = vmatpush1.bf16.msra.mxu0 0
        %1977 = vmatprep.mubr.bf16.mxu0 0
        %1978 = vmatmul.mubr.bf16.gmra.mrb[0].mxu0 %v1902
        %v1979 = vpop.f32.mrb[0].mxu0
        %v1980 = vadd.f32 0.0, %v1979
        %v1981 = vpop.f32.mrb[0].mxu0
        %v1982 = vadd.f32 0.0, %v1981
        %v1983 = vpop.f32.mrb[0].mxu0
        %v1984 = vpop.f32.mrb[0].mxu0
        %1985 = vdwg.mxu0
        %1986 = vmatprep.subr.bf16.mxu0 %v1850
        %1987 = vmatpush1.bf16.msra.mxu0 %v1849
        %1988 = vmatprep.subr.bf16.mxu0 %v1857
        %1989 = vmatpush1.bf16.msra.mxu0 %v1856
        %1990 = vmatprep.subr.bf16.mxu0 %v1864
        %1991 = vmatpush1.bf16.msra.mxu0 %v1863
        %1992 = vmatprep.subr.bf16.mxu0 %v1871
        %1993 = vmatpush1.bf16.msra.mxu0 %v1870
        %1994 = vmatprep.subr.bf16.mxu0 0
        %1995 = vmatpush1.bf16.msra.mxu0 0
        %1996 = vmatprep.subr.bf16.mxu0 0
        %1997 = vmatpush1.bf16.msra.mxu0 0
        %1998 = vmatprep.subr.bf16.mxu0 0
        %1999 = vmatpush1.bf16.msra.mxu0 0
        %2000 = vmatprep.subr.bf16.mxu0 0
        %2001 = vmatpush1.bf16.msra.mxu0 0
        %2002 = vmatprep.subr.bf16.mxu0 0
        %2003 = vmatpush1.bf16.msra.mxu0 0
        %2004 = vmatprep.subr.bf16.mxu0 0
        %2005 = vmatpush1.bf16.msra.mxu0 0
        %2006 = vmatprep.subr.bf16.mxu0 0
        %2007 = vmatpush1.bf16.msra.mxu0 0
        %2008 = vmatprep.subr.bf16.mxu0 0
        %2009 = vmatpush1.bf16.msra.mxu0 0
        %2010 = vmatprep.subr.bf16.mxu0 0
        %2011 = vmatpush1.bf16.msra.mxu0 0
        %2012 = vmatprep.subr.bf16.mxu0 0
        %2013 = vmatpush1.bf16.msra.mxu0 0
        %2014 = vmatprep.subr.bf16.mxu0 0
        %2015 = vmatpush1.bf16.msra.mxu0 0
        %2016 = vmatprep.subr.bf16.mxu0 0
        %2017 = vmatpush1.bf16.msra.mxu0 0
        %2018 = vmatprep.mubr.bf16.mxu0 0
        %2019 = vmatmul.mubr.bf16.gmra.mrb[0].mxu0 %v1902
        %v2020 = vpop.f32.mrb[0].mxu0
        %v2021 = vadd.f32 0.0, %v2020
        %v2022 = vpop.f32.mrb[0].mxu0
        %v2023 = vadd.f32 0.0, %v2022
        %v2024 = vpop.f32.mrb[0].mxu0
        %v2025 = vpop.f32.mrb[0].mxu0
        %2026 = vdwg.mxu0
        %2027 = vmatprep.subr.bf16.mxu0 0
        %2028 = vmatpush1.bf16.msra.mxu0 %v1851
        %2029 = vmatprep.subr.bf16.mxu0 0
        %2030 = vmatpush1.bf16.msra.mxu0 %v1858
        %2031 = vmatprep.subr.bf16.mxu0 0
        %2032 = vmatpush1.bf16.msra.mxu0 %v1865
        %2033 = vmatprep.subr.bf16.mxu0 0
        %2034 = vmatpush1.bf16.msra.mxu0 %v1872
        %2035 = vmatprep.subr.bf16.mxu0 0
        %2036 = vmatpush1.bf16.msra.mxu0 0
        %2037 = vmatprep.subr.bf16.mxu0 0
        %2038 = vmatpush1.bf16.msra.mxu0 0
        %2039 = vmatprep.subr.bf16.mxu0 0
        %2040 = vmatpush1.bf16.msra.mxu0 0
        %2041 = vmatprep.subr.bf16.mxu0 0
        %2042 = vmatpush1.bf16.msra.mxu0 0
        %2043 = vmatprep.subr.bf16.mxu0 0
        %2044 = vmatpush1.bf16.msra.mxu0 0
        %2045 = vmatprep.subr.bf16.mxu0 0
        %2046 = vmatpush1.bf16.msra.mxu0 0
        %2047 = vmatprep.subr.bf16.mxu0 0
        %2048 = vmatpush1.bf16.msra.mxu0 0
        %2049 = vmatprep.subr.bf16.mxu0 0
        %2050 = vmatpush1.bf16.msra.mxu0 0
        %2051 = vmatprep.subr.bf16.mxu0 0
        %2052 = vmatpush1.bf16.msra.mxu0 0
        %2053 = vmatprep.subr.bf16.mxu0 0
        %2054 = vmatpush1.bf16.msra.mxu0 0
        %2055 = vmatprep.subr.bf16.mxu0 0
        %2056 = vmatpush1.bf16.msra.mxu0 0
        %2057 = vmatprep.subr.bf16.mxu0 0
        %2058 = vmatpush1.bf16.msra.mxu0 0
        %2059 = vmatprep.mubr.bf16.mxu0 0
        %2060 = vmatmul.mubr.bf16.gmra.mrb[0].mxu0 %v1902
        %v2061 = vpop.f32.mrb[0].mxu0
        %v2062 = vadd.f32 0.0, %v2061
        %v2063 = vpop.f32.mrb[0].mxu0
        %v2064 = vpop.f32.mrb[0].mxu0
        %v2065 = vpop.f32.mrb[0].mxu0
        %2066 = vdwg.mxu0
        %v2099 = vunpack.c.l.b16 %v1221
        %v2100 = vunpack.c.h.b16 %v1221
        %v2101 = vunpack.c.l.b16 %v1222
        %v2102 = vunpack.c.h.b16 %v1222
        %v2103 = vunpack.c.l.b16 %v1223
        %v2104 = vunpack.c.h.b16 %v1223
        %v2105 = vunpack.c.l.b16 %v1224
        %v2106 = vunpack.c.l.b16 %v1225
        %v2107 = vunpack.c.h.b16 %v1225
        %v2108 = vunpack.c.l.b16 %v1226
        %v2109 = vunpack.c.h.b16 %v1226
        %v2110 = vunpack.c.l.b16 %v1227
        %v2111 = vunpack.c.h.b16 %v1227
        %v2112 = vunpack.c.l.b16 %v1228
        %v2113 = vunpack.c.l.b16 %v1229
        %v2114 = vunpack.c.h.b16 %v1229
        %v2115 = vunpack.c.l.b16 %v1230
        %v2116 = vunpack.c.h.b16 %v1230
        %v2117 = vunpack.c.l.b16 %v1231
        %v2118 = vunpack.c.h.b16 %v1231
        %v2119 = vunpack.c.l.b16 %v1232
        %v2120 = vunpack.c.l.b16 %v1233
        %v2121 = vunpack.c.h.b16 %v1233
        %v2122 = vunpack.c.l.b16 %v1234
        %v2123 = vunpack.c.h.b16 %v1234
        %v2124 = vunpack.c.l.b16 %v1235
        %v2125 = vunpack.c.h.b16 %v1235
        %v2126 = vunpack.c.l.b16 %v1236
        %v2127 = vunpack.c.l.b16 %v1237
        %v2128 = vunpack.c.h.b16 %v1237
        %v2129 = vunpack.c.l.b16 %v1238
        %v2130 = vunpack.c.h.b16 %v1238
        %v2131 = vunpack.c.l.b16 %v1239
        %v2132 = vunpack.c.h.b16 %v1239
        %v2133 = vunpack.c.l.b16 %v1240
        %v2134 = vunpack.c.l.b16 %v1241
        %v2135 = vunpack.c.h.b16 %v1241
        %v2136 = vunpack.c.l.b16 %v1242
        %v2137 = vunpack.c.h.b16 %v1242
        %v2138 = vunpack.c.l.b16 %v1243
        %v2139 = vunpack.c.h.b16 %v1243
        %v2140 = vunpack.c.l.b16 %v1244
        %v2141 = vunpack.c.l.b16 %v1245
        %v2142 = vunpack.c.h.b16 %v1245
        %v2143 = vunpack.c.l.b16 %v1246
        %v2144 = vunpack.c.h.b16 %v1246
        %v2145 = vunpack.c.l.b16 %v1247
        %v2146 = vunpack.c.h.b16 %v1247
        %v2147 = vunpack.c.l.b16 %v1248
        %v2148 = vunpack.c.l.b16 %v1249
        %v2149 = vunpack.c.h.b16 %v1249
        %v2150 = vunpack.c.l.b16 %v1250
        %v2151 = vunpack.c.h.b16 %v1250
        %v2152 = vunpack.c.l.b16 %v1251
        %v2153 = vunpack.c.h.b16 %v1251
        %v2154 = vunpack.c.l.b16 %v1252
        %v2155 = vpack.c.b16 %v2106, %v2099
        %v2156 = vpack.c.b16 %v2107, %v2100
        %v2157 = vpack.c.b16 %v2108, %v2101
        %v2158 = vpack.c.b16 %v2109, %v2102
        %v2159 = vpack.c.b16 %v2110, %v2103
        %v2160 = vpack.c.b16 %v2111, %v2104
        %v2161 = vpack.c.b16 %v2112, %v2105
        %v2162 = vpack.c.b16 %v2120, %v2113
        %v2163 = vpack.c.b16 %v2121, %v2114
        %v2164 = vpack.c.b16 %v2122, %v2115
        %v2165 = vpack.c.b16 %v2123, %v2116
        %v2166 = vpack.c.b16 %v2124, %v2117
        %v2167 = vpack.c.b16 %v2125, %v2118
        %v2168 = vpack.c.b16 %v2126, %v2119
        %v2169 = vpack.c.b16 %v2134, %v2127
        %v2170 = vpack.c.b16 %v2135, %v2128
        %v2171 = vpack.c.b16 %v2136, %v2129
        %v2172 = vpack.c.b16 %v2137, %v2130
        %v2173 = vpack.c.b16 %v2138, %v2131
        %v2174 = vpack.c.b16 %v2139, %v2132
        %v2175 = vpack.c.b16 %v2140, %v2133
        %v2176 = vpack.c.b16 %v2148, %v2141
        %v2177 = vpack.c.b16 %v2149, %v2142
        %v2178 = vpack.c.b16 %v2150, %v2143
        %v2179 = vpack.c.b16 %v2151, %v2144
        %v2180 = vpack.c.b16 %v2152, %v2145
        %v2181 = vpack.c.b16 %v2153, %v2146
        %v2182 = vpack.c.b16 %v2154, %v2147
        %v2212 = vsel %vm996, %v1754, 0
        %2214 = vmatprep.subr.bf16.mxu0 %v2156
        %2215 = vmatpush1.bf16.msra.mxu0 %v2155
        %2216 = vmatprep.subr.bf16.mxu0 %v2163
        %2217 = vmatpush1.bf16.msra.mxu0 %v2162
        %2218 = vmatprep.subr.bf16.mxu0 %v2170
        %2219 = vmatpush1.bf16.msra.mxu0 %v2169
        %2220 = vmatprep.subr.bf16.mxu0 %v2177
        %2221 = vmatpush1.bf16.msra.mxu0 %v2176
        %2222 = vmatprep.subr.bf16.mxu0 0
        %2223 = vmatpush1.bf16.msra.mxu0 0
        %2224 = vmatprep.subr.bf16.mxu0 0
        %2225 = vmatpush1.bf16.msra.mxu0 0
        %2226 = vmatprep.subr.bf16.mxu0 0
        %2227 = vmatpush1.bf16.msra.mxu0 0
        %2228 = vmatprep.subr.bf16.mxu0 0
        %2229 = vmatpush1.bf16.msra.mxu0 0
        %2230 = vmatprep.subr.bf16.mxu0 0
        %2231 = vmatpush1.bf16.msra.mxu0 0
        %2232 = vmatprep.subr.bf16.mxu0 0
        %2233 = vmatpush1.bf16.msra.mxu0 0
        %2234 = vmatprep.subr.bf16.mxu0 0
        %2235 = vmatpush1.bf16.msra.mxu0 0
        %2236 = vmatprep.subr.bf16.mxu0 0
        %2237 = vmatpush1.bf16.msra.mxu0 0
        %2238 = vmatprep.subr.bf16.mxu0 0
        %2239 = vmatpush1.bf16.msra.mxu0 0
        %2240 = vmatprep.subr.bf16.mxu0 0
        %2241 = vmatpush1.bf16.msra.mxu0 0
        %2242 = vmatprep.subr.bf16.mxu0 0
        %2243 = vmatpush1.bf16.msra.mxu0 0
        %2244 = vmatprep.subr.bf16.mxu0 0
        %2245 = vmatpush1.bf16.msra.mxu0 0
        %2246 = vmatprep.mubr.bf16.mxu0 0
        %2247 = vmatmul.mubr.bf16.gmra.mrb[0].mxu0 %v2212
        %v2248 = vpop.f32.mrb[0].mxu0
        %v2249 = vadd.f32 %v1939, %v2248
        %v2250 = vpop.f32.mrb[0].mxu0
        %v2251 = vadd.f32 %v1941, %v2250
        %v2252 = vpop.f32.mrb[0].mxu0
        %v2253 = vpop.f32.mrb[0].mxu0
        %2254 = vdwg.mxu0
        %2255 = vmatprep.subr.bf16.mxu0 %v2158
        %2256 = vmatpush1.bf16.msra.mxu0 %v2157
        %2257 = vmatprep.subr.bf16.mxu0 %v2165
        %2258 = vmatpush1.bf16.msra.mxu0 %v2164
        %2259 = vmatprep.subr.bf16.mxu0 %v2172
        %2260 = vmatpush1.bf16.msra.mxu0 %v2171
        %2261 = vmatprep.subr.bf16.mxu0 %v2179
        %2262 = vmatpush1.bf16.msra.mxu0 %v2178
        %2263 = vmatprep.subr.bf16.mxu0 0
        %2264 = vmatpush1.bf16.msra.mxu0 0
        %2265 = vmatprep.subr.bf16.mxu0 0
        %2266 = vmatpush1.bf16.msra.mxu0 0
        %2267 = vmatprep.subr.bf16.mxu0 0
        %2268 = vmatpush1.bf16.msra.mxu0 0
        %2269 = vmatprep.subr.bf16.mxu0 0
        %2270 = vmatpush1.bf16.msra.mxu0 0
        %2271 = vmatprep.subr.bf16.mxu0 0
        %2272 = vmatpush1.bf16.msra.mxu0 0
        %2273 = vmatprep.subr.bf16.mxu0 0
        %2274 = vmatpush1.bf16.msra.mxu0 0
        %2275 = vmatprep.subr.bf16.mxu0 0
        %2276 = vmatpush1.bf16.msra.mxu0 0
        %2277 = vmatprep.subr.bf16.mxu0 0
        %2278 = vmatpush1.bf16.msra.mxu0 0
        %2279 = vmatprep.subr.bf16.mxu0 0
        %2280 = vmatpush1.bf16.msra.mxu0 0
        %2281 = vmatprep.subr.bf16.mxu0 0
        %2282 = vmatpush1.bf16.msra.mxu0 0
        %2283 = vmatprep.subr.bf16.mxu0 0
        %2284 = vmatpush1.bf16.msra.mxu0 0
        %2285 = vmatprep.subr.bf16.mxu0 0
        %2286 = vmatpush1.bf16.msra.mxu0 0
        %2287 = vmatprep.mubr.bf16.mxu0 0
        %2288 = vmatmul.mubr.bf16.gmra.mrb[0].mxu0 %v2212
        %v2289 = vpop.f32.mrb[0].mxu0
        %v2290 = vadd.f32 %v1980, %v2289
        %v2291 = vpop.f32.mrb[0].mxu0
        %v2292 = vadd.f32 %v1982, %v2291
        %v2293 = vpop.f32.mrb[0].mxu0
        %v2294 = vpop.f32.mrb[0].mxu0
        %2295 = vdwg.mxu0
        %2296 = vmatprep.subr.bf16.mxu0 %v2160
        %2297 = vmatpush1.bf16.msra.mxu0 %v2159
        %2298 = vmatprep.subr.bf16.mxu0 %v2167
        %2299 = vmatpush1.bf16.msra.mxu0 %v2166
        %2300 = vmatprep.subr.bf16.mxu0 %v2174
        %2301 = vmatpush1.bf16.msra.mxu0 %v2173
        %2302 = vmatprep.subr.bf16.mxu0 %v2181
        %2303 = vmatpush1.bf16.msra.mxu0 %v2180
        %2304 = vmatprep.subr.bf16.mxu0 0
        %2305 = vmatpush1.bf16.msra.mxu0 0
        %2306 = vmatprep.subr.bf16.mxu0 0
        %2307 = vmatpush1.bf16.msra.mxu0 0
        %2308 = vmatprep.subr.bf16.mxu0 0
        %2309 = vmatpush1.bf16.msra.mxu0 0
        %2310 = vmatprep.subr.bf16.mxu0 0
        %2311 = vmatpush1.bf16.msra.mxu0 0
        %2312 = vmatprep.subr.bf16.mxu0 0
        %2313 = vmatpush1.bf16.msra.mxu0 0
        %2314 = vmatprep.subr.bf16.mxu0 0
        %2315 = vmatpush1.bf16.msra.mxu0 0
        %2316 = vmatprep.subr.bf16.mxu0 0
        %2317 = vmatpush1.bf16.msra.mxu0 0
        %2318 = vmatprep.subr.bf16.mxu0 0
        %2319 = vmatpush1.bf16.msra.mxu0 0
        %2320 = vmatprep.subr.bf16.mxu0 0
        %2321 = vmatpush1.bf16.msra.mxu0 0
        %2322 = vmatprep.subr.bf16.mxu0 0
        %2323 = vmatpush1.bf16.msra.mxu0 0
        %2324 = vmatprep.subr.bf16.mxu0 0
        %2325 = vmatpush1.bf16.msra.mxu0 0
        %2326 = vmatprep.subr.bf16.mxu0 0
        %2327 = vmatpush1.bf16.msra.mxu0 0
        %2328 = vmatprep.mubr.bf16.mxu0 0
        %2329 = vmatmul.mubr.bf16.gmra.mrb[0].mxu0 %v2212
        %v2330 = vpop.f32.mrb[0].mxu0
        %v2331 = vadd.f32 %v2021, %v2330
        %v2332 = vpop.f32.mrb[0].mxu0
        %v2333 = vadd.f32 %v2023, %v2332
        %v2334 = vpop.f32.mrb[0].mxu0
        %v2335 = vpop.f32.mrb[0].mxu0
        %2336 = vdwg.mxu0
        %2337 = vmatprep.subr.bf16.mxu0 0
        %2338 = vmatpush1.bf16.msra.mxu0 %v2161
        %2339 = vmatprep.subr.bf16.mxu0 0
        %2340 = vmatpush1.bf16.msra.mxu0 %v2168
        %2341 = vmatprep.subr.bf16.mxu0 0
        %2342 = vmatpush1.bf16.msra.mxu0 %v2175
        %2343 = vmatprep.subr.bf16.mxu0 0
        %2344 = vmatpush1.bf16.msra.mxu0 %v2182
        %2345 = vmatprep.subr.bf16.mxu0 0
        %2346 = vmatpush1.bf16.msra.mxu0 0
        %2347 = vmatprep.subr.bf16.mxu0 0
        %2348 = vmatpush1.bf16.msra.mxu0 0
        %2349 = vmatprep.subr.bf16.mxu0 0
        %2350 = vmatpush1.bf16.msra.mxu0 0
        %2351 = vmatprep.subr.bf16.mxu0 0
        %2352 = vmatpush1.bf16.msra.mxu0 0
        %2353 = vmatprep.subr.bf16.mxu0 0
        %2354 = vmatpush1.bf16.msra.mxu0 0
        %2355 = vmatprep.subr.bf16.mxu0 0
        %2356 = vmatpush1.bf16.msra.mxu0 0
        %2357 = vmatprep.subr.bf16.mxu0 0
        %2358 = vmatpush1.bf16.msra.mxu0 0
        %2359 = vmatprep.subr.bf16.mxu0 0
        %2360 = vmatpush1.bf16.msra.mxu0 0
        %2361 = vmatprep.subr.bf16.mxu0 0
        %2362 = vmatpush1.bf16.msra.mxu0 0
        %2363 = vmatprep.subr.bf16.mxu0 0
        %2364 = vmatpush1.bf16.msra.mxu0 0
        %2365 = vmatprep.subr.bf16.mxu0 0
        %2366 = vmatpush1.bf16.msra.mxu0 0
        %2367 = vmatprep.subr.bf16.mxu0 0
        %2368 = vmatpush1.bf16.msra.mxu0 0
        %2369 = vmatprep.mubr.bf16.mxu0 0
        %2370 = vmatmul.mubr.bf16.gmra.mrb[0].mxu0 %v2212
        %v2371 = vpop.f32.mrb[0].mxu0
        %v2372 = vadd.f32 %v2062, %v2371
        %v2373 = vpop.f32.mrb[0].mxu0
        %v2374 = vpop.f32.mrb[0].mxu0
        %v2375 = vpop.f32.mrb[0].mxu0
        %2376 = vdwg.mxu0
        %s2377 = scalar_lea.vmem %s352, 1344 [#allocation8]
        %v2378 = vld [vmem:[%s2377] sm:$0xff]
        %v2379 = vld [vmem:[%s2377 + $0x8] sm:$0xff]
        %v2380 = vld [vmem:[%s2377 + $0x10] sm:$0xff]
        %v2381 = vld [vmem:[%s2377 + $0x18] sm:$0xf]
        %v2382 = vld [vmem:[%s2377 + $0x1c] sm:$0xff]
        %v2383 = vld [vmem:[%s2377 + $0x24] sm:$0xff]
        %v2384 = vld [vmem:[%s2377 + $0x2c] sm:$0xff]
        %v2385 = vld [vmem:[%s2377 + $0x34] sm:$0xf]
        %v2386 = vld [vmem:[%s2377 + $0x38] sm:$0xff]
        %v2387 = vld [vmem:[%s2377 + $0x40] sm:$0xff]
        %v2388 = vld [vmem:[%s2377 + $0x48] sm:$0xff]
        %v2389 = vld [vmem:[%s2377 + $0x50] sm:$0xf]
        %v2390 = vld [vmem:[%s2377 + $0x54] sm:$0xff]
        %v2391 = vld [vmem:[%s2377 + $0x5c] sm:$0xff]
        %v2392 = vld [vmem:[%s2377 + $0x64] sm:$0xff]
        %v2393 = vld [vmem:[%s2377 + $0x6c] sm:$0xf]
        %v2394 = vld [vmem:[%s2377 + $0x70] sm:$0xff]
        %v2395 = vld [vmem:[%s2377 + $0x78] sm:$0xff]
        %v2396 = vld [vmem:[%s2377 + $0x80] sm:$0xff]
        %v2397 = vld [vmem:[%s2377 + $0x88] sm:$0xf]
        %v2398 = vld [vmem:[%s2377 + $0x8c] sm:$0xff]
        %v2399 = vld [vmem:[%s2377 + $0x94] sm:$0xff]
        %v2400 = vld [vmem:[%s2377 + $0x9c] sm:$0xff]
        %v2401 = vld [vmem:[%s2377 + $0xa4] sm:$0xf]
        %v2402 = vld [vmem:[%s2377 + $0xa8] sm:$0xff]
        %v2403 = vld [vmem:[%s2377 + $0xb0] sm:$0xff]
        %v2404 = vld [vmem:[%s2377 + $0xb8] sm:$0xff]
        %v2405 = vld [vmem:[%s2377 + $0xc0] sm:$0xf]
        %v2406 = vld [vmem:[%s2377 + $0xc4] sm:$0xff]
        %v2407 = vld [vmem:[%s2377 + $0xcc] sm:$0xff]
        %v2408 = vld [vmem:[%s2377 + $0xd4] sm:$0xff]
        %v2409 = vld [vmem:[%s2377 + $0xdc] sm:$0xf]
        %v2410 = vrot.slane %v817, 3
        %v2443 = vunpack.c.l.b16 %v2378
        %v2444 = vunpack.c.h.b16 %v2378
        %v2445 = vunpack.c.l.b16 %v2379
        %v2446 = vunpack.c.h.b16 %v2379
        %v2447 = vunpack.c.l.b16 %v2380
        %v2448 = vunpack.c.h.b16 %v2380
        %v2449 = vunpack.c.l.b16 %v2381
        %v2450 = vunpack.c.l.b16 %v2382
        %v2451 = vunpack.c.h.b16 %v2382
        %v2452 = vunpack.c.l.b16 %v2383
        %v2453 = vunpack.c.h.b16 %v2383
        %v2454 = vunpack.c.l.b16 %v2384
        %v2455 = vunpack.c.h.b16 %v2384
        %v2456 = vunpack.c.l.b16 %v2385
        %v2457 = vunpack.c.l.b16 %v2386
        %v2458 = vunpack.c.h.b16 %v2386
        %v2459 = vunpack.c.l.b16 %v2387
        %v2460 = vunpack.c.h.b16 %v2387
        %v2461 = vunpack.c.l.b16 %v2388
        %v2462 = vunpack.c.h.b16 %v2388
        %v2463 = vunpack.c.l.b16 %v2389
        %v2464 = vunpack.c.l.b16 %v2390
        %v2465 = vunpack.c.h.b16 %v2390
        %v2466 = vunpack.c.l.b16 %v2391
        %v2467 = vunpack.c.h.b16 %v2391
        %v2468 = vunpack.c.l.b16 %v2392
        %v2469 = vunpack.c.h.b16 %v2392
        %v2470 = vunpack.c.l.b16 %v2393
        %v2471 = vunpack.c.l.b16 %v2394
        %v2472 = vunpack.c.h.b16 %v2394
        %v2473 = vunpack.c.l.b16 %v2395
        %v2474 = vunpack.c.h.b16 %v2395
        %v2475 = vunpack.c.l.b16 %v2396
        %v2476 = vunpack.c.h.b16 %v2396
        %v2477 = vunpack.c.l.b16 %v2397
        %v2478 = vunpack.c.l.b16 %v2398
        %v2479 = vunpack.c.h.b16 %v2398
        %v2480 = vunpack.c.l.b16 %v2399
        %v2481 = vunpack.c.h.b16 %v2399
        %v2482 = vunpack.c.l.b16 %v2400
        %v2483 = vunpack.c.h.b16 %v2400
        %v2484 = vunpack.c.l.b16 %v2401
        %v2485 = vunpack.c.l.b16 %v2402
        %v2486 = vunpack.c.h.b16 %v2402
        %v2487 = vunpack.c.l.b16 %v2403
        %v2488 = vunpack.c.h.b16 %v2403
        %v2489 = vunpack.c.l.b16 %v2404
        %v2490 = vunpack.c.h.b16 %v2404
        %v2491 = vunpack.c.l.b16 %v2405
        %v2492 = vunpack.c.l.b16 %v2406
        %v2493 = vunpack.c.h.b16 %v2406
        %v2494 = vunpack.c.l.b16 %v2407
        %v2495 = vunpack.c.h.b16 %v2407
        %v2496 = vunpack.c.l.b16 %v2408
        %v2497 = vunpack.c.h.b16 %v2408
        %v2498 = vunpack.c.l.b16 %v2409
        %v2499 = vpack.c.b16 %v2450, %v2443
        %v2500 = vpack.c.b16 %v2451, %v2444
        %v2501 = vpack.c.b16 %v2452, %v2445
        %v2502 = vpack.c.b16 %v2453, %v2446
        %v2503 = vpack.c.b16 %v2454, %v2447
        %v2504 = vpack.c.b16 %v2455, %v2448
        %v2505 = vpack.c.b16 %v2456, %v2449
        %v2506 = vpack.c.b16 %v2464, %v2457
        %v2507 = vpack.c.b16 %v2465, %v2458
        %v2508 = vpack.c.b16 %v2466, %v2459
        %v2509 = vpack.c.b16 %v2467, %v2460
        %v2510 = vpack.c.b16 %v2468, %v2461
        %v2511 = vpack.c.b16 %v2469, %v2462
        %v2512 = vpack.c.b16 %v2470, %v2463
        %v2513 = vpack.c.b16 %v2478, %v2471
        %v2514 = vpack.c.b16 %v2479, %v2472
        %v2515 = vpack.c.b16 %v2480, %v2473
        %v2516 = vpack.c.b16 %v2481, %v2474
        %v2517 = vpack.c.b16 %v2482, %v2475
        %v2518 = vpack.c.b16 %v2483, %v2476
        %v2519 = vpack.c.b16 %v2484, %v2477
        %v2520 = vpack.c.b16 %v2492, %v2485
        %v2521 = vpack.c.b16 %v2493, %v2486
        %v2522 = vpack.c.b16 %v2494, %v2487
        %v2523 = vpack.c.b16 %v2495, %v2488
        %v2524 = vpack.c.b16 %v2496, %v2489
        %v2525 = vpack.c.b16 %v2497, %v2490
        %v2526 = vpack.c.b16 %v2498, %v2491
        %v2556 = vsel %vm996, %v2410, 0
        %2558 = vmatprep.subr.bf16.mxu0 %v2500
        %2559 = vmatpush1.bf16.msra.mxu0 %v2499
        %2560 = vmatprep.subr.bf16.mxu0 %v2507
        %2561 = vmatpush1.bf16.msra.mxu0 %v2506
        %2562 = vmatprep.subr.bf16.mxu0 %v2514
        %2563 = vmatpush1.bf16.msra.mxu0 %v2513
        %2564 = vmatprep.subr.bf16.mxu0 %v2521
        %2565 = vmatpush1.bf16.msra.mxu0 %v2520
        %2566 = vmatprep.subr.bf16.mxu0 0
        %2567 = vmatpush1.bf16.msra.mxu0 0
        %2568 = vmatprep.subr.bf16.mxu0 0
        %2569 = vmatpush1.bf16.msra.mxu0 0
        %2570 = vmatprep.subr.bf16.mxu0 0
        %2571 = vmatpush1.bf16.msra.mxu0 0
        %2572 = vmatprep.subr.bf16.mxu0 0
        %2573 = vmatpush1.bf16.msra.mxu0 0
        %2574 = vmatprep.subr.bf16.mxu0 0
        %2575 = vmatpush1.bf16.msra.mxu0 0
        %2576 = vmatprep.subr.bf16.mxu0 0
        %2577 = vmatpush1.bf16.msra.mxu0 0
        %2578 = vmatprep.subr.bf16.mxu0 0
        %2579 = vmatpush1.bf16.msra.mxu0 0
        %2580 = vmatprep.subr.bf16.mxu0 0
        %2581 = vmatpush1.bf16.msra.mxu0 0
        %2582 = vmatprep.subr.bf16.mxu0 0
        %2583 = vmatpush1.bf16.msra.mxu0 0
        %2584 = vmatprep.subr.bf16.mxu0 0
        %2585 = vmatpush1.bf16.msra.mxu0 0
        %2586 = vmatprep.subr.bf16.mxu0 0
        %2587 = vmatpush1.bf16.msra.mxu0 0
        %2588 = vmatprep.subr.bf16.mxu0 0
        %2589 = vmatpush1.bf16.msra.mxu0 0
        %2590 = vmatprep.mubr.bf16.mxu0 0
        %2591 = vmatmul.mubr.bf16.gmra.mrb[0].mxu0 %v2556
        %v2592 = vpop.f32.mrb[0].mxu0
        %v2593 = vadd.f32 0.0, %v2592
        %v2594 = vpop.f32.mrb[0].mxu0
        %v2595 = vadd.f32 0.0, %v2594
        %v2596 = vpop.f32.mrb[0].mxu0
        %v2597 = vpop.f32.mrb[0].mxu0
        %2598 = vdwg.mxu0
        %2599 = vmatprep.subr.bf16.mxu0 %v2502
        %2600 = vmatpush1.bf16.msra.mxu0 %v2501
        %2601 = vmatprep.subr.bf16.mxu0 %v2509
        %2602 = vmatpush1.bf16.msra.mxu0 %v2508
        %2603 = vmatprep.subr.bf16.mxu0 %v2516
        %2604 = vmatpush1.bf16.msra.mxu0 %v2515
        %2605 = vmatprep.subr.bf16.mxu0 %v2523
        %2606 = vmatpush1.bf16.msra.mxu0 %v2522
        %2607 = vmatprep.subr.bf16.mxu0 0
        %2608 = vmatpush1.bf16.msra.mxu0 0
        %2609 = vmatprep.subr.bf16.mxu0 0
        %2610 = vmatpush1.bf16.msra.mxu0 0
        %2611 = vmatprep.subr.bf16.mxu0 0
        %2612 = vmatpush1.bf16.msra.mxu0 0
        %2613 = vmatprep.subr.bf16.mxu0 0
        %2614 = vmatpush1.bf16.msra.mxu0 0
        %2615 = vmatprep.subr.bf16.mxu0 0
        %2616 = vmatpush1.bf16.msra.mxu0 0
        %2617 = vmatprep.subr.bf16.mxu0 0
        %2618 = vmatpush1.bf16.msra.mxu0 0
        %2619 = vmatprep.subr.bf16.mxu0 0
        %2620 = vmatpush1.bf16.msra.mxu0 0
        %2621 = vmatprep.subr.bf16.mxu0 0
        %2622 = vmatpush1.bf16.msra.mxu0 0
        %2623 = vmatprep.subr.bf16.mxu0 0
        %2624 = vmatpush1.bf16.msra.mxu0 0
        %2625 = vmatprep.subr.bf16.mxu0 0
        %2626 = vmatpush1.bf16.msra.mxu0 0
        %2627 = vmatprep.subr.bf16.mxu0 0
        %2628 = vmatpush1.bf16.msra.mxu0 0
        %2629 = vmatprep.subr.bf16.mxu0 0
        %2630 = vmatpush1.bf16.msra.mxu0 0
        %2631 = vmatprep.mubr.bf16.mxu0 0
        %2632 = vmatmul.mubr.bf16.gmra.mrb[0].mxu0 %v2556
        %v2633 = vpop.f32.mrb[0].mxu0
        %v2634 = vadd.f32 0.0, %v2633
        %v2635 = vpop.f32.mrb[0].mxu0
        %v2636 = vadd.f32 0.0, %v2635
        %v2637 = vpop.f32.mrb[0].mxu0
        %v2638 = vpop.f32.mrb[0].mxu0
        %2639 = vdwg.mxu0
        %2640 = vmatprep.subr.bf16.mxu0 %v2504
        %2641 = vmatpush1.bf16.msra.mxu0 %v2503
        %2642 = vmatprep.subr.bf16.mxu0 %v2511
        %2643 = vmatpush1.bf16.msra.mxu0 %v2510
        %2644 = vmatprep.subr.bf16.mxu0 %v2518
        %2645 = vmatpush1.bf16.msra.mxu0 %v2517
        %2646 = vmatprep.subr.bf16.mxu0 %v2525
        %2647 = vmatpush1.bf16.msra.mxu0 %v2524
        %2648 = vmatprep.subr.bf16.mxu0 0
        %2649 = vmatpush1.bf16.msra.mxu0 0
        %2650 = vmatprep.subr.bf16.mxu0 0
        %2651 = vmatpush1.bf16.msra.mxu0 0
        %2652 = vmatprep.subr.bf16.mxu0 0
        %2653 = vmatpush1.bf16.msra.mxu0 0
        %2654 = vmatprep.subr.bf16.mxu0 0
        %2655 = vmatpush1.bf16.msra.mxu0 0
        %2656 = vmatprep.subr.bf16.mxu0 0
        %2657 = vmatpush1.bf16.msra.mxu0 0
        %2658 = vmatprep.subr.bf16.mxu0 0
        %2659 = vmatpush1.bf16.msra.mxu0 0
        %2660 = vmatprep.subr.bf16.mxu0 0
        %2661 = vmatpush1.bf16.msra.mxu0 0
        %2662 = vmatprep.subr.bf16.mxu0 0
        %2663 = vmatpush1.bf16.msra.mxu0 0
        %2664 = vmatprep.subr.bf16.mxu0 0
        %2665 = vmatpush1.bf16.msra.mxu0 0
        %2666 = vmatprep.subr.bf16.mxu0 0
        %2667 = vmatpush1.bf16.msra.mxu0 0
        %2668 = vmatprep.subr.bf16.mxu0 0
        %2669 = vmatpush1.bf16.msra.mxu0 0
        %2670 = vmatprep.subr.bf16.mxu0 0
        %2671 = vmatpush1.bf16.msra.mxu0 0
        %2672 = vmatprep.mubr.bf16.mxu0 0
        %2673 = vmatmul.mubr.bf16.gmra.mrb[0].mxu0 %v2556
        %v2674 = vpop.f32.mrb[0].mxu0
        %v2675 = vadd.f32 0.0, %v2674
        %v2676 = vpop.f32.mrb[0].mxu0
        %v2677 = vadd.f32 0.0, %v2676
        %v2678 = vpop.f32.mrb[0].mxu0
        %v2679 = vpop.f32.mrb[0].mxu0
        %2680 = vdwg.mxu0
        %2681 = vmatprep.subr.bf16.mxu0 0
        %2682 = vmatpush1.bf16.msra.mxu0 %v2505
        %2683 = vmatprep.subr.bf16.mxu0 0
        %2684 = vmatpush1.bf16.msra.mxu0 %v2512
        %2685 = vmatprep.subr.bf16.mxu0 0
        %2686 = vmatpush1.bf16.msra.mxu0 %v2519
        %2687 = vmatprep.subr.bf16.mxu0 0
        %2688 = vmatpush1.bf16.msra.mxu0 %v2526
        %2689 = vmatprep.subr.bf16.mxu0 0
        %2690 = vmatpush1.bf16.msra.mxu0 0
        %2691 = vmatprep.subr.bf16.mxu0 0
        %2692 = vmatpush1.bf16.msra.mxu0 0
        %2693 = vmatprep.subr.bf16.mxu0 0
        %2694 = vmatpush1.bf16.msra.mxu0 0
        %2695 = vmatprep.subr.bf16.mxu0 0
        %2696 = vmatpush1.bf16.msra.mxu0 0
        %2697 = vmatprep.subr.bf16.mxu0 0
        %2698 = vmatpush1.bf16.msra.mxu0 0
        %2699 = vmatprep.subr.bf16.mxu0 0
        %2700 = vmatpush1.bf16.msra.mxu0 0
        %2701 = vmatprep.subr.bf16.mxu0 0
        %2702 = vmatpush1.bf16.msra.mxu0 0
        %2703 = vmatprep.subr.bf16.mxu0 0
        %2704 = vmatpush1.bf16.msra.mxu0 0
        %2705 = vmatprep.subr.bf16.mxu0 0
        %2706 = vmatpush1.bf16.msra.mxu0 0
        %2707 = vmatprep.subr.bf16.mxu0 0
        %2708 = vmatpush1.bf16.msra.mxu0 0
        %2709 = vmatprep.subr.bf16.mxu0 0
        %2710 = vmatpush1.bf16.msra.mxu0 0
        %2711 = vmatprep.subr.bf16.mxu0 0
        %2712 = vmatpush1.bf16.msra.mxu0 0
        %2713 = vmatprep.mubr.bf16.mxu0 0
        %2714 = vmatmul.mubr.bf16.gmra.mrb[0].mxu0 %v2556
        %v2715 = vpop.f32.mrb[0].mxu0
        %v2716 = vadd.f32 0.0, %v2715
        %v2717 = vpop.f32.mrb[0].mxu0
        %v2718 = vpop.f32.mrb[0].mxu0
        %v2719 = vpop.f32.mrb[0].mxu0
        %2720 = vdwg.mxu0
        %v2721 = vrot.slane %v817, 1
        %v2754 = vunpack.c.l.b16 %v1254
        %v2755 = vunpack.c.h.b16 %v1254
        %v2756 = vunpack.c.l.b16 %v1255
        %v2757 = vunpack.c.h.b16 %v1255
        %v2758 = vunpack.c.l.b16 %v1256
        %v2759 = vunpack.c.h.b16 %v1256
        %v2760 = vunpack.c.l.b16 %v1257
        %v2761 = vunpack.c.l.b16 %v1258
        %v2762 = vunpack.c.h.b16 %v1258
        %v2763 = vunpack.c.l.b16 %v1259
        %v2764 = vunpack.c.h.b16 %v1259
        %v2765 = vunpack.c.l.b16 %v1260
        %v2766 = vunpack.c.h.b16 %v1260
        %v2767 = vunpack.c.l.b16 %v1261
        %v2768 = vunpack.c.l.b16 %v1262
        %v2769 = vunpack.c.h.b16 %v1262
        %v2770 = vunpack.c.l.b16 %v1263
        %v2771 = vunpack.c.h.b16 %v1263
        %v2772 = vunpack.c.l.b16 %v1264
        %v2773 = vunpack.c.h.b16 %v1264
        %v2774 = vunpack.c.l.b16 %v1265
        %v2775 = vunpack.c.l.b16 %v1266
        %v2776 = vunpack.c.h.b16 %v1266
        %v2777 = vunpack.c.l.b16 %v1267
        %v2778 = vunpack.c.h.b16 %v1267
        %v2779 = vunpack.c.l.b16 %v1268
        %v2780 = vunpack.c.h.b16 %v1268
        %v2781 = vunpack.c.l.b16 %v1269
        %v2782 = vunpack.c.l.b16 %v1270
        %v2783 = vunpack.c.h.b16 %v1270
        %v2784 = vunpack.c.l.b16 %v1271
        %v2785 = vunpack.c.h.b16 %v1271
        %v2786 = vunpack.c.l.b16 %v1272
        %v2787 = vunpack.c.h.b16 %v1272
        %v2788 = vunpack.c.l.b16 %v1273
        %v2789 = vunpack.c.l.b16 %v1274
        %v2790 = vunpack.c.h.b16 %v1274
        %v2791 = vunpack.c.l.b16 %v1275
        %v2792 = vunpack.c.h.b16 %v1275
        %v2793 = vunpack.c.l.b16 %v1276
        %v2794 = vunpack.c.h.b16 %v1276
        %v2795 = vunpack.c.l.b16 %v1277
        %v2796 = vunpack.c.l.b16 %v1278
        %v2797 = vunpack.c.h.b16 %v1278
        %v2798 = vunpack.c.l.b16 %v1279
        %v2799 = vunpack.c.h.b16 %v1279
        %v2800 = vunpack.c.l.b16 %v1280
        %v2801 = vunpack.c.h.b16 %v1280
        %v2802 = vunpack.c.l.b16 %v1281
        %v2803 = vunpack.c.l.b16 %v1282
        %v2804 = vunpack.c.h.b16 %v1282
        %v2805 = vunpack.c.l.b16 %v1283
        %v2806 = vunpack.c.h.b16 %v1283
        %v2807 = vunpack.c.l.b16 %v1284
        %v2808 = vunpack.c.h.b16 %v1284
        %v2809 = vunpack.c.l.b16 %v1285
        %v2810 = vpack.c.b16 %v2761, %v2754
        %v2811 = vpack.c.b16 %v2762, %v2755
        %v2812 = vpack.c.b16 %v2763, %v2756
        %v2813 = vpack.c.b16 %v2764, %v2757
        %v2814 = vpack.c.b16 %v2765, %v2758
        %v2815 = vpack.c.b16 %v2766, %v2759
        %v2816 = vpack.c.b16 %v2767, %v2760
        %v2817 = vpack.c.b16 %v2775, %v2768
        %v2818 = vpack.c.b16 %v2776, %v2769
        %v2819 = vpack.c.b16 %v2777, %v2770
        %v2820 = vpack.c.b16 %v2778, %v2771
        %v2821 = vpack.c.b16 %v2779, %v2772
        %v2822 = vpack.c.b16 %v2780, %v2773
        %v2823 = vpack.c.b16 %v2781, %v2774
        %v2824 = vpack.c.b16 %v2789, %v2782
        %v2825 = vpack.c.b16 %v2790, %v2783
        %v2826 = vpack.c.b16 %v2791, %v2784
        %v2827 = vpack.c.b16 %v2792, %v2785
        %v2828 = vpack.c.b16 %v2793, %v2786
        %v2829 = vpack.c.b16 %v2794, %v2787
        %v2830 = vpack.c.b16 %v2795, %v2788
        %v2831 = vpack.c.b16 %v2803, %v2796
        %v2832 = vpack.c.b16 %v2804, %v2797
        %v2833 = vpack.c.b16 %v2805, %v2798
        %v2834 = vpack.c.b16 %v2806, %v2799
        %v2835 = vpack.c.b16 %v2807, %v2800
        %v2836 = vpack.c.b16 %v2808, %v2801
        %v2837 = vpack.c.b16 %v2809, %v2802
        %v2867 = vsel %vm996, %v2721, 0
        %2869 = vmatprep.subr.bf16.mxu0 %v2811
        %2870 = vmatpush1.bf16.msra.mxu0 %v2810
        %2871 = vmatprep.subr.bf16.mxu0 %v2818
        %2872 = vmatpush1.bf16.msra.mxu0 %v2817
        %2873 = vmatprep.subr.bf16.mxu0 %v2825
        %2874 = vmatpush1.bf16.msra.mxu0 %v2824
        %2875 = vmatprep.subr.bf16.mxu0 %v2832
        %2876 = vmatpush1.bf16.msra.mxu0 %v2831
        %2877 = vmatprep.subr.bf16.mxu0 0
        %2878 = vmatpush1.bf16.msra.mxu0 0
        %2879 = vmatprep.subr.bf16.mxu0 0
        %2880 = vmatpush1.bf16.msra.mxu0 0
        %2881 = vmatprep.subr.bf16.mxu0 0
        %2882 = vmatpush1.bf16.msra.mxu0 0
        %2883 = vmatprep.subr.bf16.mxu0 0
        %2884 = vmatpush1.bf16.msra.mxu0 0
        %2885 = vmatprep.subr.bf16.mxu0 0
        %2886 = vmatpush1.bf16.msra.mxu0 0
        %2887 = vmatprep.subr.bf16.mxu0 0
        %2888 = vmatpush1.bf16.msra.mxu0 0
        %2889 = vmatprep.subr.bf16.mxu0 0
        %2890 = vmatpush1.bf16.msra.mxu0 0
        %2891 = vmatprep.subr.bf16.mxu0 0
        %2892 = vmatpush1.bf16.msra.mxu0 0
        %2893 = vmatprep.subr.bf16.mxu0 0
        %2894 = vmatpush1.bf16.msra.mxu0 0
        %2895 = vmatprep.subr.bf16.mxu0 0
        %2896 = vmatpush1.bf16.msra.mxu0 0
        %2897 = vmatprep.subr.bf16.mxu0 0
        %2898 = vmatpush1.bf16.msra.mxu0 0
        %2899 = vmatprep.subr.bf16.mxu0 0
        %2900 = vmatpush1.bf16.msra.mxu0 0
        %2901 = vmatprep.mubr.bf16.mxu0 0
        %2902 = vmatmul.mubr.bf16.gmra.mrb[0].mxu0 %v2867
        %v2903 = vpop.f32.mrb[0].mxu0
        %v2904 = vadd.f32 %v2593, %v2903
        %v2905 = vpop.f32.mrb[0].mxu0
        %v2906 = vadd.f32 %v2595, %v2905
        %v2907 = vpop.f32.mrb[0].mxu0
        %v2908 = vpop.f32.mrb[0].mxu0
        %2909 = vdwg.mxu0
        %2910 = vmatprep.subr.bf16.mxu0 %v2813
        %2911 = vmatpush1.bf16.msra.mxu0 %v2812
        %2912 = vmatprep.subr.bf16.mxu0 %v2820
        %2913 = vmatpush1.bf16.msra.mxu0 %v2819
        %2914 = vmatprep.subr.bf16.mxu0 %v2827
        %2915 = vmatpush1.bf16.msra.mxu0 %v2826
        %2916 = vmatprep.subr.bf16.mxu0 %v2834
        %2917 = vmatpush1.bf16.msra.mxu0 %v2833
        %2918 = vmatprep.subr.bf16.mxu0 0
        %2919 = vmatpush1.bf16.msra.mxu0 0
        %2920 = vmatprep.subr.bf16.mxu0 0
        %2921 = vmatpush1.bf16.msra.mxu0 0
        %2922 = vmatprep.subr.bf16.mxu0 0
        %2923 = vmatpush1.bf16.msra.mxu0 0
        %2924 = vmatprep.subr.bf16.mxu0 0
        %2925 = vmatpush1.bf16.msra.mxu0 0
        %2926 = vmatprep.subr.bf16.mxu0 0
        %2927 = vmatpush1.bf16.msra.mxu0 0
        %2928 = vmatprep.subr.bf16.mxu0 0
        %2929 = vmatpush1.bf16.msra.mxu0 0
        %2930 = vmatprep.subr.bf16.mxu0 0
        %2931 = vmatpush1.bf16.msra.mxu0 0
        %2932 = vmatprep.subr.bf16.mxu0 0
        %2933 = vmatpush1.bf16.msra.mxu0 0
        %2934 = vmatprep.subr.bf16.mxu0 0
        %2935 = vmatpush1.bf16.msra.mxu0 0
        %2936 = vmatprep.subr.bf16.mxu0 0
        %2937 = vmatpush1.bf16.msra.mxu0 0
        %2938 = vmatprep.subr.bf16.mxu0 0
        %2939 = vmatpush1.bf16.msra.mxu0 0
        %2940 = vmatprep.subr.bf16.mxu0 0
        %2941 = vmatpush1.bf16.msra.mxu0 0
        %2942 = vmatprep.mubr.bf16.mxu0 0
        %2943 = vmatmul.mubr.bf16.gmra.mrb[0].mxu0 %v2867
        %v2944 = vpop.f32.mrb[0].mxu0
        %v2945 = vadd.f32 %v2634, %v2944
        %v2946 = vpop.f32.mrb[0].mxu0
        %v2947 = vadd.f32 %v2636, %v2946
        %v2948 = vpop.f32.mrb[0].mxu0
        %v2949 = vpop.f32.mrb[0].mxu0
        %2950 = vdwg.mxu0
        %2951 = vmatprep.subr.bf16.mxu0 %v2815
        %2952 = vmatpush1.bf16.msra.mxu0 %v2814
        %2953 = vmatprep.subr.bf16.mxu0 %v2822
        %2954 = vmatpush1.bf16.msra.mxu0 %v2821
        %2955 = vmatprep.subr.bf16.mxu0 %v2829
        %2956 = vmatpush1.bf16.msra.mxu0 %v2828
        %2957 = vmatprep.subr.bf16.mxu0 %v2836
        %2958 = vmatpush1.bf16.msra.mxu0 %v2835
        %2959 = vmatprep.subr.bf16.mxu0 0
        %2960 = vmatpush1.bf16.msra.mxu0 0
        %2961 = vmatprep.subr.bf16.mxu0 0
        %2962 = vmatpush1.bf16.msra.mxu0 0
        %2963 = vmatprep.subr.bf16.mxu0 0
        %2964 = vmatpush1.bf16.msra.mxu0 0
        %2965 = vmatprep.subr.bf16.mxu0 0
        %2966 = vmatpush1.bf16.msra.mxu0 0
        %2967 = vmatprep.subr.bf16.mxu0 0
        %2968 = vmatpush1.bf16.msra.mxu0 0
        %2969 = vmatprep.subr.bf16.mxu0 0
        %2970 = vmatpush1.bf16.msra.mxu0 0
        %2971 = vmatprep.subr.bf16.mxu0 0
        %2972 = vmatpush1.bf16.msra.mxu0 0
        %2973 = vmatprep.subr.bf16.mxu0 0
        %2974 = vmatpush1.bf16.msra.mxu0 0
        %2975 = vmatprep.subr.bf16.mxu0 0
        %2976 = vmatpush1.bf16.msra.mxu0 0
        %2977 = vmatprep.subr.bf16.mxu0 0
        %2978 = vmatpush1.bf16.msra.mxu0 0
        %2979 = vmatprep.subr.bf16.mxu0 0
        %2980 = vmatpush1.bf16.msra.mxu0 0
        %2981 = vmatprep.subr.bf16.mxu0 0
        %2982 = vmatpush1.bf16.msra.mxu0 0
        %2983 = vmatprep.mubr.bf16.mxu0 0
        %2984 = vmatmul.mubr.bf16.gmra.mrb[0].mxu0 %v2867
        %v2985 = vpop.f32.mrb[0].mxu0
        %v2986 = vadd.f32 %v2675, %v2985
        %v2987 = vpop.f32.mrb[0].mxu0
        %v2988 = vadd.f32 %v2677, %v2987
        %v2989 = vpop.f32.mrb[0].mxu0
        %v2990 = vpop.f32.mrb[0].mxu0
        %2991 = vdwg.mxu0
        %2992 = vmatprep.subr.bf16.mxu0 0
        %2993 = vmatpush1.bf16.msra.mxu0 %v2816
        %2994 = vmatprep.subr.bf16.mxu0 0
        %2995 = vmatpush1.bf16.msra.mxu0 %v2823
        %2996 = vmatprep.subr.bf16.mxu0 0
        %2997 = vmatpush1.bf16.msra.mxu0 %v2830
        %2998 = vmatprep.subr.bf16.mxu0 0
        %2999 = vmatpush1.bf16.msra.mxu0 %v2837
        %3000 = vmatprep.subr.bf16.mxu0 0
        %3001 = vmatpush1.bf16.msra.mxu0 0
        %3002 = vmatprep.subr.bf16.mxu0 0
        %3003 = vmatpush1.bf16.msra.mxu0 0
        %3004 = vmatprep.subr.bf16.mxu0 0
        %3005 = vmatpush1.bf16.msra.mxu0 0
        %3006 = vmatprep.subr.bf16.mxu0 0
        %3007 = vmatpush1.bf16.msra.mxu0 0
        %3008 = vmatprep.subr.bf16.mxu0 0
        %3009 = vmatpush1.bf16.msra.mxu0 0
        %3010 = vmatprep.subr.bf16.mxu0 0
        %3011 = vmatpush1.bf16.msra.mxu0 0
        %3012 = vmatprep.subr.bf16.mxu0 0
        %3013 = vmatpush1.bf16.msra.mxu0 0
        %3014 = vmatprep.subr.bf16.mxu0 0
        %3015 = vmatpush1.bf16.msra.mxu0 0
        %3016 = vmatprep.subr.bf16.mxu0 0
        %3017 = vmatpush1.bf16.msra.mxu0 0
        %3018 = vmatprep.subr.bf16.mxu0 0
        %3019 = vmatpush1.bf16.msra.mxu0 0
        %3020 = vmatprep.subr.bf16.mxu0 0
        %3021 = vmatpush1.bf16.msra.mxu0 0
        %3022 = vmatprep.subr.bf16.mxu0 0
        %3023 = vmatpush1.bf16.msra.mxu0 0
        %3024 = vmatprep.mubr.bf16.mxu0 0
        %3025 = vmatmul.mubr.bf16.gmra.mrb[0].mxu0 %v2867
        %v3026 = vpop.f32.mrb[0].mxu0
        %v3027 = vadd.f32 %v2716, %v3026
        %v3028 = vpop.f32.mrb[0].mxu0
        %v3029 = vpop.f32.mrb[0].mxu0
        %v3030 = vpop.f32.mrb[0].mxu0
        %3031 = vdwg.mxu0
        %s3032 = scalar_lea.vmem %s352, 1568 [#allocation8]
        %v3033 = vld [vmem:[%s3032] sm:$0xff]
        %v3034 = vld [vmem:[%s3032 + $0x8] sm:$0xff]
        %v3035 = vld [vmem:[%s3032 + $0x10] sm:$0xff]
        %v3036 = vld [vmem:[%s3032 + $0x18] sm:$0xf]
        %v3037 = vld [vmem:[%s3032 + $0x1c] sm:$0xff]
        %v3038 = vld [vmem:[%s3032 + $0x24] sm:$0xff]
        %v3039 = vld [vmem:[%s3032 + $0x2c] sm:$0xff]
        %v3040 = vld [vmem:[%s3032 + $0x34] sm:$0xf]
        %v3041 = vld [vmem:[%s3032 + $0x38] sm:$0xff]
        %v3042 = vld [vmem:[%s3032 + $0x40] sm:$0xff]
        %v3043 = vld [vmem:[%s3032 + $0x48] sm:$0xff]
        %v3044 = vld [vmem:[%s3032 + $0x50] sm:$0xf]
        %v3045 = vld [vmem:[%s3032 + $0x54] sm:$0xff]
        %v3046 = vld [vmem:[%s3032 + $0x5c] sm:$0xff]
        %v3047 = vld [vmem:[%s3032 + $0x64] sm:$0xff]
        %v3048 = vld [vmem:[%s3032 + $0x6c] sm:$0xf]
        %v3049 = vld [vmem:[%s3032 + $0x70] sm:$0xff]
        %v3050 = vld [vmem:[%s3032 + $0x78] sm:$0xff]
        %v3051 = vld [vmem:[%s3032 + $0x80] sm:$0xff]
        %v3052 = vld [vmem:[%s3032 + $0x88] sm:$0xf]
        %v3053 = vld [vmem:[%s3032 + $0x8c] sm:$0xff]
        %v3054 = vld [vmem:[%s3032 + $0x94] sm:$0xff]
        %v3055 = vld [vmem:[%s3032 + $0x9c] sm:$0xff]
        %v3056 = vld [vmem:[%s3032 + $0xa4] sm:$0xf]
        %v3057 = vld [vmem:[%s3032 + $0xa8] sm:$0xff]
        %v3058 = vld [vmem:[%s3032 + $0xb0] sm:$0xff]
        %v3059 = vld [vmem:[%s3032 + $0xb8] sm:$0xff]
        %v3060 = vld [vmem:[%s3032 + $0xc0] sm:$0xf]
        %v3061 = vld [vmem:[%s3032 + $0xc4] sm:$0xff]
        %v3062 = vld [vmem:[%s3032 + $0xcc] sm:$0xff]
        %v3063 = vld [vmem:[%s3032 + $0xd4] sm:$0xff]
        %v3064 = vld [vmem:[%s3032 + $0xdc] sm:$0xf]
        %v3065 = vrot.slane %v1754, 3
        %v3098 = vunpack.c.l.b16 %v3033
        %v3099 = vunpack.c.h.b16 %v3033
        %v3100 = vunpack.c.l.b16 %v3034
        %v3101 = vunpack.c.h.b16 %v3034
        %v3102 = vunpack.c.l.b16 %v3035
        %v3103 = vunpack.c.h.b16 %v3035
        %v3104 = vunpack.c.l.b16 %v3036
        %v3105 = vunpack.c.l.b16 %v3037
        %v3106 = vunpack.c.h.b16 %v3037
        %v3107 = vunpack.c.l.b16 %v3038
        %v3108 = vunpack.c.h.b16 %v3038
        %v3109 = vunpack.c.l.b16 %v3039
        %v3110 = vunpack.c.h.b16 %v3039
        %v3111 = vunpack.c.l.b16 %v3040
        %v3112 = vunpack.c.l.b16 %v3041
        %v3113 = vunpack.c.h.b16 %v3041
        %v3114 = vunpack.c.l.b16 %v3042
        %v3115 = vunpack.c.h.b16 %v3042
        %v3116 = vunpack.c.l.b16 %v3043
        %v3117 = vunpack.c.h.b16 %v3043
        %v3118 = vunpack.c.l.b16 %v3044
        %v3119 = vunpack.c.l.b16 %v3045
        %v3120 = vunpack.c.h.b16 %v3045
        %v3121 = vunpack.c.l.b16 %v3046
        %v3122 = vunpack.c.h.b16 %v3046
        %v3123 = vunpack.c.l.b16 %v3047
        %v3124 = vunpack.c.h.b16 %v3047
        %v3125 = vunpack.c.l.b16 %v3048
        %v3126 = vunpack.c.l.b16 %v3049
        %v3127 = vunpack.c.h.b16 %v3049
        %v3128 = vunpack.c.l.b16 %v3050
        %v3129 = vunpack.c.h.b16 %v3050
        %v3130 = vunpack.c.l.b16 %v3051
        %v3131 = vunpack.c.h.b16 %v3051
        %v3132 = vunpack.c.l.b16 %v3052
        %v3133 = vunpack.c.l.b16 %v3053
        %v3134 = vunpack.c.h.b16 %v3053
        %v3135 = vunpack.c.l.b16 %v3054
        %v3136 = vunpack.c.h.b16 %v3054
        %v3137 = vunpack.c.l.b16 %v3055
        %v3138 = vunpack.c.h.b16 %v3055
        %v3139 = vunpack.c.l.b16 %v3056
        %v3140 = vunpack.c.l.b16 %v3057
        %v3141 = vunpack.c.h.b16 %v3057
        %v3142 = vunpack.c.l.b16 %v3058
        %v3143 = vunpack.c.h.b16 %v3058
        %v3144 = vunpack.c.l.b16 %v3059
        %v3145 = vunpack.c.h.b16 %v3059
        %v3146 = vunpack.c.l.b16 %v3060
        %v3147 = vunpack.c.l.b16 %v3061
        %v3148 = vunpack.c.h.b16 %v3061
        %v3149 = vunpack.c.l.b16 %v3062
        %v3150 = vunpack.c.h.b16 %v3062
        %v3151 = vunpack.c.l.b16 %v3063
        %v3152 = vunpack.c.h.b16 %v3063
        %v3153 = vunpack.c.l.b16 %v3064
        %v3154 = vpack.c.b16 %v3105, %v3098
        %v3155 = vpack.c.b16 %v3106, %v3099
        %v3156 = vpack.c.b16 %v3107, %v3100
        %v3157 = vpack.c.b16 %v3108, %v3101
        %v3158 = vpack.c.b16 %v3109, %v3102
        %v3159 = vpack.c.b16 %v3110, %v3103
        %v3160 = vpack.c.b16 %v3111, %v3104
        %v3161 = vpack.c.b16 %v3119, %v3112
        %v3162 = vpack.c.b16 %v3120, %v3113
        %v3163 = vpack.c.b16 %v3121, %v3114
        %v3164 = vpack.c.b16 %v3122, %v3115
        %v3165 = vpack.c.b16 %v3123, %v3116
        %v3166 = vpack.c.b16 %v3124, %v3117
        %v3167 = vpack.c.b16 %v3125, %v3118
        %v3168 = vpack.c.b16 %v3133, %v3126
        %v3169 = vpack.c.b16 %v3134, %v3127
        %v3170 = vpack.c.b16 %v3135, %v3128
        %v3171 = vpack.c.b16 %v3136, %v3129
        %v3172 = vpack.c.b16 %v3137, %v3130
        %v3173 = vpack.c.b16 %v3138, %v3131
        %v3174 = vpack.c.b16 %v3139, %v3132
        %v3175 = vpack.c.b16 %v3147, %v3140
        %v3176 = vpack.c.b16 %v3148, %v3141
        %v3177 = vpack.c.b16 %v3149, %v3142
        %v3178 = vpack.c.b16 %v3150, %v3143
        %v3179 = vpack.c.b16 %v3151, %v3144
        %v3180 = vpack.c.b16 %v3152, %v3145
        %v3181 = vpack.c.b16 %v3153, %v3146
        %v3211 = vsel %vm996, %v3065, 0
        %3213 = vmatprep.subr.bf16.mxu0 %v3155
        %3214 = vmatpush1.bf16.msra.mxu0 %v3154
        %3215 = vmatprep.subr.bf16.mxu0 %v3162
        %3216 = vmatpush1.bf16.msra.mxu0 %v3161
        %3217 = vmatprep.subr.bf16.mxu0 %v3169
        %3218 = vmatpush1.bf16.msra.mxu0 %v3168
        %3219 = vmatprep.subr.bf16.mxu0 %v3176
        %3220 = vmatpush1.bf16.msra.mxu0 %v3175
        %3221 = vmatprep.subr.bf16.mxu0 0
        %3222 = vmatpush1.bf16.msra.mxu0 0
        %3223 = vmatprep.subr.bf16.mxu0 0
        %3224 = vmatpush1.bf16.msra.mxu0 0
        %3225 = vmatprep.subr.bf16.mxu0 0
        %3226 = vmatpush1.bf16.msra.mxu0 0
        %3227 = vmatprep.subr.bf16.mxu0 0
        %3228 = vmatpush1.bf16.msra.mxu0 0
        %3229 = vmatprep.subr.bf16.mxu0 0
        %3230 = vmatpush1.bf16.msra.mxu0 0
        %3231 = vmatprep.subr.bf16.mxu0 0
        %3232 = vmatpush1.bf16.msra.mxu0 0
        %3233 = vmatprep.subr.bf16.mxu0 0
        %3234 = vmatpush1.bf16.msra.mxu0 0
        %3235 = vmatprep.subr.bf16.mxu0 0
        %3236 = vmatpush1.bf16.msra.mxu0 0
        %3237 = vmatprep.subr.bf16.mxu0 0
        %3238 = vmatpush1.bf16.msra.mxu0 0
        %3239 = vmatprep.subr.bf16.mxu0 0
        %3240 = vmatpush1.bf16.msra.mxu0 0
        %3241 = vmatprep.subr.bf16.mxu0 0
        %3242 = vmatpush1.bf16.msra.mxu0 0
        %3243 = vmatprep.subr.bf16.mxu0 0
        %3244 = vmatpush1.bf16.msra.mxu0 0
        %3245 = vmatprep.mubr.bf16.mxu0 0
        %3246 = vmatmul.mubr.bf16.gmra.mrb[0].mxu0 %v3211
        %v3247 = vpop.f32.mrb[0].mxu0
        %v3248 = vadd.f32 0.0, %v3247
        %v3249 = vpop.f32.mrb[0].mxu0
        %v3250 = vadd.f32 0.0, %v3249
        %v3251 = vpop.f32.mrb[0].mxu0
        %v3252 = vpop.f32.mrb[0].mxu0
        %3253 = vdwg.mxu0
        %3254 = vmatprep.subr.bf16.mxu0 %v3157
        %3255 = vmatpush1.bf16.msra.mxu0 %v3156
        %3256 = vmatprep.subr.bf16.mxu0 %v3164
        %3257 = vmatpush1.bf16.msra.mxu0 %v3163
        %3258 = vmatprep.subr.bf16.mxu0 %v3171
        %3259 = vmatpush1.bf16.msra.mxu0 %v3170
        %3260 = vmatprep.subr.bf16.mxu0 %v3178
        %3261 = vmatpush1.bf16.msra.mxu0 %v3177
        %3262 = vmatprep.subr.bf16.mxu0 0
        %3263 = vmatpush1.bf16.msra.mxu0 0
        %3264 = vmatprep.subr.bf16.mxu0 0
        %3265 = vmatpush1.bf16.msra.mxu0 0
        %3266 = vmatprep.subr.bf16.mxu0 0
        %3267 = vmatpush1.bf16.msra.mxu0 0
        %3268 = vmatprep.subr.bf16.mxu0 0
        %3269 = vmatpush1.bf16.msra.mxu0 0
        %3270 = vmatprep.subr.bf16.mxu0 0
        %3271 = vmatpush1.bf16.msra.mxu0 0
        %3272 = vmatprep.subr.bf16.mxu0 0
        %3273 = vmatpush1.bf16.msra.mxu0 0
        %3274 = vmatprep.subr.bf16.mxu0 0
        %3275 = vmatpush1.bf16.msra.mxu0 0
        %3276 = vmatprep.subr.bf16.mxu0 0
        %3277 = vmatpush1.bf16.msra.mxu0 0
        %3278 = vmatprep.subr.bf16.mxu0 0
        %3279 = vmatpush1.bf16.msra.mxu0 0
        %3280 = vmatprep.subr.bf16.mxu0 0
        %3281 = vmatpush1.bf16.msra.mxu0 0
        %3282 = vmatprep.subr.bf16.mxu0 0
        %3283 = vmatpush1.bf16.msra.mxu0 0
        %3284 = vmatprep.subr.bf16.mxu0 0
        %3285 = vmatpush1.bf16.msra.mxu0 0
        %3286 = vmatprep.mubr.bf16.mxu0 0
        %3287 = vmatmul.mubr.bf16.gmra.mrb[0].mxu0 %v3211
        %v3288 = vpop.f32.mrb[0].mxu0
        %v3289 = vadd.f32 0.0, %v3288
        %v3290 = vpop.f32.mrb[0].mxu0
        %v3291 = vadd.f32 0.0, %v3290
        %v3292 = vpop.f32.mrb[0].mxu0
        %v3293 = vpop.f32.mrb[0].mxu0
        %3294 = vdwg.mxu0
        %3295 = vmatprep.subr.bf16.mxu0 %v3159
        %3296 = vmatpush1.bf16.msra.mxu0 %v3158
        %3297 = vmatprep.subr.bf16.mxu0 %v3166
        %3298 = vmatpush1.bf16.msra.mxu0 %v3165
        %3299 = vmatprep.subr.bf16.mxu0 %v3173
        %3300 = vmatpush1.bf16.msra.mxu0 %v3172
        %3301 = vmatprep.subr.bf16.mxu0 %v3180
        %3302 = vmatpush1.bf16.msra.mxu0 %v3179
        %3303 = vmatprep.subr.bf16.mxu0 0
        %3304 = vmatpush1.bf16.msra.mxu0 0
        %3305 = vmatprep.subr.bf16.mxu0 0
        %3306 = vmatpush1.bf16.msra.mxu0 0
        %3307 = vmatprep.subr.bf16.mxu0 0
        %3308 = vmatpush1.bf16.msra.mxu0 0
        %3309 = vmatprep.subr.bf16.mxu0 0
        %3310 = vmatpush1.bf16.msra.mxu0 0
        %3311 = vmatprep.subr.bf16.mxu0 0
        %3312 = vmatpush1.bf16.msra.mxu0 0
        %3313 = vmatprep.subr.bf16.mxu0 0
        %3314 = vmatpush1.bf16.msra.mxu0 0
        %3315 = vmatprep.subr.bf16.mxu0 0
        %3316 = vmatpush1.bf16.msra.mxu0 0
        %3317 = vmatprep.subr.bf16.mxu0 0
        %3318 = vmatpush1.bf16.msra.mxu0 0
        %3319 = vmatprep.subr.bf16.mxu0 0
        %3320 = vmatpush1.bf16.msra.mxu0 0
        %3321 = vmatprep.subr.bf16.mxu0 0
        %3322 = vmatpush1.bf16.msra.mxu0 0
        %3323 = vmatprep.subr.bf16.mxu0 0
        %3324 = vmatpush1.bf16.msra.mxu0 0
        %3325 = vmatprep.subr.bf16.mxu0 0
        %3326 = vmatpush1.bf16.msra.mxu0 0
        %3327 = vmatprep.mubr.bf16.mxu0 0
        %3328 = vmatmul.mubr.bf16.gmra.mrb[0].mxu0 %v3211
        %v3329 = vpop.f32.mrb[0].mxu0
        %v3330 = vadd.f32 0.0, %v3329
        %v3331 = vpop.f32.mrb[0].mxu0
        %v3332 = vadd.f32 0.0, %v3331
        %v3333 = vpop.f32.mrb[0].mxu0
        %v3334 = vpop.f32.mrb[0].mxu0
        %3335 = vdwg.mxu0
        %3336 = vmatprep.subr.bf16.mxu0 0
        %3337 = vmatpush1.bf16.msra.mxu0 %v3160
        %3338 = vmatprep.subr.bf16.mxu0 0
        %3339 = vmatpush1.bf16.msra.mxu0 %v3167
        %3340 = vmatprep.subr.bf16.mxu0 0
        %3341 = vmatpush1.bf16.msra.mxu0 %v3174
        %3342 = vmatprep.subr.bf16.mxu0 0
        %3343 = vmatpush1.bf16.msra.mxu0 %v3181
        %3344 = vmatprep.subr.bf16.mxu0 0
        %3345 = vmatpush1.bf16.msra.mxu0 0
        %3346 = vmatprep.subr.bf16.mxu0 0
        %3347 = vmatpush1.bf16.msra.mxu0 0
        %3348 = vmatprep.subr.bf16.mxu0 0
        %3349 = vmatpush1.bf16.msra.mxu0 0
        %3350 = vmatprep.subr.bf16.mxu0 0
        %3351 = vmatpush1.bf16.msra.mxu0 0
        %3352 = vmatprep.subr.bf16.mxu0 0
        %3353 = vmatpush1.bf16.msra.mxu0 0
        %3354 = vmatprep.subr.bf16.mxu0 0
        %3355 = vmatpush1.bf16.msra.mxu0 0
        %3356 = vmatprep.subr.bf16.mxu0 0
        %3357 = vmatpush1.bf16.msra.mxu0 0
        %3358 = vmatprep.subr.bf16.mxu0 0
        %3359 = vmatpush1.bf16.msra.mxu0 0
        %3360 = vmatprep.subr.bf16.mxu0 0
        %3361 = vmatpush1.bf16.msra.mxu0 0
        %3362 = vmatprep.subr.bf16.mxu0 0
        %3363 = vmatpush1.bf16.msra.mxu0 0
        %3364 = vmatprep.subr.bf16.mxu0 0
        %3365 = vmatpush1.bf16.msra.mxu0 0
        %3366 = vmatprep.subr.bf16.mxu0 0
        %3367 = vmatpush1.bf16.msra.mxu0 0
        %3368 = vmatprep.mubr.bf16.mxu0 0
        %3369 = vmatmul.mubr.bf16.gmra.mrb[0].mxu0 %v3211
        %v3370 = vpop.f32.mrb[0].mxu0
        %v3371 = vadd.f32 0.0, %v3370
        %v3372 = vpop.f32.mrb[0].mxu0
        %v3373 = vpop.f32.mrb[0].mxu0
        %v3374 = vpop.f32.mrb[0].mxu0
        %3375 = vdwg.mxu0
        %v3376 = vrot.slane %v1754, 1
        %v3409 = vunpack.c.l.b16 %v1287
        %v3410 = vunpack.c.h.b16 %v1287
        %v3411 = vunpack.c.l.b16 %v1288
        %v3412 = vunpack.c.h.b16 %v1288
        %v3413 = vunpack.c.l.b16 %v1289
        %v3414 = vunpack.c.h.b16 %v1289
        %v3415 = vunpack.c.l.b16 %v1290
        %v3416 = vunpack.c.l.b16 %v1291
        %v3417 = vunpack.c.h.b16 %v1291
        %v3418 = vunpack.c.l.b16 %v1292
        %v3419 = vunpack.c.h.b16 %v1292
        %v3420 = vunpack.c.l.b16 %v1293
        %v3421 = vunpack.c.h.b16 %v1293
        %v3422 = vunpack.c.l.b16 %v1294
        %v3423 = vunpack.c.l.b16 %v1295
        %v3424 = vunpack.c.h.b16 %v1295
        %v3425 = vunpack.c.l.b16 %v1296
        %v3426 = vunpack.c.h.b16 %v1296
        %v3427 = vunpack.c.l.b16 %v1297
        %v3428 = vunpack.c.h.b16 %v1297
        %v3429 = vunpack.c.l.b16 %v1298
        %v3430 = vunpack.c.l.b16 %v1299
        %v3431 = vunpack.c.h.b16 %v1299
        %v3432 = vunpack.c.l.b16 %v1300
        %v3433 = vunpack.c.h.b16 %v1300
        %v3434 = vunpack.c.l.b16 %v1301
        %v3435 = vunpack.c.h.b16 %v1301
        %v3436 = vunpack.c.l.b16 %v1302
        %v3437 = vunpack.c.l.b16 %v1303
        %v3438 = vunpack.c.h.b16 %v1303
        %v3439 = vunpack.c.l.b16 %v1304
        %v3440 = vunpack.c.h.b16 %v1304
        %v3441 = vunpack.c.l.b16 %v1305
        %v3442 = vunpack.c.h.b16 %v1305
        %v3443 = vunpack.c.l.b16 %v1306
        %v3444 = vunpack.c.l.b16 %v1307
        %v3445 = vunpack.c.h.b16 %v1307
        %v3446 = vunpack.c.l.b16 %v1308
        %v3447 = vunpack.c.h.b16 %v1308
        %v3448 = vunpack.c.l.b16 %v1309
        %v3449 = vunpack.c.h.b16 %v1309
        %v3450 = vunpack.c.l.b16 %v1310
        %v3451 = vunpack.c.l.b16 %v1311
        %v3452 = vunpack.c.h.b16 %v1311
        %v3453 = vunpack.c.l.b16 %v1312
        %v3454 = vunpack.c.h.b16 %v1312
        %v3455 = vunpack.c.l.b16 %v1313
        %v3456 = vunpack.c.h.b16 %v1313
        %v3457 = vunpack.c.l.b16 %v1314
        %v3458 = vunpack.c.l.b16 %v1315
        %v3459 = vunpack.c.h.b16 %v1315
        %v3460 = vunpack.c.l.b16 %v1316
        %v3461 = vunpack.c.h.b16 %v1316
        %v3462 = vunpack.c.l.b16 %v1317
        %v3463 = vunpack.c.h.b16 %v1317
        %v3464 = vunpack.c.l.b16 %v1318
        %v3465 = vpack.c.b16 %v3416, %v3409
        %v3466 = vpack.c.b16 %v3417, %v3410
        %v3467 = vpack.c.b16 %v3418, %v3411
        %v3468 = vpack.c.b16 %v3419, %v3412
        %v3469 = vpack.c.b16 %v3420, %v3413
        %v3470 = vpack.c.b16 %v3421, %v3414
        %v3471 = vpack.c.b16 %v3422, %v3415
        %v3472 = vpack.c.b16 %v3430, %v3423
        %v3473 = vpack.c.b16 %v3431, %v3424
        %v3474 = vpack.c.b16 %v3432, %v3425
        %v3475 = vpack.c.b16 %v3433, %v3426
        %v3476 = vpack.c.b16 %v3434, %v3427
        %v3477 = vpack.c.b16 %v3435, %v3428
        %v3478 = vpack.c.b16 %v3436, %v3429
        %v3479 = vpack.c.b16 %v3444, %v3437
        %v3480 = vpack.c.b16 %v3445, %v3438
        %v3481 = vpack.c.b16 %v3446, %v3439
        %v3482 = vpack.c.b16 %v3447, %v3440
        %v3483 = vpack.c.b16 %v3448, %v3441
        %v3484 = vpack.c.b16 %v3449, %v3442
        %v3485 = vpack.c.b16 %v3450, %v3443
        %v3486 = vpack.c.b16 %v3458, %v3451
        %v3487 = vpack.c.b16 %v3459, %v3452
        %v3488 = vpack.c.b16 %v3460, %v3453
        %v3489 = vpack.c.b16 %v3461, %v3454
        %v3490 = vpack.c.b16 %v3462, %v3455
        %v3491 = vpack.c.b16 %v3463, %v3456
        %v3492 = vpack.c.b16 %v3464, %v3457
        %v3522 = vsel %vm996, %v3376, 0
        %3524 = vmatprep.subr.bf16.mxu0 %v3466
        %3525 = vmatpush1.bf16.msra.mxu0 %v3465
        %3526 = vmatprep.subr.bf16.mxu0 %v3473
        %3527 = vmatpush1.bf16.msra.mxu0 %v3472
        %3528 = vmatprep.subr.bf16.mxu0 %v3480
        %3529 = vmatpush1.bf16.msra.mxu0 %v3479
        %3530 = vmatprep.subr.bf16.mxu0 %v3487
        %3531 = vmatpush1.bf16.msra.mxu0 %v3486
        %3532 = vmatprep.subr.bf16.mxu0 0
        %3533 = vmatpush1.bf16.msra.mxu0 0
        %3534 = vmatprep.subr.bf16.mxu0 0
        %3535 = vmatpush1.bf16.msra.mxu0 0
        %3536 = vmatprep.subr.bf16.mxu0 0
        %3537 = vmatpush1.bf16.msra.mxu0 0
        %3538 = vmatprep.subr.bf16.mxu0 0
        %3539 = vmatpush1.bf16.msra.mxu0 0
        %3540 = vmatprep.subr.bf16.mxu0 0
        %3541 = vmatpush1.bf16.msra.mxu0 0
        %3542 = vmatprep.subr.bf16.mxu0 0
        %3543 = vmatpush1.bf16.msra.mxu0 0
        %3544 = vmatprep.subr.bf16.mxu0 0
        %3545 = vmatpush1.bf16.msra.mxu0 0
        %3546 = vmatprep.subr.bf16.mxu0 0
        %3547 = vmatpush1.bf16.msra.mxu0 0
        %3548 = vmatprep.subr.bf16.mxu0 0
        %3549 = vmatpush1.bf16.msra.mxu0 0
        %3550 = vmatprep.subr.bf16.mxu0 0
        %3551 = vmatpush1.bf16.msra.mxu0 0
        %3552 = vmatprep.subr.bf16.mxu0 0
        %3553 = vmatpush1.bf16.msra.mxu0 0
        %3554 = vmatprep.subr.bf16.mxu0 0
        %3555 = vmatpush1.bf16.msra.mxu0 0
        %3556 = vmatprep.mubr.bf16.mxu0 0
        %3557 = vmatmul.mubr.bf16.gmra.mrb[0].mxu0 %v3522
        %v3558 = vpop.f32.mrb[0].mxu0
        %v3559 = vadd.f32 %v3248, %v3558
        %v3560 = vpop.f32.mrb[0].mxu0
        %v3561 = vadd.f32 %v3250, %v3560
        %v3562 = vpop.f32.mrb[0].mxu0
        %v3563 = vpop.f32.mrb[0].mxu0
        %3564 = vdwg.mxu0
        %3565 = vmatprep.subr.bf16.mxu0 %v3468
        %3566 = vmatpush1.bf16.msra.mxu0 %v3467
        %3567 = vmatprep.subr.bf16.mxu0 %v3475
        %3568 = vmatpush1.bf16.msra.mxu0 %v3474
        %3569 = vmatprep.subr.bf16.mxu0 %v3482
        %3570 = vmatpush1.bf16.msra.mxu0 %v3481
        %3571 = vmatprep.subr.bf16.mxu0 %v3489
        %3572 = vmatpush1.bf16.msra.mxu0 %v3488
        %3573 = vmatprep.subr.bf16.mxu0 0
        %3574 = vmatpush1.bf16.msra.mxu0 0
        %3575 = vmatprep.subr.bf16.mxu0 0
        %3576 = vmatpush1.bf16.msra.mxu0 0
        %3577 = vmatprep.subr.bf16.mxu0 0
        %3578 = vmatpush1.bf16.msra.mxu0 0
        %3579 = vmatprep.subr.bf16.mxu0 0
        %3580 = vmatpush1.bf16.msra.mxu0 0
        %3581 = vmatprep.subr.bf16.mxu0 0
        %3582 = vmatpush1.bf16.msra.mxu0 0
        %3583 = vmatprep.subr.bf16.mxu0 0
        %3584 = vmatpush1.bf16.msra.mxu0 0
        %3585 = vmatprep.subr.bf16.mxu0 0
        %3586 = vmatpush1.bf16.msra.mxu0 0
        %3587 = vmatprep.subr.bf16.mxu0 0
        %3588 = vmatpush1.bf16.msra.mxu0 0
        %3589 = vmatprep.subr.bf16.mxu0 0
        %3590 = vmatpush1.bf16.msra.mxu0 0
        %3591 = vmatprep.subr.bf16.mxu0 0
        %3592 = vmatpush1.bf16.msra.mxu0 0
        %3593 = vmatprep.subr.bf16.mxu0 0
        %3594 = vmatpush1.bf16.msra.mxu0 0
        %3595 = vmatprep.subr.bf16.mxu0 0
        %3596 = vmatpush1.bf16.msra.mxu0 0
        %3597 = vmatprep.mubr.bf16.mxu0 0
        %3598 = vmatmul.mubr.bf16.gmra.mrb[0].mxu0 %v3522
        %v3599 = vpop.f32.mrb[0].mxu0
        %v3600 = vadd.f32 %v3289, %v3599
        %v3601 = vpop.f32.mrb[0].mxu0
        %v3602 = vadd.f32 %v3291, %v3601
        %v3603 = vpop.f32.mrb[0].mxu0
        %v3604 = vpop.f32.mrb[0].mxu0
        %3605 = vdwg.mxu0
        %3606 = vmatprep.subr.bf16.mxu0 %v3470
        %3607 = vmatpush1.bf16.msra.mxu0 %v3469
        %3608 = vmatprep.subr.bf16.mxu0 %v3477
        %3609 = vmatpush1.bf16.msra.mxu0 %v3476
        %3610 = vmatprep.subr.bf16.mxu0 %v3484
        %3611 = vmatpush1.bf16.msra.mxu0 %v3483
        %3612 = vmatprep.subr.bf16.mxu0 %v3491
        %3613 = vmatpush1.bf16.msra.mxu0 %v3490
        %3614 = vmatprep.subr.bf16.mxu0 0
        %3615 = vmatpush1.bf16.msra.mxu0 0
        %3616 = vmatprep.subr.bf16.mxu0 0
        %3617 = vmatpush1.bf16.msra.mxu0 0
        %3618 = vmatprep.subr.bf16.mxu0 0
        %3619 = vmatpush1.bf16.msra.mxu0 0
        %3620 = vmatprep.subr.bf16.mxu0 0
        %3621 = vmatpush1.bf16.msra.mxu0 0
        %3622 = vmatprep.subr.bf16.mxu0 0
        %3623 = vmatpush1.bf16.msra.mxu0 0
        %3624 = vmatprep.subr.bf16.mxu0 0
        %3625 = vmatpush1.bf16.msra.mxu0 0
        %3626 = vmatprep.subr.bf16.mxu0 0
        %3627 = vmatpush1.bf16.msra.mxu0 0
        %3628 = vmatprep.subr.bf16.mxu0 0
        %3629 = vmatpush1.bf16.msra.mxu0 0
        %3630 = vmatprep.subr.bf16.mxu0 0
        %3631 = vmatpush1.bf16.msra.mxu0 0
        %3632 = vmatprep.subr.bf16.mxu0 0
        %3633 = vmatpush1.bf16.msra.mxu0 0
        %3634 = vmatprep.subr.bf16.mxu0 0
        %3635 = vmatpush1.bf16.msra.mxu0 0
        %3636 = vmatprep.subr.bf16.mxu0 0
        %3637 = vmatpush1.bf16.msra.mxu0 0
        %3638 = vmatprep.mubr.bf16.mxu0 0
        %3639 = vmatmul.mubr.bf16.gmra.mrb[0].mxu0 %v3522
        %v3640 = vpop.f32.mrb[0].mxu0
        %v3641 = vadd.f32 %v3330, %v3640
        %v3642 = vpop.f32.mrb[0].mxu0
        %v3643 = vadd.f32 %v3332, %v3642
        %v3644 = vpop.f32.mrb[0].mxu0
        %v3645 = vpop.f32.mrb[0].mxu0
        %3646 = vdwg.mxu0
        %3647 = vmatprep.subr.bf16.mxu0 0
        %3648 = vmatpush1.bf16.msra.mxu0 %v3471
        %3649 = vmatprep.subr.bf16.mxu0 0
        %3650 = vmatpush1.bf16.msra.mxu0 %v3478
        %3651 = vmatprep.subr.bf16.mxu0 0
        %3652 = vmatpush1.bf16.msra.mxu0 %v3485
        %3653 = vmatprep.subr.bf16.mxu0 0
        %3654 = vmatpush1.bf16.msra.mxu0 %v3492
        %3655 = vmatprep.subr.bf16.mxu0 0
        %3656 = vmatpush1.bf16.msra.mxu0 0
        %3657 = vmatprep.subr.bf16.mxu0 0
        %3658 = vmatpush1.bf16.msra.mxu0 0
        %3659 = vmatprep.subr.bf16.mxu0 0
        %3660 = vmatpush1.bf16.msra.mxu0 0
        %3661 = vmatprep.subr.bf16.mxu0 0
        %3662 = vmatpush1.bf16.msra.mxu0 0
        %3663 = vmatprep.subr.bf16.mxu0 0
        %3664 = vmatpush1.bf16.msra.mxu0 0
        %3665 = vmatprep.subr.bf16.mxu0 0
        %3666 = vmatpush1.bf16.msra.mxu0 0
        %3667 = vmatprep.subr.bf16.mxu0 0
        %3668 = vmatpush1.bf16.msra.mxu0 0
        %3669 = vmatprep.subr.bf16.mxu0 0
        %3670 = vmatpush1.bf16.msra.mxu0 0
        %3671 = vmatprep.subr.bf16.mxu0 0
        %3672 = vmatpush1.bf16.msra.mxu0 0
        %3673 = vmatprep.subr.bf16.mxu0 0
        %3674 = vmatpush1.bf16.msra.mxu0 0
        %3675 = vmatprep.subr.bf16.mxu0 0
        %3676 = vmatpush1.bf16.msra.mxu0 0
        %3677 = vmatprep.subr.bf16.mxu0 0
        %3678 = vmatpush1.bf16.msra.mxu0 0
        %3679 = vmatprep.mubr.bf16.mxu0 0
        %3680 = vmatmul.mubr.bf16.gmra.mrb[0].mxu0 %v3522
        %v3681 = vpop.f32.mrb[0].mxu0
        %v3682 = vadd.f32 %v3371, %v3681
        %v3683 = vpop.f32.mrb[0].mxu0
        %v3684 = vpop.f32.mrb[0].mxu0
        %v3685 = vpop.f32.mrb[0].mxu0
        %3686 = vdwg.mxu0
        %s3687 = scalar_lea.vmem %s352, 1792 [#allocation8]
        %v3688 = vld [vmem:[%s3687] sm:$0xff]
        %v3689 = vld [vmem:[%s3687 + $0x8] sm:$0xff]
        %v3690 = vld [vmem:[%s3687 + $0x10] sm:$0xff]
        %v3691 = vld [vmem:[%s3687 + $0x18] sm:$0xf]
        %v3692 = vld [vmem:[%s3687 + $0x1c] sm:$0xff]
        %v3693 = vld [vmem:[%s3687 + $0x24] sm:$0xff]
        %v3694 = vld [vmem:[%s3687 + $0x2c] sm:$0xff]
        %v3695 = vld [vmem:[%s3687 + $0x34] sm:$0xf]
        %v3696 = vld [vmem:[%s3687 + $0x38] sm:$0xff]
        %v3697 = vld [vmem:[%s3687 + $0x40] sm:$0xff]
        %v3698 = vld [vmem:[%s3687 + $0x48] sm:$0xff]
        %v3699 = vld [vmem:[%s3687 + $0x50] sm:$0xf]
        %v3700 = vld [vmem:[%s3687 + $0x54] sm:$0xff]
        %v3701 = vld [vmem:[%s3687 + $0x5c] sm:$0xff]
        %v3702 = vld [vmem:[%s3687 + $0x64] sm:$0xff]
        %v3703 = vld [vmem:[%s3687 + $0x6c] sm:$0xf]
        %v3704 = vld [vmem:[%s3687 + $0x70] sm:$0xff]
        %v3705 = vld [vmem:[%s3687 + $0x78] sm:$0xff]
        %v3706 = vld [vmem:[%s3687 + $0x80] sm:$0xff]
        %v3707 = vld [vmem:[%s3687 + $0x88] sm:$0xf]
        %v3708 = vld [vmem:[%s3687 + $0x8c] sm:$0xff]
        %v3709 = vld [vmem:[%s3687 + $0x94] sm:$0xff]
        %v3710 = vld [vmem:[%s3687 + $0x9c] sm:$0xff]
        %v3711 = vld [vmem:[%s3687 + $0xa4] sm:$0xf]
        %v3712 = vld [vmem:[%s3687 + $0xa8] sm:$0xff]
        %v3713 = vld [vmem:[%s3687 + $0xb0] sm:$0xff]
        %v3714 = vld [vmem:[%s3687 + $0xb8] sm:$0xff]
        %v3715 = vld [vmem:[%s3687 + $0xc0] sm:$0xf]
        %v3716 = vld [vmem:[%s3687 + $0xc4] sm:$0xff]
        %v3717 = vld [vmem:[%s3687 + $0xcc] sm:$0xff]
        %v3718 = vld [vmem:[%s3687 + $0xd4] sm:$0xff]
        %v3719 = vld [vmem:[%s3687 + $0xdc] sm:$0xf]
        %v3720 = vrot.slane %v817, 4
        %v3753 = vunpack.c.l.b16 %v3688
        %v3754 = vunpack.c.h.b16 %v3688
        %v3755 = vunpack.c.l.b16 %v3689
        %v3756 = vunpack.c.h.b16 %v3689
        %v3757 = vunpack.c.l.b16 %v3690
        %v3758 = vunpack.c.h.b16 %v3690
        %v3759 = vunpack.c.l.b16 %v3691
        %v3760 = vunpack.c.l.b16 %v3692
        %v3761 = vunpack.c.h.b16 %v3692
        %v3762 = vunpack.c.l.b16 %v3693
        %v3763 = vunpack.c.h.b16 %v3693
        %v3764 = vunpack.c.l.b16 %v3694
        %v3765 = vunpack.c.h.b16 %v3694
        %v3766 = vunpack.c.l.b16 %v3695
        %v3767 = vunpack.c.l.b16 %v3696
        %v3768 = vunpack.c.h.b16 %v3696
        %v3769 = vunpack.c.l.b16 %v3697
        %v3770 = vunpack.c.h.b16 %v3697
        %v3771 = vunpack.c.l.b16 %v3698
        %v3772 = vunpack.c.h.b16 %v3698
        %v3773 = vunpack.c.l.b16 %v3699
        %v3774 = vunpack.c.l.b16 %v3700
        %v3775 = vunpack.c.h.b16 %v3700
        %v3776 = vunpack.c.l.b16 %v3701
        %v3777 = vunpack.c.h.b16 %v3701
        %v3778 = vunpack.c.l.b16 %v3702
        %v3779 = vunpack.c.h.b16 %v3702
        %v3780 = vunpack.c.l.b16 %v3703
        %v3781 = vunpack.c.l.b16 %v3704
        %v3782 = vunpack.c.h.b16 %v3704
        %v3783 = vunpack.c.l.b16 %v3705
        %v3784 = vunpack.c.h.b16 %v3705
        %v3785 = vunpack.c.l.b16 %v3706
        %v3786 = vunpack.c.h.b16 %v3706
        %v3787 = vunpack.c.l.b16 %v3707
        %v3788 = vunpack.c.l.b16 %v3708
        %v3789 = vunpack.c.h.b16 %v3708
        %v3790 = vunpack.c.l.b16 %v3709
        %v3791 = vunpack.c.h.b16 %v3709
        %v3792 = vunpack.c.l.b16 %v3710
        %v3793 = vunpack.c.h.b16 %v3710
        %v3794 = vunpack.c.l.b16 %v3711
        %v3795 = vunpack.c.l.b16 %v3712
        %v3796 = vunpack.c.h.b16 %v3712
        %v3797 = vunpack.c.l.b16 %v3713
        %v3798 = vunpack.c.h.b16 %v3713
        %v3799 = vunpack.c.l.b16 %v3714
        %v3800 = vunpack.c.h.b16 %v3714
        %v3801 = vunpack.c.l.b16 %v3715
        %v3802 = vunpack.c.l.b16 %v3716
        %v3803 = vunpack.c.h.b16 %v3716
        %v3804 = vunpack.c.l.b16 %v3717
        %v3805 = vunpack.c.h.b16 %v3717
        %v3806 = vunpack.c.l.b16 %v3718
        %v3807 = vunpack.c.h.b16 %v3718
        %v3808 = vunpack.c.l.b16 %v3719
        %v3809 = vpack.c.b16 %v3760, %v3753
        %v3810 = vpack.c.b16 %v3761, %v3754
        %v3811 = vpack.c.b16 %v3762, %v3755
        %v3812 = vpack.c.b16 %v3763, %v3756
        %v3813 = vpack.c.b16 %v3764, %v3757
        %v3814 = vpack.c.b16 %v3765, %v3758
        %v3815 = vpack.c.b16 %v3766, %v3759
        %v3816 = vpack.c.b16 %v3774, %v3767
        %v3817 = vpack.c.b16 %v3775, %v3768
        %v3818 = vpack.c.b16 %v3776, %v3769
        %v3819 = vpack.c.b16 %v3777, %v3770
        %v3820 = vpack.c.b16 %v3778, %v3771
        %v3821 = vpack.c.b16 %v3779, %v3772
        %v3822 = vpack.c.b16 %v3780, %v3773
        %v3823 = vpack.c.b16 %v3788, %v3781
        %v3824 = vpack.c.b16 %v3789, %v3782
        %v3825 = vpack.c.b16 %v3790, %v3783
        %v3826 = vpack.c.b16 %v3791, %v3784
        %v3827 = vpack.c.b16 %v3792, %v3785
        %v3828 = vpack.c.b16 %v3793, %v3786
        %v3829 = vpack.c.b16 %v3794, %v3787
        %v3830 = vpack.c.b16 %v3802, %v3795
        %v3831 = vpack.c.b16 %v3803, %v3796
        %v3832 = vpack.c.b16 %v3804, %v3797
        %v3833 = vpack.c.b16 %v3805, %v3798
        %v3834 = vpack.c.b16 %v3806, %v3799
        %v3835 = vpack.c.b16 %v3807, %v3800
        %v3836 = vpack.c.b16 %v3808, %v3801
        %v3866 = vsel %vm996, %v3720, 0
        %3868 = vmatprep.subr.bf16.mxu0 %v3810
        %3869 = vmatpush1.bf16.msra.mxu0 %v3809
        %3870 = vmatprep.subr.bf16.mxu0 %v3817
        %3871 = vmatpush1.bf16.msra.mxu0 %v3816
        %3872 = vmatprep.subr.bf16.mxu0 %v3824
        %3873 = vmatpush1.bf16.msra.mxu0 %v3823
        %3874 = vmatprep.subr.bf16.mxu0 %v3831
        %3875 = vmatpush1.bf16.msra.mxu0 %v3830
        %3876 = vmatprep.subr.bf16.mxu0 0
        %3877 = vmatpush1.bf16.msra.mxu0 0
        %3878 = vmatprep.subr.bf16.mxu0 0
        %3879 = vmatpush1.bf16.msra.mxu0 0
        %3880 = vmatprep.subr.bf16.mxu0 0
        %3881 = vmatpush1.bf16.msra.mxu0 0
        %3882 = vmatprep.subr.bf16.mxu0 0
        %3883 = vmatpush1.bf16.msra.mxu0 0
        %3884 = vmatprep.subr.bf16.mxu0 0
        %3885 = vmatpush1.bf16.msra.mxu0 0
        %3886 = vmatprep.subr.bf16.mxu0 0
        %3887 = vmatpush1.bf16.msra.mxu0 0
        %3888 = vmatprep.subr.bf16.mxu0 0
        %3889 = vmatpush1.bf16.msra.mxu0 0
        %3890 = vmatprep.subr.bf16.mxu0 0
        %3891 = vmatpush1.bf16.msra.mxu0 0
        %3892 = vmatprep.subr.bf16.mxu0 0
        %3893 = vmatpush1.bf16.msra.mxu0 0
        %3894 = vmatprep.subr.bf16.mxu0 0
        %3895 = vmatpush1.bf16.msra.mxu0 0
        %3896 = vmatprep.subr.bf16.mxu0 0
        %3897 = vmatpush1.bf16.msra.mxu0 0
        %3898 = vmatprep.subr.bf16.mxu0 0
        %3899 = vmatpush1.bf16.msra.mxu0 0
        %3900 = vmatprep.mubr.bf16.mxu0 0
        %3901 = vmatmul.mubr.bf16.gmra.mrb[0].mxu0 %v3866
        %v3902 = vpop.f32.mrb[0].mxu0
        %v3903 = vadd.f32 0.0, %v3902
        %v3904 = vpop.f32.mrb[0].mxu0
        %v3905 = vadd.f32 0.0, %v3904
        %v3906 = vpop.f32.mrb[0].mxu0
        %v3907 = vpop.f32.mrb[0].mxu0
        %3908 = vdwg.mxu0
        %3909 = vmatprep.subr.bf16.mxu0 %v3812
        %3910 = vmatpush1.bf16.msra.mxu0 %v3811
        %3911 = vmatprep.subr.bf16.mxu0 %v3819
        %3912 = vmatpush1.bf16.msra.mxu0 %v3818
        %3913 = vmatprep.subr.bf16.mxu0 %v3826
        %3914 = vmatpush1.bf16.msra.mxu0 %v3825
        %3915 = vmatprep.subr.bf16.mxu0 %v3833
        %3916 = vmatpush1.bf16.msra.mxu0 %v3832
        %3917 = vmatprep.subr.bf16.mxu0 0
        %3918 = vmatpush1.bf16.msra.mxu0 0
        %3919 = vmatprep.subr.bf16.mxu0 0
        %3920 = vmatpush1.bf16.msra.mxu0 0
        %3921 = vmatprep.subr.bf16.mxu0 0
        %3922 = vmatpush1.bf16.msra.mxu0 0
        %3923 = vmatprep.subr.bf16.mxu0 0
        %3924 = vmatpush1.bf16.msra.mxu0 0
        %3925 = vmatprep.subr.bf16.mxu0 0
        %3926 = vmatpush1.bf16.msra.mxu0 0
        %3927 = vmatprep.subr.bf16.mxu0 0
        %3928 = vmatpush1.bf16.msra.mxu0 0
        %3929 = vmatprep.subr.bf16.mxu0 0
        %3930 = vmatpush1.bf16.msra.mxu0 0
        %3931 = vmatprep.subr.bf16.mxu0 0
        %3932 = vmatpush1.bf16.msra.mxu0 0
        %3933 = vmatprep.subr.bf16.mxu0 0
        %3934 = vmatpush1.bf16.msra.mxu0 0
        %3935 = vmatprep.subr.bf16.mxu0 0
        %3936 = vmatpush1.bf16.msra.mxu0 0
        %3937 = vmatprep.subr.bf16.mxu0 0
        %3938 = vmatpush1.bf16.msra.mxu0 0
        %3939 = vmatprep.subr.bf16.mxu0 0
        %3940 = vmatpush1.bf16.msra.mxu0 0
        %3941 = vmatprep.mubr.bf16.mxu0 0
        %3942 = vmatmul.mubr.bf16.gmra.mrb[0].mxu0 %v3866
        %v3943 = vpop.f32.mrb[0].mxu0
        %v3944 = vadd.f32 0.0, %v3943
        %v3945 = vpop.f32.mrb[0].mxu0
        %v3946 = vadd.f32 0.0, %v3945
        %v3947 = vpop.f32.mrb[0].mxu0
        %v3948 = vpop.f32.mrb[0].mxu0
        %3949 = vdwg.mxu0
        %3950 = vmatprep.subr.bf16.mxu0 %v3814
        %3951 = vmatpush1.bf16.msra.mxu0 %v3813
        %3952 = vmatprep.subr.bf16.mxu0 %v3821
        %3953 = vmatpush1.bf16.msra.mxu0 %v3820
        %3954 = vmatprep.subr.bf16.mxu0 %v3828
        %3955 = vmatpush1.bf16.msra.mxu0 %v3827
        %3956 = vmatprep.subr.bf16.mxu0 %v3835
        %3957 = vmatpush1.bf16.msra.mxu0 %v3834
        %3958 = vmatprep.subr.bf16.mxu0 0
        %3959 = vmatpush1.bf16.msra.mxu0 0
        %3960 = vmatprep.subr.bf16.mxu0 0
        %3961 = vmatpush1.bf16.msra.mxu0 0
        %3962 = vmatprep.subr.bf16.mxu0 0
        %3963 = vmatpush1.bf16.msra.mxu0 0
        %3964 = vmatprep.subr.bf16.mxu0 0
        %3965 = vmatpush1.bf16.msra.mxu0 0
        %3966 = vmatprep.subr.bf16.mxu0 0
        %3967 = vmatpush1.bf16.msra.mxu0 0
        %3968 = vmatprep.subr.bf16.mxu0 0
        %3969 = vmatpush1.bf16.msra.mxu0 0
        %3970 = vmatprep.subr.bf16.mxu0 0
        %3971 = vmatpush1.bf16.msra.mxu0 0
        %3972 = vmatprep.subr.bf16.mxu0 0
        %3973 = vmatpush1.bf16.msra.mxu0 0
        %3974 = vmatprep.subr.bf16.mxu0 0
        %3975 = vmatpush1.bf16.msra.mxu0 0
        %3976 = vmatprep.subr.bf16.mxu0 0
        %3977 = vmatpush1.bf16.msra.mxu0 0
        %3978 = vmatprep.subr.bf16.mxu0 0
        %3979 = vmatpush1.bf16.msra.mxu0 0
        %3980 = vmatprep.subr.bf16.mxu0 0
        %3981 = vmatpush1.bf16.msra.mxu0 0
        %3982 = vmatprep.mubr.bf16.mxu0 0
        %3983 = vmatmul.mubr.bf16.gmra.mrb[0].mxu0 %v3866
        %v3984 = vpop.f32.mrb[0].mxu0
        %v3985 = vadd.f32 0.0, %v3984
        %v3986 = vpop.f32.mrb[0].mxu0
        %v3987 = vadd.f32 0.0, %v3986
        %v3988 = vpop.f32.mrb[0].mxu0
        %v3989 = vpop.f32.mrb[0].mxu0
        %3990 = vdwg.mxu0
        %3991 = vmatprep.subr.bf16.mxu0 0
        %3992 = vmatpush1.bf16.msra.mxu0 %v3815
        %3993 = vmatprep.subr.bf16.mxu0 0
        %3994 = vmatpush1.bf16.msra.mxu0 %v3822
        %3995 = vmatprep.subr.bf16.mxu0 0
        %3996 = vmatpush1.bf16.msra.mxu0 %v3829
        %3997 = vmatprep.subr.bf16.mxu0 0
        %3998 = vmatpush1.bf16.msra.mxu0 %v3836
        %3999 = vmatprep.subr.bf16.mxu0 0
        %4000 = vmatpush1.bf16.msra.mxu0 0
        %4001 = vmatprep.subr.bf16.mxu0 0
        %4002 = vmatpush1.bf16.msra.mxu0 0
        %4003 = vmatprep.subr.bf16.mxu0 0
        %4004 = vmatpush1.bf16.msra.mxu0 0
        %4005 = vmatprep.subr.bf16.mxu0 0
        %4006 = vmatpush1.bf16.msra.mxu0 0
        %4007 = vmatprep.subr.bf16.mxu0 0
        %4008 = vmatpush1.bf16.msra.mxu0 0
        %4009 = vmatprep.subr.bf16.mxu0 0
        %4010 = vmatpush1.bf16.msra.mxu0 0
        %4011 = vmatprep.subr.bf16.mxu0 0
        %4012 = vmatpush1.bf16.msra.mxu0 0
        %4013 = vmatprep.subr.bf16.mxu0 0
        %4014 = vmatpush1.bf16.msra.mxu0 0
        %4015 = vmatprep.subr.bf16.mxu0 0
        %4016 = vmatpush1.bf16.msra.mxu0 0
        %4017 = vmatprep.subr.bf16.mxu0 0
        %4018 = vmatpush1.bf16.msra.mxu0 0
        %4019 = vmatprep.subr.bf16.mxu0 0
        %4020 = vmatpush1.bf16.msra.mxu0 0
        %4021 = vmatprep.subr.bf16.mxu0 0
        %4022 = vmatpush1.bf16.msra.mxu0 0
        %4023 = vmatprep.mubr.bf16.mxu0 0
        %4024 = vmatmul.mubr.bf16.gmra.mrb[0].mxu0 %v3866
        %v4025 = vpop.f32.mrb[0].mxu0
        %v4026 = vadd.f32 0.0, %v4025
        %v4027 = vpop.f32.mrb[0].mxu0
        %v4028 = vpop.f32.mrb[0].mxu0
        %v4029 = vpop.f32.mrb[0].mxu0
        %4030 = vdwg.mxu0
        %v4038 = vcombine.low %v3903, %v3905
        %v4039 = vcombine.low %v3944, %v3946
        %v4040 = vcombine.low %v3985, %v3987
        %v4042 = vunpack.c.l.s4 1966171168
        %v4043 = vunpack.c.0.s8 %v4042
        %v4044 = vlaneseq
        %v4045 = vshrl.u32 %v4044, 7
        %v4046 = vsub.s32 %v4043, %v4045
        %v4047 = vrot.slane %v4038, %v4046
        %v4049 = vunpack.c.l.s4 1966171168
        %v4050 = vunpack.c.0.s8 %v4049
        %v4051 = vlaneseq
        %v4052 = vshrl.u32 %v4051, 7
        %v4053 = vsub.s32 %v4050, %v4052
        %v4054 = vrot.slane %v4039, %v4053
        %v4056 = vunpack.c.l.s4 1966171168
        %v4057 = vunpack.c.0.s8 %v4056
        %v4058 = vlaneseq
        %v4059 = vshrl.u32 %v4058, 7
        %v4060 = vsub.s32 %v4057, %v4059
        %v4061 = vrot.slane %v4040, %v4060
        %v4063 = vunpack.c.l.s4 1966171168
        %v4064 = vunpack.c.0.s8 %v4063
        %v4065 = vlaneseq
        %v4066 = vshrl.u32 %v4065, 7
        %v4067 = vsub.s32 %v4064, %v4066
        %v4068 = vrot.slane %v4026, %v4067
        %v4069 = vcombine.low %v4047, %v4054
        %v4070 = vcombine.low %v4061, %v4068
        %v4072 = vunpack.c.l.s4 1966171168
        %v4073 = vunpack.c.0.s8 %v4072
        %v4074 = vlaneseq
        %v4075 = vshrl.u32 %v4074, 7
        %v4076 = vsub.s32 %v4073, %v4075
        %v4077 = vrot.slane %v4069, %v4076
        %v4079 = vunpack.c.l.s4 1966171168
        %v4080 = vunpack.c.0.s8 %v4079
        %v4081 = vlaneseq
        %v4082 = vshrl.u32 %v4081, 7
        %v4083 = vsub.s32 %v4080, %v4082
        %v4084 = vrot.slane %v4070, %v4083
        %v4085 = vcombine.low %v4077, %v4084
        %v4087 = vadd.f32 %v1720, %v4085
        %s4088 = scalar_lea.vmem %s352, 2016 [#allocation8]
        %v4089 = vld [vmem:[%s4088] sm:$0xff]
        %v4090 = vld [vmem:[%s4088 + $0x8] sm:$0xff]
        %v4091 = vld [vmem:[%s4088 + $0x10] sm:$0xff]
        %v4092 = vld [vmem:[%s4088 + $0x18] sm:$0xf]
        %v4093 = vld [vmem:[%s4088 + $0x1c] sm:$0xff]
        %v4094 = vld [vmem:[%s4088 + $0x24] sm:$0xff]
        %v4095 = vld [vmem:[%s4088 + $0x2c] sm:$0xff]
        %v4096 = vld [vmem:[%s4088 + $0x34] sm:$0xf]
        %v4097 = vld [vmem:[%s4088 + $0x38] sm:$0xff]
        %v4098 = vld [vmem:[%s4088 + $0x40] sm:$0xff]
        %v4099 = vld [vmem:[%s4088 + $0x48] sm:$0xff]
        %v4100 = vld [vmem:[%s4088 + $0x50] sm:$0xf]
        %v4101 = vld [vmem:[%s4088 + $0x54] sm:$0xff]
        %v4102 = vld [vmem:[%s4088 + $0x5c] sm:$0xff]
        %v4103 = vld [vmem:[%s4088 + $0x64] sm:$0xff]
        %v4104 = vld [vmem:[%s4088 + $0x6c] sm:$0xf]
        %v4105 = vld [vmem:[%s4088 + $0x70] sm:$0xff]
        %v4106 = vld [vmem:[%s4088 + $0x78] sm:$0xff]
        %v4107 = vld [vmem:[%s4088 + $0x80] sm:$0xff]
        %v4108 = vld [vmem:[%s4088 + $0x88] sm:$0xf]
        %v4109 = vld [vmem:[%s4088 + $0x8c] sm:$0xff]
        %v4110 = vld [vmem:[%s4088 + $0x94] sm:$0xff]
        %v4111 = vld [vmem:[%s4088 + $0x9c] sm:$0xff]
        %v4112 = vld [vmem:[%s4088 + $0xa4] sm:$0xf]
        %v4113 = vld [vmem:[%s4088 + $0xa8] sm:$0xff]
        %v4114 = vld [vmem:[%s4088 + $0xb0] sm:$0xff]
        %v4115 = vld [vmem:[%s4088 + $0xb8] sm:$0xff]
        %v4116 = vld [vmem:[%s4088 + $0xc0] sm:$0xf]
        %v4117 = vld [vmem:[%s4088 + $0xc4] sm:$0xff]
        %v4118 = vld [vmem:[%s4088 + $0xcc] sm:$0xff]
        %v4119 = vld [vmem:[%s4088 + $0xd4] sm:$0xff]
        %v4120 = vld [vmem:[%s4088 + $0xdc] sm:$0xf]
        %v4121 = vrot.slane %v1754, 4
        %v4154 = vunpack.c.l.b16 %v4089
        %v4155 = vunpack.c.h.b16 %v4089
        %v4156 = vunpack.c.l.b16 %v4090
        %v4157 = vunpack.c.h.b16 %v4090
        %v4158 = vunpack.c.l.b16 %v4091
        %v4159 = vunpack.c.h.b16 %v4091
        %v4160 = vunpack.c.l.b16 %v4092
        %v4161 = vunpack.c.l.b16 %v4093
        %v4162 = vunpack.c.h.b16 %v4093
        %v4163 = vunpack.c.l.b16 %v4094
        %v4164 = vunpack.c.h.b16 %v4094
        %v4165 = vunpack.c.l.b16 %v4095
        %v4166 = vunpack.c.h.b16 %v4095
        %v4167 = vunpack.c.l.b16 %v4096
        %v4168 = vunpack.c.l.b16 %v4097
        %v4169 = vunpack.c.h.b16 %v4097
        %v4170 = vunpack.c.l.b16 %v4098
        %v4171 = vunpack.c.h.b16 %v4098
        %v4172 = vunpack.c.l.b16 %v4099
        %v4173 = vunpack.c.h.b16 %v4099
        %v4174 = vunpack.c.l.b16 %v4100
        %v4175 = vunpack.c.l.b16 %v4101
        %v4176 = vunpack.c.h.b16 %v4101
        %v4177 = vunpack.c.l.b16 %v4102
        %v4178 = vunpack.c.h.b16 %v4102
        %v4179 = vunpack.c.l.b16 %v4103
        %v4180 = vunpack.c.h.b16 %v4103
        %v4181 = vunpack.c.l.b16 %v4104
        %v4182 = vunpack.c.l.b16 %v4105
        %v4183 = vunpack.c.h.b16 %v4105
        %v4184 = vunpack.c.l.b16 %v4106
        %v4185 = vunpack.c.h.b16 %v4106
        %v4186 = vunpack.c.l.b16 %v4107
        %v4187 = vunpack.c.h.b16 %v4107
        %v4188 = vunpack.c.l.b16 %v4108
        %v4189 = vunpack.c.l.b16 %v4109
        %v4190 = vunpack.c.h.b16 %v4109
        %v4191 = vunpack.c.l.b16 %v4110
        %v4192 = vunpack.c.h.b16 %v4110
        %v4193 = vunpack.c.l.b16 %v4111
        %v4194 = vunpack.c.h.b16 %v4111
        %v4195 = vunpack.c.l.b16 %v4112
        %v4196 = vunpack.c.l.b16 %v4113
        %v4197 = vunpack.c.h.b16 %v4113
        %v4198 = vunpack.c.l.b16 %v4114
        %v4199 = vunpack.c.h.b16 %v4114
        %v4200 = vunpack.c.l.b16 %v4115
        %v4201 = vunpack.c.h.b16 %v4115
        %v4202 = vunpack.c.l.b16 %v4116
        %v4203 = vunpack.c.l.b16 %v4117
        %v4204 = vunpack.c.h.b16 %v4117
        %v4205 = vunpack.c.l.b16 %v4118
        %v4206 = vunpack.c.h.b16 %v4118
        %v4207 = vunpack.c.l.b16 %v4119
        %v4208 = vunpack.c.h.b16 %v4119
        %v4209 = vunpack.c.l.b16 %v4120
        %v4210 = vpack.c.b16 %v4161, %v4154
        %v4211 = vpack.c.b16 %v4162, %v4155
        %v4212 = vpack.c.b16 %v4163, %v4156
        %v4213 = vpack.c.b16 %v4164, %v4157
        %v4214 = vpack.c.b16 %v4165, %v4158
        %v4215 = vpack.c.b16 %v4166, %v4159
        %v4216 = vpack.c.b16 %v4167, %v4160
        %v4217 = vpack.c.b16 %v4175, %v4168
        %v4218 = vpack.c.b16 %v4176, %v4169
        %v4219 = vpack.c.b16 %v4177, %v4170
        %v4220 = vpack.c.b16 %v4178, %v4171
        %v4221 = vpack.c.b16 %v4179, %v4172
        %v4222 = vpack.c.b16 %v4180, %v4173
        %v4223 = vpack.c.b16 %v4181, %v4174
        %v4224 = vpack.c.b16 %v4189, %v4182
        %v4225 = vpack.c.b16 %v4190, %v4183
        %v4226 = vpack.c.b16 %v4191, %v4184
        %v4227 = vpack.c.b16 %v4192, %v4185
        %v4228 = vpack.c.b16 %v4193, %v4186
        %v4229 = vpack.c.b16 %v4194, %v4187
        %v4230 = vpack.c.b16 %v4195, %v4188
        %v4231 = vpack.c.b16 %v4203, %v4196
        %v4232 = vpack.c.b16 %v4204, %v4197
        %v4233 = vpack.c.b16 %v4205, %v4198
        %v4234 = vpack.c.b16 %v4206, %v4199
        %v4235 = vpack.c.b16 %v4207, %v4200
        %v4236 = vpack.c.b16 %v4208, %v4201
        %v4237 = vpack.c.b16 %v4209, %v4202
        %v4267 = vsel %vm996, %v4121, 0
        %4269 = vmatprep.subr.bf16.mxu0 %v4211
        %4270 = vmatpush1.bf16.msra.mxu0 %v4210
        %4271 = vmatprep.subr.bf16.mxu0 %v4218
        %4272 = vmatpush1.bf16.msra.mxu0 %v4217
        %4273 = vmatprep.subr.bf16.mxu0 %v4225
        %4274 = vmatpush1.bf16.msra.mxu0 %v4224
        %4275 = vmatprep.subr.bf16.mxu0 %v4232
        %4276 = vmatpush1.bf16.msra.mxu0 %v4231
        %4277 = vmatprep.subr.bf16.mxu0 0
        %4278 = vmatpush1.bf16.msra.mxu0 0
        %4279 = vmatprep.subr.bf16.mxu0 0
        %4280 = vmatpush1.bf16.msra.mxu0 0
        %4281 = vmatprep.subr.bf16.mxu0 0
        %4282 = vmatpush1.bf16.msra.mxu0 0
        %4283 = vmatprep.subr.bf16.mxu0 0
        %4284 = vmatpush1.bf16.msra.mxu0 0
        %4285 = vmatprep.subr.bf16.mxu0 0
        %4286 = vmatpush1.bf16.msra.mxu0 0
        %4287 = vmatprep.subr.bf16.mxu0 0
        %4288 = vmatpush1.bf16.msra.mxu0 0
        %4289 = vmatprep.subr.bf16.mxu0 0
        %4290 = vmatpush1.bf16.msra.mxu0 0
        %4291 = vmatprep.subr.bf16.mxu0 0
        %4292 = vmatpush1.bf16.msra.mxu0 0
        %4293 = vmatprep.subr.bf16.mxu0 0
        %4294 = vmatpush1.bf16.msra.mxu0 0
        %4295 = vmatprep.subr.bf16.mxu0 0
        %4296 = vmatpush1.bf16.msra.mxu0 0
        %4297 = vmatprep.subr.bf16.mxu0 0
        %4298 = vmatpush1.bf16.msra.mxu0 0
        %4299 = vmatprep.subr.bf16.mxu0 0
        %4300 = vmatpush1.bf16.msra.mxu0 0
        %4301 = vmatprep.mubr.bf16.mxu0 0
        %4302 = vmatmul.mubr.bf16.gmra.mrb[0].mxu0 %v4267
        %v4303 = vpop.f32.mrb[0].mxu0
        %v4304 = vadd.f32 0.0, %v4303
        %v4305 = vpop.f32.mrb[0].mxu0
        %v4306 = vadd.f32 0.0, %v4305
        %v4307 = vpop.f32.mrb[0].mxu0
        %v4308 = vpop.f32.mrb[0].mxu0
        %4309 = vdwg.mxu0
        %4310 = vmatprep.subr.bf16.mxu0 %v4213
        %4311 = vmatpush1.bf16.msra.mxu0 %v4212
        %4312 = vmatprep.subr.bf16.mxu0 %v4220
        %4313 = vmatpush1.bf16.msra.mxu0 %v4219
        %4314 = vmatprep.subr.bf16.mxu0 %v4227
        %4315 = vmatpush1.bf16.msra.mxu0 %v4226
        %4316 = vmatprep.subr.bf16.mxu0 %v4234
        %4317 = vmatpush1.bf16.msra.mxu0 %v4233
        %4318 = vmatprep.subr.bf16.mxu0 0
        %4319 = vmatpush1.bf16.msra.mxu0 0
        %4320 = vmatprep.subr.bf16.mxu0 0
        %4321 = vmatpush1.bf16.msra.mxu0 0
        %4322 = vmatprep.subr.bf16.mxu0 0
        %4323 = vmatpush1.bf16.msra.mxu0 0
        %4324 = vmatprep.subr.bf16.mxu0 0
        %4325 = vmatpush1.bf16.msra.mxu0 0
        %4326 = vmatprep.subr.bf16.mxu0 0
        %4327 = vmatpush1.bf16.msra.mxu0 0
        %4328 = vmatprep.subr.bf16.mxu0 0
        %4329 = vmatpush1.bf16.msra.mxu0 0
        %4330 = vmatprep.subr.bf16.mxu0 0
        %4331 = vmatpush1.bf16.msra.mxu0 0
        %4332 = vmatprep.subr.bf16.mxu0 0
        %4333 = vmatpush1.bf16.msra.mxu0 0
        %4334 = vmatprep.subr.bf16.mxu0 0
        %4335 = vmatpush1.bf16.msra.mxu0 0
        %4336 = vmatprep.subr.bf16.mxu0 0
        %4337 = vmatpush1.bf16.msra.mxu0 0
        %4338 = vmatprep.subr.bf16.mxu0 0
        %4339 = vmatpush1.bf16.msra.mxu0 0
        %4340 = vmatprep.subr.bf16.mxu0 0
        %4341 = vmatpush1.bf16.msra.mxu0 0
        %4342 = vmatprep.mubr.bf16.mxu0 0
        %4343 = vmatmul.mubr.bf16.gmra.mrb[0].mxu0 %v4267
        %v4344 = vpop.f32.mrb[0].mxu0
        %v4345 = vadd.f32 0.0, %v4344
        %v4346 = vpop.f32.mrb[0].mxu0
        %v4347 = vadd.f32 0.0, %v4346
        %v4348 = vpop.f32.mrb[0].mxu0
        %v4349 = vpop.f32.mrb[0].mxu0
        %4350 = vdwg.mxu0
        %4351 = vmatprep.subr.bf16.mxu0 %v4215
        %4352 = vmatpush1.bf16.msra.mxu0 %v4214
        %4353 = vmatprep.subr.bf16.mxu0 %v4222
        %4354 = vmatpush1.bf16.msra.mxu0 %v4221
        %4355 = vmatprep.subr.bf16.mxu0 %v4229
        %4356 = vmatpush1.bf16.msra.mxu0 %v4228
        %4357 = vmatprep.subr.bf16.mxu0 %v4236
        %4358 = vmatpush1.bf16.msra.mxu0 %v4235
        %4359 = vmatprep.subr.bf16.mxu0 0
        %4360 = vmatpush1.bf16.msra.mxu0 0
        %4361 = vmatprep.subr.bf16.mxu0 0
        %4362 = vmatpush1.bf16.msra.mxu0 0
        %4363 = vmatprep.subr.bf16.mxu0 0
        %4364 = vmatpush1.bf16.msra.mxu0 0
        %4365 = vmatprep.subr.bf16.mxu0 0
        %4366 = vmatpush1.bf16.msra.mxu0 0
        %4367 = vmatprep.subr.bf16.mxu0 0
        %4368 = vmatpush1.bf16.msra.mxu0 0
        %4369 = vmatprep.subr.bf16.mxu0 0
        %4370 = vmatpush1.bf16.msra.mxu0 0
        %4371 = vmatprep.subr.bf16.mxu0 0
        %4372 = vmatpush1.bf16.msra.mxu0 0
        %4373 = vmatprep.subr.bf16.mxu0 0
        %4374 = vmatpush1.bf16.msra.mxu0 0
        %4375 = vmatprep.subr.bf16.mxu0 0
        %4376 = vmatpush1.bf16.msra.mxu0 0
        %4377 = vmatprep.subr.bf16.mxu0 0
        %4378 = vmatpush1.bf16.msra.mxu0 0
        %4379 = vmatprep.subr.bf16.mxu0 0
        %4380 = vmatpush1.bf16.msra.mxu0 0
        %4381 = vmatprep.subr.bf16.mxu0 0
        %4382 = vmatpush1.bf16.msra.mxu0 0
        %4383 = vmatprep.mubr.bf16.mxu0 0
        %4384 = vmatmul.mubr.bf16.gmra.mrb[0].mxu0 %v4267
        %v4385 = vpop.f32.mrb[0].mxu0
        %v4386 = vadd.f32 0.0, %v4385
        %v4387 = vpop.f32.mrb[0].mxu0
        %v4388 = vadd.f32 0.0, %v4387
        %v4389 = vpop.f32.mrb[0].mxu0
        %v4390 = vpop.f32.mrb[0].mxu0
        %4391 = vdwg.mxu0
        %4392 = vmatprep.subr.bf16.mxu0 0
        %4393 = vmatpush1.bf16.msra.mxu0 %v4216
        %4394 = vmatprep.subr.bf16.mxu0 0
        %4395 = vmatpush1.bf16.msra.mxu0 %v4223
        %4396 = vmatprep.subr.bf16.mxu0 0
        %4397 = vmatpush1.bf16.msra.mxu0 %v4230
        %4398 = vmatprep.subr.bf16.mxu0 0
        %4399 = vmatpush1.bf16.msra.mxu0 %v4237
        %4400 = vmatprep.subr.bf16.mxu0 0
        %4401 = vmatpush1.bf16.msra.mxu0 0
        %4402 = vmatprep.subr.bf16.mxu0 0
        %4403 = vmatpush1.bf16.msra.mxu0 0
        %4404 = vmatprep.subr.bf16.mxu0 0
        %4405 = vmatpush1.bf16.msra.mxu0 0
        %4406 = vmatprep.subr.bf16.mxu0 0
        %4407 = vmatpush1.bf16.msra.mxu0 0
        %4408 = vmatprep.subr.bf16.mxu0 0
        %4409 = vmatpush1.bf16.msra.mxu0 0
        %4410 = vmatprep.subr.bf16.mxu0 0
        %4411 = vmatpush1.bf16.msra.mxu0 0
        %4412 = vmatprep.subr.bf16.mxu0 0
        %4413 = vmatpush1.bf16.msra.mxu0 0
        %4414 = vmatprep.subr.bf16.mxu0 0
        %4415 = vmatpush1.bf16.msra.mxu0 0
        %4416 = vmatprep.subr.bf16.mxu0 0
        %4417 = vmatpush1.bf16.msra.mxu0 0
        %4418 = vmatprep.subr.bf16.mxu0 0
        %4419 = vmatpush1.bf16.msra.mxu0 0
        %4420 = vmatprep.subr.bf16.mxu0 0
        %4421 = vmatpush1.bf16.msra.mxu0 0
        %4422 = vmatprep.subr.bf16.mxu0 0
        %4423 = vmatpush1.bf16.msra.mxu0 0
        %4424 = vmatprep.mubr.bf16.mxu0 0
        %4425 = vmatmul.mubr.bf16.gmra.mrb[0].mxu0 %v4267
        %v4426 = vpop.f32.mrb[0].mxu0
        %v4427 = vadd.f32 0.0, %v4426
        %v4428 = vpop.f32.mrb[0].mxu0
        %v4429 = vpop.f32.mrb[0].mxu0
        %v4430 = vpop.f32.mrb[0].mxu0
        %4431 = vdwg.mxu0
        %v4432 = vadd.f32 %v2249, %v4304
        %v4433 = vadd.f32 %v2251, %v4306
        %v4434 = vadd.f32 %v2290, %v4345
        %v4435 = vadd.f32 %v2292, %v4347
        %v4436 = vadd.f32 %v2331, %v4386
        %v4437 = vadd.f32 %v2333, %v4388
        %v4438 = vadd.f32 %v2372, %v4427
        %s4439 = scalar_lea.vmem %s352, 2240 [#allocation8]
        %v4440 = vld [vmem:[%s4439] sm:$0xff]
        %v4441 = vld [vmem:[%s4439 + $0x8] sm:$0xff]
        %v4442 = vld [vmem:[%s4439 + $0x10] sm:$0xff]
        %v4443 = vld [vmem:[%s4439 + $0x18] sm:$0xf]
        %v4444 = vld [vmem:[%s4439 + $0x1c] sm:$0xff]
        %v4445 = vld [vmem:[%s4439 + $0x24] sm:$0xff]
        %v4446 = vld [vmem:[%s4439 + $0x2c] sm:$0xff]
        %v4447 = vld [vmem:[%s4439 + $0x34] sm:$0xf]
        %v4448 = vld [vmem:[%s4439 + $0x38] sm:$0xff]
        %v4449 = vld [vmem:[%s4439 + $0x40] sm:$0xff]
        %v4450 = vld [vmem:[%s4439 + $0x48] sm:$0xff]
        %v4451 = vld [vmem:[%s4439 + $0x50] sm:$0xf]
        %v4452 = vld [vmem:[%s4439 + $0x54] sm:$0xff]
        %v4453 = vld [vmem:[%s4439 + $0x5c] sm:$0xff]
        %v4454 = vld [vmem:[%s4439 + $0x64] sm:$0xff]
        %v4455 = vld [vmem:[%s4439 + $0x6c] sm:$0xf]
        %v4456 = vld [vmem:[%s4439 + $0x70] sm:$0xff]
        %v4457 = vld [vmem:[%s4439 + $0x78] sm:$0xff]
        %v4458 = vld [vmem:[%s4439 + $0x80] sm:$0xff]
        %v4459 = vld [vmem:[%s4439 + $0x88] sm:$0xf]
        %v4460 = vld [vmem:[%s4439 + $0x8c] sm:$0xff]
        %v4461 = vld [vmem:[%s4439 + $0x94] sm:$0xff]
        %v4462 = vld [vmem:[%s4439 + $0x9c] sm:$0xff]
        %v4463 = vld [vmem:[%s4439 + $0xa4] sm:$0xf]
        %v4464 = vld [vmem:[%s4439 + $0xa8] sm:$0xff]
        %v4465 = vld [vmem:[%s4439 + $0xb0] sm:$0xff]
        %v4466 = vld [vmem:[%s4439 + $0xb8] sm:$0xff]
        %v4467 = vld [vmem:[%s4439 + $0xc0] sm:$0xf]
        %v4468 = vld [vmem:[%s4439 + $0xc4] sm:$0xff]
        %v4469 = vld [vmem:[%s4439 + $0xcc] sm:$0xff]
        %v4470 = vld [vmem:[%s4439 + $0xd4] sm:$0xff]
        %v4471 = vld [vmem:[%s4439 + $0xdc] sm:$0xf]
        %v4472 = vrot.slane %v817, 5
        %v4505 = vunpack.c.l.b16 %v4440
        %v4506 = vunpack.c.h.b16 %v4440
        %v4507 = vunpack.c.l.b16 %v4441
        %v4508 = vunpack.c.h.b16 %v4441
        %v4509 = vunpack.c.l.b16 %v4442
        %v4510 = vunpack.c.h.b16 %v4442
        %v4511 = vunpack.c.l.b16 %v4443
        %v4512 = vunpack.c.l.b16 %v4444
        %v4513 = vunpack.c.h.b16 %v4444
        %v4514 = vunpack.c.l.b16 %v4445
        %v4515 = vunpack.c.h.b16 %v4445
        %v4516 = vunpack.c.l.b16 %v4446
        %v4517 = vunpack.c.h.b16 %v4446
        %v4518 = vunpack.c.l.b16 %v4447
        %v4519 = vunpack.c.l.b16 %v4448
        %v4520 = vunpack.c.h.b16 %v4448
        %v4521 = vunpack.c.l.b16 %v4449
        %v4522 = vunpack.c.h.b16 %v4449
        %v4523 = vunpack.c.l.b16 %v4450
        %v4524 = vunpack.c.h.b16 %v4450
        %v4525 = vunpack.c.l.b16 %v4451
        %v4526 = vunpack.c.l.b16 %v4452
        %v4527 = vunpack.c.h.b16 %v4452
        %v4528 = vunpack.c.l.b16 %v4453
        %v4529 = vunpack.c.h.b16 %v4453
        %v4530 = vunpack.c.l.b16 %v4454
        %v4531 = vunpack.c.h.b16 %v4454
        %v4532 = vunpack.c.l.b16 %v4455
        %v4533 = vunpack.c.l.b16 %v4456
        %v4534 = vunpack.c.h.b16 %v4456
        %v4535 = vunpack.c.l.b16 %v4457
        %v4536 = vunpack.c.h.b16 %v4457
        %v4537 = vunpack.c.l.b16 %v4458
        %v4538 = vunpack.c.h.b16 %v4458
        %v4539 = vunpack.c.l.b16 %v4459
        %v4540 = vunpack.c.l.b16 %v4460
        %v4541 = vunpack.c.h.b16 %v4460
        %v4542 = vunpack.c.l.b16 %v4461
        %v4543 = vunpack.c.h.b16 %v4461
        %v4544 = vunpack.c.l.b16 %v4462
        %v4545 = vunpack.c.h.b16 %v4462
        %v4546 = vunpack.c.l.b16 %v4463
        %v4547 = vunpack.c.l.b16 %v4464
        %v4548 = vunpack.c.h.b16 %v4464
        %v4549 = vunpack.c.l.b16 %v4465
        %v4550 = vunpack.c.h.b16 %v4465
        %v4551 = vunpack.c.l.b16 %v4466
        %v4552 = vunpack.c.h.b16 %v4466
        %v4553 = vunpack.c.l.b16 %v4467
        %v4554 = vunpack.c.l.b16 %v4468
        %v4555 = vunpack.c.h.b16 %v4468
        %v4556 = vunpack.c.l.b16 %v4469
        %v4557 = vunpack.c.h.b16 %v4469
        %v4558 = vunpack.c.l.b16 %v4470
        %v4559 = vunpack.c.h.b16 %v4470
        %v4560 = vunpack.c.l.b16 %v4471
        %v4561 = vpack.c.b16 %v4512, %v4505
        %v4562 = vpack.c.b16 %v4513, %v4506
        %v4563 = vpack.c.b16 %v4514, %v4507
        %v4564 = vpack.c.b16 %v4515, %v4508
        %v4565 = vpack.c.b16 %v4516, %v4509
        %v4566 = vpack.c.b16 %v4517, %v4510
        %v4567 = vpack.c.b16 %v4518, %v4511
        %v4568 = vpack.c.b16 %v4526, %v4519
        %v4569 = vpack.c.b16 %v4527, %v4520
        %v4570 = vpack.c.b16 %v4528, %v4521
        %v4571 = vpack.c.b16 %v4529, %v4522
        %v4572 = vpack.c.b16 %v4530, %v4523
        %v4573 = vpack.c.b16 %v4531, %v4524
        %v4574 = vpack.c.b16 %v4532, %v4525
        %v4575 = vpack.c.b16 %v4540, %v4533
        %v4576 = vpack.c.b16 %v4541, %v4534
        %v4577 = vpack.c.b16 %v4542, %v4535
        %v4578 = vpack.c.b16 %v4543, %v4536
        %v4579 = vpack.c.b16 %v4544, %v4537
        %v4580 = vpack.c.b16 %v4545, %v4538
        %v4581 = vpack.c.b16 %v4546, %v4539
        %v4582 = vpack.c.b16 %v4554, %v4547
        %v4583 = vpack.c.b16 %v4555, %v4548
        %v4584 = vpack.c.b16 %v4556, %v4549
        %v4585 = vpack.c.b16 %v4557, %v4550
        %v4586 = vpack.c.b16 %v4558, %v4551
        %v4587 = vpack.c.b16 %v4559, %v4552
        %v4588 = vpack.c.b16 %v4560, %v4553
        %v4618 = vsel %vm996, %v4472, 0
        %4620 = vmatprep.subr.bf16.mxu0 %v4562
        %4621 = vmatpush1.bf16.msra.mxu0 %v4561
        %4622 = vmatprep.subr.bf16.mxu0 %v4569
        %4623 = vmatpush1.bf16.msra.mxu0 %v4568
        %4624 = vmatprep.subr.bf16.mxu0 %v4576
        %4625 = vmatpush1.bf16.msra.mxu0 %v4575
        %4626 = vmatprep.subr.bf16.mxu0 %v4583
        %4627 = vmatpush1.bf16.msra.mxu0 %v4582
        %4628 = vmatprep.subr.bf16.mxu0 0
        %4629 = vmatpush1.bf16.msra.mxu0 0
        %4630 = vmatprep.subr.bf16.mxu0 0
        %4631 = vmatpush1.bf16.msra.mxu0 0
        %4632 = vmatprep.subr.bf16.mxu0 0
        %4633 = vmatpush1.bf16.msra.mxu0 0
        %4634 = vmatprep.subr.bf16.mxu0 0
        %4635 = vmatpush1.bf16.msra.mxu0 0
        %4636 = vmatprep.subr.bf16.mxu0 0
        %4637 = vmatpush1.bf16.msra.mxu0 0
        %4638 = vmatprep.subr.bf16.mxu0 0
        %4639 = vmatpush1.bf16.msra.mxu0 0
        %4640 = vmatprep.subr.bf16.mxu0 0
        %4641 = vmatpush1.bf16.msra.mxu0 0
        %4642 = vmatprep.subr.bf16.mxu0 0
        %4643 = vmatpush1.bf16.msra.mxu0 0
        %4644 = vmatprep.subr.bf16.mxu0 0
        %4645 = vmatpush1.bf16.msra.mxu0 0
        %4646 = vmatprep.subr.bf16.mxu0 0
        %4647 = vmatpush1.bf16.msra.mxu0 0
        %4648 = vmatprep.subr.bf16.mxu0 0
        %4649 = vmatpush1.bf16.msra.mxu0 0
        %4650 = vmatprep.subr.bf16.mxu0 0
        %4651 = vmatpush1.bf16.msra.mxu0 0
        %4652 = vmatprep.mubr.bf16.mxu0 0
        %4653 = vmatmul.mubr.bf16.gmra.mrb[0].mxu0 %v4618
        %v4654 = vpop.f32.mrb[0].mxu0
        %v4655 = vadd.f32 0.0, %v4654
        %v4656 = vpop.f32.mrb[0].mxu0
        %v4657 = vadd.f32 0.0, %v4656
        %v4658 = vpop.f32.mrb[0].mxu0
        %v4659 = vpop.f32.mrb[0].mxu0
        %4660 = vdwg.mxu0
        %4661 = vmatprep.subr.bf16.mxu0 %v4564
        %4662 = vmatpush1.bf16.msra.mxu0 %v4563
        %4663 = vmatprep.subr.bf16.mxu0 %v4571
        %4664 = vmatpush1.bf16.msra.mxu0 %v4570
        %4665 = vmatprep.subr.bf16.mxu0 %v4578
        %4666 = vmatpush1.bf16.msra.mxu0 %v4577
        %4667 = vmatprep.subr.bf16.mxu0 %v4585
        %4668 = vmatpush1.bf16.msra.mxu0 %v4584
        %4669 = vmatprep.subr.bf16.mxu0 0
        %4670 = vmatpush1.bf16.msra.mxu0 0
        %4671 = vmatprep.subr.bf16.mxu0 0
        %4672 = vmatpush1.bf16.msra.mxu0 0
        %4673 = vmatprep.subr.bf16.mxu0 0
        %4674 = vmatpush1.bf16.msra.mxu0 0
        %4675 = vmatprep.subr.bf16.mxu0 0
        %4676 = vmatpush1.bf16.msra.mxu0 0
        %4677 = vmatprep.subr.bf16.mxu0 0
        %4678 = vmatpush1.bf16.msra.mxu0 0
        %4679 = vmatprep.subr.bf16.mxu0 0
        %4680 = vmatpush1.bf16.msra.mxu0 0
        %4681 = vmatprep.subr.bf16.mxu0 0
        %4682 = vmatpush1.bf16.msra.mxu0 0
        %4683 = vmatprep.subr.bf16.mxu0 0
        %4684 = vmatpush1.bf16.msra.mxu0 0
        %4685 = vmatprep.subr.bf16.mxu0 0
        %4686 = vmatpush1.bf16.msra.mxu0 0
        %4687 = vmatprep.subr.bf16.mxu0 0
        %4688 = vmatpush1.bf16.msra.mxu0 0
        %4689 = vmatprep.subr.bf16.mxu0 0
        %4690 = vmatpush1.bf16.msra.mxu0 0
        %4691 = vmatprep.subr.bf16.mxu0 0
        %4692 = vmatpush1.bf16.msra.mxu0 0
        %4693 = vmatprep.mubr.bf16.mxu0 0
        %4694 = vmatmul.mubr.bf16.gmra.mrb[0].mxu0 %v4618
        %v4695 = vpop.f32.mrb[0].mxu0
        %v4696 = vadd.f32 0.0, %v4695
        %v4697 = vpop.f32.mrb[0].mxu0
        %v4698 = vadd.f32 0.0, %v4697
        %v4699 = vpop.f32.mrb[0].mxu0
        %v4700 = vpop.f32.mrb[0].mxu0
        %4701 = vdwg.mxu0
        %4702 = vmatprep.subr.bf16.mxu0 %v4566
        %4703 = vmatpush1.bf16.msra.mxu0 %v4565
        %4704 = vmatprep.subr.bf16.mxu0 %v4573
        %4705 = vmatpush1.bf16.msra.mxu0 %v4572
        %4706 = vmatprep.subr.bf16.mxu0 %v4580
        %4707 = vmatpush1.bf16.msra.mxu0 %v4579
        %4708 = vmatprep.subr.bf16.mxu0 %v4587
        %4709 = vmatpush1.bf16.msra.mxu0 %v4586
        %4710 = vmatprep.subr.bf16.mxu0 0
        %4711 = vmatpush1.bf16.msra.mxu0 0
        %4712 = vmatprep.subr.bf16.mxu0 0
        %4713 = vmatpush1.bf16.msra.mxu0 0
        %4714 = vmatprep.subr.bf16.mxu0 0
        %4715 = vmatpush1.bf16.msra.mxu0 0
        %4716 = vmatprep.subr.bf16.mxu0 0
        %4717 = vmatpush1.bf16.msra.mxu0 0
        %4718 = vmatprep.subr.bf16.mxu0 0
        %4719 = vmatpush1.bf16.msra.mxu0 0
        %4720 = vmatprep.subr.bf16.mxu0 0
        %4721 = vmatpush1.bf16.msra.mxu0 0
        %4722 = vmatprep.subr.bf16.mxu0 0
        %4723 = vmatpush1.bf16.msra.mxu0 0
        %4724 = vmatprep.subr.bf16.mxu0 0
        %4725 = vmatpush1.bf16.msra.mxu0 0
        %4726 = vmatprep.subr.bf16.mxu0 0
        %4727 = vmatpush1.bf16.msra.mxu0 0
        %4728 = vmatprep.subr.bf16.mxu0 0
        %4729 = vmatpush1.bf16.msra.mxu0 0
        %4730 = vmatprep.subr.bf16.mxu0 0
        %4731 = vmatpush1.bf16.msra.mxu0 0
        %4732 = vmatprep.subr.bf16.mxu0 0
        %4733 = vmatpush1.bf16.msra.mxu0 0
        %4734 = vmatprep.mubr.bf16.mxu0 0
        %4735 = vmatmul.mubr.bf16.gmra.mrb[0].mxu0 %v4618
        %v4736 = vpop.f32.mrb[0].mxu0
        %v4737 = vadd.f32 0.0, %v4736
        %v4738 = vpop.f32.mrb[0].mxu0
        %v4739 = vadd.f32 0.0, %v4738
        %v4740 = vpop.f32.mrb[0].mxu0
        %v4741 = vpop.f32.mrb[0].mxu0
        %4742 = vdwg.mxu0
        %4743 = vmatprep.subr.bf16.mxu0 0
        %4744 = vmatpush1.bf16.msra.mxu0 %v4567
        %4745 = vmatprep.subr.bf16.mxu0 0
        %4746 = vmatpush1.bf16.msra.mxu0 %v4574
        %4747 = vmatprep.subr.bf16.mxu0 0
        %4748 = vmatpush1.bf16.msra.mxu0 %v4581
        %4749 = vmatprep.subr.bf16.mxu0 0
        %4750 = vmatpush1.bf16.msra.mxu0 %v4588
        %4751 = vmatprep.subr.bf16.mxu0 0
        %4752 = vmatpush1.bf16.msra.mxu0 0
        %4753 = vmatprep.subr.bf16.mxu0 0
        %4754 = vmatpush1.bf16.msra.mxu0 0
        %4755 = vmatprep.subr.bf16.mxu0 0
        %4756 = vmatpush1.bf16.msra.mxu0 0
        %4757 = vmatprep.subr.bf16.mxu0 0
        %4758 = vmatpush1.bf16.msra.mxu0 0
        %4759 = vmatprep.subr.bf16.mxu0 0
        %4760 = vmatpush1.bf16.msra.mxu0 0
        %4761 = vmatprep.subr.bf16.mxu0 0
        %4762 = vmatpush1.bf16.msra.mxu0 0
        %4763 = vmatprep.subr.bf16.mxu0 0
        %4764 = vmatpush1.bf16.msra.mxu0 0
        %4765 = vmatprep.subr.bf16.mxu0 0
        %4766 = vmatpush1.bf16.msra.mxu0 0
        %4767 = vmatprep.subr.bf16.mxu0 0
        %4768 = vmatpush1.bf16.msra.mxu0 0
        %4769 = vmatprep.subr.bf16.mxu0 0
        %4770 = vmatpush1.bf16.msra.mxu0 0
        %4771 = vmatprep.subr.bf16.mxu0 0
        %4772 = vmatpush1.bf16.msra.mxu0 0
        %4773 = vmatprep.subr.bf16.mxu0 0
        %4774 = vmatpush1.bf16.msra.mxu0 0
        %4775 = vmatprep.mubr.bf16.mxu0 0
        %4776 = vmatmul.mubr.bf16.gmra.mrb[0].mxu0 %v4618
        %v4777 = vpop.f32.mrb[0].mxu0
        %v4778 = vadd.f32 0.0, %v4777
        %v4779 = vpop.f32.mrb[0].mxu0
        %v4780 = vpop.f32.mrb[0].mxu0
        %v4781 = vpop.f32.mrb[0].mxu0
        %4782 = vdwg.mxu0
        %v4783 = vadd.f32 %v2904, %v4655
        %v4784 = vadd.f32 %v2906, %v4657
        %v4785 = vadd.f32 %v2945, %v4696
        %v4786 = vadd.f32 %v2947, %v4698
        %v4787 = vadd.f32 %v2986, %v4737
        %v4788 = vadd.f32 %v2988, %v4739
        %v4789 = vadd.f32 %v3027, %v4778
        %s4790 = scalar_lea.vmem %s352, 2464 [#allocation8]
        %v4791 = vld [vmem:[%s4790] sm:$0xff]
        %v4792 = vld [vmem:[%s4790 + $0x8] sm:$0xff]
        %v4793 = vld [vmem:[%s4790 + $0x10] sm:$0xff]
        %v4794 = vld [vmem:[%s4790 + $0x18] sm:$0xf]
        %v4795 = vld [vmem:[%s4790 + $0x1c] sm:$0xff]
        %v4796 = vld [vmem:[%s4790 + $0x24] sm:$0xff]
        %v4797 = vld [vmem:[%s4790 + $0x2c] sm:$0xff]
        %v4798 = vld [vmem:[%s4790 + $0x34] sm:$0xf]
        %v4799 = vld [vmem:[%s4790 + $0x38] sm:$0xff]
        %v4800 = vld [vmem:[%s4790 + $0x40] sm:$0xff]
        %v4801 = vld [vmem:[%s4790 + $0x48] sm:$0xff]
        %v4802 = vld [vmem:[%s4790 + $0x50] sm:$0xf]
        %v4803 = vld [vmem:[%s4790 + $0x54] sm:$0xff]
        %v4804 = vld [vmem:[%s4790 + $0x5c] sm:$0xff]
        %v4805 = vld [vmem:[%s4790 + $0x64] sm:$0xff]
        %v4806 = vld [vmem:[%s4790 + $0x6c] sm:$0xf]
        %v4807 = vld [vmem:[%s4790 + $0x70] sm:$0xff]
        %v4808 = vld [vmem:[%s4790 + $0x78] sm:$0xff]
        %v4809 = vld [vmem:[%s4790 + $0x80] sm:$0xff]
        %v4810 = vld [vmem:[%s4790 + $0x88] sm:$0xf]
        %v4811 = vld [vmem:[%s4790 + $0x8c] sm:$0xff]
        %v4812 = vld [vmem:[%s4790 + $0x94] sm:$0xff]
        %v4813 = vld [vmem:[%s4790 + $0x9c] sm:$0xff]
        %v4814 = vld [vmem:[%s4790 + $0xa4] sm:$0xf]
        %v4815 = vld [vmem:[%s4790 + $0xa8] sm:$0xff]
        %v4816 = vld [vmem:[%s4790 + $0xb0] sm:$0xff]
        %v4817 = vld [vmem:[%s4790 + $0xb8] sm:$0xff]
        %v4818 = vld [vmem:[%s4790 + $0xc0] sm:$0xf]
        %v4819 = vld [vmem:[%s4790 + $0xc4] sm:$0xff]
        %v4820 = vld [vmem:[%s4790 + $0xcc] sm:$0xff]
        %v4821 = vld [vmem:[%s4790 + $0xd4] sm:$0xff]
        %v4822 = vld [vmem:[%s4790 + $0xdc] sm:$0xf]
        %v4823 = vrot.slane %v1754, 5
        %v4856 = vunpack.c.l.b16 %v4791
        %v4857 = vunpack.c.h.b16 %v4791
        %v4858 = vunpack.c.l.b16 %v4792
        %v4859 = vunpack.c.h.b16 %v4792
        %v4860 = vunpack.c.l.b16 %v4793
        %v4861 = vunpack.c.h.b16 %v4793
        %v4862 = vunpack.c.l.b16 %v4794
        %v4863 = vunpack.c.l.b16 %v4795
        %v4864 = vunpack.c.h.b16 %v4795
        %v4865 = vunpack.c.l.b16 %v4796
        %v4866 = vunpack.c.h.b16 %v4796
        %v4867 = vunpack.c.l.b16 %v4797
        %v4868 = vunpack.c.h.b16 %v4797
        %v4869 = vunpack.c.l.b16 %v4798
        %v4870 = vunpack.c.l.b16 %v4799
        %v4871 = vunpack.c.h.b16 %v4799
        %v4872 = vunpack.c.l.b16 %v4800
        %v4873 = vunpack.c.h.b16 %v4800
        %v4874 = vunpack.c.l.b16 %v4801
        %v4875 = vunpack.c.h.b16 %v4801
        %v4876 = vunpack.c.l.b16 %v4802
        %v4877 = vunpack.c.l.b16 %v4803
        %v4878 = vunpack.c.h.b16 %v4803
        %v4879 = vunpack.c.l.b16 %v4804
        %v4880 = vunpack.c.h.b16 %v4804
        %v4881 = vunpack.c.l.b16 %v4805
        %v4882 = vunpack.c.h.b16 %v4805
        %v4883 = vunpack.c.l.b16 %v4806
        %v4884 = vunpack.c.l.b16 %v4807
        %v4885 = vunpack.c.h.b16 %v4807
        %v4886 = vunpack.c.l.b16 %v4808
        %v4887 = vunpack.c.h.b16 %v4808
        %v4888 = vunpack.c.l.b16 %v4809
        %v4889 = vunpack.c.h.b16 %v4809
        %v4890 = vunpack.c.l.b16 %v4810
        %v4891 = vunpack.c.l.b16 %v4811
        %v4892 = vunpack.c.h.b16 %v4811
        %v4893 = vunpack.c.l.b16 %v4812
        %v4894 = vunpack.c.h.b16 %v4812
        %v4895 = vunpack.c.l.b16 %v4813
        %v4896 = vunpack.c.h.b16 %v4813
        %v4897 = vunpack.c.l.b16 %v4814
        %v4898 = vunpack.c.l.b16 %v4815
        %v4899 = vunpack.c.h.b16 %v4815
        %v4900 = vunpack.c.l.b16 %v4816
        %v4901 = vunpack.c.h.b16 %v4816
        %v4902 = vunpack.c.l.b16 %v4817
        %v4903 = vunpack.c.h.b16 %v4817
        %v4904 = vunpack.c.l.b16 %v4818
        %v4905 = vunpack.c.l.b16 %v4819
        %v4906 = vunpack.c.h.b16 %v4819
        %v4907 = vunpack.c.l.b16 %v4820
        %v4908 = vunpack.c.h.b16 %v4820
        %v4909 = vunpack.c.l.b16 %v4821
        %v4910 = vunpack.c.h.b16 %v4821
        %v4911 = vunpack.c.l.b16 %v4822
        %v4912 = vpack.c.b16 %v4863, %v4856
        %v4913 = vpack.c.b16 %v4864, %v4857
        %v4914 = vpack.c.b16 %v4865, %v4858
        %v4915 = vpack.c.b16 %v4866, %v4859
        %v4916 = vpack.c.b16 %v4867, %v4860
        %v4917 = vpack.c.b16 %v4868, %v4861
        %v4918 = vpack.c.b16 %v4869, %v4862
        %v4919 = vpack.c.b16 %v4877, %v4870
        %v4920 = vpack.c.b16 %v4878, %v4871
        %v4921 = vpack.c.b16 %v4879, %v4872
        %v4922 = vpack.c.b16 %v4880, %v4873
        %v4923 = vpack.c.b16 %v4881, %v4874
        %v4924 = vpack.c.b16 %v4882, %v4875
        %v4925 = vpack.c.b16 %v4883, %v4876
        %v4926 = vpack.c.b16 %v4891, %v4884
        %v4927 = vpack.c.b16 %v4892, %v4885
        %v4928 = vpack.c.b16 %v4893, %v4886
        %v4929 = vpack.c.b16 %v4894, %v4887
        %v4930 = vpack.c.b16 %v4895, %v4888
        %v4931 = vpack.c.b16 %v4896, %v4889
        %v4932 = vpack.c.b16 %v4897, %v4890
        %v4933 = vpack.c.b16 %v4905, %v4898
        %v4934 = vpack.c.b16 %v4906, %v4899
        %v4935 = vpack.c.b16 %v4907, %v4900
        %v4936 = vpack.c.b16 %v4908, %v4901
        %v4937 = vpack.c.b16 %v4909, %v4902
        %v4938 = vpack.c.b16 %v4910, %v4903
        %v4939 = vpack.c.b16 %v4911, %v4904
        %v4969 = vsel %vm996, %v4823, 0
        %4971 = vmatprep.subr.bf16.mxu0 %v4913
        %4972 = vmatpush1.bf16.msra.mxu0 %v4912
        %4973 = vmatprep.subr.bf16.mxu0 %v4920
        %4974 = vmatpush1.bf16.msra.mxu0 %v4919
        %4975 = vmatprep.subr.bf16.mxu0 %v4927
        %4976 = vmatpush1.bf16.msra.mxu0 %v4926
        %4977 = vmatprep.subr.bf16.mxu0 %v4934
        %4978 = vmatpush1.bf16.msra.mxu0 %v4933
        %4979 = vmatprep.subr.bf16.mxu0 0
        %4980 = vmatpush1.bf16.msra.mxu0 0
        %4981 = vmatprep.subr.bf16.mxu0 0
        %4982 = vmatpush1.bf16.msra.mxu0 0
        %4983 = vmatprep.subr.bf16.mxu0 0
        %4984 = vmatpush1.bf16.msra.mxu0 0
        %4985 = vmatprep.subr.bf16.mxu0 0
        %4986 = vmatpush1.bf16.msra.mxu0 0
        %4987 = vmatprep.subr.bf16.mxu0 0
        %4988 = vmatpush1.bf16.msra.mxu0 0
        %4989 = vmatprep.subr.bf16.mxu0 0
        %4990 = vmatpush1.bf16.msra.mxu0 0
        %4991 = vmatprep.subr.bf16.mxu0 0
        %4992 = vmatpush1.bf16.msra.mxu0 0
        %4993 = vmatprep.subr.bf16.mxu0 0
        %4994 = vmatpush1.bf16.msra.mxu0 0
        %4995 = vmatprep.subr.bf16.mxu0 0
        %4996 = vmatpush1.bf16.msra.mxu0 0
        %4997 = vmatprep.subr.bf16.mxu0 0
        %4998 = vmatpush1.bf16.msra.mxu0 0
        %4999 = vmatprep.subr.bf16.mxu0 0
        %5000 = vmatpush1.bf16.msra.mxu0 0
        %5001 = vmatprep.subr.bf16.mxu0 0
        %5002 = vmatpush1.bf16.msra.mxu0 0
        %5003 = vmatprep.mubr.bf16.mxu0 0
        %5004 = vmatmul.mubr.bf16.gmra.mrb[0].mxu0 %v4969
        %v5005 = vpop.f32.mrb[0].mxu0
        %v5006 = vadd.f32 0.0, %v5005
        %v5007 = vpop.f32.mrb[0].mxu0
        %v5008 = vadd.f32 0.0, %v5007
        %v5009 = vpop.f32.mrb[0].mxu0
        %v5010 = vpop.f32.mrb[0].mxu0
        %5011 = vdwg.mxu0
        %5012 = vmatprep.subr.bf16.mxu0 %v4915
        %5013 = vmatpush1.bf16.msra.mxu0 %v4914
        %5014 = vmatprep.subr.bf16.mxu0 %v4922
        %5015 = vmatpush1.bf16.msra.mxu0 %v4921
        %5016 = vmatprep.subr.bf16.mxu0 %v4929
        %5017 = vmatpush1.bf16.msra.mxu0 %v4928
        %5018 = vmatprep.subr.bf16.mxu0 %v4936
        %5019 = vmatpush1.bf16.msra.mxu0 %v4935
        %5020 = vmatprep.subr.bf16.mxu0 0
        %5021 = vmatpush1.bf16.msra.mxu0 0
        %5022 = vmatprep.subr.bf16.mxu0 0
        %5023 = vmatpush1.bf16.msra.mxu0 0
        %5024 = vmatprep.subr.bf16.mxu0 0
        %5025 = vmatpush1.bf16.msra.mxu0 0
        %5026 = vmatprep.subr.bf16.mxu0 0
        %5027 = vmatpush1.bf16.msra.mxu0 0
        %5028 = vmatprep.subr.bf16.mxu0 0
        %5029 = vmatpush1.bf16.msra.mxu0 0
        %5030 = vmatprep.subr.bf16.mxu0 0
        %5031 = vmatpush1.bf16.msra.mxu0 0
        %5032 = vmatprep.subr.bf16.mxu0 0
        %5033 = vmatpush1.bf16.msra.mxu0 0
        %5034 = vmatprep.subr.bf16.mxu0 0
        %5035 = vmatpush1.bf16.msra.mxu0 0
        %5036 = vmatprep.subr.bf16.mxu0 0
        %5037 = vmatpush1.bf16.msra.mxu0 0
        %5038 = vmatprep.subr.bf16.mxu0 0
        %5039 = vmatpush1.bf16.msra.mxu0 0
        %5040 = vmatprep.subr.bf16.mxu0 0
        %5041 = vmatpush1.bf16.msra.mxu0 0
        %5042 = vmatprep.subr.bf16.mxu0 0
        %5043 = vmatpush1.bf16.msra.mxu0 0
        %5044 = vmatprep.mubr.bf16.mxu0 0
        %5045 = vmatmul.mubr.bf16.gmra.mrb[0].mxu0 %v4969
        %v5046 = vpop.f32.mrb[0].mxu0
        %v5047 = vadd.f32 0.0, %v5046
        %v5048 = vpop.f32.mrb[0].mxu0
        %v5049 = vadd.f32 0.0, %v5048
        %v5050 = vpop.f32.mrb[0].mxu0
        %v5051 = vpop.f32.mrb[0].mxu0
        %5052 = vdwg.mxu0
        %5053 = vmatprep.subr.bf16.mxu0 %v4917
        %5054 = vmatpush1.bf16.msra.mxu0 %v4916
        %5055 = vmatprep.subr.bf16.mxu0 %v4924
        %5056 = vmatpush1.bf16.msra.mxu0 %v4923
        %5057 = vmatprep.subr.bf16.mxu0 %v4931
        %5058 = vmatpush1.bf16.msra.mxu0 %v4930
        %5059 = vmatprep.subr.bf16.mxu0 %v4938
        %5060 = vmatpush1.bf16.msra.mxu0 %v4937
        %5061 = vmatprep.subr.bf16.mxu0 0
        %5062 = vmatpush1.bf16.msra.mxu0 0
        %5063 = vmatprep.subr.bf16.mxu0 0
        %5064 = vmatpush1.bf16.msra.mxu0 0
        %5065 = vmatprep.subr.bf16.mxu0 0
        %5066 = vmatpush1.bf16.msra.mxu0 0
        %5067 = vmatprep.subr.bf16.mxu0 0
        %5068 = vmatpush1.bf16.msra.mxu0 0
        %5069 = vmatprep.subr.bf16.mxu0 0
        %5070 = vmatpush1.bf16.msra.mxu0 0
        %5071 = vmatprep.subr.bf16.mxu0 0
        %5072 = vmatpush1.bf16.msra.mxu0 0
        %5073 = vmatprep.subr.bf16.mxu0 0
        %5074 = vmatpush1.bf16.msra.mxu0 0
        %5075 = vmatprep.subr.bf16.mxu0 0
        %5076 = vmatpush1.bf16.msra.mxu0 0
        %5077 = vmatprep.subr.bf16.mxu0 0
        %5078 = vmatpush1.bf16.msra.mxu0 0
        %5079 = vmatprep.subr.bf16.mxu0 0
        %5080 = vmatpush1.bf16.msra.mxu0 0
        %5081 = vmatprep.subr.bf16.mxu0 0
        %5082 = vmatpush1.bf16.msra.mxu0 0
        %5083 = vmatprep.subr.bf16.mxu0 0
        %5084 = vmatpush1.bf16.msra.mxu0 0
        %5085 = vmatprep.mubr.bf16.mxu0 0
        %5086 = vmatmul.mubr.bf16.gmra.mrb[0].mxu0 %v4969
        %v5087 = vpop.f32.mrb[0].mxu0
        %v5088 = vadd.f32 0.0, %v5087
        %v5089 = vpop.f32.mrb[0].mxu0
        %v5090 = vadd.f32 0.0, %v5089
        %v5091 = vpop.f32.mrb[0].mxu0
        %v5092 = vpop.f32.mrb[0].mxu0
        %5093 = vdwg.mxu0
        %5094 = vmatprep.subr.bf16.mxu0 0
        %5095 = vmatpush1.bf16.msra.mxu0 %v4918
        %5096 = vmatprep.subr.bf16.mxu0 0
        %5097 = vmatpush1.bf16.msra.mxu0 %v4925
        %5098 = vmatprep.subr.bf16.mxu0 0
        %5099 = vmatpush1.bf16.msra.mxu0 %v4932
        %5100 = vmatprep.subr.bf16.mxu0 0
        %5101 = vmatpush1.bf16.msra.mxu0 %v4939
        %5102 = vmatprep.subr.bf16.mxu0 0
        %5103 = vmatpush1.bf16.msra.mxu0 0
        %5104 = vmatprep.subr.bf16.mxu0 0
        %5105 = vmatpush1.bf16.msra.mxu0 0
        %5106 = vmatprep.subr.bf16.mxu0 0
        %5107 = vmatpush1.bf16.msra.mxu0 0
        %5108 = vmatprep.subr.bf16.mxu0 0
        %5109 = vmatpush1.bf16.msra.mxu0 0
        %5110 = vmatprep.subr.bf16.mxu0 0
        %5111 = vmatpush1.bf16.msra.mxu0 0
        %5112 = vmatprep.subr.bf16.mxu0 0
        %5113 = vmatpush1.bf16.msra.mxu0 0
        %5114 = vmatprep.subr.bf16.mxu0 0
        %5115 = vmatpush1.bf16.msra.mxu0 0
        %5116 = vmatprep.subr.bf16.mxu0 0
        %5117 = vmatpush1.bf16.msra.mxu0 0
        %5118 = vmatprep.subr.bf16.mxu0 0
        %5119 = vmatpush1.bf16.msra.mxu0 0
        %5120 = vmatprep.subr.bf16.mxu0 0
        %5121 = vmatpush1.bf16.msra.mxu0 0
        %5122 = vmatprep.subr.bf16.mxu0 0
        %5123 = vmatpush1.bf16.msra.mxu0 0
        %5124 = vmatprep.subr.bf16.mxu0 0
        %5125 = vmatpush1.bf16.msra.mxu0 0
        %5126 = vmatprep.mubr.bf16.mxu0 0
        %5127 = vmatmul.mubr.bf16.gmra.mrb[0].mxu0 %v4969
        %v5128 = vpop.f32.mrb[0].mxu0
        %v5129 = vadd.f32 0.0, %v5128
        %v5130 = vpop.f32.mrb[0].mxu0
        %v5131 = vpop.f32.mrb[0].mxu0
        %v5132 = vpop.f32.mrb[0].mxu0
        %5133 = vdwg.mxu0
        %v5134 = vadd.f32 %v3559, %v5006
        %v5135 = vadd.f32 %v3561, %v5008
        %v5136 = vadd.f32 %v3600, %v5047
        %v5137 = vadd.f32 %v3602, %v5049
        %v5138 = vadd.f32 %v3641, %v5088
        %v5139 = vadd.f32 %v3643, %v5090
        %v5140 = vadd.f32 %v3682, %v5129
        %s5141 = scalar_lea.vmem %s352, 2688 [#allocation8]
        %v5142 = vld [vmem:[%s5141] sm:$0xff]
        %v5143 = vld [vmem:[%s5141 + $0x8] sm:$0xff]
        %v5144 = vld [vmem:[%s5141 + $0x10] sm:$0xff]
        %v5145 = vld [vmem:[%s5141 + $0x18] sm:$0xf]
        %v5146 = vld [vmem:[%s5141 + $0x1c] sm:$0xff]
        %v5147 = vld [vmem:[%s5141 + $0x24] sm:$0xff]
        %v5148 = vld [vmem:[%s5141 + $0x2c] sm:$0xff]
        %v5149 = vld [vmem:[%s5141 + $0x34] sm:$0xf]
        %v5150 = vld [vmem:[%s5141 + $0x38] sm:$0xff]
        %v5151 = vld [vmem:[%s5141 + $0x40] sm:$0xff]
        %v5152 = vld [vmem:[%s5141 + $0x48] sm:$0xff]
        %v5153 = vld [vmem:[%s5141 + $0x50] sm:$0xf]
        %v5154 = vld [vmem:[%s5141 + $0x54] sm:$0xff]
        %v5155 = vld [vmem:[%s5141 + $0x5c] sm:$0xff]
        %v5156 = vld [vmem:[%s5141 + $0x64] sm:$0xff]
        %v5157 = vld [vmem:[%s5141 + $0x6c] sm:$0xf]
        %v5158 = vld [vmem:[%s5141 + $0x70] sm:$0xff]
        %v5159 = vld [vmem:[%s5141 + $0x78] sm:$0xff]
        %v5160 = vld [vmem:[%s5141 + $0x80] sm:$0xff]
        %v5161 = vld [vmem:[%s5141 + $0x88] sm:$0xf]
        %v5162 = vld [vmem:[%s5141 + $0x8c] sm:$0xff]
        %v5163 = vld [vmem:[%s5141 + $0x94] sm:$0xff]
        %v5164 = vld [vmem:[%s5141 + $0x9c] sm:$0xff]
        %v5165 = vld [vmem:[%s5141 + $0xa4] sm:$0xf]
        %v5166 = vld [vmem:[%s5141 + $0xa8] sm:$0xff]
        %v5167 = vld [vmem:[%s5141 + $0xb0] sm:$0xff]
        %v5168 = vld [vmem:[%s5141 + $0xb8] sm:$0xff]
        %v5169 = vld [vmem:[%s5141 + $0xc0] sm:$0xf]
        %v5170 = vld [vmem:[%s5141 + $0xc4] sm:$0xff]
        %v5171 = vld [vmem:[%s5141 + $0xcc] sm:$0xff]
        %v5172 = vld [vmem:[%s5141 + $0xd4] sm:$0xff]
        %v5173 = vld [vmem:[%s5141 + $0xdc] sm:$0xf]
        %v5174 = vrot.slane %v817, 6
        %v5207 = vunpack.c.l.b16 %v5142
        %v5208 = vunpack.c.h.b16 %v5142
        %v5209 = vunpack.c.l.b16 %v5143
        %v5210 = vunpack.c.h.b16 %v5143
        %v5211 = vunpack.c.l.b16 %v5144
        %v5212 = vunpack.c.h.b16 %v5144
        %v5213 = vunpack.c.l.b16 %v5145
        %v5214 = vunpack.c.l.b16 %v5146
        %v5215 = vunpack.c.h.b16 %v5146
        %v5216 = vunpack.c.l.b16 %v5147
        %v5217 = vunpack.c.h.b16 %v5147
        %v5218 = vunpack.c.l.b16 %v5148
        %v5219 = vunpack.c.h.b16 %v5148
        %v5220 = vunpack.c.l.b16 %v5149
        %v5221 = vunpack.c.l.b16 %v5150
        %v5222 = vunpack.c.h.b16 %v5150
        %v5223 = vunpack.c.l.b16 %v5151
        %v5224 = vunpack.c.h.b16 %v5151
        %v5225 = vunpack.c.l.b16 %v5152
        %v5226 = vunpack.c.h.b16 %v5152
        %v5227 = vunpack.c.l.b16 %v5153
        %v5228 = vunpack.c.l.b16 %v5154
        %v5229 = vunpack.c.h.b16 %v5154
        %v5230 = vunpack.c.l.b16 %v5155
        %v5231 = vunpack.c.h.b16 %v5155
        %v5232 = vunpack.c.l.b16 %v5156
        %v5233 = vunpack.c.h.b16 %v5156
        %v5234 = vunpack.c.l.b16 %v5157
        %v5235 = vunpack.c.l.b16 %v5158
        %v5236 = vunpack.c.h.b16 %v5158
        %v5237 = vunpack.c.l.b16 %v5159
        %v5238 = vunpack.c.h.b16 %v5159
        %v5239 = vunpack.c.l.b16 %v5160
        %v5240 = vunpack.c.h.b16 %v5160
        %v5241 = vunpack.c.l.b16 %v5161
        %v5242 = vunpack.c.l.b16 %v5162
        %v5243 = vunpack.c.h.b16 %v5162
        %v5244 = vunpack.c.l.b16 %v5163
        %v5245 = vunpack.c.h.b16 %v5163
        %v5246 = vunpack.c.l.b16 %v5164
        %v5247 = vunpack.c.h.b16 %v5164
        %v5248 = vunpack.c.l.b16 %v5165
        %v5249 = vunpack.c.l.b16 %v5166
        %v5250 = vunpack.c.h.b16 %v5166
        %v5251 = vunpack.c.l.b16 %v5167
        %v5252 = vunpack.c.h.b16 %v5167
        %v5253 = vunpack.c.l.b16 %v5168
        %v5254 = vunpack.c.h.b16 %v5168
        %v5255 = vunpack.c.l.b16 %v5169
        %v5256 = vunpack.c.l.b16 %v5170
        %v5257 = vunpack.c.h.b16 %v5170
        %v5258 = vunpack.c.l.b16 %v5171
        %v5259 = vunpack.c.h.b16 %v5171
        %v5260 = vunpack.c.l.b16 %v5172
        %v5261 = vunpack.c.h.b16 %v5172
        %v5262 = vunpack.c.l.b16 %v5173
        %v5263 = vpack.c.b16 %v5214, %v5207
        %v5264 = vpack.c.b16 %v5215, %v5208
        %v5265 = vpack.c.b16 %v5216, %v5209
        %v5266 = vpack.c.b16 %v5217, %v5210
        %v5267 = vpack.c.b16 %v5218, %v5211
        %v5268 = vpack.c.b16 %v5219, %v5212
        %v5269 = vpack.c.b16 %v5220, %v5213
        %v5270 = vpack.c.b16 %v5228, %v5221
        %v5271 = vpack.c.b16 %v5229, %v5222
        %v5272 = vpack.c.b16 %v5230, %v5223
        %v5273 = vpack.c.b16 %v5231, %v5224
        %v5274 = vpack.c.b16 %v5232, %v5225
        %v5275 = vpack.c.b16 %v5233, %v5226
        %v5276 = vpack.c.b16 %v5234, %v5227
        %v5277 = vpack.c.b16 %v5242, %v5235
        %v5278 = vpack.c.b16 %v5243, %v5236
        %v5279 = vpack.c.b16 %v5244, %v5237
        %v5280 = vpack.c.b16 %v5245, %v5238
        %v5281 = vpack.c.b16 %v5246, %v5239
        %v5282 = vpack.c.b16 %v5247, %v5240
        %v5283 = vpack.c.b16 %v5248, %v5241
        %v5284 = vpack.c.b16 %v5256, %v5249
        %v5285 = vpack.c.b16 %v5257, %v5250
        %v5286 = vpack.c.b16 %v5258, %v5251
        %v5287 = vpack.c.b16 %v5259, %v5252
        %v5288 = vpack.c.b16 %v5260, %v5253
        %v5289 = vpack.c.b16 %v5261, %v5254
        %v5290 = vpack.c.b16 %v5262, %v5255
        %v5320 = vsel %vm996, %v5174, 0
        %5322 = vmatprep.subr.bf16.mxu0 %v5264
        %5323 = vmatpush1.bf16.msra.mxu0 %v5263
        %5324 = vmatprep.subr.bf16.mxu0 %v5271
        %5325 = vmatpush1.bf16.msra.mxu0 %v5270
        %5326 = vmatprep.subr.bf16.mxu0 %v5278
        %5327 = vmatpush1.bf16.msra.mxu0 %v5277
        %5328 = vmatprep.subr.bf16.mxu0 %v5285
        %5329 = vmatpush1.bf16.msra.mxu0 %v5284
        %5330 = vmatprep.subr.bf16.mxu0 0
        %5331 = vmatpush1.bf16.msra.mxu0 0
        %5332 = vmatprep.subr.bf16.mxu0 0
        %5333 = vmatpush1.bf16.msra.mxu0 0
        %5334 = vmatprep.subr.bf16.mxu0 0
        %5335 = vmatpush1.bf16.msra.mxu0 0
        %5336 = vmatprep.subr.bf16.mxu0 0
        %5337 = vmatpush1.bf16.msra.mxu0 0
        %5338 = vmatprep.subr.bf16.mxu0 0
        %5339 = vmatpush1.bf16.msra.mxu0 0
        %5340 = vmatprep.subr.bf16.mxu0 0
        %5341 = vmatpush1.bf16.msra.mxu0 0
        %5342 = vmatprep.subr.bf16.mxu0 0
        %5343 = vmatpush1.bf16.msra.mxu0 0
        %5344 = vmatprep.subr.bf16.mxu0 0
        %5345 = vmatpush1.bf16.msra.mxu0 0
        %5346 = vmatprep.subr.bf16.mxu0 0
        %5347 = vmatpush1.bf16.msra.mxu0 0
        %5348 = vmatprep.subr.bf16.mxu0 0
        %5349 = vmatpush1.bf16.msra.mxu0 0
        %5350 = vmatprep.subr.bf16.mxu0 0
        %5351 = vmatpush1.bf16.msra.mxu0 0
        %5352 = vmatprep.subr.bf16.mxu0 0
        %5353 = vmatpush1.bf16.msra.mxu0 0
        %5354 = vmatprep.mubr.bf16.mxu0 0
        %5355 = vmatmul.mubr.bf16.gmra.mrb[0].mxu0 %v5320
        %v5356 = vpop.f32.mrb[0].mxu0
        %v5357 = vadd.f32 0.0, %v5356
        %v5358 = vpop.f32.mrb[0].mxu0
        %v5359 = vadd.f32 0.0, %v5358
        %v5360 = vpop.f32.mrb[0].mxu0
        %v5361 = vpop.f32.mrb[0].mxu0
        %5362 = vdwg.mxu0
        %5363 = vmatprep.subr.bf16.mxu0 %v5266
        %5364 = vmatpush1.bf16.msra.mxu0 %v5265
        %5365 = vmatprep.subr.bf16.mxu0 %v5273
        %5366 = vmatpush1.bf16.msra.mxu0 %v5272
        %5367 = vmatprep.subr.bf16.mxu0 %v5280
        %5368 = vmatpush1.bf16.msra.mxu0 %v5279
        %5369 = vmatprep.subr.bf16.mxu0 %v5287
        %5370 = vmatpush1.bf16.msra.mxu0 %v5286
        %5371 = vmatprep.subr.bf16.mxu0 0
        %5372 = vmatpush1.bf16.msra.mxu0 0
        %5373 = vmatprep.subr.bf16.mxu0 0
        %5374 = vmatpush1.bf16.msra.mxu0 0
        %5375 = vmatprep.subr.bf16.mxu0 0
        %5376 = vmatpush1.bf16.msra.mxu0 0
        %5377 = vmatprep.subr.bf16.mxu0 0
        %5378 = vmatpush1.bf16.msra.mxu0 0
        %5379 = vmatprep.subr.bf16.mxu0 0
        %5380 = vmatpush1.bf16.msra.mxu0 0
        %5381 = vmatprep.subr.bf16.mxu0 0
        %5382 = vmatpush1.bf16.msra.mxu0 0
        %5383 = vmatprep.subr.bf16.mxu0 0
        %5384 = vmatpush1.bf16.msra.mxu0 0
        %5385 = vmatprep.subr.bf16.mxu0 0
        %5386 = vmatpush1.bf16.msra.mxu0 0
        %5387 = vmatprep.subr.bf16.mxu0 0
        %5388 = vmatpush1.bf16.msra.mxu0 0
        %5389 = vmatprep.subr.bf16.mxu0 0
        %5390 = vmatpush1.bf16.msra.mxu0 0
        %5391 = vmatprep.subr.bf16.mxu0 0
        %5392 = vmatpush1.bf16.msra.mxu0 0
        %5393 = vmatprep.subr.bf16.mxu0 0
        %5394 = vmatpush1.bf16.msra.mxu0 0
        %5395 = vmatprep.mubr.bf16.mxu0 0
        %5396 = vmatmul.mubr.bf16.gmra.mrb[0].mxu0 %v5320
        %v5397 = vpop.f32.mrb[0].mxu0
        %v5398 = vadd.f32 0.0, %v5397
        %v5399 = vpop.f32.mrb[0].mxu0
        %v5400 = vadd.f32 0.0, %v5399
        %v5401 = vpop.f32.mrb[0].mxu0
        %v5402 = vpop.f32.mrb[0].mxu0
        %5403 = vdwg.mxu0
        %5404 = vmatprep.subr.bf16.mxu0 %v5268
        %5405 = vmatpush1.bf16.msra.mxu0 %v5267
        %5406 = vmatprep.subr.bf16.mxu0 %v5275
        %5407 = vmatpush1.bf16.msra.mxu0 %v5274
        %5408 = vmatprep.subr.bf16.mxu0 %v5282
        %5409 = vmatpush1.bf16.msra.mxu0 %v5281
        %5410 = vmatprep.subr.bf16.mxu0 %v5289
        %5411 = vmatpush1.bf16.msra.mxu0 %v5288
        %5412 = vmatprep.subr.bf16.mxu0 0
        %5413 = vmatpush1.bf16.msra.mxu0 0
        %5414 = vmatprep.subr.bf16.mxu0 0
        %5415 = vmatpush1.bf16.msra.mxu0 0
        %5416 = vmatprep.subr.bf16.mxu0 0
        %5417 = vmatpush1.bf16.msra.mxu0 0
        %5418 = vmatprep.subr.bf16.mxu0 0
        %5419 = vmatpush1.bf16.msra.mxu0 0
        %5420 = vmatprep.subr.bf16.mxu0 0
        %5421 = vmatpush1.bf16.msra.mxu0 0
        %5422 = vmatprep.subr.bf16.mxu0 0
        %5423 = vmatpush1.bf16.msra.mxu0 0
        %5424 = vmatprep.subr.bf16.mxu0 0
        %5425 = vmatpush1.bf16.msra.mxu0 0
        %5426 = vmatprep.subr.bf16.mxu0 0
        %5427 = vmatpush1.bf16.msra.mxu0 0
        %5428 = vmatprep.subr.bf16.mxu0 0
        %5429 = vmatpush1.bf16.msra.mxu0 0
        %5430 = vmatprep.subr.bf16.mxu0 0
        %5431 = vmatpush1.bf16.msra.mxu0 0
        %5432 = vmatprep.subr.bf16.mxu0 0
        %5433 = vmatpush1.bf16.msra.mxu0 0
        %5434 = vmatprep.subr.bf16.mxu0 0
        %5435 = vmatpush1.bf16.msra.mxu0 0
        %5436 = vmatprep.mubr.bf16.mxu0 0
        %5437 = vmatmul.mubr.bf16.gmra.mrb[0].mxu0 %v5320
        %v5438 = vpop.f32.mrb[0].mxu0
        %v5439 = vadd.f32 0.0, %v5438
        %v5440 = vpop.f32.mrb[0].mxu0
        %v5441 = vadd.f32 0.0, %v5440
        %v5442 = vpop.f32.mrb[0].mxu0
        %v5443 = vpop.f32.mrb[0].mxu0
        %5444 = vdwg.mxu0
        %5445 = vmatprep.subr.bf16.mxu0 0
        %5446 = vmatpush1.bf16.msra.mxu0 %v5269
        %5447 = vmatprep.subr.bf16.mxu0 0
        %5448 = vmatpush1.bf16.msra.mxu0 %v5276
        %5449 = vmatprep.subr.bf16.mxu0 0
        %5450 = vmatpush1.bf16.msra.mxu0 %v5283
        %5451 = vmatprep.subr.bf16.mxu0 0
        %5452 = vmatpush1.bf16.msra.mxu0 %v5290
        %5453 = vmatprep.subr.bf16.mxu0 0
        %5454 = vmatpush1.bf16.msra.mxu0 0
        %5455 = vmatprep.subr.bf16.mxu0 0
        %5456 = vmatpush1.bf16.msra.mxu0 0
        %5457 = vmatprep.subr.bf16.mxu0 0
        %5458 = vmatpush1.bf16.msra.mxu0 0
        %5459 = vmatprep.subr.bf16.mxu0 0
        %5460 = vmatpush1.bf16.msra.mxu0 0
        %5461 = vmatprep.subr.bf16.mxu0 0
        %5462 = vmatpush1.bf16.msra.mxu0 0
        %5463 = vmatprep.subr.bf16.mxu0 0
        %5464 = vmatpush1.bf16.msra.mxu0 0
        %5465 = vmatprep.subr.bf16.mxu0 0
        %5466 = vmatpush1.bf16.msra.mxu0 0
        %5467 = vmatprep.subr.bf16.mxu0 0
        %5468 = vmatpush1.bf16.msra.mxu0 0
        %5469 = vmatprep.subr.bf16.mxu0 0
        %5470 = vmatpush1.bf16.msra.mxu0 0
        %5471 = vmatprep.subr.bf16.mxu0 0
        %5472 = vmatpush1.bf16.msra.mxu0 0
        %5473 = vmatprep.subr.bf16.mxu0 0
        %5474 = vmatpush1.bf16.msra.mxu0 0
        %5475 = vmatprep.subr.bf16.mxu0 0
        %5476 = vmatpush1.bf16.msra.mxu0 0
        %5477 = vmatprep.mubr.bf16.mxu0 0
        %5478 = vmatmul.mubr.bf16.gmra.mrb[0].mxu0 %v5320
        %v5479 = vpop.f32.mrb[0].mxu0
        %v5480 = vadd.f32 0.0, %v5479
        %v5481 = vpop.f32.mrb[0].mxu0
        %v5482 = vpop.f32.mrb[0].mxu0
        %v5483 = vpop.f32.mrb[0].mxu0
        %5484 = vdwg.mxu0
        %v5492 = vcombine.low %v5357, %v5359
        %v5493 = vcombine.low %v5398, %v5400
        %v5494 = vcombine.low %v5439, %v5441
        %v5496 = vunpack.c.l.s4 1966171168
        %v5497 = vunpack.c.0.s8 %v5496
        %v5498 = vlaneseq
        %v5499 = vshrl.u32 %v5498, 7
        %v5500 = vsub.s32 %v5497, %v5499
        %v5501 = vrot.slane %v5492, %v5500
        %v5503 = vunpack.c.l.s4 1966171168
        %v5504 = vunpack.c.0.s8 %v5503
        %v5505 = vlaneseq
        %v5506 = vshrl.u32 %v5505, 7
        %v5507 = vsub.s32 %v5504, %v5506
        %v5508 = vrot.slane %v5493, %v5507
        %v5510 = vunpack.c.l.s4 1966171168
        %v5511 = vunpack.c.0.s8 %v5510
        %v5512 = vlaneseq
        %v5513 = vshrl.u32 %v5512, 7
        %v5514 = vsub.s32 %v5511, %v5513
        %v5515 = vrot.slane %v5494, %v5514
        %v5517 = vunpack.c.l.s4 1966171168
        %v5518 = vunpack.c.0.s8 %v5517
        %v5519 = vlaneseq
        %v5520 = vshrl.u32 %v5519, 7
        %v5521 = vsub.s32 %v5518, %v5520
        %v5522 = vrot.slane %v5480, %v5521
        %v5523 = vcombine.low %v5501, %v5508
        %v5524 = vcombine.low %v5515, %v5522
        %v5526 = vunpack.c.l.s4 1966171168
        %v5527 = vunpack.c.0.s8 %v5526
        %v5528 = vlaneseq
        %v5529 = vshrl.u32 %v5528, 7
        %v5530 = vsub.s32 %v5527, %v5529
        %v5531 = vrot.slane %v5523, %v5530
        %v5533 = vunpack.c.l.s4 1966171168
        %v5534 = vunpack.c.0.s8 %v5533
        %v5535 = vlaneseq
        %v5536 = vshrl.u32 %v5535, 7
        %v5537 = vsub.s32 %v5534, %v5536
        %v5538 = vrot.slane %v5524, %v5537
        %v5539 = vcombine.low %v5531, %v5538
        %v5541 = vadd.f32 %v4087, %v5539
        %s5542 = scalar_lea.vmem %s352, 2912 [#allocation8]
        %v5543 = vld [vmem:[%s5542] sm:$0xff]
        %v5544 = vld [vmem:[%s5542 + $0x8] sm:$0xff]
        %v5545 = vld [vmem:[%s5542 + $0x10] sm:$0xff]
        %v5546 = vld [vmem:[%s5542 + $0x18] sm:$0xf]
        %v5547 = vld [vmem:[%s5542 + $0x1c] sm:$0xff]
        %v5548 = vld [vmem:[%s5542 + $0x24] sm:$0xff]
        %v5549 = vld [vmem:[%s5542 + $0x2c] sm:$0xff]
        %v5550 = vld [vmem:[%s5542 + $0x34] sm:$0xf]
        %v5551 = vld [vmem:[%s5542 + $0x38] sm:$0xff]
        %v5552 = vld [vmem:[%s5542 + $0x40] sm:$0xff]
        %v5553 = vld [vmem:[%s5542 + $0x48] sm:$0xff]
        %v5554 = vld [vmem:[%s5542 + $0x50] sm:$0xf]
        %v5555 = vld [vmem:[%s5542 + $0x54] sm:$0xff]
        %v5556 = vld [vmem:[%s5542 + $0x5c] sm:$0xff]
        %v5557 = vld [vmem:[%s5542 + $0x64] sm:$0xff]
        %v5558 = vld [vmem:[%s5542 + $0x6c] sm:$0xf]
        %v5559 = vld [vmem:[%s5542 + $0x70] sm:$0xff]
        %v5560 = vld [vmem:[%s5542 + $0x78] sm:$0xff]
        %v5561 = vld [vmem:[%s5542 + $0x80] sm:$0xff]
        %v5562 = vld [vmem:[%s5542 + $0x88] sm:$0xf]
        %v5563 = vld [vmem:[%s5542 + $0x8c] sm:$0xff]
        %v5564 = vld [vmem:[%s5542 + $0x94] sm:$0xff]
        %v5565 = vld [vmem:[%s5542 + $0x9c] sm:$0xff]
        %v5566 = vld [vmem:[%s5542 + $0xa4] sm:$0xf]
        %v5567 = vld [vmem:[%s5542 + $0xa8] sm:$0xff]
        %v5568 = vld [vmem:[%s5542 + $0xb0] sm:$0xff]
        %v5569 = vld [vmem:[%s5542 + $0xb8] sm:$0xff]
        %v5570 = vld [vmem:[%s5542 + $0xc0] sm:$0xf]
        %v5571 = vld [vmem:[%s5542 + $0xc4] sm:$0xff]
        %v5572 = vld [vmem:[%s5542 + $0xcc] sm:$0xff]
        %v5573 = vld [vmem:[%s5542 + $0xd4] sm:$0xff]
        %v5574 = vld [vmem:[%s5542 + $0xdc] sm:$0xf]
        %v5575 = vrot.slane %v1754, 6
        %v5608 = vunpack.c.l.b16 %v5543
        %v5609 = vunpack.c.h.b16 %v5543
        %v5610 = vunpack.c.l.b16 %v5544
        %v5611 = vunpack.c.h.b16 %v5544
        %v5612 = vunpack.c.l.b16 %v5545
        %v5613 = vunpack.c.h.b16 %v5545
        %v5614 = vunpack.c.l.b16 %v5546
        %v5615 = vunpack.c.l.b16 %v5547
        %v5616 = vunpack.c.h.b16 %v5547
        %v5617 = vunpack.c.l.b16 %v5548
        %v5618 = vunpack.c.h.b16 %v5548
        %v5619 = vunpack.c.l.b16 %v5549
        %v5620 = vunpack.c.h.b16 %v5549
        %v5621 = vunpack.c.l.b16 %v5550
        %v5622 = vunpack.c.l.b16 %v5551
        %v5623 = vunpack.c.h.b16 %v5551
        %v5624 = vunpack.c.l.b16 %v5552
        %v5625 = vunpack.c.h.b16 %v5552
        %v5626 = vunpack.c.l.b16 %v5553
        %v5627 = vunpack.c.h.b16 %v5553
        %v5628 = vunpack.c.l.b16 %v5554
        %v5629 = vunpack.c.l.b16 %v5555
        %v5630 = vunpack.c.h.b16 %v5555
        %v5631 = vunpack.c.l.b16 %v5556
        %v5632 = vunpack.c.h.b16 %v5556
        %v5633 = vunpack.c.l.b16 %v5557
        %v5634 = vunpack.c.h.b16 %v5557
        %v5635 = vunpack.c.l.b16 %v5558
        %v5636 = vunpack.c.l.b16 %v5559
        %v5637 = vunpack.c.h.b16 %v5559
        %v5638 = vunpack.c.l.b16 %v5560
        %v5639 = vunpack.c.h.b16 %v5560
        %v5640 = vunpack.c.l.b16 %v5561
        %v5641 = vunpack.c.h.b16 %v5561
        %v5642 = vunpack.c.l.b16 %v5562
        %v5643 = vunpack.c.l.b16 %v5563
        %v5644 = vunpack.c.h.b16 %v5563
        %v5645 = vunpack.c.l.b16 %v5564
        %v5646 = vunpack.c.h.b16 %v5564
        %v5647 = vunpack.c.l.b16 %v5565
        %v5648 = vunpack.c.h.b16 %v5565
        %v5649 = vunpack.c.l.b16 %v5566
        %v5650 = vunpack.c.l.b16 %v5567
        %v5651 = vunpack.c.h.b16 %v5567
        %v5652 = vunpack.c.l.b16 %v5568
        %v5653 = vunpack.c.h.b16 %v5568
        %v5654 = vunpack.c.l.b16 %v5569
        %v5655 = vunpack.c.h.b16 %v5569
        %v5656 = vunpack.c.l.b16 %v5570
        %v5657 = vunpack.c.l.b16 %v5571
        %v5658 = vunpack.c.h.b16 %v5571
        %v5659 = vunpack.c.l.b16 %v5572
        %v5660 = vunpack.c.h.b16 %v5572
        %v5661 = vunpack.c.l.b16 %v5573
        %v5662 = vunpack.c.h.b16 %v5573
        %v5663 = vunpack.c.l.b16 %v5574
        %v5664 = vpack.c.b16 %v5615, %v5608
        %v5665 = vpack.c.b16 %v5616, %v5609
        %v5666 = vpack.c.b16 %v5617, %v5610
        %v5667 = vpack.c.b16 %v5618, %v5611
        %v5668 = vpack.c.b16 %v5619, %v5612
        %v5669 = vpack.c.b16 %v5620, %v5613
        %v5670 = vpack.c.b16 %v5621, %v5614
        %v5671 = vpack.c.b16 %v5629, %v5622
        %v5672 = vpack.c.b16 %v5630, %v5623
        %v5673 = vpack.c.b16 %v5631, %v5624
        %v5674 = vpack.c.b16 %v5632, %v5625
        %v5675 = vpack.c.b16 %v5633, %v5626
        %v5676 = vpack.c.b16 %v5634, %v5627
        %v5677 = vpack.c.b16 %v5635, %v5628
        %v5678 = vpack.c.b16 %v5643, %v5636
        %v5679 = vpack.c.b16 %v5644, %v5637
        %v5680 = vpack.c.b16 %v5645, %v5638
        %v5681 = vpack.c.b16 %v5646, %v5639
        %v5682 = vpack.c.b16 %v5647, %v5640
        %v5683 = vpack.c.b16 %v5648, %v5641
        %v5684 = vpack.c.b16 %v5649, %v5642
        %v5685 = vpack.c.b16 %v5657, %v5650
        %v5686 = vpack.c.b16 %v5658, %v5651
        %v5687 = vpack.c.b16 %v5659, %v5652
        %v5688 = vpack.c.b16 %v5660, %v5653
        %v5689 = vpack.c.b16 %v5661, %v5654
        %v5690 = vpack.c.b16 %v5662, %v5655
        %v5691 = vpack.c.b16 %v5663, %v5656
        %v5721 = vsel %vm996, %v5575, 0
        %5723 = vmatprep.subr.bf16.mxu0 %v5665
        %5724 = vmatpush1.bf16.msra.mxu0 %v5664
        %5725 = vmatprep.subr.bf16.mxu0 %v5672
        %5726 = vmatpush1.bf16.msra.mxu0 %v5671
        %5727 = vmatprep.subr.bf16.mxu0 %v5679
        %5728 = vmatpush1.bf16.msra.mxu0 %v5678
        %5729 = vmatprep.subr.bf16.mxu0 %v5686
        %5730 = vmatpush1.bf16.msra.mxu0 %v5685
        %5731 = vmatprep.subr.bf16.mxu0 0
        %5732 = vmatpush1.bf16.msra.mxu0 0
        %5733 = vmatprep.subr.bf16.mxu0 0
        %5734 = vmatpush1.bf16.msra.mxu0 0
        %5735 = vmatprep.subr.bf16.mxu0 0
        %5736 = vmatpush1.bf16.msra.mxu0 0
        %5737 = vmatprep.subr.bf16.mxu0 0
        %5738 = vmatpush1.bf16.msra.mxu0 0
        %5739 = vmatprep.subr.bf16.mxu0 0
        %5740 = vmatpush1.bf16.msra.mxu0 0
        %5741 = vmatprep.subr.bf16.mxu0 0
        %5742 = vmatpush1.bf16.msra.mxu0 0
        %5743 = vmatprep.subr.bf16.mxu0 0
        %5744 = vmatpush1.bf16.msra.mxu0 0
        %5745 = vmatprep.subr.bf16.mxu0 0
        %5746 = vmatpush1.bf16.msra.mxu0 0
        %5747 = vmatprep.subr.bf16.mxu0 0
        %5748 = vmatpush1.bf16.msra.mxu0 0
        %5749 = vmatprep.subr.bf16.mxu0 0
        %5750 = vmatpush1.bf16.msra.mxu0 0
        %5751 = vmatprep.subr.bf16.mxu0 0
        %5752 = vmatpush1.bf16.msra.mxu0 0
        %5753 = vmatprep.subr.bf16.mxu0 0
        %5754 = vmatpush1.bf16.msra.mxu0 0
        %5755 = vmatprep.mubr.bf16.mxu0 0
        %5756 = vmatmul.mubr.bf16.gmra.mrb[0].mxu0 %v5721
        %v5757 = vpop.f32.mrb[0].mxu0
        %v5758 = vadd.f32 0.0, %v5757
        %v5759 = vpop.f32.mrb[0].mxu0
        %v5760 = vadd.f32 0.0, %v5759
        %v5761 = vpop.f32.mrb[0].mxu0
        %v5762 = vpop.f32.mrb[0].mxu0
        %5763 = vdwg.mxu0
        %5764 = vmatprep.subr.bf16.mxu0 %v5667
        %5765 = vmatpush1.bf16.msra.mxu0 %v5666
        %5766 = vmatprep.subr.bf16.mxu0 %v5674
        %5767 = vmatpush1.bf16.msra.mxu0 %v5673
        %5768 = vmatprep.subr.bf16.mxu0 %v5681
        %5769 = vmatpush1.bf16.msra.mxu0 %v5680
        %5770 = vmatprep.subr.bf16.mxu0 %v5688
        %5771 = vmatpush1.bf16.msra.mxu0 %v5687
        %5772 = vmatprep.subr.bf16.mxu0 0
        %5773 = vmatpush1.bf16.msra.mxu0 0
        %5774 = vmatprep.subr.bf16.mxu0 0
        %5775 = vmatpush1.bf16.msra.mxu0 0
        %5776 = vmatprep.subr.bf16.mxu0 0
        %5777 = vmatpush1.bf16.msra.mxu0 0
        %5778 = vmatprep.subr.bf16.mxu0 0
        %5779 = vmatpush1.bf16.msra.mxu0 0
        %5780 = vmatprep.subr.bf16.mxu0 0
        %5781 = vmatpush1.bf16.msra.mxu0 0
        %5782 = vmatprep.subr.bf16.mxu0 0
        %5783 = vmatpush1.bf16.msra.mxu0 0
        %5784 = vmatprep.subr.bf16.mxu0 0
        %5785 = vmatpush1.bf16.msra.mxu0 0
        %5786 = vmatprep.subr.bf16.mxu0 0
        %5787 = vmatpush1.bf16.msra.mxu0 0
        %5788 = vmatprep.subr.bf16.mxu0 0
        %5789 = vmatpush1.bf16.msra.mxu0 0
        %5790 = vmatprep.subr.bf16.mxu0 0
        %5791 = vmatpush1.bf16.msra.mxu0 0
        %5792 = vmatprep.subr.bf16.mxu0 0
        %5793 = vmatpush1.bf16.msra.mxu0 0
        %5794 = vmatprep.subr.bf16.mxu0 0
        %5795 = vmatpush1.bf16.msra.mxu0 0
        %5796 = vmatprep.mubr.bf16.mxu0 0
        %5797 = vmatmul.mubr.bf16.gmra.mrb[0].mxu0 %v5721
        %v5798 = vpop.f32.mrb[0].mxu0
        %v5799 = vadd.f32 0.0, %v5798
        %v5800 = vpop.f32.mrb[0].mxu0
        %v5801 = vadd.f32 0.0, %v5800
        %v5802 = vpop.f32.mrb[0].mxu0
        %v5803 = vpop.f32.mrb[0].mxu0
        %5804 = vdwg.mxu0
        %5805 = vmatprep.subr.bf16.mxu0 %v5669
        %5806 = vmatpush1.bf16.msra.mxu0 %v5668
        %5807 = vmatprep.subr.bf16.mxu0 %v5676
        %5808 = vmatpush1.bf16.msra.mxu0 %v5675
        %5809 = vmatprep.subr.bf16.mxu0 %v5683
        %5810 = vmatpush1.bf16.msra.mxu0 %v5682
        %5811 = vmatprep.subr.bf16.mxu0 %v5690
        %5812 = vmatpush1.bf16.msra.mxu0 %v5689
        %5813 = vmatprep.subr.bf16.mxu0 0
        %5814 = vmatpush1.bf16.msra.mxu0 0
        %5815 = vmatprep.subr.bf16.mxu0 0
        %5816 = vmatpush1.bf16.msra.mxu0 0
        %5817 = vmatprep.subr.bf16.mxu0 0
        %5818 = vmatpush1.bf16.msra.mxu0 0
        %5819 = vmatprep.subr.bf16.mxu0 0
        %5820 = vmatpush1.bf16.msra.mxu0 0
        %5821 = vmatprep.subr.bf16.mxu0 0
        %5822 = vmatpush1.bf16.msra.mxu0 0
        %5823 = vmatprep.subr.bf16.mxu0 0
        %5824 = vmatpush1.bf16.msra.mxu0 0
        %5825 = vmatprep.subr.bf16.mxu0 0
        %5826 = vmatpush1.bf16.msra.mxu0 0
        %5827 = vmatprep.subr.bf16.mxu0 0
        %5828 = vmatpush1.bf16.msra.mxu0 0
        %5829 = vmatprep.subr.bf16.mxu0 0
        %5830 = vmatpush1.bf16.msra.mxu0 0
        %5831 = vmatprep.subr.bf16.mxu0 0
        %5832 = vmatpush1.bf16.msra.mxu0 0
        %5833 = vmatprep.subr.bf16.mxu0 0
        %5834 = vmatpush1.bf16.msra.mxu0 0
        %5835 = vmatprep.subr.bf16.mxu0 0
        %5836 = vmatpush1.bf16.msra.mxu0 0
        %5837 = vmatprep.mubr.bf16.mxu0 0
        %5838 = vmatmul.mubr.bf16.gmra.mrb[0].mxu0 %v5721
        %v5839 = vpop.f32.mrb[0].mxu0
        %v5840 = vadd.f32 0.0, %v5839
        %v5841 = vpop.f32.mrb[0].mxu0
        %v5842 = vadd.f32 0.0, %v5841
        %v5843 = vpop.f32.mrb[0].mxu0
        %v5844 = vpop.f32.mrb[0].mxu0
        %5845 = vdwg.mxu0
        %5846 = vmatprep.subr.bf16.mxu0 0
        %5847 = vmatpush1.bf16.msra.mxu0 %v5670
        %5848 = vmatprep.subr.bf16.mxu0 0
        %5849 = vmatpush1.bf16.msra.mxu0 %v5677
        %5850 = vmatprep.subr.bf16.mxu0 0
        %5851 = vmatpush1.bf16.msra.mxu0 %v5684
        %5852 = vmatprep.subr.bf16.mxu0 0
        %5853 = vmatpush1.bf16.msra.mxu0 %v5691
        %5854 = vmatprep.subr.bf16.mxu0 0
        %5855 = vmatpush1.bf16.msra.mxu0 0
        %5856 = vmatprep.subr.bf16.mxu0 0
        %5857 = vmatpush1.bf16.msra.mxu0 0
        %5858 = vmatprep.subr.bf16.mxu0 0
        %5859 = vmatpush1.bf16.msra.mxu0 0
        %5860 = vmatprep.subr.bf16.mxu0 0
        %5861 = vmatpush1.bf16.msra.mxu0 0
        %5862 = vmatprep.subr.bf16.mxu0 0
        %5863 = vmatpush1.bf16.msra.mxu0 0
        %5864 = vmatprep.subr.bf16.mxu0 0
        %5865 = vmatpush1.bf16.msra.mxu0 0
        %5866 = vmatprep.subr.bf16.mxu0 0
        %5867 = vmatpush1.bf16.msra.mxu0 0
        %5868 = vmatprep.subr.bf16.mxu0 0
        %5869 = vmatpush1.bf16.msra.mxu0 0
        %5870 = vmatprep.subr.bf16.mxu0 0
        %5871 = vmatpush1.bf16.msra.mxu0 0
        %5872 = vmatprep.subr.bf16.mxu0 0
        %5873 = vmatpush1.bf16.msra.mxu0 0
        %5874 = vmatprep.subr.bf16.mxu0 0
        %5875 = vmatpush1.bf16.msra.mxu0 0
        %5876 = vmatprep.subr.bf16.mxu0 0
        %5877 = vmatpush1.bf16.msra.mxu0 0
        %5878 = vmatprep.mubr.bf16.mxu0 0
        %5879 = vmatmul.mubr.bf16.gmra.mrb[0].mxu0 %v5721
        %v5880 = vpop.f32.mrb[0].mxu0
        %v5881 = vadd.f32 0.0, %v5880
        %v5882 = vpop.f32.mrb[0].mxu0
        %v5883 = vpop.f32.mrb[0].mxu0
        %v5884 = vpop.f32.mrb[0].mxu0
        %5885 = vdwg.mxu0
        %v5886 = vadd.f32 %v4432, %v5758
        %v5887 = vadd.f32 %v4433, %v5760
        %v5888 = vadd.f32 %v4434, %v5799
        %v5889 = vadd.f32 %v4435, %v5801
        %v5890 = vadd.f32 %v4436, %v5840
        %v5891 = vadd.f32 %v4437, %v5842
        %v5892 = vadd.f32 %v4438, %v5881
        %s5893 = scalar_lea.vmem %s352, 3136 [#allocation8]
        %v5894 = vld [vmem:[%s5893] sm:$0xff]
        %v5895 = vld [vmem:[%s5893 + $0x8] sm:$0xff]
        %v5896 = vld [vmem:[%s5893 + $0x10] sm:$0xff]
        %v5897 = vld [vmem:[%s5893 + $0x18] sm:$0xf]
        %v5898 = vld [vmem:[%s5893 + $0x1c] sm:$0xff]
        %v5899 = vld [vmem:[%s5893 + $0x24] sm:$0xff]
        %v5900 = vld [vmem:[%s5893 + $0x2c] sm:$0xff]
        %v5901 = vld [vmem:[%s5893 + $0x34] sm:$0xf]
        %v5902 = vld [vmem:[%s5893 + $0x38] sm:$0xff]
        %v5903 = vld [vmem:[%s5893 + $0x40] sm:$0xff]
        %v5904 = vld [vmem:[%s5893 + $0x48] sm:$0xff]
        %v5905 = vld [vmem:[%s5893 + $0x50] sm:$0xf]
        %v5906 = vld [vmem:[%s5893 + $0x54] sm:$0xff]
        %v5907 = vld [vmem:[%s5893 + $0x5c] sm:$0xff]
        %v5908 = vld [vmem:[%s5893 + $0x64] sm:$0xff]
        %v5909 = vld [vmem:[%s5893 + $0x6c] sm:$0xf]
        %v5910 = vld [vmem:[%s5893 + $0x70] sm:$0xff]
        %v5911 = vld [vmem:[%s5893 + $0x78] sm:$0xff]
        %v5912 = vld [vmem:[%s5893 + $0x80] sm:$0xff]
        %v5913 = vld [vmem:[%s5893 + $0x88] sm:$0xf]
        %v5914 = vld [vmem:[%s5893 + $0x8c] sm:$0xff]
        %v5915 = vld [vmem:[%s5893 + $0x94] sm:$0xff]
        %v5916 = vld [vmem:[%s5893 + $0x9c] sm:$0xff]
        %v5917 = vld [vmem:[%s5893 + $0xa4] sm:$0xf]
        %v5918 = vld [vmem:[%s5893 + $0xa8] sm:$0xff]
        %v5919 = vld [vmem:[%s5893 + $0xb0] sm:$0xff]
        %v5920 = vld [vmem:[%s5893 + $0xb8] sm:$0xff]
        %v5921 = vld [vmem:[%s5893 + $0xc0] sm:$0xf]
        %v5922 = vld [vmem:[%s5893 + $0xc4] sm:$0xff]
        %v5923 = vld [vmem:[%s5893 + $0xcc] sm:$0xff]
        %v5924 = vld [vmem:[%s5893 + $0xd4] sm:$0xff]
        %v5925 = vld [vmem:[%s5893 + $0xdc] sm:$0xf]
        %v5926 = vrot.slane %v817, 7
        %v5959 = vunpack.c.l.b16 %v5894
        %v5960 = vunpack.c.h.b16 %v5894
        %v5961 = vunpack.c.l.b16 %v5895
        %v5962 = vunpack.c.h.b16 %v5895
        %v5963 = vunpack.c.l.b16 %v5896
        %v5964 = vunpack.c.h.b16 %v5896
        %v5965 = vunpack.c.l.b16 %v5897
        %v5966 = vunpack.c.l.b16 %v5898
        %v5967 = vunpack.c.h.b16 %v5898
        %v5968 = vunpack.c.l.b16 %v5899
        %v5969 = vunpack.c.h.b16 %v5899
        %v5970 = vunpack.c.l.b16 %v5900
        %v5971 = vunpack.c.h.b16 %v5900
        %v5972 = vunpack.c.l.b16 %v5901
        %v5973 = vunpack.c.l.b16 %v5902
        %v5974 = vunpack.c.h.b16 %v5902
        %v5975 = vunpack.c.l.b16 %v5903
        %v5976 = vunpack.c.h.b16 %v5903
        %v5977 = vunpack.c.l.b16 %v5904
        %v5978 = vunpack.c.h.b16 %v5904
        %v5979 = vunpack.c.l.b16 %v5905
        %v5980 = vunpack.c.l.b16 %v5906
        %v5981 = vunpack.c.h.b16 %v5906
        %v5982 = vunpack.c.l.b16 %v5907
        %v5983 = vunpack.c.h.b16 %v5907
        %v5984 = vunpack.c.l.b16 %v5908
        %v5985 = vunpack.c.h.b16 %v5908
        %v5986 = vunpack.c.l.b16 %v5909
        %v5987 = vunpack.c.l.b16 %v5910
        %v5988 = vunpack.c.h.b16 %v5910
        %v5989 = vunpack.c.l.b16 %v5911
        %v5990 = vunpack.c.h.b16 %v5911
        %v5991 = vunpack.c.l.b16 %v5912
        %v5992 = vunpack.c.h.b16 %v5912
        %v5993 = vunpack.c.l.b16 %v5913
        %v5994 = vunpack.c.l.b16 %v5914
        %v5995 = vunpack.c.h.b16 %v5914
        %v5996 = vunpack.c.l.b16 %v5915
        %v5997 = vunpack.c.h.b16 %v5915
        %v5998 = vunpack.c.l.b16 %v5916
        %v5999 = vunpack.c.h.b16 %v5916
        %v6000 = vunpack.c.l.b16 %v5917
        %v6001 = vunpack.c.l.b16 %v5918
        %v6002 = vunpack.c.h.b16 %v5918
        %v6003 = vunpack.c.l.b16 %v5919
        %v6004 = vunpack.c.h.b16 %v5919
        %v6005 = vunpack.c.l.b16 %v5920
        %v6006 = vunpack.c.h.b16 %v5920
        %v6007 = vunpack.c.l.b16 %v5921
        %v6008 = vunpack.c.l.b16 %v5922
        %v6009 = vunpack.c.h.b16 %v5922
        %v6010 = vunpack.c.l.b16 %v5923
        %v6011 = vunpack.c.h.b16 %v5923
        %v6012 = vunpack.c.l.b16 %v5924
        %v6013 = vunpack.c.h.b16 %v5924
        %v6014 = vunpack.c.l.b16 %v5925
        %v6015 = vpack.c.b16 %v5966, %v5959
        %v6016 = vpack.c.b16 %v5967, %v5960
        %v6017 = vpack.c.b16 %v5968, %v5961
        %v6018 = vpack.c.b16 %v5969, %v5962
        %v6019 = vpack.c.b16 %v5970, %v5963
        %v6020 = vpack.c.b16 %v5971, %v5964
        %v6021 = vpack.c.b16 %v5972, %v5965
        %v6022 = vpack.c.b16 %v5980, %v5973
        %v6023 = vpack.c.b16 %v5981, %v5974
        %v6024 = vpack.c.b16 %v5982, %v5975
        %v6025 = vpack.c.b16 %v5983, %v5976
        %v6026 = vpack.c.b16 %v5984, %v5977
        %v6027 = vpack.c.b16 %v5985, %v5978
        %v6028 = vpack.c.b16 %v5986, %v5979
        %v6029 = vpack.c.b16 %v5994, %v5987
        %v6030 = vpack.c.b16 %v5995, %v5988
        %v6031 = vpack.c.b16 %v5996, %v5989
        %v6032 = vpack.c.b16 %v5997, %v5990
        %v6033 = vpack.c.b16 %v5998, %v5991
        %v6034 = vpack.c.b16 %v5999, %v5992
        %v6035 = vpack.c.b16 %v6000, %v5993
        %v6036 = vpack.c.b16 %v6008, %v6001
        %v6037 = vpack.c.b16 %v6009, %v6002
        %v6038 = vpack.c.b16 %v6010, %v6003
        %v6039 = vpack.c.b16 %v6011, %v6004
        %v6040 = vpack.c.b16 %v6012, %v6005
        %v6041 = vpack.c.b16 %v6013, %v6006
        %v6042 = vpack.c.b16 %v6014, %v6007
        %v6072 = vsel %vm996, %v5926, 0
        %6074 = vmatprep.subr.bf16.mxu0 %v6016
        %6075 = vmatpush1.bf16.msra.mxu0 %v6015
        %6076 = vmatprep.subr.bf16.mxu0 %v6023
        %6077 = vmatpush1.bf16.msra.mxu0 %v6022
        %6078 = vmatprep.subr.bf16.mxu0 %v6030
        %6079 = vmatpush1.bf16.msra.mxu0 %v6029
        %6080 = vmatprep.subr.bf16.mxu0 %v6037
        %6081 = vmatpush1.bf16.msra.mxu0 %v6036
        %6082 = vmatprep.subr.bf16.mxu0 0
        %6083 = vmatpush1.bf16.msra.mxu0 0
        %6084 = vmatprep.subr.bf16.mxu0 0
        %6085 = vmatpush1.bf16.msra.mxu0 0
        %6086 = vmatprep.subr.bf16.mxu0 0
        %6087 = vmatpush1.bf16.msra.mxu0 0
        %6088 = vmatprep.subr.bf16.mxu0 0
        %6089 = vmatpush1.bf16.msra.mxu0 0
        %6090 = vmatprep.subr.bf16.mxu0 0
        %6091 = vmatpush1.bf16.msra.mxu0 0
        %6092 = vmatprep.subr.bf16.mxu0 0
        %6093 = vmatpush1.bf16.msra.mxu0 0
        %6094 = vmatprep.subr.bf16.mxu0 0
        %6095 = vmatpush1.bf16.msra.mxu0 0
        %6096 = vmatprep.subr.bf16.mxu0 0
        %6097 = vmatpush1.bf16.msra.mxu0 0
        %6098 = vmatprep.subr.bf16.mxu0 0
        %6099 = vmatpush1.bf16.msra.mxu0 0
        %6100 = vmatprep.subr.bf16.mxu0 0
        %6101 = vmatpush1.bf16.msra.mxu0 0
        %6102 = vmatprep.subr.bf16.mxu0 0
        %6103 = vmatpush1.bf16.msra.mxu0 0
        %6104 = vmatprep.subr.bf16.mxu0 0
        %6105 = vmatpush1.bf16.msra.mxu0 0
        %6106 = vmatprep.mubr.bf16.mxu0 0
        %6107 = vmatmul.mubr.bf16.gmra.mrb[0].mxu0 %v6072
        %v6108 = vpop.f32.mrb[0].mxu0
        %v6109 = vadd.f32 0.0, %v6108
        %v6110 = vpop.f32.mrb[0].mxu0
        %v6111 = vadd.f32 0.0, %v6110
        %v6112 = vpop.f32.mrb[0].mxu0
        %v6113 = vpop.f32.mrb[0].mxu0
        %6114 = vdwg.mxu0
        %6115 = vmatprep.subr.bf16.mxu0 %v6018
        %6116 = vmatpush1.bf16.msra.mxu0 %v6017
        %6117 = vmatprep.subr.bf16.mxu0 %v6025
        %6118 = vmatpush1.bf16.msra.mxu0 %v6024
        %6119 = vmatprep.subr.bf16.mxu0 %v6032
        %6120 = vmatpush1.bf16.msra.mxu0 %v6031
        %6121 = vmatprep.subr.bf16.mxu0 %v6039
        %6122 = vmatpush1.bf16.msra.mxu0 %v6038
        %6123 = vmatprep.subr.bf16.mxu0 0
        %6124 = vmatpush1.bf16.msra.mxu0 0
        %6125 = vmatprep.subr.bf16.mxu0 0
        %6126 = vmatpush1.bf16.msra.mxu0 0
        %6127 = vmatprep.subr.bf16.mxu0 0
        %6128 = vmatpush1.bf16.msra.mxu0 0
        %6129 = vmatprep.subr.bf16.mxu0 0
        %6130 = vmatpush1.bf16.msra.mxu0 0
        %6131 = vmatprep.subr.bf16.mxu0 0
        %6132 = vmatpush1.bf16.msra.mxu0 0
        %6133 = vmatprep.subr.bf16.mxu0 0
        %6134 = vmatpush1.bf16.msra.mxu0 0
        %6135 = vmatprep.subr.bf16.mxu0 0
        %6136 = vmatpush1.bf16.msra.mxu0 0
        %6137 = vmatprep.subr.bf16.mxu0 0
        %6138 = vmatpush1.bf16.msra.mxu0 0
        %6139 = vmatprep.subr.bf16.mxu0 0
        %6140 = vmatpush1.bf16.msra.mxu0 0
        %6141 = vmatprep.subr.bf16.mxu0 0
        %6142 = vmatpush1.bf16.msra.mxu0 0
        %6143 = vmatprep.subr.bf16.mxu0 0
        %6144 = vmatpush1.bf16.msra.mxu0 0
        %6145 = vmatprep.subr.bf16.mxu0 0
        %6146 = vmatpush1.bf16.msra.mxu0 0
        %6147 = vmatprep.mubr.bf16.mxu0 0
        %6148 = vmatmul.mubr.bf16.gmra.mrb[0].mxu0 %v6072
        %v6149 = vpop.f32.mrb[0].mxu0
        %v6150 = vadd.f32 0.0, %v6149
        %v6151 = vpop.f32.mrb[0].mxu0
        %v6152 = vadd.f32 0.0, %v6151
        %v6153 = vpop.f32.mrb[0].mxu0
        %v6154 = vpop.f32.mrb[0].mxu0
        %6155 = vdwg.mxu0
        %6156 = vmatprep.subr.bf16.mxu0 %v6020
        %6157 = vmatpush1.bf16.msra.mxu0 %v6019
        %6158 = vmatprep.subr.bf16.mxu0 %v6027
        %6159 = vmatpush1.bf16.msra.mxu0 %v6026
        %6160 = vmatprep.subr.bf16.mxu0 %v6034
        %6161 = vmatpush1.bf16.msra.mxu0 %v6033
        %6162 = vmatprep.subr.bf16.mxu0 %v6041
        %6163 = vmatpush1.bf16.msra.mxu0 %v6040
        %6164 = vmatprep.subr.bf16.mxu0 0
        %6165 = vmatpush1.bf16.msra.mxu0 0
        %6166 = vmatprep.subr.bf16.mxu0 0
        %6167 = vmatpush1.bf16.msra.mxu0 0
        %6168 = vmatprep.subr.bf16.mxu0 0
        %6169 = vmatpush1.bf16.msra.mxu0 0
        %6170 = vmatprep.subr.bf16.mxu0 0
        %6171 = vmatpush1.bf16.msra.mxu0 0
        %6172 = vmatprep.subr.bf16.mxu0 0
        %6173 = vmatpush1.bf16.msra.mxu0 0
        %6174 = vmatprep.subr.bf16.mxu0 0
        %6175 = vmatpush1.bf16.msra.mxu0 0
        %6176 = vmatprep.subr.bf16.mxu0 0
        %6177 = vmatpush1.bf16.msra.mxu0 0
        %6178 = vmatprep.subr.bf16.mxu0 0
        %6179 = vmatpush1.bf16.msra.mxu0 0
        %6180 = vmatprep.subr.bf16.mxu0 0
        %6181 = vmatpush1.bf16.msra.mxu0 0
        %6182 = vmatprep.subr.bf16.mxu0 0
        %6183 = vmatpush1.bf16.msra.mxu0 0
        %6184 = vmatprep.subr.bf16.mxu0 0
        %6185 = vmatpush1.bf16.msra.mxu0 0
        %6186 = vmatprep.subr.bf16.mxu0 0
        %6187 = vmatpush1.bf16.msra.mxu0 0
        %6188 = vmatprep.mubr.bf16.mxu0 0
        %6189 = vmatmul.mubr.bf16.gmra.mrb[0].mxu0 %v6072
        %v6190 = vpop.f32.mrb[0].mxu0
        %v6191 = vadd.f32 0.0, %v6190
        %v6192 = vpop.f32.mrb[0].mxu0
        %v6193 = vadd.f32 0.0, %v6192
        %v6194 = vpop.f32.mrb[0].mxu0
        %v6195 = vpop.f32.mrb[0].mxu0
        %6196 = vdwg.mxu0
        %6197 = vmatprep.subr.bf16.mxu0 0
        %6198 = vmatpush1.bf16.msra.mxu0 %v6021
        %6199 = vmatprep.subr.bf16.mxu0 0
        %6200 = vmatpush1.bf16.msra.mxu0 %v6028
        %6201 = vmatprep.subr.bf16.mxu0 0
        %6202 = vmatpush1.bf16.msra.mxu0 %v6035
        %6203 = vmatprep.subr.bf16.mxu0 0
        %6204 = vmatpush1.bf16.msra.mxu0 %v6042
        %6205 = vmatprep.subr.bf16.mxu0 0
        %6206 = vmatpush1.bf16.msra.mxu0 0
        %6207 = vmatprep.subr.bf16.mxu0 0
        %6208 = vmatpush1.bf16.msra.mxu0 0
        %6209 = vmatprep.subr.bf16.mxu0 0
        %6210 = vmatpush1.bf16.msra.mxu0 0
        %6211 = vmatprep.subr.bf16.mxu0 0
        %6212 = vmatpush1.bf16.msra.mxu0 0
        %6213 = vmatprep.subr.bf16.mxu0 0
        %6214 = vmatpush1.bf16.msra.mxu0 0
        %6215 = vmatprep.subr.bf16.mxu0 0
        %6216 = vmatpush1.bf16.msra.mxu0 0
        %6217 = vmatprep.subr.bf16.mxu0 0
        %6218 = vmatpush1.bf16.msra.mxu0 0
        %6219 = vmatprep.subr.bf16.mxu0 0
        %6220 = vmatpush1.bf16.msra.mxu0 0
        %6221 = vmatprep.subr.bf16.mxu0 0
        %6222 = vmatpush1.bf16.msra.mxu0 0
        %6223 = vmatprep.subr.bf16.mxu0 0
        %6224 = vmatpush1.bf16.msra.mxu0 0
        %6225 = vmatprep.subr.bf16.mxu0 0
        %6226 = vmatpush1.bf16.msra.mxu0 0
        %6227 = vmatprep.subr.bf16.mxu0 0
        %6228 = vmatpush1.bf16.msra.mxu0 0
        %6229 = vmatprep.mubr.bf16.mxu0 0
        %6230 = vmatmul.mubr.bf16.gmra.mrb[0].mxu0 %v6072
        %v6231 = vpop.f32.mrb[0].mxu0
        %v6232 = vadd.f32 0.0, %v6231
        %v6233 = vpop.f32.mrb[0].mxu0
        %v6234 = vpop.f32.mrb[0].mxu0
        %v6235 = vpop.f32.mrb[0].mxu0
        %6236 = vdwg.mxu0
        %v6237 = vadd.f32 %v4783, %v6109
        %v6238 = vadd.f32 %v4784, %v6111
        %v6239 = vadd.f32 %v4785, %v6150
        %v6240 = vadd.f32 %v4786, %v6152
        %v6241 = vadd.f32 %v4787, %v6191
        %v6242 = vadd.f32 %v4788, %v6193
        %v6243 = vadd.f32 %v4789, %v6232
        %s6244 = scalar_lea.vmem %s352, 3360 [#allocation8]
        %v6245 = vld [vmem:[%s6244] sm:$0xff]
        %v6246 = vld [vmem:[%s6244 + $0x8] sm:$0xff]
        %v6247 = vld [vmem:[%s6244 + $0x10] sm:$0xff]
        %v6248 = vld [vmem:[%s6244 + $0x18] sm:$0xf]
        %v6249 = vld [vmem:[%s6244 + $0x1c] sm:$0xff]
        %v6250 = vld [vmem:[%s6244 + $0x24] sm:$0xff]
        %v6251 = vld [vmem:[%s6244 + $0x2c] sm:$0xff]
        %v6252 = vld [vmem:[%s6244 + $0x34] sm:$0xf]
        %v6253 = vld [vmem:[%s6244 + $0x38] sm:$0xff]
        %v6254 = vld [vmem:[%s6244 + $0x40] sm:$0xff]
        %v6255 = vld [vmem:[%s6244 + $0x48] sm:$0xff]
        %v6256 = vld [vmem:[%s6244 + $0x50] sm:$0xf]
        %v6257 = vld [vmem:[%s6244 + $0x54] sm:$0xff]
        %v6258 = vld [vmem:[%s6244 + $0x5c] sm:$0xff]
        %v6259 = vld [vmem:[%s6244 + $0x64] sm:$0xff]
        %v6260 = vld [vmem:[%s6244 + $0x6c] sm:$0xf]
        %v6261 = vld [vmem:[%s6244 + $0x70] sm:$0xff]
        %v6262 = vld [vmem:[%s6244 + $0x78] sm:$0xff]
        %v6263 = vld [vmem:[%s6244 + $0x80] sm:$0xff]
        %v6264 = vld [vmem:[%s6244 + $0x88] sm:$0xf]
        %v6265 = vld [vmem:[%s6244 + $0x8c] sm:$0xff]
        %v6266 = vld [vmem:[%s6244 + $0x94] sm:$0xff]
        %v6267 = vld [vmem:[%s6244 + $0x9c] sm:$0xff]
        %v6268 = vld [vmem:[%s6244 + $0xa4] sm:$0xf]
        %v6269 = vld [vmem:[%s6244 + $0xa8] sm:$0xff]
        %v6270 = vld [vmem:[%s6244 + $0xb0] sm:$0xff]
        %v6271 = vld [vmem:[%s6244 + $0xb8] sm:$0xff]
        %v6272 = vld [vmem:[%s6244 + $0xc0] sm:$0xf]
        %v6273 = vld [vmem:[%s6244 + $0xc4] sm:$0xff]
        %v6274 = vld [vmem:[%s6244 + $0xcc] sm:$0xff]
        %v6275 = vld [vmem:[%s6244 + $0xd4] sm:$0xff]
        %v6276 = vld [vmem:[%s6244 + $0xdc] sm:$0xf]
        %v6277 = vrot.slane %v1754, 7
        %v6310 = vunpack.c.l.b16 %v6245
        %v6311 = vunpack.c.h.b16 %v6245
        %v6312 = vunpack.c.l.b16 %v6246
        %v6313 = vunpack.c.h.b16 %v6246
        %v6314 = vunpack.c.l.b16 %v6247
        %v6315 = vunpack.c.h.b16 %v6247
        %v6316 = vunpack.c.l.b16 %v6248
        %v6317 = vunpack.c.l.b16 %v6249
        %v6318 = vunpack.c.h.b16 %v6249
        %v6319 = vunpack.c.l.b16 %v6250
        %v6320 = vunpack.c.h.b16 %v6250
        %v6321 = vunpack.c.l.b16 %v6251
        %v6322 = vunpack.c.h.b16 %v6251
        %v6323 = vunpack.c.l.b16 %v6252
        %v6324 = vunpack.c.l.b16 %v6253
        %v6325 = vunpack.c.h.b16 %v6253
        %v6326 = vunpack.c.l.b16 %v6254
        %v6327 = vunpack.c.h.b16 %v6254
        %v6328 = vunpack.c.l.b16 %v6255
        %v6329 = vunpack.c.h.b16 %v6255
        %v6330 = vunpack.c.l.b16 %v6256
        %v6331 = vunpack.c.l.b16 %v6257
        %v6332 = vunpack.c.h.b16 %v6257
        %v6333 = vunpack.c.l.b16 %v6258
        %v6334 = vunpack.c.h.b16 %v6258
        %v6335 = vunpack.c.l.b16 %v6259
        %v6336 = vunpack.c.h.b16 %v6259
        %v6337 = vunpack.c.l.b16 %v6260
        %v6338 = vunpack.c.l.b16 %v6261
        %v6339 = vunpack.c.h.b16 %v6261
        %v6340 = vunpack.c.l.b16 %v6262
        %v6341 = vunpack.c.h.b16 %v6262
        %v6342 = vunpack.c.l.b16 %v6263
        %v6343 = vunpack.c.h.b16 %v6263
        %v6344 = vunpack.c.l.b16 %v6264
        %v6345 = vunpack.c.l.b16 %v6265
        %v6346 = vunpack.c.h.b16 %v6265
        %v6347 = vunpack.c.l.b16 %v6266
        %v6348 = vunpack.c.h.b16 %v6266
        %v6349 = vunpack.c.l.b16 %v6267
        %v6350 = vunpack.c.h.b16 %v6267
        %v6351 = vunpack.c.l.b16 %v6268
        %v6352 = vunpack.c.l.b16 %v6269
        %v6353 = vunpack.c.h.b16 %v6269
        %v6354 = vunpack.c.l.b16 %v6270
        %v6355 = vunpack.c.h.b16 %v6270
        %v6356 = vunpack.c.l.b16 %v6271
        %v6357 = vunpack.c.h.b16 %v6271
        %v6358 = vunpack.c.l.b16 %v6272
        %v6359 = vunpack.c.l.b16 %v6273
        %v6360 = vunpack.c.h.b16 %v6273
        %v6361 = vunpack.c.l.b16 %v6274
        %v6362 = vunpack.c.h.b16 %v6274
        %v6363 = vunpack.c.l.b16 %v6275
        %v6364 = vunpack.c.h.b16 %v6275
        %v6365 = vunpack.c.l.b16 %v6276
        %v6366 = vpack.c.b16 %v6317, %v6310
        %v6367 = vpack.c.b16 %v6318, %v6311
        %v6368 = vpack.c.b16 %v6319, %v6312
        %v6369 = vpack.c.b16 %v6320, %v6313
        %v6370 = vpack.c.b16 %v6321, %v6314
        %v6371 = vpack.c.b16 %v6322, %v6315
        %v6372 = vpack.c.b16 %v6323, %v6316
        %v6373 = vpack.c.b16 %v6331, %v6324
        %v6374 = vpack.c.b16 %v6332, %v6325
        %v6375 = vpack.c.b16 %v6333, %v6326
        %v6376 = vpack.c.b16 %v6334, %v6327
        %v6377 = vpack.c.b16 %v6335, %v6328
        %v6378 = vpack.c.b16 %v6336, %v6329
        %v6379 = vpack.c.b16 %v6337, %v6330
        %v6380 = vpack.c.b16 %v6345, %v6338
        %v6381 = vpack.c.b16 %v6346, %v6339
        %v6382 = vpack.c.b16 %v6347, %v6340
        %v6383 = vpack.c.b16 %v6348, %v6341
        %v6384 = vpack.c.b16 %v6349, %v6342
        %v6385 = vpack.c.b16 %v6350, %v6343
        %v6386 = vpack.c.b16 %v6351, %v6344
        %v6387 = vpack.c.b16 %v6359, %v6352
        %v6388 = vpack.c.b16 %v6360, %v6353
        %v6389 = vpack.c.b16 %v6361, %v6354
        %v6390 = vpack.c.b16 %v6362, %v6355
        %v6391 = vpack.c.b16 %v6363, %v6356
        %v6392 = vpack.c.b16 %v6364, %v6357
        %v6393 = vpack.c.b16 %v6365, %v6358
        %v6423 = vsel %vm996, %v6277, 0
        %6425 = vmatprep.subr.bf16.mxu0 %v6367
        %6426 = vmatpush1.bf16.msra.mxu0 %v6366
        %6427 = vmatprep.subr.bf16.mxu0 %v6374
        %6428 = vmatpush1.bf16.msra.mxu0 %v6373
        %6429 = vmatprep.subr.bf16.mxu0 %v6381
        %6430 = vmatpush1.bf16.msra.mxu0 %v6380
        %6431 = vmatprep.subr.bf16.mxu0 %v6388
        %6432 = vmatpush1.bf16.msra.mxu0 %v6387
        %6433 = vmatprep.subr.bf16.mxu0 0
        %6434 = vmatpush1.bf16.msra.mxu0 0
        %6435 = vmatprep.subr.bf16.mxu0 0
        %6436 = vmatpush1.bf16.msra.mxu0 0
        %6437 = vmatprep.subr.bf16.mxu0 0
        %6438 = vmatpush1.bf16.msra.mxu0 0
        %6439 = vmatprep.subr.bf16.mxu0 0
        %6440 = vmatpush1.bf16.msra.mxu0 0
        %6441 = vmatprep.subr.bf16.mxu0 0
        %6442 = vmatpush1.bf16.msra.mxu0 0
        %6443 = vmatprep.subr.bf16.mxu0 0
        %6444 = vmatpush1.bf16.msra.mxu0 0
        %6445 = vmatprep.subr.bf16.mxu0 0
        %6446 = vmatpush1.bf16.msra.mxu0 0
        %6447 = vmatprep.subr.bf16.mxu0 0
        %6448 = vmatpush1.bf16.msra.mxu0 0
        %6449 = vmatprep.subr.bf16.mxu0 0
        %6450 = vmatpush1.bf16.msra.mxu0 0
        %6451 = vmatprep.subr.bf16.mxu0 0
        %6452 = vmatpush1.bf16.msra.mxu0 0
        %6453 = vmatprep.subr.bf16.mxu0 0
        %6454 = vmatpush1.bf16.msra.mxu0 0
        %6455 = vmatprep.subr.bf16.mxu0 0
        %6456 = vmatpush1.bf16.msra.mxu0 0
        %6457 = vmatprep.mubr.bf16.mxu0 0
        %6458 = vmatmul.mubr.bf16.gmra.mrb[0].mxu0 %v6423
        %v6459 = vpop.f32.mrb[0].mxu0
        %v6460 = vadd.f32 0.0, %v6459
        %v6461 = vpop.f32.mrb[0].mxu0
        %v6462 = vadd.f32 0.0, %v6461
        %v6463 = vpop.f32.mrb[0].mxu0
        %v6464 = vpop.f32.mrb[0].mxu0
        %6465 = vdwg.mxu0
        %6466 = vmatprep.subr.bf16.mxu0 %v6369
        %6467 = vmatpush1.bf16.msra.mxu0 %v6368
        %6468 = vmatprep.subr.bf16.mxu0 %v6376
        %6469 = vmatpush1.bf16.msra.mxu0 %v6375
        %6470 = vmatprep.subr.bf16.mxu0 %v6383
        %6471 = vmatpush1.bf16.msra.mxu0 %v6382
        %6472 = vmatprep.subr.bf16.mxu0 %v6390
        %6473 = vmatpush1.bf16.msra.mxu0 %v6389
        %6474 = vmatprep.subr.bf16.mxu0 0
        %6475 = vmatpush1.bf16.msra.mxu0 0
        %6476 = vmatprep.subr.bf16.mxu0 0
        %6477 = vmatpush1.bf16.msra.mxu0 0
        %6478 = vmatprep.subr.bf16.mxu0 0
        %6479 = vmatpush1.bf16.msra.mxu0 0
        %6480 = vmatprep.subr.bf16.mxu0 0
        %6481 = vmatpush1.bf16.msra.mxu0 0
        %6482 = vmatprep.subr.bf16.mxu0 0
        %6483 = vmatpush1.bf16.msra.mxu0 0
        %6484 = vmatprep.subr.bf16.mxu0 0
        %6485 = vmatpush1.bf16.msra.mxu0 0
        %6486 = vmatprep.subr.bf16.mxu0 0
        %6487 = vmatpush1.bf16.msra.mxu0 0
        %6488 = vmatprep.subr.bf16.mxu0 0
        %6489 = vmatpush1.bf16.msra.mxu0 0
        %6490 = vmatprep.subr.bf16.mxu0 0
        %6491 = vmatpush1.bf16.msra.mxu0 0
        %6492 = vmatprep.subr.bf16.mxu0 0
        %6493 = vmatpush1.bf16.msra.mxu0 0
        %6494 = vmatprep.subr.bf16.mxu0 0
        %6495 = vmatpush1.bf16.msra.mxu0 0
        %6496 = vmatprep.subr.bf16.mxu0 0
        %6497 = vmatpush1.bf16.msra.mxu0 0
        %6498 = vmatprep.mubr.bf16.mxu0 0
        %6499 = vmatmul.mubr.bf16.gmra.mrb[0].mxu0 %v6423
        %v6500 = vpop.f32.mrb[0].mxu0
        %v6501 = vadd.f32 0.0, %v6500
        %v6502 = vpop.f32.mrb[0].mxu0
        %v6503 = vadd.f32 0.0, %v6502
        %v6504 = vpop.f32.mrb[0].mxu0
        %v6505 = vpop.f32.mrb[0].mxu0
        %6506 = vdwg.mxu0
        %6507 = vmatprep.subr.bf16.mxu0 %v6371
        %6508 = vmatpush1.bf16.msra.mxu0 %v6370
        %6509 = vmatprep.subr.bf16.mxu0 %v6378
        %6510 = vmatpush1.bf16.msra.mxu0 %v6377
        %6511 = vmatprep.subr.bf16.mxu0 %v6385
        %6512 = vmatpush1.bf16.msra.mxu0 %v6384
        %6513 = vmatprep.subr.bf16.mxu0 %v6392
        %6514 = vmatpush1.bf16.msra.mxu0 %v6391
        %6515 = vmatprep.subr.bf16.mxu0 0
        %6516 = vmatpush1.bf16.msra.mxu0 0
        %6517 = vmatprep.subr.bf16.mxu0 0
        %6518 = vmatpush1.bf16.msra.mxu0 0
        %6519 = vmatprep.subr.bf16.mxu0 0
        %6520 = vmatpush1.bf16.msra.mxu0 0
        %6521 = vmatprep.subr.bf16.mxu0 0
        %6522 = vmatpush1.bf16.msra.mxu0 0
        %6523 = vmatprep.subr.bf16.mxu0 0
        %6524 = vmatpush1.bf16.msra.mxu0 0
        %6525 = vmatprep.subr.bf16.mxu0 0
        %6526 = vmatpush1.bf16.msra.mxu0 0
        %6527 = vmatprep.subr.bf16.mxu0 0
        %6528 = vmatpush1.bf16.msra.mxu0 0
        %6529 = vmatprep.subr.bf16.mxu0 0
        %6530 = vmatpush1.bf16.msra.mxu0 0
        %6531 = vmatprep.subr.bf16.mxu0 0
        %6532 = vmatpush1.bf16.msra.mxu0 0
        %6533 = vmatprep.subr.bf16.mxu0 0
        %6534 = vmatpush1.bf16.msra.mxu0 0
        %6535 = vmatprep.subr.bf16.mxu0 0
        %6536 = vmatpush1.bf16.msra.mxu0 0
        %6537 = vmatprep.subr.bf16.mxu0 0
        %6538 = vmatpush1.bf16.msra.mxu0 0
        %6539 = vmatprep.mubr.bf16.mxu0 0
        %6540 = vmatmul.mubr.bf16.gmra.mrb[0].mxu0 %v6423
        %v6541 = vpop.f32.mrb[0].mxu0
        %v6542 = vadd.f32 0.0, %v6541
        %v6543 = vpop.f32.mrb[0].mxu0
        %v6544 = vadd.f32 0.0, %v6543
        %v6545 = vpop.f32.mrb[0].mxu0
        %v6546 = vpop.f32.mrb[0].mxu0
        %6547 = vdwg.mxu0
        %6548 = vmatprep.subr.bf16.mxu0 0
        %6549 = vmatpush1.bf16.msra.mxu0 %v6372
        %6550 = vmatprep.subr.bf16.mxu0 0
        %6551 = vmatpush1.bf16.msra.mxu0 %v6379
        %6552 = vmatprep.subr.bf16.mxu0 0
        %6553 = vmatpush1.bf16.msra.mxu0 %v6386
        %6554 = vmatprep.subr.bf16.mxu0 0
        %6555 = vmatpush1.bf16.msra.mxu0 %v6393
        %6556 = vmatprep.subr.bf16.mxu0 0
        %6557 = vmatpush1.bf16.msra.mxu0 0
        %6558 = vmatprep.subr.bf16.mxu0 0
        %6559 = vmatpush1.bf16.msra.mxu0 0
        %6560 = vmatprep.subr.bf16.mxu0 0
        %6561 = vmatpush1.bf16.msra.mxu0 0
        %6562 = vmatprep.subr.bf16.mxu0 0
        %6563 = vmatpush1.bf16.msra.mxu0 0
        %6564 = vmatprep.subr.bf16.mxu0 0
        %6565 = vmatpush1.bf16.msra.mxu0 0
        %6566 = vmatprep.subr.bf16.mxu0 0
        %6567 = vmatpush1.bf16.msra.mxu0 0
        %6568 = vmatprep.subr.bf16.mxu0 0
        %6569 = vmatpush1.bf16.msra.mxu0 0
        %6570 = vmatprep.subr.bf16.mxu0 0
        %6571 = vmatpush1.bf16.msra.mxu0 0
        %6572 = vmatprep.subr.bf16.mxu0 0
        %6573 = vmatpush1.bf16.msra.mxu0 0
        %6574 = vmatprep.subr.bf16.mxu0 0
        %6575 = vmatpush1.bf16.msra.mxu0 0
        %6576 = vmatprep.subr.bf16.mxu0 0
        %6577 = vmatpush1.bf16.msra.mxu0 0
        %6578 = vmatprep.subr.bf16.mxu0 0
        %6579 = vmatpush1.bf16.msra.mxu0 0
        %6580 = vmatprep.mubr.bf16.mxu0 0
        %6581 = vmatmul.mubr.bf16.gmra.mrb[0].mxu0 %v6423
        %v6582 = vpop.f32.mrb[0].mxu0
        %v6583 = vadd.f32 0.0, %v6582
        %v6584 = vpop.f32.mrb[0].mxu0
        %v6585 = vpop.f32.mrb[0].mxu0
        %v6586 = vpop.f32.mrb[0].mxu0
        %6587 = vdwg.mxu0
        %v6588 = vadd.f32 %v5134, %v6460
        %v6589 = vadd.f32 %v5135, %v6462
        %v6590 = vadd.f32 %v5136, %v6501
        %v6591 = vadd.f32 %v5137, %v6503
        %v6592 = vadd.f32 %v5138, %v6542
        %v6593 = vadd.f32 %v5139, %v6544
        %v6594 = vadd.f32 %v5140, %v6583
        %s6595 = scalar_lea.vmem %s352, 3584 [#allocation8]
        %v6596 = vld [vmem:[%s6595] sm:$0xff]
        %v6597 = vld [vmem:[%s6595 + $0x8] sm:$0xff]
        %v6598 = vld [vmem:[%s6595 + $0x10] sm:$0xff]
        %v6599 = vld [vmem:[%s6595 + $0x18] sm:$0xf]
        %v6600 = vld [vmem:[%s6595 + $0x1c] sm:$0xff]
        %v6601 = vld [vmem:[%s6595 + $0x24] sm:$0xff]
        %v6602 = vld [vmem:[%s6595 + $0x2c] sm:$0xff]
        %v6603 = vld [vmem:[%s6595 + $0x34] sm:$0xf]
        %v6604 = vld [vmem:[%s6595 + $0x38] sm:$0xff]
        %v6605 = vld [vmem:[%s6595 + $0x40] sm:$0xff]
        %v6606 = vld [vmem:[%s6595 + $0x48] sm:$0xff]
        %v6607 = vld [vmem:[%s6595 + $0x50] sm:$0xf]
        %v6608 = vld [vmem:[%s6595 + $0x54] sm:$0xff]
        %v6609 = vld [vmem:[%s6595 + $0x5c] sm:$0xff]
        %v6610 = vld [vmem:[%s6595 + $0x64] sm:$0xff]
        %v6611 = vld [vmem:[%s6595 + $0x6c] sm:$0xf]
        %v6612 = vld [vmem:[%s6595 + $0x70] sm:$0xff]
        %v6613 = vld [vmem:[%s6595 + $0x78] sm:$0xff]
        %v6614 = vld [vmem:[%s6595 + $0x80] sm:$0xff]
        %v6615 = vld [vmem:[%s6595 + $0x88] sm:$0xf]
        %v6616 = vld [vmem:[%s6595 + $0x8c] sm:$0xff]
        %v6617 = vld [vmem:[%s6595 + $0x94] sm:$0xff]
        %v6618 = vld [vmem:[%s6595 + $0x9c] sm:$0xff]
        %v6619 = vld [vmem:[%s6595 + $0xa4] sm:$0xf]
        %v6620 = vld [vmem:[%s6595 + $0xa8] sm:$0xff]
        %v6621 = vld [vmem:[%s6595 + $0xb0] sm:$0xff]
        %v6622 = vld [vmem:[%s6595 + $0xb8] sm:$0xff]
        %v6623 = vld [vmem:[%s6595 + $0xc0] sm:$0xf]
        %v6624 = vld [vmem:[%s6595 + $0xc4] sm:$0xff]
        %v6625 = vld [vmem:[%s6595 + $0xcc] sm:$0xff]
        %v6626 = vld [vmem:[%s6595 + $0xd4] sm:$0xff]
        %v6627 = vld [vmem:[%s6595 + $0xdc] sm:$0xf]
        %v6660 = vunpack.c.l.b16 %v6596
        %v6661 = vunpack.c.h.b16 %v6596
        %v6662 = vunpack.c.l.b16 %v6597
        %v6663 = vunpack.c.h.b16 %v6597
        %v6664 = vunpack.c.l.b16 %v6598
        %v6665 = vunpack.c.h.b16 %v6598
        %v6666 = vunpack.c.l.b16 %v6599
        %v6667 = vunpack.c.l.b16 %v6600
        %v6668 = vunpack.c.h.b16 %v6600
        %v6669 = vunpack.c.l.b16 %v6601
        %v6670 = vunpack.c.h.b16 %v6601
        %v6671 = vunpack.c.l.b16 %v6602
        %v6672 = vunpack.c.h.b16 %v6602
        %v6673 = vunpack.c.l.b16 %v6603
        %v6674 = vunpack.c.l.b16 %v6604
        %v6675 = vunpack.c.h.b16 %v6604
        %v6676 = vunpack.c.l.b16 %v6605
        %v6677 = vunpack.c.h.b16 %v6605
        %v6678 = vunpack.c.l.b16 %v6606
        %v6679 = vunpack.c.h.b16 %v6606
        %v6680 = vunpack.c.l.b16 %v6607
        %v6681 = vunpack.c.l.b16 %v6608
        %v6682 = vunpack.c.h.b16 %v6608
        %v6683 = vunpack.c.l.b16 %v6609
        %v6684 = vunpack.c.h.b16 %v6609
        %v6685 = vunpack.c.l.b16 %v6610
        %v6686 = vunpack.c.h.b16 %v6610
        %v6687 = vunpack.c.l.b16 %v6611
        %v6688 = vunpack.c.l.b16 %v6612
        %v6689 = vunpack.c.h.b16 %v6612
        %v6690 = vunpack.c.l.b16 %v6613
        %v6691 = vunpack.c.h.b16 %v6613
        %v6692 = vunpack.c.l.b16 %v6614
        %v6693 = vunpack.c.h.b16 %v6614
        %v6694 = vunpack.c.l.b16 %v6615
        %v6695 = vunpack.c.l.b16 %v6616
        %v6696 = vunpack.c.h.b16 %v6616
        %v6697 = vunpack.c.l.b16 %v6617
        %v6698 = vunpack.c.h.b16 %v6617
        %v6699 = vunpack.c.l.b16 %v6618
        %v6700 = vunpack.c.h.b16 %v6618
        %v6701 = vunpack.c.l.b16 %v6619
        %v6702 = vunpack.c.l.b16 %v6620
        %v6703 = vunpack.c.h.b16 %v6620
        %v6704 = vunpack.c.l.b16 %v6621
        %v6705 = vunpack.c.h.b16 %v6621
        %v6706 = vunpack.c.l.b16 %v6622
        %v6707 = vunpack.c.h.b16 %v6622
        %v6708 = vunpack.c.l.b16 %v6623
        %v6709 = vunpack.c.l.b16 %v6624
        %v6710 = vunpack.c.h.b16 %v6624
        %v6711 = vunpack.c.l.b16 %v6625
        %v6712 = vunpack.c.h.b16 %v6625
        %v6713 = vunpack.c.l.b16 %v6626
        %v6714 = vunpack.c.h.b16 %v6626
        %v6715 = vunpack.c.l.b16 %v6627
        %v6716 = vpack.c.b16 %v6667, %v6660
        %v6717 = vpack.c.b16 %v6668, %v6661
        %v6718 = vpack.c.b16 %v6669, %v6662
        %v6719 = vpack.c.b16 %v6670, %v6663
        %v6720 = vpack.c.b16 %v6671, %v6664
        %v6721 = vpack.c.b16 %v6672, %v6665
        %v6722 = vpack.c.b16 %v6673, %v6666
        %v6723 = vpack.c.b16 %v6681, %v6674
        %v6724 = vpack.c.b16 %v6682, %v6675
        %v6725 = vpack.c.b16 %v6683, %v6676
        %v6726 = vpack.c.b16 %v6684, %v6677
        %v6727 = vpack.c.b16 %v6685, %v6678
        %v6728 = vpack.c.b16 %v6686, %v6679
        %v6729 = vpack.c.b16 %v6687, %v6680
        %v6730 = vpack.c.b16 %v6695, %v6688
        %v6731 = vpack.c.b16 %v6696, %v6689
        %v6732 = vpack.c.b16 %v6697, %v6690
        %v6733 = vpack.c.b16 %v6698, %v6691
        %v6734 = vpack.c.b16 %v6699, %v6692
        %v6735 = vpack.c.b16 %v6700, %v6693
        %v6736 = vpack.c.b16 %v6701, %v6694
        %v6737 = vpack.c.b16 %v6709, %v6702
        %v6738 = vpack.c.b16 %v6710, %v6703
        %v6739 = vpack.c.b16 %v6711, %v6704
        %v6740 = vpack.c.b16 %v6712, %v6705
        %v6741 = vpack.c.b16 %v6713, %v6706
        %v6742 = vpack.c.b16 %v6714, %v6707
        %v6743 = vpack.c.b16 %v6715, %v6708
        %v6773 = vsel %vm996, %v818, 0
        %6775 = vmatprep.subr.bf16.mxu0 %v6717
        %6776 = vmatpush1.bf16.msra.mxu0 %v6716
        %6777 = vmatprep.subr.bf16.mxu0 %v6724
        %6778 = vmatpush1.bf16.msra.mxu0 %v6723
        %6779 = vmatprep.subr.bf16.mxu0 %v6731
        %6780 = vmatpush1.bf16.msra.mxu0 %v6730
        %6781 = vmatprep.subr.bf16.mxu0 %v6738
        %6782 = vmatpush1.bf16.msra.mxu0 %v6737
        %6783 = vmatprep.subr.bf16.mxu0 0
        %6784 = vmatpush1.bf16.msra.mxu0 0
        %6785 = vmatprep.subr.bf16.mxu0 0
        %6786 = vmatpush1.bf16.msra.mxu0 0
        %6787 = vmatprep.subr.bf16.mxu0 0
        %6788 = vmatpush1.bf16.msra.mxu0 0
        %6789 = vmatprep.subr.bf16.mxu0 0
        %6790 = vmatpush1.bf16.msra.mxu0 0
        %6791 = vmatprep.subr.bf16.mxu0 0
        %6792 = vmatpush1.bf16.msra.mxu0 0
        %6793 = vmatprep.subr.bf16.mxu0 0
        %6794 = vmatpush1.bf16.msra.mxu0 0
        %6795 = vmatprep.subr.bf16.mxu0 0
        %6796 = vmatpush1.bf16.msra.mxu0 0
        %6797 = vmatprep.subr.bf16.mxu0 0
        %6798 = vmatpush1.bf16.msra.mxu0 0
        %6799 = vmatprep.subr.bf16.mxu0 0
        %6800 = vmatpush1.bf16.msra.mxu0 0
        %6801 = vmatprep.subr.bf16.mxu0 0
        %6802 = vmatpush1.bf16.msra.mxu0 0
        %6803 = vmatprep.subr.bf16.mxu0 0
        %6804 = vmatpush1.bf16.msra.mxu0 0
        %6805 = vmatprep.subr.bf16.mxu0 0
        %6806 = vmatpush1.bf16.msra.mxu0 0
        %6807 = vmatprep.mubr.bf16.mxu0 0
        %6808 = vmatmul.mubr.bf16.gmra.mrb[0].mxu0 %v6773
        %v6809 = vpop.f32.mrb[0].mxu0
        %v6810 = vadd.f32 0.0, %v6809
        %v6811 = vpop.f32.mrb[0].mxu0
        %v6812 = vadd.f32 0.0, %v6811
        %v6813 = vpop.f32.mrb[0].mxu0
        %v6814 = vpop.f32.mrb[0].mxu0
        %6815 = vdwg.mxu0
        %6816 = vmatprep.subr.bf16.mxu0 %v6719
        %6817 = vmatpush1.bf16.msra.mxu0 %v6718
        %6818 = vmatprep.subr.bf16.mxu0 %v6726
        %6819 = vmatpush1.bf16.msra.mxu0 %v6725
        %6820 = vmatprep.subr.bf16.mxu0 %v6733
        %6821 = vmatpush1.bf16.msra.mxu0 %v6732
        %6822 = vmatprep.subr.bf16.mxu0 %v6740
        %6823 = vmatpush1.bf16.msra.mxu0 %v6739
        %6824 = vmatprep.subr.bf16.mxu0 0
        %6825 = vmatpush1.bf16.msra.mxu0 0
        %6826 = vmatprep.subr.bf16.mxu0 0
        %6827 = vmatpush1.bf16.msra.mxu0 0
        %6828 = vmatprep.subr.bf16.mxu0 0
        %6829 = vmatpush1.bf16.msra.mxu0 0
        %6830 = vmatprep.subr.bf16.mxu0 0
        %6831 = vmatpush1.bf16.msra.mxu0 0
        %6832 = vmatprep.subr.bf16.mxu0 0
        %6833 = vmatpush1.bf16.msra.mxu0 0
        %6834 = vmatprep.subr.bf16.mxu0 0
        %6835 = vmatpush1.bf16.msra.mxu0 0
        %6836 = vmatprep.subr.bf16.mxu0 0
        %6837 = vmatpush1.bf16.msra.mxu0 0
        %6838 = vmatprep.subr.bf16.mxu0 0
        %6839 = vmatpush1.bf16.msra.mxu0 0
        %6840 = vmatprep.subr.bf16.mxu0 0
        %6841 = vmatpush1.bf16.msra.mxu0 0
        %6842 = vmatprep.subr.bf16.mxu0 0
        %6843 = vmatpush1.bf16.msra.mxu0 0
        %6844 = vmatprep.subr.bf16.mxu0 0
        %6845 = vmatpush1.bf16.msra.mxu0 0
        %6846 = vmatprep.subr.bf16.mxu0 0
        %6847 = vmatpush1.bf16.msra.mxu0 0
        %6848 = vmatprep.mubr.bf16.mxu0 0
        %6849 = vmatmul.mubr.bf16.gmra.mrb[0].mxu0 %v6773
        %v6850 = vpop.f32.mrb[0].mxu0
        %v6851 = vadd.f32 0.0, %v6850
        %v6852 = vpop.f32.mrb[0].mxu0
        %v6853 = vadd.f32 0.0, %v6852
        %v6854 = vpop.f32.mrb[0].mxu0
        %v6855 = vpop.f32.mrb[0].mxu0
        %6856 = vdwg.mxu0
        %6857 = vmatprep.subr.bf16.mxu0 %v6721
        %6858 = vmatpush1.bf16.msra.mxu0 %v6720
        %6859 = vmatprep.subr.bf16.mxu0 %v6728
        %6860 = vmatpush1.bf16.msra.mxu0 %v6727
        %6861 = vmatprep.subr.bf16.mxu0 %v6735
        %6862 = vmatpush1.bf16.msra.mxu0 %v6734
        %6863 = vmatprep.subr.bf16.mxu0 %v6742
        %6864 = vmatpush1.bf16.msra.mxu0 %v6741
        %6865 = vmatprep.subr.bf16.mxu0 0
        %6866 = vmatpush1.bf16.msra.mxu0 0
        %6867 = vmatprep.subr.bf16.mxu0 0
        %6868 = vmatpush1.bf16.msra.mxu0 0
        %6869 = vmatprep.subr.bf16.mxu0 0
        %6870 = vmatpush1.bf16.msra.mxu0 0
        %6871 = vmatprep.subr.bf16.mxu0 0
        %6872 = vmatpush1.bf16.msra.mxu0 0
        %6873 = vmatprep.subr.bf16.mxu0 0
        %6874 = vmatpush1.bf16.msra.mxu0 0
        %6875 = vmatprep.subr.bf16.mxu0 0
        %6876 = vmatpush1.bf16.msra.mxu0 0
        %6877 = vmatprep.subr.bf16.mxu0 0
        %6878 = vmatpush1.bf16.msra.mxu0 0
        %6879 = vmatprep.subr.bf16.mxu0 0
        %6880 = vmatpush1.bf16.msra.mxu0 0
        %6881 = vmatprep.subr.bf16.mxu0 0
        %6882 = vmatpush1.bf16.msra.mxu0 0
        %6883 = vmatprep.subr.bf16.mxu0 0
        %6884 = vmatpush1.bf16.msra.mxu0 0
        %6885 = vmatprep.subr.bf16.mxu0 0
        %6886 = vmatpush1.bf16.msra.mxu0 0
        %6887 = vmatprep.subr.bf16.mxu0 0
        %6888 = vmatpush1.bf16.msra.mxu0 0
        %6889 = vmatprep.mubr.bf16.mxu0 0
        %6890 = vmatmul.mubr.bf16.gmra.mrb[0].mxu0 %v6773
        %v6891 = vpop.f32.mrb[0].mxu0
        %v6892 = vadd.f32 0.0, %v6891
        %v6893 = vpop.f32.mrb[0].mxu0
        %v6894 = vadd.f32 0.0, %v6893
        %v6895 = vpop.f32.mrb[0].mxu0
        %v6896 = vpop.f32.mrb[0].mxu0
        %6897 = vdwg.mxu0
        %6898 = vmatprep.subr.bf16.mxu0 0
        %6899 = vmatpush1.bf16.msra.mxu0 %v6722
        %6900 = vmatprep.subr.bf16.mxu0 0
        %6901 = vmatpush1.bf16.msra.mxu0 %v6729
        %6902 = vmatprep.subr.bf16.mxu0 0
        %6903 = vmatpush1.bf16.msra.mxu0 %v6736
        %6904 = vmatprep.subr.bf16.mxu0 0
        %6905 = vmatpush1.bf16.msra.mxu0 %v6743
        %6906 = vmatprep.subr.bf16.mxu0 0
        %6907 = vmatpush1.bf16.msra.mxu0 0
        %6908 = vmatprep.subr.bf16.mxu0 0
        %6909 = vmatpush1.bf16.msra.mxu0 0
        %6910 = vmatprep.subr.bf16.mxu0 0
        %6911 = vmatpush1.bf16.msra.mxu0 0
        %6912 = vmatprep.subr.bf16.mxu0 0
        %6913 = vmatpush1.bf16.msra.mxu0 0
        %6914 = vmatprep.subr.bf16.mxu0 0
        %6915 = vmatpush1.bf16.msra.mxu0 0
        %6916 = vmatprep.subr.bf16.mxu0 0
        %6917 = vmatpush1.bf16.msra.mxu0 0
        %6918 = vmatprep.subr.bf16.mxu0 0
        %6919 = vmatpush1.bf16.msra.mxu0 0
        %6920 = vmatprep.subr.bf16.mxu0 0
        %6921 = vmatpush1.bf16.msra.mxu0 0
        %6922 = vmatprep.subr.bf16.mxu0 0
        %6923 = vmatpush1.bf16.msra.mxu0 0
        %6924 = vmatprep.subr.bf16.mxu0 0
        %6925 = vmatpush1.bf16.msra.mxu0 0
        %6926 = vmatprep.subr.bf16.mxu0 0
        %6927 = vmatpush1.bf16.msra.mxu0 0
        %6928 = vmatprep.subr.bf16.mxu0 0
        %6929 = vmatpush1.bf16.msra.mxu0 0
        %6930 = vmatprep.mubr.bf16.mxu0 0
        %6931 = vmatmul.mubr.bf16.gmra.mrb[0].mxu0 %v6773
        %v6932 = vpop.f32.mrb[0].mxu0
        %v6933 = vadd.f32 0.0, %v6932
        %v6934 = vpop.f32.mrb[0].mxu0
        %v6935 = vpop.f32.mrb[0].mxu0
        %v6936 = vpop.f32.mrb[0].mxu0
        %6937 = vdwg.mxu0
        %v6945 = vcombine.low %v6810, %v6812
        %v6946 = vcombine.low %v6851, %v6853
        %v6947 = vcombine.low %v6892, %v6894
        %v6949 = vunpack.c.l.s4 1966171168
        %v6950 = vunpack.c.0.s8 %v6949
        %v6951 = vlaneseq
        %v6952 = vshrl.u32 %v6951, 7
        %v6953 = vsub.s32 %v6950, %v6952
        %v6954 = vrot.slane %v6945, %v6953
        %v6956 = vunpack.c.l.s4 1966171168
        %v6957 = vunpack.c.0.s8 %v6956
        %v6958 = vlaneseq
        %v6959 = vshrl.u32 %v6958, 7
        %v6960 = vsub.s32 %v6957, %v6959
        %v6961 = vrot.slane %v6946, %v6960
        %v6963 = vunpack.c.l.s4 1966171168
        %v6964 = vunpack.c.0.s8 %v6963
        %v6965 = vlaneseq
        %v6966 = vshrl.u32 %v6965, 7
        %v6967 = vsub.s32 %v6964, %v6966
        %v6968 = vrot.slane %v6947, %v6967
        %v6970 = vunpack.c.l.s4 1966171168
        %v6971 = vunpack.c.0.s8 %v6970
        %v6972 = vlaneseq
        %v6973 = vshrl.u32 %v6972, 7
        %v6974 = vsub.s32 %v6971, %v6973
        %v6975 = vrot.slane %v6933, %v6974
        %v6976 = vcombine.low %v6954, %v6961
        %v6977 = vcombine.low %v6968, %v6975
        %v6979 = vunpack.c.l.s4 1966171168
        %v6980 = vunpack.c.0.s8 %v6979
        %v6981 = vlaneseq
        %v6982 = vshrl.u32 %v6981, 7
        %v6983 = vsub.s32 %v6980, %v6982
        %v6984 = vrot.slane %v6976, %v6983
        %v6986 = vunpack.c.l.s4 1966171168
        %v6987 = vunpack.c.0.s8 %v6986
        %v6988 = vlaneseq
        %v6989 = vshrl.u32 %v6988, 7
        %v6990 = vsub.s32 %v6987, %v6989
        %v6991 = vrot.slane %v6977, %v6990
        %v6992 = vcombine.low %v6984, %v6991
        %v6994 = vadd.f32 %v5541, %v6992
        %s6995 = scalar_lea.vmem %s352, 3808 [#allocation8]
        %v6996 = vld [vmem:[%s6995] sm:$0xff]
        %v6997 = vld [vmem:[%s6995 + $0x8] sm:$0xff]
        %v6998 = vld [vmem:[%s6995 + $0x10] sm:$0xff]
        %v6999 = vld [vmem:[%s6995 + $0x18] sm:$0xf]
        %v7000 = vld [vmem:[%s6995 + $0x1c] sm:$0xff]
        %v7001 = vld [vmem:[%s6995 + $0x24] sm:$0xff]
        %v7002 = vld [vmem:[%s6995 + $0x2c] sm:$0xff]
        %v7003 = vld [vmem:[%s6995 + $0x34] sm:$0xf]
        %v7004 = vld [vmem:[%s6995 + $0x38] sm:$0xff]
        %v7005 = vld [vmem:[%s6995 + $0x40] sm:$0xff]
        %v7006 = vld [vmem:[%s6995 + $0x48] sm:$0xff]
        %v7007 = vld [vmem:[%s6995 + $0x50] sm:$0xf]
        %v7008 = vld [vmem:[%s6995 + $0x54] sm:$0xff]
        %v7009 = vld [vmem:[%s6995 + $0x5c] sm:$0xff]
        %v7010 = vld [vmem:[%s6995 + $0x64] sm:$0xff]
        %v7011 = vld [vmem:[%s6995 + $0x6c] sm:$0xf]
        %v7012 = vld [vmem:[%s6995 + $0x70] sm:$0xff]
        %v7013 = vld [vmem:[%s6995 + $0x78] sm:$0xff]
        %v7014 = vld [vmem:[%s6995 + $0x80] sm:$0xff]
        %v7015 = vld [vmem:[%s6995 + $0x88] sm:$0xf]
        %v7016 = vld [vmem:[%s6995 + $0x8c] sm:$0xff]
        %v7017 = vld [vmem:[%s6995 + $0x94] sm:$0xff]
        %v7018 = vld [vmem:[%s6995 + $0x9c] sm:$0xff]
        %v7019 = vld [vmem:[%s6995 + $0xa4] sm:$0xf]
        %v7020 = vld [vmem:[%s6995 + $0xa8] sm:$0xff]
        %v7021 = vld [vmem:[%s6995 + $0xb0] sm:$0xff]
        %v7022 = vld [vmem:[%s6995 + $0xb8] sm:$0xff]
        %v7023 = vld [vmem:[%s6995 + $0xc0] sm:$0xf]
        %v7024 = vld [vmem:[%s6995 + $0xc4] sm:$0xff]
        %v7025 = vld [vmem:[%s6995 + $0xcc] sm:$0xff]
        %v7026 = vld [vmem:[%s6995 + $0xd4] sm:$0xff]
        %v7027 = vld [vmem:[%s6995 + $0xdc] sm:$0xf]
        %v7028 = vshrl.u32 %v818, 16
        %v7062 = vunpack.c.l.b16 %v6996
        %v7063 = vunpack.c.h.b16 %v6996
        %v7064 = vunpack.c.l.b16 %v6997
        %v7065 = vunpack.c.h.b16 %v6997
        %v7066 = vunpack.c.l.b16 %v6998
        %v7067 = vunpack.c.h.b16 %v6998
        %v7068 = vunpack.c.l.b16 %v6999
        %v7069 = vunpack.c.l.b16 %v7000
        %v7070 = vunpack.c.h.b16 %v7000
        %v7071 = vunpack.c.l.b16 %v7001
        %v7072 = vunpack.c.h.b16 %v7001
        %v7073 = vunpack.c.l.b16 %v7002
        %v7074 = vunpack.c.h.b16 %v7002
        %v7075 = vunpack.c.l.b16 %v7003
        %v7076 = vunpack.c.l.b16 %v7004
        %v7077 = vunpack.c.h.b16 %v7004
        %v7078 = vunpack.c.l.b16 %v7005
        %v7079 = vunpack.c.h.b16 %v7005
        %v7080 = vunpack.c.l.b16 %v7006
        %v7081 = vunpack.c.h.b16 %v7006
        %v7082 = vunpack.c.l.b16 %v7007
        %v7083 = vunpack.c.l.b16 %v7008
        %v7084 = vunpack.c.h.b16 %v7008
        %v7085 = vunpack.c.l.b16 %v7009
        %v7086 = vunpack.c.h.b16 %v7009
        %v7087 = vunpack.c.l.b16 %v7010
        %v7088 = vunpack.c.h.b16 %v7010
        %v7089 = vunpack.c.l.b16 %v7011
        %v7090 = vunpack.c.l.b16 %v7012
        %v7091 = vunpack.c.h.b16 %v7012
        %v7092 = vunpack.c.l.b16 %v7013
        %v7093 = vunpack.c.h.b16 %v7013
        %v7094 = vunpack.c.l.b16 %v7014
        %v7095 = vunpack.c.h.b16 %v7014
        %v7096 = vunpack.c.l.b16 %v7015
        %v7097 = vunpack.c.l.b16 %v7016
        %v7098 = vunpack.c.h.b16 %v7016
        %v7099 = vunpack.c.l.b16 %v7017
        %v7100 = vunpack.c.h.b16 %v7017
        %v7101 = vunpack.c.l.b16 %v7018
        %v7102 = vunpack.c.h.b16 %v7018
        %v7103 = vunpack.c.l.b16 %v7019
        %v7104 = vunpack.c.l.b16 %v7020
        %v7105 = vunpack.c.h.b16 %v7020
        %v7106 = vunpack.c.l.b16 %v7021
        %v7107 = vunpack.c.h.b16 %v7021
        %v7108 = vunpack.c.l.b16 %v7022
        %v7109 = vunpack.c.h.b16 %v7022
        %v7110 = vunpack.c.l.b16 %v7023
        %v7111 = vunpack.c.l.b16 %v7024
        %v7112 = vunpack.c.h.b16 %v7024
        %v7113 = vunpack.c.l.b16 %v7025
        %v7114 = vunpack.c.h.b16 %v7025
        %v7115 = vunpack.c.l.b16 %v7026
        %v7116 = vunpack.c.h.b16 %v7026
        %v7117 = vunpack.c.l.b16 %v7027
        %v7118 = vpack.c.b16 %v7069, %v7062
        %v7119 = vpack.c.b16 %v7070, %v7063
        %v7120 = vpack.c.b16 %v7071, %v7064
        %v7121 = vpack.c.b16 %v7072, %v7065
        %v7122 = vpack.c.b16 %v7073, %v7066
        %v7123 = vpack.c.b16 %v7074, %v7067
        %v7124 = vpack.c.b16 %v7075, %v7068
        %v7125 = vpack.c.b16 %v7083, %v7076
        %v7126 = vpack.c.b16 %v7084, %v7077
        %v7127 = vpack.c.b16 %v7085, %v7078
        %v7128 = vpack.c.b16 %v7086, %v7079
        %v7129 = vpack.c.b16 %v7087, %v7080
        %v7130 = vpack.c.b16 %v7088, %v7081
        %v7131 = vpack.c.b16 %v7089, %v7082
        %v7132 = vpack.c.b16 %v7097, %v7090
        %v7133 = vpack.c.b16 %v7098, %v7091
        %v7134 = vpack.c.b16 %v7099, %v7092
        %v7135 = vpack.c.b16 %v7100, %v7093
        %v7136 = vpack.c.b16 %v7101, %v7094
        %v7137 = vpack.c.b16 %v7102, %v7095
        %v7138 = vpack.c.b16 %v7103, %v7096
        %v7139 = vpack.c.b16 %v7111, %v7104
        %v7140 = vpack.c.b16 %v7112, %v7105
        %v7141 = vpack.c.b16 %v7113, %v7106
        %v7142 = vpack.c.b16 %v7114, %v7107
        %v7143 = vpack.c.b16 %v7115, %v7108
        %v7144 = vpack.c.b16 %v7116, %v7109
        %v7145 = vpack.c.b16 %v7117, %v7110
        %v7175 = vsel %vm996, %v7028, 0
        %7177 = vmatprep.subr.bf16.mxu0 %v7119
        %7178 = vmatpush1.bf16.msra.mxu0 %v7118
        %7179 = vmatprep.subr.bf16.mxu0 %v7126
        %7180 = vmatpush1.bf16.msra.mxu0 %v7125
        %7181 = vmatprep.subr.bf16.mxu0 %v7133
        %7182 = vmatpush1.bf16.msra.mxu0 %v7132
        %7183 = vmatprep.subr.bf16.mxu0 %v7140
        %7184 = vmatpush1.bf16.msra.mxu0 %v7139
        %7185 = vmatprep.subr.bf16.mxu0 0
        %7186 = vmatpush1.bf16.msra.mxu0 0
        %7187 = vmatprep.subr.bf16.mxu0 0
        %7188 = vmatpush1.bf16.msra.mxu0 0
        %7189 = vmatprep.subr.bf16.mxu0 0
        %7190 = vmatpush1.bf16.msra.mxu0 0
        %7191 = vmatprep.subr.bf16.mxu0 0
        %7192 = vmatpush1.bf16.msra.mxu0 0
        %7193 = vmatprep.subr.bf16.mxu0 0
        %7194 = vmatpush1.bf16.msra.mxu0 0
        %7195 = vmatprep.subr.bf16.mxu0 0
        %7196 = vmatpush1.bf16.msra.mxu0 0
        %7197 = vmatprep.subr.bf16.mxu0 0
        %7198 = vmatpush1.bf16.msra.mxu0 0
        %7199 = vmatprep.subr.bf16.mxu0 0
        %7200 = vmatpush1.bf16.msra.mxu0 0
        %7201 = vmatprep.subr.bf16.mxu0 0
        %7202 = vmatpush1.bf16.msra.mxu0 0
        %7203 = vmatprep.subr.bf16.mxu0 0
        %7204 = vmatpush1.bf16.msra.mxu0 0
        %7205 = vmatprep.subr.bf16.mxu0 0
        %7206 = vmatpush1.bf16.msra.mxu0 0
        %7207 = vmatprep.subr.bf16.mxu0 0
        %7208 = vmatpush1.bf16.msra.mxu0 0
        %7209 = vmatprep.mubr.bf16.mxu0 0
        %7210 = vmatmul.mubr.bf16.gmra.mrb[0].mxu0 %v7175
        %v7211 = vpop.f32.mrb[0].mxu0
        %v7212 = vadd.f32 0.0, %v7211
        %v7213 = vpop.f32.mrb[0].mxu0
        %v7214 = vadd.f32 0.0, %v7213
        %v7215 = vpop.f32.mrb[0].mxu0
        %v7216 = vpop.f32.mrb[0].mxu0
        %7217 = vdwg.mxu0
        %7218 = vmatprep.subr.bf16.mxu0 %v7121
        %7219 = vmatpush1.bf16.msra.mxu0 %v7120
        %7220 = vmatprep.subr.bf16.mxu0 %v7128
        %7221 = vmatpush1.bf16.msra.mxu0 %v7127
        %7222 = vmatprep.subr.bf16.mxu0 %v7135
        %7223 = vmatpush1.bf16.msra.mxu0 %v7134
        %7224 = vmatprep.subr.bf16.mxu0 %v7142
        %7225 = vmatpush1.bf16.msra.mxu0 %v7141
        %7226 = vmatprep.subr.bf16.mxu0 0
        %7227 = vmatpush1.bf16.msra.mxu0 0
        %7228 = vmatprep.subr.bf16.mxu0 0
        %7229 = vmatpush1.bf16.msra.mxu0 0
        %7230 = vmatprep.subr.bf16.mxu0 0
        %7231 = vmatpush1.bf16.msra.mxu0 0
        %7232 = vmatprep.subr.bf16.mxu0 0
        %7233 = vmatpush1.bf16.msra.mxu0 0
        %7234 = vmatprep.subr.bf16.mxu0 0
        %7235 = vmatpush1.bf16.msra.mxu0 0
        %7236 = vmatprep.subr.bf16.mxu0 0
        %7237 = vmatpush1.bf16.msra.mxu0 0
        %7238 = vmatprep.subr.bf16.mxu0 0
        %7239 = vmatpush1.bf16.msra.mxu0 0
        %7240 = vmatprep.subr.bf16.mxu0 0
        %7241 = vmatpush1.bf16.msra.mxu0 0
        %7242 = vmatprep.subr.bf16.mxu0 0
        %7243 = vmatpush1.bf16.msra.mxu0 0
        %7244 = vmatprep.subr.bf16.mxu0 0
        %7245 = vmatpush1.bf16.msra.mxu0 0
        %7246 = vmatprep.subr.bf16.mxu0 0
        %7247 = vmatpush1.bf16.msra.mxu0 0
        %7248 = vmatprep.subr.bf16.mxu0 0
        %7249 = vmatpush1.bf16.msra.mxu0 0
        %7250 = vmatprep.mubr.bf16.mxu0 0
        %7251 = vmatmul.mubr.bf16.gmra.mrb[0].mxu0 %v7175
        %v7252 = vpop.f32.mrb[0].mxu0
        %v7253 = vadd.f32 0.0, %v7252
        %v7254 = vpop.f32.mrb[0].mxu0
        %v7255 = vadd.f32 0.0, %v7254
        %v7256 = vpop.f32.mrb[0].mxu0
        %v7257 = vpop.f32.mrb[0].mxu0
        %7258 = vdwg.mxu0
        %7259 = vmatprep.subr.bf16.mxu0 %v7123
        %7260 = vmatpush1.bf16.msra.mxu0 %v7122
        %7261 = vmatprep.subr.bf16.mxu0 %v7130
        %7262 = vmatpush1.bf16.msra.mxu0 %v7129
        %7263 = vmatprep.subr.bf16.mxu0 %v7137
        %7264 = vmatpush1.bf16.msra.mxu0 %v7136
        %7265 = vmatprep.subr.bf16.mxu0 %v7144
        %7266 = vmatpush1.bf16.msra.mxu0 %v7143
        %7267 = vmatprep.subr.bf16.mxu0 0
        %7268 = vmatpush1.bf16.msra.mxu0 0
        %7269 = vmatprep.subr.bf16.mxu0 0
        %7270 = vmatpush1.bf16.msra.mxu0 0
        %7271 = vmatprep.subr.bf16.mxu0 0
        %7272 = vmatpush1.bf16.msra.mxu0 0
        %7273 = vmatprep.subr.bf16.mxu0 0
        %7274 = vmatpush1.bf16.msra.mxu0 0
        %7275 = vmatprep.subr.bf16.mxu0 0
        %7276 = vmatpush1.bf16.msra.mxu0 0
        %7277 = vmatprep.subr.bf16.mxu0 0
        %7278 = vmatpush1.bf16.msra.mxu0 0
        %7279 = vmatprep.subr.bf16.mxu0 0
        %7280 = vmatpush1.bf16.msra.mxu0 0
        %7281 = vmatprep.subr.bf16.mxu0 0
        %7282 = vmatpush1.bf16.msra.mxu0 0
        %7283 = vmatprep.subr.bf16.mxu0 0
        %7284 = vmatpush1.bf16.msra.mxu0 0
        %7285 = vmatprep.subr.bf16.mxu0 0
        %7286 = vmatpush1.bf16.msra.mxu0 0
        %7287 = vmatprep.subr.bf16.mxu0 0
        %7288 = vmatpush1.bf16.msra.mxu0 0
        %7289 = vmatprep.subr.bf16.mxu0 0
        %7290 = vmatpush1.bf16.msra.mxu0 0
        %7291 = vmatprep.mubr.bf16.mxu0 0
        %7292 = vmatmul.mubr.bf16.gmra.mrb[0].mxu0 %v7175
        %v7293 = vpop.f32.mrb[0].mxu0
        %v7294 = vadd.f32 0.0, %v7293
        %v7295 = vpop.f32.mrb[0].mxu0
        %v7296 = vadd.f32 0.0, %v7295
        %v7297 = vpop.f32.mrb[0].mxu0
        %v7298 = vpop.f32.mrb[0].mxu0
        %7299 = vdwg.mxu0
        %7300 = vmatprep.subr.bf16.mxu0 0
        %7301 = vmatpush1.bf16.msra.mxu0 %v7124
        %7302 = vmatprep.subr.bf16.mxu0 0
        %7303 = vmatpush1.bf16.msra.mxu0 %v7131
        %7304 = vmatprep.subr.bf16.mxu0 0
        %7305 = vmatpush1.bf16.msra.mxu0 %v7138
        %7306 = vmatprep.subr.bf16.mxu0 0
        %7307 = vmatpush1.bf16.msra.mxu0 %v7145
        %7308 = vmatprep.subr.bf16.mxu0 0
        %7309 = vmatpush1.bf16.msra.mxu0 0
        %7310 = vmatprep.subr.bf16.mxu0 0
        %7311 = vmatpush1.bf16.msra.mxu0 0
        %7312 = vmatprep.subr.bf16.mxu0 0
        %7313 = vmatpush1.bf16.msra.mxu0 0
        %7314 = vmatprep.subr.bf16.mxu0 0
        %7315 = vmatpush1.bf16.msra.mxu0 0
        %7316 = vmatprep.subr.bf16.mxu0 0
        %7317 = vmatpush1.bf16.msra.mxu0 0
        %7318 = vmatprep.subr.bf16.mxu0 0
        %7319 = vmatpush1.bf16.msra.mxu0 0
        %7320 = vmatprep.subr.bf16.mxu0 0
        %7321 = vmatpush1.bf16.msra.mxu0 0
        %7322 = vmatprep.subr.bf16.mxu0 0
        %7323 = vmatpush1.bf16.msra.mxu0 0
        %7324 = vmatprep.subr.bf16.mxu0 0
        %7325 = vmatpush1.bf16.msra.mxu0 0
        %7326 = vmatprep.subr.bf16.mxu0 0
        %7327 = vmatpush1.bf16.msra.mxu0 0
        %7328 = vmatprep.subr.bf16.mxu0 0
        %7329 = vmatpush1.bf16.msra.mxu0 0
        %7330 = vmatprep.subr.bf16.mxu0 0
        %7331 = vmatpush1.bf16.msra.mxu0 0
        %7332 = vmatprep.mubr.bf16.mxu0 0
        %7333 = vmatmul.mubr.bf16.gmra.mrb[0].mxu0 %v7175
        %v7334 = vpop.f32.mrb[0].mxu0
        %v7335 = vadd.f32 0.0, %v7334
        %v7336 = vpop.f32.mrb[0].mxu0
        %v7337 = vpop.f32.mrb[0].mxu0
        %v7338 = vpop.f32.mrb[0].mxu0
        %7339 = vdwg.mxu0
        %v7340 = vadd.f32 %v5886, %v7212
        %v7341 = vadd.f32 %v5887, %v7214
        %v7342 = vadd.f32 %v5888, %v7253
        %v7343 = vadd.f32 %v5889, %v7255
        %v7344 = vadd.f32 %v5890, %v7294
        %v7345 = vadd.f32 %v5891, %v7296
        %v7346 = vadd.f32 %v5892, %v7335
        %s7347 = scalar_lea.vmem %s352, 4032 [#allocation8]
        %v7348 = vld [vmem:[%s7347] sm:$0xff]
        %v7349 = vld [vmem:[%s7347 + $0x8] sm:$0xff]
        %v7350 = vld [vmem:[%s7347 + $0x10] sm:$0xff]
        %v7351 = vld [vmem:[%s7347 + $0x18] sm:$0xf]
        %v7352 = vld [vmem:[%s7347 + $0x1c] sm:$0xff]
        %v7353 = vld [vmem:[%s7347 + $0x24] sm:$0xff]
        %v7354 = vld [vmem:[%s7347 + $0x2c] sm:$0xff]
        %v7355 = vld [vmem:[%s7347 + $0x34] sm:$0xf]
        %v7356 = vld [vmem:[%s7347 + $0x38] sm:$0xff]
        %v7357 = vld [vmem:[%s7347 + $0x40] sm:$0xff]
        %v7358 = vld [vmem:[%s7347 + $0x48] sm:$0xff]
        %v7359 = vld [vmem:[%s7347 + $0x50] sm:$0xf]
        %v7360 = vld [vmem:[%s7347 + $0x54] sm:$0xff]
        %v7361 = vld [vmem:[%s7347 + $0x5c] sm:$0xff]
        %v7362 = vld [vmem:[%s7347 + $0x64] sm:$0xff]
        %v7363 = vld [vmem:[%s7347 + $0x6c] sm:$0xf]
        %v7364 = vld [vmem:[%s7347 + $0x70] sm:$0xff]
        %v7365 = vld [vmem:[%s7347 + $0x78] sm:$0xff]
        %v7366 = vld [vmem:[%s7347 + $0x80] sm:$0xff]
        %v7367 = vld [vmem:[%s7347 + $0x88] sm:$0xf]
        %v7368 = vld [vmem:[%s7347 + $0x8c] sm:$0xff]
        %v7369 = vld [vmem:[%s7347 + $0x94] sm:$0xff]
        %v7370 = vld [vmem:[%s7347 + $0x9c] sm:$0xff]
        %v7371 = vld [vmem:[%s7347 + $0xa4] sm:$0xf]
        %v7372 = vld [vmem:[%s7347 + $0xa8] sm:$0xff]
        %v7373 = vld [vmem:[%s7347 + $0xb0] sm:$0xff]
        %v7374 = vld [vmem:[%s7347 + $0xb8] sm:$0xff]
        %v7375 = vld [vmem:[%s7347 + $0xc0] sm:$0xf]
        %v7376 = vld [vmem:[%s7347 + $0xc4] sm:$0xff]
        %v7377 = vld [vmem:[%s7347 + $0xcc] sm:$0xff]
        %v7378 = vld [vmem:[%s7347 + $0xd4] sm:$0xff]
        %v7379 = vld [vmem:[%s7347 + $0xdc] sm:$0xf]
        %v7381 = vrot.slane %v818, 1
        %v7414 = vunpack.c.l.b16 %v7348
        %v7415 = vunpack.c.h.b16 %v7348
        %v7416 = vunpack.c.l.b16 %v7349
        %v7417 = vunpack.c.h.b16 %v7349
        %v7418 = vunpack.c.l.b16 %v7350
        %v7419 = vunpack.c.h.b16 %v7350
        %v7420 = vunpack.c.l.b16 %v7351
        %v7421 = vunpack.c.l.b16 %v7352
        %v7422 = vunpack.c.h.b16 %v7352
        %v7423 = vunpack.c.l.b16 %v7353
        %v7424 = vunpack.c.h.b16 %v7353
        %v7425 = vunpack.c.l.b16 %v7354
        %v7426 = vunpack.c.h.b16 %v7354
        %v7427 = vunpack.c.l.b16 %v7355
        %v7428 = vunpack.c.l.b16 %v7356
        %v7429 = vunpack.c.h.b16 %v7356
        %v7430 = vunpack.c.l.b16 %v7357
        %v7431 = vunpack.c.h.b16 %v7357
        %v7432 = vunpack.c.l.b16 %v7358
        %v7433 = vunpack.c.h.b16 %v7358
        %v7434 = vunpack.c.l.b16 %v7359
        %v7435 = vunpack.c.l.b16 %v7360
        %v7436 = vunpack.c.h.b16 %v7360
        %v7437 = vunpack.c.l.b16 %v7361
        %v7438 = vunpack.c.h.b16 %v7361
        %v7439 = vunpack.c.l.b16 %v7362
        %v7440 = vunpack.c.h.b16 %v7362
        %v7441 = vunpack.c.l.b16 %v7363
        %v7442 = vunpack.c.l.b16 %v7364
        %v7443 = vunpack.c.h.b16 %v7364
        %v7444 = vunpack.c.l.b16 %v7365
        %v7445 = vunpack.c.h.b16 %v7365
        %v7446 = vunpack.c.l.b16 %v7366
        %v7447 = vunpack.c.h.b16 %v7366
        %v7448 = vunpack.c.l.b16 %v7367
        %v7449 = vunpack.c.l.b16 %v7368
        %v7450 = vunpack.c.h.b16 %v7368
        %v7451 = vunpack.c.l.b16 %v7369
        %v7452 = vunpack.c.h.b16 %v7369
        %v7453 = vunpack.c.l.b16 %v7370
        %v7454 = vunpack.c.h.b16 %v7370
        %v7455 = vunpack.c.l.b16 %v7371
        %v7456 = vunpack.c.l.b16 %v7372
        %v7457 = vunpack.c.h.b16 %v7372
        %v7458 = vunpack.c.l.b16 %v7373
        %v7459 = vunpack.c.h.b16 %v7373
        %v7460 = vunpack.c.l.b16 %v7374
        %v7461 = vunpack.c.h.b16 %v7374
        %v7462 = vunpack.c.l.b16 %v7375
        %v7463 = vunpack.c.l.b16 %v7376
        %v7464 = vunpack.c.h.b16 %v7376
        %v7465 = vunpack.c.l.b16 %v7377
        %v7466 = vunpack.c.h.b16 %v7377
        %v7467 = vunpack.c.l.b16 %v7378
        %v7468 = vunpack.c.h.b16 %v7378
        %v7469 = vunpack.c.l.b16 %v7379
        %v7470 = vpack.c.b16 %v7421, %v7414
        %v7471 = vpack.c.b16 %v7422, %v7415
        %v7472 = vpack.c.b16 %v7423, %v7416
        %v7473 = vpack.c.b16 %v7424, %v7417
        %v7474 = vpack.c.b16 %v7425, %v7418
        %v7475 = vpack.c.b16 %v7426, %v7419
        %v7476 = vpack.c.b16 %v7427, %v7420
        %v7477 = vpack.c.b16 %v7435, %v7428
        %v7478 = vpack.c.b16 %v7436, %v7429
        %v7479 = vpack.c.b16 %v7437, %v7430
        %v7480 = vpack.c.b16 %v7438, %v7431
        %v7481 = vpack.c.b16 %v7439, %v7432
        %v7482 = vpack.c.b16 %v7440, %v7433
        %v7483 = vpack.c.b16 %v7441, %v7434
        %v7484 = vpack.c.b16 %v7449, %v7442
        %v7485 = vpack.c.b16 %v7450, %v7443
        %v7486 = vpack.c.b16 %v7451, %v7444
        %v7487 = vpack.c.b16 %v7452, %v7445
        %v7488 = vpack.c.b16 %v7453, %v7446
        %v7489 = vpack.c.b16 %v7454, %v7447
        %v7490 = vpack.c.b16 %v7455, %v7448
        %v7491 = vpack.c.b16 %v7463, %v7456
        %v7492 = vpack.c.b16 %v7464, %v7457
        %v7493 = vpack.c.b16 %v7465, %v7458
        %v7494 = vpack.c.b16 %v7466, %v7459
        %v7495 = vpack.c.b16 %v7467, %v7460
        %v7496 = vpack.c.b16 %v7468, %v7461
        %v7497 = vpack.c.b16 %v7469, %v7462
        %v7527 = vsel %vm996, %v7381, 0
        %7529 = vmatprep.subr.bf16.mxu0 %v7471
        %7530 = vmatpush1.bf16.msra.mxu0 %v7470
        %7531 = vmatprep.subr.bf16.mxu0 %v7478
        %7532 = vmatpush1.bf16.msra.mxu0 %v7477
        %7533 = vmatprep.subr.bf16.mxu0 %v7485
        %7534 = vmatpush1.bf16.msra.mxu0 %v7484
        %7535 = vmatprep.subr.bf16.mxu0 %v7492
        %7536 = vmatpush1.bf16.msra.mxu0 %v7491
        %7537 = vmatprep.subr.bf16.mxu0 0
        %7538 = vmatpush1.bf16.msra.mxu0 0
        %7539 = vmatprep.subr.bf16.mxu0 0
        %7540 = vmatpush1.bf16.msra.mxu0 0
        %7541 = vmatprep.subr.bf16.mxu0 0
        %7542 = vmatpush1.bf16.msra.mxu0 0
        %7543 = vmatprep.subr.bf16.mxu0 0
        %7544 = vmatpush1.bf16.msra.mxu0 0
        %7545 = vmatprep.subr.bf16.mxu0 0
        %7546 = vmatpush1.bf16.msra.mxu0 0
        %7547 = vmatprep.subr.bf16.mxu0 0
        %7548 = vmatpush1.bf16.msra.mxu0 0
        %7549 = vmatprep.subr.bf16.mxu0 0
        %7550 = vmatpush1.bf16.msra.mxu0 0
        %7551 = vmatprep.subr.bf16.mxu0 0
        %7552 = vmatpush1.bf16.msra.mxu0 0
        %7553 = vmatprep.subr.bf16.mxu0 0
        %7554 = vmatpush1.bf16.msra.mxu0 0
        %7555 = vmatprep.subr.bf16.mxu0 0
        %7556 = vmatpush1.bf16.msra.mxu0 0
        %7557 = vmatprep.subr.bf16.mxu0 0
        %7558 = vmatpush1.bf16.msra.mxu0 0
        %7559 = vmatprep.subr.bf16.mxu0 0
        %7560 = vmatpush1.bf16.msra.mxu0 0
        %7561 = vmatprep.mubr.bf16.mxu0 0
        %7562 = vmatmul.mubr.bf16.gmra.mrb[0].mxu0 %v7527
        %v7563 = vpop.f32.mrb[0].mxu0
        %v7564 = vadd.f32 0.0, %v7563
        %v7565 = vpop.f32.mrb[0].mxu0
        %v7566 = vadd.f32 0.0, %v7565
        %v7567 = vpop.f32.mrb[0].mxu0
        %v7568 = vpop.f32.mrb[0].mxu0
        %7569 = vdwg.mxu0
        %7570 = vmatprep.subr.bf16.mxu0 %v7473
        %7571 = vmatpush1.bf16.msra.mxu0 %v7472
        %7572 = vmatprep.subr.bf16.mxu0 %v7480
        %7573 = vmatpush1.bf16.msra.mxu0 %v7479
        %7574 = vmatprep.subr.bf16.mxu0 %v7487
        %7575 = vmatpush1.bf16.msra.mxu0 %v7486
        %7576 = vmatprep.subr.bf16.mxu0 %v7494
        %7577 = vmatpush1.bf16.msra.mxu0 %v7493
        %7578 = vmatprep.subr.bf16.mxu0 0
        %7579 = vmatpush1.bf16.msra.mxu0 0
        %7580 = vmatprep.subr.bf16.mxu0 0
        %7581 = vmatpush1.bf16.msra.mxu0 0
        %7582 = vmatprep.subr.bf16.mxu0 0
        %7583 = vmatpush1.bf16.msra.mxu0 0
        %7584 = vmatprep.subr.bf16.mxu0 0
        %7585 = vmatpush1.bf16.msra.mxu0 0
        %7586 = vmatprep.subr.bf16.mxu0 0
        %7587 = vmatpush1.bf16.msra.mxu0 0
        %7588 = vmatprep.subr.bf16.mxu0 0
        %7589 = vmatpush1.bf16.msra.mxu0 0
        %7590 = vmatprep.subr.bf16.mxu0 0
        %7591 = vmatpush1.bf16.msra.mxu0 0
        %7592 = vmatprep.subr.bf16.mxu0 0
        %7593 = vmatpush1.bf16.msra.mxu0 0
        %7594 = vmatprep.subr.bf16.mxu0 0
        %7595 = vmatpush1.bf16.msra.mxu0 0
        %7596 = vmatprep.subr.bf16.mxu0 0
        %7597 = vmatpush1.bf16.msra.mxu0 0
        %7598 = vmatprep.subr.bf16.mxu0 0
        %7599 = vmatpush1.bf16.msra.mxu0 0
        %7600 = vmatprep.subr.bf16.mxu0 0
        %7601 = vmatpush1.bf16.msra.mxu0 0
        %7602 = vmatprep.mubr.bf16.mxu0 0
        %7603 = vmatmul.mubr.bf16.gmra.mrb[0].mxu0 %v7527
        %v7604 = vpop.f32.mrb[0].mxu0
        %v7605 = vadd.f32 0.0, %v7604
        %v7606 = vpop.f32.mrb[0].mxu0
        %v7607 = vadd.f32 0.0, %v7606
        %v7608 = vpop.f32.mrb[0].mxu0
        %v7609 = vpop.f32.mrb[0].mxu0
        %7610 = vdwg.mxu0
        %7611 = vmatprep.subr.bf16.mxu0 %v7475
        %7612 = vmatpush1.bf16.msra.mxu0 %v7474
        %7613 = vmatprep.subr.bf16.mxu0 %v7482
        %7614 = vmatpush1.bf16.msra.mxu0 %v7481
        %7615 = vmatprep.subr.bf16.mxu0 %v7489
        %7616 = vmatpush1.bf16.msra.mxu0 %v7488
        %7617 = vmatprep.subr.bf16.mxu0 %v7496
        %7618 = vmatpush1.bf16.msra.mxu0 %v7495
        %7619 = vmatprep.subr.bf16.mxu0 0
        %7620 = vmatpush1.bf16.msra.mxu0 0
        %7621 = vmatprep.subr.bf16.mxu0 0
        %7622 = vmatpush1.bf16.msra.mxu0 0
        %7623 = vmatprep.subr.bf16.mxu0 0
        %7624 = vmatpush1.bf16.msra.mxu0 0
        %7625 = vmatprep.subr.bf16.mxu0 0
        %7626 = vmatpush1.bf16.msra.mxu0 0
        %7627 = vmatprep.subr.bf16.mxu0 0
        %7628 = vmatpush1.bf16.msra.mxu0 0
        %7629 = vmatprep.subr.bf16.mxu0 0
        %7630 = vmatpush1.bf16.msra.mxu0 0
        %7631 = vmatprep.subr.bf16.mxu0 0
        %7632 = vmatpush1.bf16.msra.mxu0 0
        %7633 = vmatprep.subr.bf16.mxu0 0
        %7634 = vmatpush1.bf16.msra.mxu0 0
        %7635 = vmatprep.subr.bf16.mxu0 0
        %7636 = vmatpush1.bf16.msra.mxu0 0
        %7637 = vmatprep.subr.bf16.mxu0 0
        %7638 = vmatpush1.bf16.msra.mxu0 0
        %7639 = vmatprep.subr.bf16.mxu0 0
        %7640 = vmatpush1.bf16.msra.mxu0 0
        %7641 = vmatprep.subr.bf16.mxu0 0
        %7642 = vmatpush1.bf16.msra.mxu0 0
        %7643 = vmatprep.mubr.bf16.mxu0 0
        %7644 = vmatmul.mubr.bf16.gmra.mrb[0].mxu0 %v7527
        %v7645 = vpop.f32.mrb[0].mxu0
        %v7646 = vadd.f32 0.0, %v7645
        %v7647 = vpop.f32.mrb[0].mxu0
        %v7648 = vadd.f32 0.0, %v7647
        %v7649 = vpop.f32.mrb[0].mxu0
        %v7650 = vpop.f32.mrb[0].mxu0
        %7651 = vdwg.mxu0
        %7652 = vmatprep.subr.bf16.mxu0 0
        %7653 = vmatpush1.bf16.msra.mxu0 %v7476
        %7654 = vmatprep.subr.bf16.mxu0 0
        %7655 = vmatpush1.bf16.msra.mxu0 %v7483
        %7656 = vmatprep.subr.bf16.mxu0 0
        %7657 = vmatpush1.bf16.msra.mxu0 %v7490
        %7658 = vmatprep.subr.bf16.mxu0 0
        %7659 = vmatpush1.bf16.msra.mxu0 %v7497
        %7660 = vmatprep.subr.bf16.mxu0 0
        %7661 = vmatpush1.bf16.msra.mxu0 0
        %7662 = vmatprep.subr.bf16.mxu0 0
        %7663 = vmatpush1.bf16.msra.mxu0 0
        %7664 = vmatprep.subr.bf16.mxu0 0
        %7665 = vmatpush1.bf16.msra.mxu0 0
        %7666 = vmatprep.subr.bf16.mxu0 0
        %7667 = vmatpush1.bf16.msra.mxu0 0
        %7668 = vmatprep.subr.bf16.mxu0 0
        %7669 = vmatpush1.bf16.msra.mxu0 0
        %7670 = vmatprep.subr.bf16.mxu0 0
        %7671 = vmatpush1.bf16.msra.mxu0 0
        %7672 = vmatprep.subr.bf16.mxu0 0
        %7673 = vmatpush1.bf16.msra.mxu0 0
        %7674 = vmatprep.subr.bf16.mxu0 0
        %7675 = vmatpush1.bf16.msra.mxu0 0
        %7676 = vmatprep.subr.bf16.mxu0 0
        %7677 = vmatpush1.bf16.msra.mxu0 0
        %7678 = vmatprep.subr.bf16.mxu0 0
        %7679 = vmatpush1.bf16.msra.mxu0 0
        %7680 = vmatprep.subr.bf16.mxu0 0
        %7681 = vmatpush1.bf16.msra.mxu0 0
        %7682 = vmatprep.subr.bf16.mxu0 0
        %7683 = vmatpush1.bf16.msra.mxu0 0
        %7684 = vmatprep.mubr.bf16.mxu0 0
        %7685 = vmatmul.mubr.bf16.gmra.mrb[0].mxu0 %v7527
        %v7686 = vpop.f32.mrb[0].mxu0
        %v7687 = vadd.f32 0.0, %v7686
        %v7688 = vpop.f32.mrb[0].mxu0
        %v7689 = vpop.f32.mrb[0].mxu0
        %v7690 = vpop.f32.mrb[0].mxu0
        %7691 = vdwg.mxu0
        %v7692 = vadd.f32 %v6237, %v7564
        %v7693 = vadd.f32 %v6238, %v7566
        %v7694 = vadd.f32 %v6239, %v7605
        %v7695 = vadd.f32 %v6240, %v7607
        %v7696 = vadd.f32 %v6241, %v7646
        %v7697 = vadd.f32 %v6242, %v7648
        %v7698 = vadd.f32 %v6243, %v7687
        %s7699 = scalar_lea.vmem %s352, 4256 [#allocation8]
        %v7700 = vld [vmem:[%s7699] sm:$0xff]
        %v7701 = vld [vmem:[%s7699 + $0x8] sm:$0xff]
        %v7702 = vld [vmem:[%s7699 + $0x10] sm:$0xff]
        %v7703 = vld [vmem:[%s7699 + $0x18] sm:$0xf]
        %v7704 = vld [vmem:[%s7699 + $0x1c] sm:$0xff]
        %v7705 = vld [vmem:[%s7699 + $0x24] sm:$0xff]
        %v7706 = vld [vmem:[%s7699 + $0x2c] sm:$0xff]
        %v7707 = vld [vmem:[%s7699 + $0x34] sm:$0xf]
        %v7708 = vld [vmem:[%s7699 + $0x38] sm:$0xff]
        %v7709 = vld [vmem:[%s7699 + $0x40] sm:$0xff]
        %v7710 = vld [vmem:[%s7699 + $0x48] sm:$0xff]
        %v7711 = vld [vmem:[%s7699 + $0x50] sm:$0xf]
        %v7712 = vld [vmem:[%s7699 + $0x54] sm:$0xff]
        %v7713 = vld [vmem:[%s7699 + $0x5c] sm:$0xff]
        %v7714 = vld [vmem:[%s7699 + $0x64] sm:$0xff]
        %v7715 = vld [vmem:[%s7699 + $0x6c] sm:$0xf]
        %v7716 = vld [vmem:[%s7699 + $0x70] sm:$0xff]
        %v7717 = vld [vmem:[%s7699 + $0x78] sm:$0xff]
        %v7718 = vld [vmem:[%s7699 + $0x80] sm:$0xff]
        %v7719 = vld [vmem:[%s7699 + $0x88] sm:$0xf]
        %v7720 = vld [vmem:[%s7699 + $0x8c] sm:$0xff]
        %v7721 = vld [vmem:[%s7699 + $0x94] sm:$0xff]
        %v7722 = vld [vmem:[%s7699 + $0x9c] sm:$0xff]
        %v7723 = vld [vmem:[%s7699 + $0xa4] sm:$0xf]
        %v7724 = vld [vmem:[%s7699 + $0xa8] sm:$0xff]
        %v7725 = vld [vmem:[%s7699 + $0xb0] sm:$0xff]
        %v7726 = vld [vmem:[%s7699 + $0xb8] sm:$0xff]
        %v7727 = vld [vmem:[%s7699 + $0xc0] sm:$0xf]
        %v7728 = vld [vmem:[%s7699 + $0xc4] sm:$0xff]
        %v7729 = vld [vmem:[%s7699 + $0xcc] sm:$0xff]
        %v7730 = vld [vmem:[%s7699 + $0xd4] sm:$0xff]
        %v7731 = vld [vmem:[%s7699 + $0xdc] sm:$0xf]
        %v7732 = vrot.slane %v7028, 1
        %v7765 = vunpack.c.l.b16 %v7700
        %v7766 = vunpack.c.h.b16 %v7700
        %v7767 = vunpack.c.l.b16 %v7701
        %v7768 = vunpack.c.h.b16 %v7701
        %v7769 = vunpack.c.l.b16 %v7702
        %v7770 = vunpack.c.h.b16 %v7702
        %v7771 = vunpack.c.l.b16 %v7703
        %v7772 = vunpack.c.l.b16 %v7704
        %v7773 = vunpack.c.h.b16 %v7704
        %v7774 = vunpack.c.l.b16 %v7705
        %v7775 = vunpack.c.h.b16 %v7705
        %v7776 = vunpack.c.l.b16 %v7706
        %v7777 = vunpack.c.h.b16 %v7706
        %v7778 = vunpack.c.l.b16 %v7707
        %v7779 = vunpack.c.l.b16 %v7708
        %v7780 = vunpack.c.h.b16 %v7708
        %v7781 = vunpack.c.l.b16 %v7709
        %v7782 = vunpack.c.h.b16 %v7709
        %v7783 = vunpack.c.l.b16 %v7710
        %v7784 = vunpack.c.h.b16 %v7710
        %v7785 = vunpack.c.l.b16 %v7711
        %v7786 = vunpack.c.l.b16 %v7712
        %v7787 = vunpack.c.h.b16 %v7712
        %v7788 = vunpack.c.l.b16 %v7713
        %v7789 = vunpack.c.h.b16 %v7713
        %v7790 = vunpack.c.l.b16 %v7714
        %v7791 = vunpack.c.h.b16 %v7714
        %v7792 = vunpack.c.l.b16 %v7715
        %v7793 = vunpack.c.l.b16 %v7716
        %v7794 = vunpack.c.h.b16 %v7716
        %v7795 = vunpack.c.l.b16 %v7717
        %v7796 = vunpack.c.h.b16 %v7717
        %v7797 = vunpack.c.l.b16 %v7718
        %v7798 = vunpack.c.h.b16 %v7718
        %v7799 = vunpack.c.l.b16 %v7719
        %v7800 = vunpack.c.l.b16 %v7720
        %v7801 = vunpack.c.h.b16 %v7720
        %v7802 = vunpack.c.l.b16 %v7721
        %v7803 = vunpack.c.h.b16 %v7721
        %v7804 = vunpack.c.l.b16 %v7722
        %v7805 = vunpack.c.h.b16 %v7722
        %v7806 = vunpack.c.l.b16 %v7723
        %v7807 = vunpack.c.l.b16 %v7724
        %v7808 = vunpack.c.h.b16 %v7724
        %v7809 = vunpack.c.l.b16 %v7725
        %v7810 = vunpack.c.h.b16 %v7725
        %v7811 = vunpack.c.l.b16 %v7726
        %v7812 = vunpack.c.h.b16 %v7726
        %v7813 = vunpack.c.l.b16 %v7727
        %v7814 = vunpack.c.l.b16 %v7728
        %v7815 = vunpack.c.h.b16 %v7728
        %v7816 = vunpack.c.l.b16 %v7729
        %v7817 = vunpack.c.h.b16 %v7729
        %v7818 = vunpack.c.l.b16 %v7730
        %v7819 = vunpack.c.h.b16 %v7730
        %v7820 = vunpack.c.l.b16 %v7731
        %v7821 = vpack.c.b16 %v7772, %v7765
        %v7822 = vpack.c.b16 %v7773, %v7766
        %v7823 = vpack.c.b16 %v7774, %v7767
        %v7824 = vpack.c.b16 %v7775, %v7768
        %v7825 = vpack.c.b16 %v7776, %v7769
        %v7826 = vpack.c.b16 %v7777, %v7770
        %v7827 = vpack.c.b16 %v7778, %v7771
        %v7828 = vpack.c.b16 %v7786, %v7779
        %v7829 = vpack.c.b16 %v7787, %v7780
        %v7830 = vpack.c.b16 %v7788, %v7781
        %v7831 = vpack.c.b16 %v7789, %v7782
        %v7832 = vpack.c.b16 %v7790, %v7783
        %v7833 = vpack.c.b16 %v7791, %v7784
        %v7834 = vpack.c.b16 %v7792, %v7785
        %v7835 = vpack.c.b16 %v7800, %v7793
        %v7836 = vpack.c.b16 %v7801, %v7794
        %v7837 = vpack.c.b16 %v7802, %v7795
        %v7838 = vpack.c.b16 %v7803, %v7796
        %v7839 = vpack.c.b16 %v7804, %v7797
        %v7840 = vpack.c.b16 %v7805, %v7798
        %v7841 = vpack.c.b16 %v7806, %v7799
        %v7842 = vpack.c.b16 %v7814, %v7807
        %v7843 = vpack.c.b16 %v7815, %v7808
        %v7844 = vpack.c.b16 %v7816, %v7809
        %v7845 = vpack.c.b16 %v7817, %v7810
        %v7846 = vpack.c.b16 %v7818, %v7811
        %v7847 = vpack.c.b16 %v7819, %v7812
        %v7848 = vpack.c.b16 %v7820, %v7813
        %v7878 = vsel %vm996, %v7732, 0
        %7880 = vmatprep.subr.bf16.mxu0 %v7822
        %7881 = vmatpush1.bf16.msra.mxu0 %v7821
        %7882 = vmatprep.subr.bf16.mxu0 %v7829
        %7883 = vmatpush1.bf16.msra.mxu0 %v7828
        %7884 = vmatprep.subr.bf16.mxu0 %v7836
        %7885 = vmatpush1.bf16.msra.mxu0 %v7835
        %7886 = vmatprep.subr.bf16.mxu0 %v7843
        %7887 = vmatpush1.bf16.msra.mxu0 %v7842
        %7888 = vmatprep.subr.bf16.mxu0 0
        %7889 = vmatpush1.bf16.msra.mxu0 0
        %7890 = vmatprep.subr.bf16.mxu0 0
        %7891 = vmatpush1.bf16.msra.mxu0 0
        %7892 = vmatprep.subr.bf16.mxu0 0
        %7893 = vmatpush1.bf16.msra.mxu0 0
        %7894 = vmatprep.subr.bf16.mxu0 0
        %7895 = vmatpush1.bf16.msra.mxu0 0
        %7896 = vmatprep.subr.bf16.mxu0 0
        %7897 = vmatpush1.bf16.msra.mxu0 0
        %7898 = vmatprep.subr.bf16.mxu0 0
        %7899 = vmatpush1.bf16.msra.mxu0 0
        %7900 = vmatprep.subr.bf16.mxu0 0
        %7901 = vmatpush1.bf16.msra.mxu0 0
        %7902 = vmatprep.subr.bf16.mxu0 0
        %7903 = vmatpush1.bf16.msra.mxu0 0
        %7904 = vmatprep.subr.bf16.mxu0 0
        %7905 = vmatpush1.bf16.msra.mxu0 0
        %7906 = vmatprep.subr.bf16.mxu0 0
        %7907 = vmatpush1.bf16.msra.mxu0 0
        %7908 = vmatprep.subr.bf16.mxu0 0
        %7909 = vmatpush1.bf16.msra.mxu0 0
        %7910 = vmatprep.subr.bf16.mxu0 0
        %7911 = vmatpush1.bf16.msra.mxu0 0
        %7912 = vmatprep.mubr.bf16.mxu0 0
        %7913 = vmatmul.mubr.bf16.gmra.mrb[0].mxu0 %v7878
        %v7914 = vpop.f32.mrb[0].mxu0
        %v7915 = vadd.f32 0.0, %v7914
        %v7916 = vpop.f32.mrb[0].mxu0
        %v7917 = vadd.f32 0.0, %v7916
        %v7918 = vpop.f32.mrb[0].mxu0
        %v7919 = vpop.f32.mrb[0].mxu0
        %7920 = vdwg.mxu0
        %7921 = vmatprep.subr.bf16.mxu0 %v7824
        %7922 = vmatpush1.bf16.msra.mxu0 %v7823
        %7923 = vmatprep.subr.bf16.mxu0 %v7831
        %7924 = vmatpush1.bf16.msra.mxu0 %v7830
        %7925 = vmatprep.subr.bf16.mxu0 %v7838
        %7926 = vmatpush1.bf16.msra.mxu0 %v7837
        %7927 = vmatprep.subr.bf16.mxu0 %v7845
        %7928 = vmatpush1.bf16.msra.mxu0 %v7844
        %7929 = vmatprep.subr.bf16.mxu0 0
        %7930 = vmatpush1.bf16.msra.mxu0 0
        %7931 = vmatprep.subr.bf16.mxu0 0
        %7932 = vmatpush1.bf16.msra.mxu0 0
        %7933 = vmatprep.subr.bf16.mxu0 0
        %7934 = vmatpush1.bf16.msra.mxu0 0
        %7935 = vmatprep.subr.bf16.mxu0 0
        %7936 = vmatpush1.bf16.msra.mxu0 0
        %7937 = vmatprep.subr.bf16.mxu0 0
        %7938 = vmatpush1.bf16.msra.mxu0 0
        %7939 = vmatprep.subr.bf16.mxu0 0
        %7940 = vmatpush1.bf16.msra.mxu0 0
        %7941 = vmatprep.subr.bf16.mxu0 0
        %7942 = vmatpush1.bf16.msra.mxu0 0
        %7943 = vmatprep.subr.bf16.mxu0 0
        %7944 = vmatpush1.bf16.msra.mxu0 0
        %7945 = vmatprep.subr.bf16.mxu0 0
        %7946 = vmatpush1.bf16.msra.mxu0 0
        %7947 = vmatprep.subr.bf16.mxu0 0
        %7948 = vmatpush1.bf16.msra.mxu0 0
        %7949 = vmatprep.subr.bf16.mxu0 0
        %7950 = vmatpush1.bf16.msra.mxu0 0
        %7951 = vmatprep.subr.bf16.mxu0 0
        %7952 = vmatpush1.bf16.msra.mxu0 0
        %7953 = vmatprep.mubr.bf16.mxu0 0
        %7954 = vmatmul.mubr.bf16.gmra.mrb[0].mxu0 %v7878
        %v7955 = vpop.f32.mrb[0].mxu0
        %v7956 = vadd.f32 0.0, %v7955
        %v7957 = vpop.f32.mrb[0].mxu0
        %v7958 = vadd.f32 0.0, %v7957
        %v7959 = vpop.f32.mrb[0].mxu0
        %v7960 = vpop.f32.mrb[0].mxu0
        %7961 = vdwg.mxu0
        %7962 = vmatprep.subr.bf16.mxu0 %v7826
        %7963 = vmatpush1.bf16.msra.mxu0 %v7825
        %7964 = vmatprep.subr.bf16.mxu0 %v7833
        %7965 = vmatpush1.bf16.msra.mxu0 %v7832
        %7966 = vmatprep.subr.bf16.mxu0 %v7840
        %7967 = vmatpush1.bf16.msra.mxu0 %v7839
        %7968 = vmatprep.subr.bf16.mxu0 %v7847
        %7969 = vmatpush1.bf16.msra.mxu0 %v7846
        %7970 = vmatprep.subr.bf16.mxu0 0
        %7971 = vmatpush1.bf16.msra.mxu0 0
        %7972 = vmatprep.subr.bf16.mxu0 0
        %7973 = vmatpush1.bf16.msra.mxu0 0
        %7974 = vmatprep.subr.bf16.mxu0 0
        %7975 = vmatpush1.bf16.msra.mxu0 0
        %7976 = vmatprep.subr.bf16.mxu0 0
        %7977 = vmatpush1.bf16.msra.mxu0 0
        %7978 = vmatprep.subr.bf16.mxu0 0
        %7979 = vmatpush1.bf16.msra.mxu0 0
        %7980 = vmatprep.subr.bf16.mxu0 0
        %7981 = vmatpush1.bf16.msra.mxu0 0
        %7982 = vmatprep.subr.bf16.mxu0 0
        %7983 = vmatpush1.bf16.msra.mxu0 0
        %7984 = vmatprep.subr.bf16.mxu0 0
        %7985 = vmatpush1.bf16.msra.mxu0 0
        %7986 = vmatprep.subr.bf16.mxu0 0
        %7987 = vmatpush1.bf16.msra.mxu0 0
        %7988 = vmatprep.subr.bf16.mxu0 0
        %7989 = vmatpush1.bf16.msra.mxu0 0
        %7990 = vmatprep.subr.bf16.mxu0 0
        %7991 = vmatpush1.bf16.msra.mxu0 0
        %7992 = vmatprep.subr.bf16.mxu0 0
        %7993 = vmatpush1.bf16.msra.mxu0 0
        %7994 = vmatprep.mubr.bf16.mxu0 0
        %7995 = vmatmul.mubr.bf16.gmra.mrb[0].mxu0 %v7878
        %v7996 = vpop.f32.mrb[0].mxu0
        %v7997 = vadd.f32 0.0, %v7996
        %v7998 = vpop.f32.mrb[0].mxu0
        %v7999 = vadd.f32 0.0, %v7998
        %v8000 = vpop.f32.mrb[0].mxu0
        %v8001 = vpop.f32.mrb[0].mxu0
        %8002 = vdwg.mxu0
        %8003 = vmatprep.subr.bf16.mxu0 0
        %8004 = vmatpush1.bf16.msra.mxu0 %v7827
        %8005 = vmatprep.subr.bf16.mxu0 0
        %8006 = vmatpush1.bf16.msra.mxu0 %v7834
        %8007 = vmatprep.subr.bf16.mxu0 0
        %8008 = vmatpush1.bf16.msra.mxu0 %v7841
        %8009 = vmatprep.subr.bf16.mxu0 0
        %8010 = vmatpush1.bf16.msra.mxu0 %v7848
        %8011 = vmatprep.subr.bf16.mxu0 0
        %8012 = vmatpush1.bf16.msra.mxu0 0
        %8013 = vmatprep.subr.bf16.mxu0 0
        %8014 = vmatpush1.bf16.msra.mxu0 0
        %8015 = vmatprep.subr.bf16.mxu0 0
        %8016 = vmatpush1.bf16.msra.mxu0 0
        %8017 = vmatprep.subr.bf16.mxu0 0
        %8018 = vmatpush1.bf16.msra.mxu0 0
        %8019 = vmatprep.subr.bf16.mxu0 0
        %8020 = vmatpush1.bf16.msra.mxu0 0
        %8021 = vmatprep.subr.bf16.mxu0 0
        %8022 = vmatpush1.bf16.msra.mxu0 0
        %8023 = vmatprep.subr.bf16.mxu0 0
        %8024 = vmatpush1.bf16.msra.mxu0 0
        %8025 = vmatprep.subr.bf16.mxu0 0
        %8026 = vmatpush1.bf16.msra.mxu0 0
        %8027 = vmatprep.subr.bf16.mxu0 0
        %8028 = vmatpush1.bf16.msra.mxu0 0
        %8029 = vmatprep.subr.bf16.mxu0 0
        %8030 = vmatpush1.bf16.msra.mxu0 0
        %8031 = vmatprep.subr.bf16.mxu0 0
        %8032 = vmatpush1.bf16.msra.mxu0 0
        %8033 = vmatprep.subr.bf16.mxu0 0
        %8034 = vmatpush1.bf16.msra.mxu0 0
        %8035 = vmatprep.mubr.bf16.mxu0 0
        %8036 = vmatmul.mubr.bf16.gmra.mrb[0].mxu0 %v7878
        %v8037 = vpop.f32.mrb[0].mxu0
        %v8038 = vadd.f32 0.0, %v8037
        %v8039 = vpop.f32.mrb[0].mxu0
        %v8040 = vpop.f32.mrb[0].mxu0
        %v8041 = vpop.f32.mrb[0].mxu0
        %8042 = vdwg.mxu0
        %v8043 = vadd.f32 %v6588, %v7915
        %v8044 = vadd.f32 %v6589, %v7917
        %v8045 = vadd.f32 %v6590, %v7956
        %v8046 = vadd.f32 %v6591, %v7958
        %v8047 = vadd.f32 %v6592, %v7997
        %v8048 = vadd.f32 %v6593, %v7999
        %v8049 = vadd.f32 %v6594, %v8038
        %s8050 = scalar_lea.vmem %s352, 4480 [#allocation8]
        %v8051 = vld [vmem:[%s8050] sm:$0xff]
        %v8052 = vld [vmem:[%s8050 + $0x8] sm:$0xff]
        %v8053 = vld [vmem:[%s8050 + $0x10] sm:$0xff]
        %v8054 = vld [vmem:[%s8050 + $0x18] sm:$0xf]
        %v8055 = vld [vmem:[%s8050 + $0x1c] sm:$0xff]
        %v8056 = vld [vmem:[%s8050 + $0x24] sm:$0xff]
        %v8057 = vld [vmem:[%s8050 + $0x2c] sm:$0xff]
        %v8058 = vld [vmem:[%s8050 + $0x34] sm:$0xf]
        %v8059 = vld [vmem:[%s8050 + $0x38] sm:$0xff]
        %v8060 = vld [vmem:[%s8050 + $0x40] sm:$0xff]
        %v8061 = vld [vmem:[%s8050 + $0x48] sm:$0xff]
        %v8062 = vld [vmem:[%s8050 + $0x50] sm:$0xf]
        %v8063 = vld [vmem:[%s8050 + $0x54] sm:$0xff]
        %v8064 = vld [vmem:[%s8050 + $0x5c] sm:$0xff]
        %v8065 = vld [vmem:[%s8050 + $0x64] sm:$0xff]
        %v8066 = vld [vmem:[%s8050 + $0x6c] sm:$0xf]
        %v8067 = vld [vmem:[%s8050 + $0x70] sm:$0xff]
        %v8068 = vld [vmem:[%s8050 + $0x78] sm:$0xff]
        %v8069 = vld [vmem:[%s8050 + $0x80] sm:$0xff]
        %v8070 = vld [vmem:[%s8050 + $0x88] sm:$0xf]
        %v8071 = vld [vmem:[%s8050 + $0x8c] sm:$0xff]
        %v8072 = vld [vmem:[%s8050 + $0x94] sm:$0xff]
        %v8073 = vld [vmem:[%s8050 + $0x9c] sm:$0xff]
        %v8074 = vld [vmem:[%s8050 + $0xa4] sm:$0xf]
        %v8075 = vld [vmem:[%s8050 + $0xa8] sm:$0xff]
        %v8076 = vld [vmem:[%s8050 + $0xb0] sm:$0xff]
        %v8077 = vld [vmem:[%s8050 + $0xb8] sm:$0xff]
        %v8078 = vld [vmem:[%s8050 + $0xc0] sm:$0xf]
        %v8079 = vld [vmem:[%s8050 + $0xc4] sm:$0xff]
        %v8080 = vld [vmem:[%s8050 + $0xcc] sm:$0xff]
        %v8081 = vld [vmem:[%s8050 + $0xd4] sm:$0xff]
        %v8082 = vld [vmem:[%s8050 + $0xdc] sm:$0xf]
        %v8083 = vrot.slane %v818, 2
        %v8116 = vunpack.c.l.b16 %v8051
        %v8117 = vunpack.c.h.b16 %v8051
        %v8118 = vunpack.c.l.b16 %v8052
        %v8119 = vunpack.c.h.b16 %v8052
        %v8120 = vunpack.c.l.b16 %v8053
        %v8121 = vunpack.c.h.b16 %v8053
        %v8122 = vunpack.c.l.b16 %v8054
        %v8123 = vunpack.c.l.b16 %v8055
        %v8124 = vunpack.c.h.b16 %v8055
        %v8125 = vunpack.c.l.b16 %v8056
        %v8126 = vunpack.c.h.b16 %v8056
        %v8127 = vunpack.c.l.b16 %v8057
        %v8128 = vunpack.c.h.b16 %v8057
        %v8129 = vunpack.c.l.b16 %v8058
        %v8130 = vunpack.c.l.b16 %v8059
        %v8131 = vunpack.c.h.b16 %v8059
        %v8132 = vunpack.c.l.b16 %v8060
        %v8133 = vunpack.c.h.b16 %v8060
        %v8134 = vunpack.c.l.b16 %v8061
        %v8135 = vunpack.c.h.b16 %v8061
        %v8136 = vunpack.c.l.b16 %v8062
        %v8137 = vunpack.c.l.b16 %v8063
        %v8138 = vunpack.c.h.b16 %v8063
        %v8139 = vunpack.c.l.b16 %v8064
        %v8140 = vunpack.c.h.b16 %v8064
        %v8141 = vunpack.c.l.b16 %v8065
        %v8142 = vunpack.c.h.b16 %v8065
        %v8143 = vunpack.c.l.b16 %v8066
        %v8144 = vunpack.c.l.b16 %v8067
        %v8145 = vunpack.c.h.b16 %v8067
        %v8146 = vunpack.c.l.b16 %v8068
        %v8147 = vunpack.c.h.b16 %v8068
        %v8148 = vunpack.c.l.b16 %v8069
        %v8149 = vunpack.c.h.b16 %v8069
        %v8150 = vunpack.c.l.b16 %v8070
        %v8151 = vunpack.c.l.b16 %v8071
        %v8152 = vunpack.c.h.b16 %v8071
        %v8153 = vunpack.c.l.b16 %v8072
        %v8154 = vunpack.c.h.b16 %v8072
        %v8155 = vunpack.c.l.b16 %v8073
        %v8156 = vunpack.c.h.b16 %v8073
        %v8157 = vunpack.c.l.b16 %v8074
        %v8158 = vunpack.c.l.b16 %v8075
        %v8159 = vunpack.c.h.b16 %v8075
        %v8160 = vunpack.c.l.b16 %v8076
        %v8161 = vunpack.c.h.b16 %v8076
        %v8162 = vunpack.c.l.b16 %v8077
        %v8163 = vunpack.c.h.b16 %v8077
        %v8164 = vunpack.c.l.b16 %v8078
        %v8165 = vunpack.c.l.b16 %v8079
        %v8166 = vunpack.c.h.b16 %v8079
        %v8167 = vunpack.c.l.b16 %v8080
        %v8168 = vunpack.c.h.b16 %v8080
        %v8169 = vunpack.c.l.b16 %v8081
        %v8170 = vunpack.c.h.b16 %v8081
        %v8171 = vunpack.c.l.b16 %v8082
        %v8172 = vpack.c.b16 %v8123, %v8116
        %v8173 = vpack.c.b16 %v8124, %v8117
        %v8174 = vpack.c.b16 %v8125, %v8118
        %v8175 = vpack.c.b16 %v8126, %v8119
        %v8176 = vpack.c.b16 %v8127, %v8120
        %v8177 = vpack.c.b16 %v8128, %v8121
        %v8178 = vpack.c.b16 %v8129, %v8122
        %v8179 = vpack.c.b16 %v8137, %v8130
        %v8180 = vpack.c.b16 %v8138, %v8131
        %v8181 = vpack.c.b16 %v8139, %v8132
        %v8182 = vpack.c.b16 %v8140, %v8133
        %v8183 = vpack.c.b16 %v8141, %v8134
        %v8184 = vpack.c.b16 %v8142, %v8135
        %v8185 = vpack.c.b16 %v8143, %v8136
        %v8186 = vpack.c.b16 %v8151, %v8144
        %v8187 = vpack.c.b16 %v8152, %v8145
        %v8188 = vpack.c.b16 %v8153, %v8146
        %v8189 = vpack.c.b16 %v8154, %v8147
        %v8190 = vpack.c.b16 %v8155, %v8148
        %v8191 = vpack.c.b16 %v8156, %v8149
        %v8192 = vpack.c.b16 %v8157, %v8150
        %v8193 = vpack.c.b16 %v8165, %v8158
        %v8194 = vpack.c.b16 %v8166, %v8159
        %v8195 = vpack.c.b16 %v8167, %v8160
        %v8196 = vpack.c.b16 %v8168, %v8161
        %v8197 = vpack.c.b16 %v8169, %v8162
        %v8198 = vpack.c.b16 %v8170, %v8163
        %v8199 = vpack.c.b16 %v8171, %v8164
        %v8229 = vsel %vm996, %v8083, 0
        %8231 = vmatprep.subr.bf16.mxu0 %v8173
        %8232 = vmatpush1.bf16.msra.mxu0 %v8172
        %8233 = vmatprep.subr.bf16.mxu0 %v8180
        %8234 = vmatpush1.bf16.msra.mxu0 %v8179
        %8235 = vmatprep.subr.bf16.mxu0 %v8187
        %8236 = vmatpush1.bf16.msra.mxu0 %v8186
        %8237 = vmatprep.subr.bf16.mxu0 %v8194
        %8238 = vmatpush1.bf16.msra.mxu0 %v8193
        %8239 = vmatprep.subr.bf16.mxu0 0
        %8240 = vmatpush1.bf16.msra.mxu0 0
        %8241 = vmatprep.subr.bf16.mxu0 0
        %8242 = vmatpush1.bf16.msra.mxu0 0
        %8243 = vmatprep.subr.bf16.mxu0 0
        %8244 = vmatpush1.bf16.msra.mxu0 0
        %8245 = vmatprep.subr.bf16.mxu0 0
        %8246 = vmatpush1.bf16.msra.mxu0 0
        %8247 = vmatprep.subr.bf16.mxu0 0
        %8248 = vmatpush1.bf16.msra.mxu0 0
        %8249 = vmatprep.subr.bf16.mxu0 0
        %8250 = vmatpush1.bf16.msra.mxu0 0
        %8251 = vmatprep.subr.bf16.mxu0 0
        %8252 = vmatpush1.bf16.msra.mxu0 0
        %8253 = vmatprep.subr.bf16.mxu0 0
        %8254 = vmatpush1.bf16.msra.mxu0 0
        %8255 = vmatprep.subr.bf16.mxu0 0
        %8256 = vmatpush1.bf16.msra.mxu0 0
        %8257 = vmatprep.subr.bf16.mxu0 0
        %8258 = vmatpush1.bf16.msra.mxu0 0
        %8259 = vmatprep.subr.bf16.mxu0 0
        %8260 = vmatpush1.bf16.msra.mxu0 0
        %8261 = vmatprep.subr.bf16.mxu0 0
        %8262 = vmatpush1.bf16.msra.mxu0 0
        %8263 = vmatprep.mubr.bf16.mxu0 0
        %8264 = vmatmul.mubr.bf16.gmra.mrb[0].mxu0 %v8229
        %v8265 = vpop.f32.mrb[0].mxu0
        %v8266 = vadd.f32 0.0, %v8265
        %v8267 = vpop.f32.mrb[0].mxu0
        %v8268 = vadd.f32 0.0, %v8267
        %v8269 = vpop.f32.mrb[0].mxu0
        %v8270 = vpop.f32.mrb[0].mxu0
        %8271 = vdwg.mxu0
        %8272 = vmatprep.subr.bf16.mxu0 %v8175
        %8273 = vmatpush1.bf16.msra.mxu0 %v8174
        %8274 = vmatprep.subr.bf16.mxu0 %v8182
        %8275 = vmatpush1.bf16.msra.mxu0 %v8181
        %8276 = vmatprep.subr.bf16.mxu0 %v8189
        %8277 = vmatpush1.bf16.msra.mxu0 %v8188
        %8278 = vmatprep.subr.bf16.mxu0 %v8196
        %8279 = vmatpush1.bf16.msra.mxu0 %v8195
        %8280 = vmatprep.subr.bf16.mxu0 0
        %8281 = vmatpush1.bf16.msra.mxu0 0
        %8282 = vmatprep.subr.bf16.mxu0 0
        %8283 = vmatpush1.bf16.msra.mxu0 0
        %8284 = vmatprep.subr.bf16.mxu0 0
        %8285 = vmatpush1.bf16.msra.mxu0 0
        %8286 = vmatprep.subr.bf16.mxu0 0
        %8287 = vmatpush1.bf16.msra.mxu0 0
        %8288 = vmatprep.subr.bf16.mxu0 0
        %8289 = vmatpush1.bf16.msra.mxu0 0
        %8290 = vmatprep.subr.bf16.mxu0 0
        %8291 = vmatpush1.bf16.msra.mxu0 0
        %8292 = vmatprep.subr.bf16.mxu0 0
        %8293 = vmatpush1.bf16.msra.mxu0 0
        %8294 = vmatprep.subr.bf16.mxu0 0
        %8295 = vmatpush1.bf16.msra.mxu0 0
        %8296 = vmatprep.subr.bf16.mxu0 0
        %8297 = vmatpush1.bf16.msra.mxu0 0
        %8298 = vmatprep.subr.bf16.mxu0 0
        %8299 = vmatpush1.bf16.msra.mxu0 0
        %8300 = vmatprep.subr.bf16.mxu0 0
        %8301 = vmatpush1.bf16.msra.mxu0 0
        %8302 = vmatprep.subr.bf16.mxu0 0
        %8303 = vmatpush1.bf16.msra.mxu0 0
        %8304 = vmatprep.mubr.bf16.mxu0 0
        %8305 = vmatmul.mubr.bf16.gmra.mrb[0].mxu0 %v8229
        %v8306 = vpop.f32.mrb[0].mxu0
        %v8307 = vadd.f32 0.0, %v8306
        %v8308 = vpop.f32.mrb[0].mxu0
        %v8309 = vadd.f32 0.0, %v8308
        %v8310 = vpop.f32.mrb[0].mxu0
        %v8311 = vpop.f32.mrb[0].mxu0
        %8312 = vdwg.mxu0
        %8313 = vmatprep.subr.bf16.mxu0 %v8177
        %8314 = vmatpush1.bf16.msra.mxu0 %v8176
        %8315 = vmatprep.subr.bf16.mxu0 %v8184
        %8316 = vmatpush1.bf16.msra.mxu0 %v8183
        %8317 = vmatprep.subr.bf16.mxu0 %v8191
        %8318 = vmatpush1.bf16.msra.mxu0 %v8190
        %8319 = vmatprep.subr.bf16.mxu0 %v8198
        %8320 = vmatpush1.bf16.msra.mxu0 %v8197
        %8321 = vmatprep.subr.bf16.mxu0 0
        %8322 = vmatpush1.bf16.msra.mxu0 0
        %8323 = vmatprep.subr.bf16.mxu0 0
        %8324 = vmatpush1.bf16.msra.mxu0 0
        %8325 = vmatprep.subr.bf16.mxu0 0
        %8326 = vmatpush1.bf16.msra.mxu0 0
        %8327 = vmatprep.subr.bf16.mxu0 0
        %8328 = vmatpush1.bf16.msra.mxu0 0
        %8329 = vmatprep.subr.bf16.mxu0 0
        %8330 = vmatpush1.bf16.msra.mxu0 0
        %8331 = vmatprep.subr.bf16.mxu0 0
        %8332 = vmatpush1.bf16.msra.mxu0 0
        %8333 = vmatprep.subr.bf16.mxu0 0
        %8334 = vmatpush1.bf16.msra.mxu0 0
        %8335 = vmatprep.subr.bf16.mxu0 0
        %8336 = vmatpush1.bf16.msra.mxu0 0
        %8337 = vmatprep.subr.bf16.mxu0 0
        %8338 = vmatpush1.bf16.msra.mxu0 0
        %8339 = vmatprep.subr.bf16.mxu0 0
        %8340 = vmatpush1.bf16.msra.mxu0 0
        %8341 = vmatprep.subr.bf16.mxu0 0
        %8342 = vmatpush1.bf16.msra.mxu0 0
        %8343 = vmatprep.subr.bf16.mxu0 0
        %8344 = vmatpush1.bf16.msra.mxu0 0
        %8345 = vmatprep.mubr.bf16.mxu0 0
        %8346 = vmatmul.mubr.bf16.gmra.mrb[0].mxu0 %v8229
        %v8347 = vpop.f32.mrb[0].mxu0
        %v8348 = vadd.f32 0.0, %v8347
        %v8349 = vpop.f32.mrb[0].mxu0
        %v8350 = vadd.f32 0.0, %v8349
        %v8351 = vpop.f32.mrb[0].mxu0
        %v8352 = vpop.f32.mrb[0].mxu0
        %8353 = vdwg.mxu0
        %8354 = vmatprep.subr.bf16.mxu0 0
        %8355 = vmatpush1.bf16.msra.mxu0 %v8178
        %8356 = vmatprep.subr.bf16.mxu0 0
        %8357 = vmatpush1.bf16.msra.mxu0 %v8185
        %8358 = vmatprep.subr.bf16.mxu0 0
        %8359 = vmatpush1.bf16.msra.mxu0 %v8192
        %8360 = vmatprep.subr.bf16.mxu0 0
        %8361 = vmatpush1.bf16.msra.mxu0 %v8199
        %8362 = vmatprep.subr.bf16.mxu0 0
        %8363 = vmatpush1.bf16.msra.mxu0 0
        %8364 = vmatprep.subr.bf16.mxu0 0
        %8365 = vmatpush1.bf16.msra.mxu0 0
        %8366 = vmatprep.subr.bf16.mxu0 0
        %8367 = vmatpush1.bf16.msra.mxu0 0
        %8368 = vmatprep.subr.bf16.mxu0 0
        %8369 = vmatpush1.bf16.msra.mxu0 0
        %8370 = vmatprep.subr.bf16.mxu0 0
        %8371 = vmatpush1.bf16.msra.mxu0 0
        %8372 = vmatprep.subr.bf16.mxu0 0
        %8373 = vmatpush1.bf16.msra.mxu0 0
        %8374 = vmatprep.subr.bf16.mxu0 0
        %8375 = vmatpush1.bf16.msra.mxu0 0
        %8376 = vmatprep.subr.bf16.mxu0 0
        %8377 = vmatpush1.bf16.msra.mxu0 0
        %8378 = vmatprep.subr.bf16.mxu0 0
        %8379 = vmatpush1.bf16.msra.mxu0 0
        %8380 = vmatprep.subr.bf16.mxu0 0
        %8381 = vmatpush1.bf16.msra.mxu0 0
        %8382 = vmatprep.subr.bf16.mxu0 0
        %8383 = vmatpush1.bf16.msra.mxu0 0
        %8384 = vmatprep.subr.bf16.mxu0 0
        %8385 = vmatpush1.bf16.msra.mxu0 0
        %8386 = vmatprep.mubr.bf16.mxu0 0
        %8387 = vmatmul.mubr.bf16.gmra.mrb[0].mxu0 %v8229
        %v8388 = vpop.f32.mrb[0].mxu0
        %v8389 = vadd.f32 0.0, %v8388
        %v8390 = vpop.f32.mrb[0].mxu0
        %v8391 = vpop.f32.mrb[0].mxu0
        %v8392 = vpop.f32.mrb[0].mxu0
        %8393 = vdwg.mxu0
        %v8401 = vcombine.low %v8266, %v8268
        %v8402 = vcombine.low %v8307, %v8309
        %v8403 = vcombine.low %v8348, %v8350
        %v8405 = vunpack.c.l.s4 1966171168
        %v8406 = vunpack.c.0.s8 %v8405
        %v8407 = vlaneseq
        %v8408 = vshrl.u32 %v8407, 7
        %v8409 = vsub.s32 %v8406, %v8408
        %v8410 = vrot.slane %v8401, %v8409
        %v8412 = vunpack.c.l.s4 1966171168
        %v8413 = vunpack.c.0.s8 %v8412
        %v8414 = vlaneseq
        %v8415 = vshrl.u32 %v8414, 7
        %v8416 = vsub.s32 %v8413, %v8415
        %v8417 = vrot.slane %v8402, %v8416
        %v8419 = vunpack.c.l.s4 1966171168
        %v8420 = vunpack.c.0.s8 %v8419
        %v8421 = vlaneseq
        %v8422 = vshrl.u32 %v8421, 7
        %v8423 = vsub.s32 %v8420, %v8422
        %v8424 = vrot.slane %v8403, %v8423
        %v8426 = vunpack.c.l.s4 1966171168
        %v8427 = vunpack.c.0.s8 %v8426
        %v8428 = vlaneseq
        %v8429 = vshrl.u32 %v8428, 7
        %v8430 = vsub.s32 %v8427, %v8429
        %v8431 = vrot.slane %v8389, %v8430
        %v8432 = vcombine.low %v8410, %v8417
        %v8433 = vcombine.low %v8424, %v8431
        %v8435 = vunpack.c.l.s4 1966171168
        %v8436 = vunpack.c.0.s8 %v8435
        %v8437 = vlaneseq
        %v8438 = vshrl.u32 %v8437, 7
        %v8439 = vsub.s32 %v8436, %v8438
        %v8440 = vrot.slane %v8432, %v8439
        %v8442 = vunpack.c.l.s4 1966171168
        %v8443 = vunpack.c.0.s8 %v8442
        %v8444 = vlaneseq
        %v8445 = vshrl.u32 %v8444, 7
        %v8446 = vsub.s32 %v8443, %v8445
        %v8447 = vrot.slane %v8433, %v8446
        %v8448 = vcombine.low %v8440, %v8447
        %v8450 = vadd.f32 %v6994, %v8448
        %s8451 = scalar_lea.vmem %s352, 4704 [#allocation8]
        %v8452 = vld [vmem:[%s8451] sm:$0xff]
        %v8453 = vld [vmem:[%s8451 + $0x8] sm:$0xff]
        %v8454 = vld [vmem:[%s8451 + $0x10] sm:$0xff]
        %v8455 = vld [vmem:[%s8451 + $0x18] sm:$0xf]
        %v8456 = vld [vmem:[%s8451 + $0x1c] sm:$0xff]
        %v8457 = vld [vmem:[%s8451 + $0x24] sm:$0xff]
        %v8458 = vld [vmem:[%s8451 + $0x2c] sm:$0xff]
        %v8459 = vld [vmem:[%s8451 + $0x34] sm:$0xf]
        %v8460 = vld [vmem:[%s8451 + $0x38] sm:$0xff]
        %v8461 = vld [vmem:[%s8451 + $0x40] sm:$0xff]
        %v8462 = vld [vmem:[%s8451 + $0x48] sm:$0xff]
        %v8463 = vld [vmem:[%s8451 + $0x50] sm:$0xf]
        %v8464 = vld [vmem:[%s8451 + $0x54] sm:$0xff]
        %v8465 = vld [vmem:[%s8451 + $0x5c] sm:$0xff]
        %v8466 = vld [vmem:[%s8451 + $0x64] sm:$0xff]
        %v8467 = vld [vmem:[%s8451 + $0x6c] sm:$0xf]
        %v8468 = vld [vmem:[%s8451 + $0x70] sm:$0xff]
        %v8469 = vld [vmem:[%s8451 + $0x78] sm:$0xff]
        %v8470 = vld [vmem:[%s8451 + $0x80] sm:$0xff]
        %v8471 = vld [vmem:[%s8451 + $0x88] sm:$0xf]
        %v8472 = vld [vmem:[%s8451 + $0x8c] sm:$0xff]
        %v8473 = vld [vmem:[%s8451 + $0x94] sm:$0xff]
        %v8474 = vld [vmem:[%s8451 + $0x9c] sm:$0xff]
        %v8475 = vld [vmem:[%s8451 + $0xa4] sm:$0xf]
        %v8476 = vld [vmem:[%s8451 + $0xa8] sm:$0xff]
        %v8477 = vld [vmem:[%s8451 + $0xb0] sm:$0xff]
        %v8478 = vld [vmem:[%s8451 + $0xb8] sm:$0xff]
        %v8479 = vld [vmem:[%s8451 + $0xc0] sm:$0xf]
        %v8480 = vld [vmem:[%s8451 + $0xc4] sm:$0xff]
        %v8481 = vld [vmem:[%s8451 + $0xcc] sm:$0xff]
        %v8482 = vld [vmem:[%s8451 + $0xd4] sm:$0xff]
        %v8483 = vld [vmem:[%s8451 + $0xdc] sm:$0xf]
        %v8484 = vrot.slane %v7028, 2
        %v8517 = vunpack.c.l.b16 %v8452
        %v8518 = vunpack.c.h.b16 %v8452
        %v8519 = vunpack.c.l.b16 %v8453
        %v8520 = vunpack.c.h.b16 %v8453
        %v8521 = vunpack.c.l.b16 %v8454
        %v8522 = vunpack.c.h.b16 %v8454
        %v8523 = vunpack.c.l.b16 %v8455
        %v8524 = vunpack.c.l.b16 %v8456
        %v8525 = vunpack.c.h.b16 %v8456
        %v8526 = vunpack.c.l.b16 %v8457
        %v8527 = vunpack.c.h.b16 %v8457
        %v8528 = vunpack.c.l.b16 %v8458
        %v8529 = vunpack.c.h.b16 %v8458
        %v8530 = vunpack.c.l.b16 %v8459
        %v8531 = vunpack.c.l.b16 %v8460
        %v8532 = vunpack.c.h.b16 %v8460
        %v8533 = vunpack.c.l.b16 %v8461
        %v8534 = vunpack.c.h.b16 %v8461
        %v8535 = vunpack.c.l.b16 %v8462
        %v8536 = vunpack.c.h.b16 %v8462
        %v8537 = vunpack.c.l.b16 %v8463
        %v8538 = vunpack.c.l.b16 %v8464
        %v8539 = vunpack.c.h.b16 %v8464
        %v8540 = vunpack.c.l.b16 %v8465
        %v8541 = vunpack.c.h.b16 %v8465
        %v8542 = vunpack.c.l.b16 %v8466
        %v8543 = vunpack.c.h.b16 %v8466
        %v8544 = vunpack.c.l.b16 %v8467
        %v8545 = vunpack.c.l.b16 %v8468
        %v8546 = vunpack.c.h.b16 %v8468
        %v8547 = vunpack.c.l.b16 %v8469
        %v8548 = vunpack.c.h.b16 %v8469
        %v8549 = vunpack.c.l.b16 %v8470
        %v8550 = vunpack.c.h.b16 %v8470
        %v8551 = vunpack.c.l.b16 %v8471
        %v8552 = vunpack.c.l.b16 %v8472
        %v8553 = vunpack.c.h.b16 %v8472
        %v8554 = vunpack.c.l.b16 %v8473
        %v8555 = vunpack.c.h.b16 %v8473
        %v8556 = vunpack.c.l.b16 %v8474
        %v8557 = vunpack.c.h.b16 %v8474
        %v8558 = vunpack.c.l.b16 %v8475
        %v8559 = vunpack.c.l.b16 %v8476
        %v8560 = vunpack.c.h.b16 %v8476
        %v8561 = vunpack.c.l.b16 %v8477
        %v8562 = vunpack.c.h.b16 %v8477
        %v8563 = vunpack.c.l.b16 %v8478
        %v8564 = vunpack.c.h.b16 %v8478
        %v8565 = vunpack.c.l.b16 %v8479
        %v8566 = vunpack.c.l.b16 %v8480
        %v8567 = vunpack.c.h.b16 %v8480
        %v8568 = vunpack.c.l.b16 %v8481
        %v8569 = vunpack.c.h.b16 %v8481
        %v8570 = vunpack.c.l.b16 %v8482
        %v8571 = vunpack.c.h.b16 %v8482
        %v8572 = vunpack.c.l.b16 %v8483
        %v8573 = vpack.c.b16 %v8524, %v8517
        %v8574 = vpack.c.b16 %v8525, %v8518
        %v8575 = vpack.c.b16 %v8526, %v8519
        %v8576 = vpack.c.b16 %v8527, %v8520
        %v8577 = vpack.c.b16 %v8528, %v8521
        %v8578 = vpack.c.b16 %v8529, %v8522
        %v8579 = vpack.c.b16 %v8530, %v8523
        %v8580 = vpack.c.b16 %v8538, %v8531
        %v8581 = vpack.c.b16 %v8539, %v8532
        %v8582 = vpack.c.b16 %v8540, %v8533
        %v8583 = vpack.c.b16 %v8541, %v8534
        %v8584 = vpack.c.b16 %v8542, %v8535
        %v8585 = vpack.c.b16 %v8543, %v8536
        %v8586 = vpack.c.b16 %v8544, %v8537
        %v8587 = vpack.c.b16 %v8552, %v8545
        %v8588 = vpack.c.b16 %v8553, %v8546
        %v8589 = vpack.c.b16 %v8554, %v8547
        %v8590 = vpack.c.b16 %v8555, %v8548
        %v8591 = vpack.c.b16 %v8556, %v8549
        %v8592 = vpack.c.b16 %v8557, %v8550
        %v8593 = vpack.c.b16 %v8558, %v8551
        %v8594 = vpack.c.b16 %v8566, %v8559
        %v8595 = vpack.c.b16 %v8567, %v8560
        %v8596 = vpack.c.b16 %v8568, %v8561
        %v8597 = vpack.c.b16 %v8569, %v8562
        %v8598 = vpack.c.b16 %v8570, %v8563
        %v8599 = vpack.c.b16 %v8571, %v8564
        %v8600 = vpack.c.b16 %v8572, %v8565
        %v8630 = vsel %vm996, %v8484, 0
        %8632 = vmatprep.subr.bf16.mxu0 %v8574
        %8633 = vmatpush1.bf16.msra.mxu0 %v8573
        %8634 = vmatprep.subr.bf16.mxu0 %v8581
        %8635 = vmatpush1.bf16.msra.mxu0 %v8580
        %8636 = vmatprep.subr.bf16.mxu0 %v8588
        %8637 = vmatpush1.bf16.msra.mxu0 %v8587
        %8638 = vmatprep.subr.bf16.mxu0 %v8595
        %8639 = vmatpush1.bf16.msra.mxu0 %v8594
        %8640 = vmatprep.subr.bf16.mxu0 0
        %8641 = vmatpush1.bf16.msra.mxu0 0
        %8642 = vmatprep.subr.bf16.mxu0 0
        %8643 = vmatpush1.bf16.msra.mxu0 0
        %8644 = vmatprep.subr.bf16.mxu0 0
        %8645 = vmatpush1.bf16.msra.mxu0 0
        %8646 = vmatprep.subr.bf16.mxu0 0
        %8647 = vmatpush1.bf16.msra.mxu0 0
        %8648 = vmatprep.subr.bf16.mxu0 0
        %8649 = vmatpush1.bf16.msra.mxu0 0
        %8650 = vmatprep.subr.bf16.mxu0 0
        %8651 = vmatpush1.bf16.msra.mxu0 0
        %8652 = vmatprep.subr.bf16.mxu0 0
        %8653 = vmatpush1.bf16.msra.mxu0 0
        %8654 = vmatprep.subr.bf16.mxu0 0
        %8655 = vmatpush1.bf16.msra.mxu0 0
        %8656 = vmatprep.subr.bf16.mxu0 0
        %8657 = vmatpush1.bf16.msra.mxu0 0
        %8658 = vmatprep.subr.bf16.mxu0 0
        %8659 = vmatpush1.bf16.msra.mxu0 0
        %8660 = vmatprep.subr.bf16.mxu0 0
        %8661 = vmatpush1.bf16.msra.mxu0 0
        %8662 = vmatprep.subr.bf16.mxu0 0
        %8663 = vmatpush1.bf16.msra.mxu0 0
        %8664 = vmatprep.mubr.bf16.mxu0 0
        %8665 = vmatmul.mubr.bf16.gmra.mrb[0].mxu0 %v8630
        %v8666 = vpop.f32.mrb[0].mxu0
        %v8667 = vadd.f32 0.0, %v8666
        %v8668 = vpop.f32.mrb[0].mxu0
        %v8669 = vadd.f32 0.0, %v8668
        %v8670 = vpop.f32.mrb[0].mxu0
        %v8671 = vpop.f32.mrb[0].mxu0
        %8672 = vdwg.mxu0
        %8673 = vmatprep.subr.bf16.mxu0 %v8576
        %8674 = vmatpush1.bf16.msra.mxu0 %v8575
        %8675 = vmatprep.subr.bf16.mxu0 %v8583
        %8676 = vmatpush1.bf16.msra.mxu0 %v8582
        %8677 = vmatprep.subr.bf16.mxu0 %v8590
        %8678 = vmatpush1.bf16.msra.mxu0 %v8589
        %8679 = vmatprep.subr.bf16.mxu0 %v8597
        %8680 = vmatpush1.bf16.msra.mxu0 %v8596
        %8681 = vmatprep.subr.bf16.mxu0 0
        %8682 = vmatpush1.bf16.msra.mxu0 0
        %8683 = vmatprep.subr.bf16.mxu0 0
        %8684 = vmatpush1.bf16.msra.mxu0 0
        %8685 = vmatprep.subr.bf16.mxu0 0
        %8686 = vmatpush1.bf16.msra.mxu0 0
        %8687 = vmatprep.subr.bf16.mxu0 0
        %8688 = vmatpush1.bf16.msra.mxu0 0
        %8689 = vmatprep.subr.bf16.mxu0 0
        %8690 = vmatpush1.bf16.msra.mxu0 0
        %8691 = vmatprep.subr.bf16.mxu0 0
        %8692 = vmatpush1.bf16.msra.mxu0 0
        %8693 = vmatprep.subr.bf16.mxu0 0
        %8694 = vmatpush1.bf16.msra.mxu0 0
        %8695 = vmatprep.subr.bf16.mxu0 0
        %8696 = vmatpush1.bf16.msra.mxu0 0
        %8697 = vmatprep.subr.bf16.mxu0 0
        %8698 = vmatpush1.bf16.msra.mxu0 0
        %8699 = vmatprep.subr.bf16.mxu0 0
        %8700 = vmatpush1.bf16.msra.mxu0 0
        %8701 = vmatprep.subr.bf16.mxu0 0
        %8702 = vmatpush1.bf16.msra.mxu0 0
        %8703 = vmatprep.subr.bf16.mxu0 0
        %8704 = vmatpush1.bf16.msra.mxu0 0
        %8705 = vmatprep.mubr.bf16.mxu0 0
        %8706 = vmatmul.mubr.bf16.gmra.mrb[0].mxu0 %v8630
        %v8707 = vpop.f32.mrb[0].mxu0
        %v8708 = vadd.f32 0.0, %v8707
        %v8709 = vpop.f32.mrb[0].mxu0
        %v8710 = vadd.f32 0.0, %v8709
        %v8711 = vpop.f32.mrb[0].mxu0
        %v8712 = vpop.f32.mrb[0].mxu0
        %8713 = vdwg.mxu0
        %8714 = vmatprep.subr.bf16.mxu0 %v8578
        %8715 = vmatpush1.bf16.msra.mxu0 %v8577
        %8716 = vmatprep.subr.bf16.mxu0 %v8585
        %8717 = vmatpush1.bf16.msra.mxu0 %v8584
        %8718 = vmatprep.subr.bf16.mxu0 %v8592
        %8719 = vmatpush1.bf16.msra.mxu0 %v8591
        %8720 = vmatprep.subr.bf16.mxu0 %v8599
        %8721 = vmatpush1.bf16.msra.mxu0 %v8598
        %8722 = vmatprep.subr.bf16.mxu0 0
        %8723 = vmatpush1.bf16.msra.mxu0 0
        %8724 = vmatprep.subr.bf16.mxu0 0
        %8725 = vmatpush1.bf16.msra.mxu0 0
        %8726 = vmatprep.subr.bf16.mxu0 0
        %8727 = vmatpush1.bf16.msra.mxu0 0
        %8728 = vmatprep.subr.bf16.mxu0 0
        %8729 = vmatpush1.bf16.msra.mxu0 0
        %8730 = vmatprep.subr.bf16.mxu0 0
        %8731 = vmatpush1.bf16.msra.mxu0 0
        %8732 = vmatprep.subr.bf16.mxu0 0
        %8733 = vmatpush1.bf16.msra.mxu0 0
        %8734 = vmatprep.subr.bf16.mxu0 0
        %8735 = vmatpush1.bf16.msra.mxu0 0
        %8736 = vmatprep.subr.bf16.mxu0 0
        %8737 = vmatpush1.bf16.msra.mxu0 0
        %8738 = vmatprep.subr.bf16.mxu0 0
        %8739 = vmatpush1.bf16.msra.mxu0 0
        %8740 = vmatprep.subr.bf16.mxu0 0
        %8741 = vmatpush1.bf16.msra.mxu0 0
        %8742 = vmatprep.subr.bf16.mxu0 0
        %8743 = vmatpush1.bf16.msra.mxu0 0
        %8744 = vmatprep.subr.bf16.mxu0 0
        %8745 = vmatpush1.bf16.msra.mxu0 0
        %8746 = vmatprep.mubr.bf16.mxu0 0
        %8747 = vmatmul.mubr.bf16.gmra.mrb[0].mxu0 %v8630
        %v8748 = vpop.f32.mrb[0].mxu0
        %v8749 = vadd.f32 0.0, %v8748
        %v8750 = vpop.f32.mrb[0].mxu0
        %v8751 = vadd.f32 0.0, %v8750
        %v8752 = vpop.f32.mrb[0].mxu0
        %v8753 = vpop.f32.mrb[0].mxu0
        %8754 = vdwg.mxu0
        %8755 = vmatprep.subr.bf16.mxu0 0
        %8756 = vmatpush1.bf16.msra.mxu0 %v8579
        %8757 = vmatprep.subr.bf16.mxu0 0
        %8758 = vmatpush1.bf16.msra.mxu0 %v8586
        %8759 = vmatprep.subr.bf16.mxu0 0
        %8760 = vmatpush1.bf16.msra.mxu0 %v8593
        %8761 = vmatprep.subr.bf16.mxu0 0
        %8762 = vmatpush1.bf16.msra.mxu0 %v8600
        %8763 = vmatprep.subr.bf16.mxu0 0
        %8764 = vmatpush1.bf16.msra.mxu0 0
        %8765 = vmatprep.subr.bf16.mxu0 0
        %8766 = vmatpush1.bf16.msra.mxu0 0
        %8767 = vmatprep.subr.bf16.mxu0 0
        %8768 = vmatpush1.bf16.msra.mxu0 0
        %8769 = vmatprep.subr.bf16.mxu0 0
        %8770 = vmatpush1.bf16.msra.mxu0 0
        %8771 = vmatprep.subr.bf16.mxu0 0
        %8772 = vmatpush1.bf16.msra.mxu0 0
        %8773 = vmatprep.subr.bf16.mxu0 0
        %8774 = vmatpush1.bf16.msra.mxu0 0
        %8775 = vmatprep.subr.bf16.mxu0 0
        %8776 = vmatpush1.bf16.msra.mxu0 0
        %8777 = vmatprep.subr.bf16.mxu0 0
        %8778 = vmatpush1.bf16.msra.mxu0 0
        %8779 = vmatprep.subr.bf16.mxu0 0
        %8780 = vmatpush1.bf16.msra.mxu0 0
        %8781 = vmatprep.subr.bf16.mxu0 0
        %8782 = vmatpush1.bf16.msra.mxu0 0
        %8783 = vmatprep.subr.bf16.mxu0 0
        %8784 = vmatpush1.bf16.msra.mxu0 0
        %8785 = vmatprep.subr.bf16.mxu0 0
        %8786 = vmatpush1.bf16.msra.mxu0 0
        %8787 = vmatprep.mubr.bf16.mxu0 0
        %8788 = vmatmul.mubr.bf16.gmra.mrb[0].mxu0 %v8630
        %v8789 = vpop.f32.mrb[0].mxu0
        %v8790 = vadd.f32 0.0, %v8789
        %v8791 = vpop.f32.mrb[0].mxu0
        %v8792 = vpop.f32.mrb[0].mxu0
        %v8793 = vpop.f32.mrb[0].mxu0
        %8794 = vdwg.mxu0
        %v8795 = vadd.f32 %v7340, %v8667
        %v8796 = vadd.f32 %v7341, %v8669
        %v8797 = vadd.f32 %v7342, %v8708
        %v8798 = vadd.f32 %v7343, %v8710
        %v8799 = vadd.f32 %v7344, %v8749
        %v8800 = vadd.f32 %v7345, %v8751
        %v8801 = vadd.f32 %v7346, %v8790
        %s8802 = scalar_lea.vmem %s352, 4928 [#allocation8]
        %v8803 = vld [vmem:[%s8802] sm:$0xff]
        %v8804 = vld [vmem:[%s8802 + $0x8] sm:$0xff]
        %v8805 = vld [vmem:[%s8802 + $0x10] sm:$0xff]
        %v8806 = vld [vmem:[%s8802 + $0x18] sm:$0xf]
        %v8807 = vld [vmem:[%s8802 + $0x1c] sm:$0xff]
        %v8808 = vld [vmem:[%s8802 + $0x24] sm:$0xff]
        %v8809 = vld [vmem:[%s8802 + $0x2c] sm:$0xff]
        %v8810 = vld [vmem:[%s8802 + $0x34] sm:$0xf]
        %v8811 = vld [vmem:[%s8802 + $0x38] sm:$0xff]
        %v8812 = vld [vmem:[%s8802 + $0x40] sm:$0xff]
        %v8813 = vld [vmem:[%s8802 + $0x48] sm:$0xff]
        %v8814 = vld [vmem:[%s8802 + $0x50] sm:$0xf]
        %v8815 = vld [vmem:[%s8802 + $0x54] sm:$0xff]
        %v8816 = vld [vmem:[%s8802 + $0x5c] sm:$0xff]
        %v8817 = vld [vmem:[%s8802 + $0x64] sm:$0xff]
        %v8818 = vld [vmem:[%s8802 + $0x6c] sm:$0xf]
        %v8819 = vld [vmem:[%s8802 + $0x70] sm:$0xff]
        %v8820 = vld [vmem:[%s8802 + $0x78] sm:$0xff]
        %v8821 = vld [vmem:[%s8802 + $0x80] sm:$0xff]
        %v8822 = vld [vmem:[%s8802 + $0x88] sm:$0xf]
        %v8823 = vld [vmem:[%s8802 + $0x8c] sm:$0xff]
        %v8824 = vld [vmem:[%s8802 + $0x94] sm:$0xff]
        %v8825 = vld [vmem:[%s8802 + $0x9c] sm:$0xff]
        %v8826 = vld [vmem:[%s8802 + $0xa4] sm:$0xf]
        %v8827 = vld [vmem:[%s8802 + $0xa8] sm:$0xff]
        %v8828 = vld [vmem:[%s8802 + $0xb0] sm:$0xff]
        %v8829 = vld [vmem:[%s8802 + $0xb8] sm:$0xff]
        %v8830 = vld [vmem:[%s8802 + $0xc0] sm:$0xf]
        %v8831 = vld [vmem:[%s8802 + $0xc4] sm:$0xff]
        %v8832 = vld [vmem:[%s8802 + $0xcc] sm:$0xff]
        %v8833 = vld [vmem:[%s8802 + $0xd4] sm:$0xff]
        %v8834 = vld [vmem:[%s8802 + $0xdc] sm:$0xf]
        %v8835 = vrot.slane %v818, 3
        %v8868 = vunpack.c.l.b16 %v8803
        %v8869 = vunpack.c.h.b16 %v8803
        %v8870 = vunpack.c.l.b16 %v8804
        %v8871 = vunpack.c.h.b16 %v8804
        %v8872 = vunpack.c.l.b16 %v8805
        %v8873 = vunpack.c.h.b16 %v8805
        %v8874 = vunpack.c.l.b16 %v8806
        %v8875 = vunpack.c.l.b16 %v8807
        %v8876 = vunpack.c.h.b16 %v8807
        %v8877 = vunpack.c.l.b16 %v8808
        %v8878 = vunpack.c.h.b16 %v8808
        %v8879 = vunpack.c.l.b16 %v8809
        %v8880 = vunpack.c.h.b16 %v8809
        %v8881 = vunpack.c.l.b16 %v8810
        %v8882 = vunpack.c.l.b16 %v8811
        %v8883 = vunpack.c.h.b16 %v8811
        %v8884 = vunpack.c.l.b16 %v8812
        %v8885 = vunpack.c.h.b16 %v8812
        %v8886 = vunpack.c.l.b16 %v8813
        %v8887 = vunpack.c.h.b16 %v8813
        %v8888 = vunpack.c.l.b16 %v8814
        %v8889 = vunpack.c.l.b16 %v8815
        %v8890 = vunpack.c.h.b16 %v8815
        %v8891 = vunpack.c.l.b16 %v8816
        %v8892 = vunpack.c.h.b16 %v8816
        %v8893 = vunpack.c.l.b16 %v8817
        %v8894 = vunpack.c.h.b16 %v8817
        %v8895 = vunpack.c.l.b16 %v8818
        %v8896 = vunpack.c.l.b16 %v8819
        %v8897 = vunpack.c.h.b16 %v8819
        %v8898 = vunpack.c.l.b16 %v8820
        %v8899 = vunpack.c.h.b16 %v8820
        %v8900 = vunpack.c.l.b16 %v8821
        %v8901 = vunpack.c.h.b16 %v8821
        %v8902 = vunpack.c.l.b16 %v8822
        %v8903 = vunpack.c.l.b16 %v8823
        %v8904 = vunpack.c.h.b16 %v8823
        %v8905 = vunpack.c.l.b16 %v8824
        %v8906 = vunpack.c.h.b16 %v8824
        %v8907 = vunpack.c.l.b16 %v8825
        %v8908 = vunpack.c.h.b16 %v8825
        %v8909 = vunpack.c.l.b16 %v8826
        %v8910 = vunpack.c.l.b16 %v8827
        %v8911 = vunpack.c.h.b16 %v8827
        %v8912 = vunpack.c.l.b16 %v8828
        %v8913 = vunpack.c.h.b16 %v8828
        %v8914 = vunpack.c.l.b16 %v8829
        %v8915 = vunpack.c.h.b16 %v8829
        %v8916 = vunpack.c.l.b16 %v8830
        %v8917 = vunpack.c.l.b16 %v8831
        %v8918 = vunpack.c.h.b16 %v8831
        %v8919 = vunpack.c.l.b16 %v8832
        %v8920 = vunpack.c.h.b16 %v8832
        %v8921 = vunpack.c.l.b16 %v8833
        %v8922 = vunpack.c.h.b16 %v8833
        %v8923 = vunpack.c.l.b16 %v8834
        %v8924 = vpack.c.b16 %v8875, %v8868
        %v8925 = vpack.c.b16 %v8876, %v8869
        %v8926 = vpack.c.b16 %v8877, %v8870
        %v8927 = vpack.c.b16 %v8878, %v8871
        %v8928 = vpack.c.b16 %v8879, %v8872
        %v8929 = vpack.c.b16 %v8880, %v8873
        %v8930 = vpack.c.b16 %v8881, %v8874
        %v8931 = vpack.c.b16 %v8889, %v8882
        %v8932 = vpack.c.b16 %v8890, %v8883
        %v8933 = vpack.c.b16 %v8891, %v8884
        %v8934 = vpack.c.b16 %v8892, %v8885
        %v8935 = vpack.c.b16 %v8893, %v8886
        %v8936 = vpack.c.b16 %v8894, %v8887
        %v8937 = vpack.c.b16 %v8895, %v8888
        %v8938 = vpack.c.b16 %v8903, %v8896
        %v8939 = vpack.c.b16 %v8904, %v8897
        %v8940 = vpack.c.b16 %v8905, %v8898
        %v8941 = vpack.c.b16 %v8906, %v8899
        %v8942 = vpack.c.b16 %v8907, %v8900
        %v8943 = vpack.c.b16 %v8908, %v8901
        %v8944 = vpack.c.b16 %v8909, %v8902
        %v8945 = vpack.c.b16 %v8917, %v8910
        %v8946 = vpack.c.b16 %v8918, %v8911
        %v8947 = vpack.c.b16 %v8919, %v8912
        %v8948 = vpack.c.b16 %v8920, %v8913
        %v8949 = vpack.c.b16 %v8921, %v8914
        %v8950 = vpack.c.b16 %v8922, %v8915
        %v8951 = vpack.c.b16 %v8923, %v8916
        %v8981 = vsel %vm996, %v8835, 0
        %8983 = vmatprep.subr.bf16.mxu0 %v8925
        %8984 = vmatpush1.bf16.msra.mxu0 %v8924
        %8985 = vmatprep.subr.bf16.mxu0 %v8932
        %8986 = vmatpush1.bf16.msra.mxu0 %v8931
        %8987 = vmatprep.subr.bf16.mxu0 %v8939
        %8988 = vmatpush1.bf16.msra.mxu0 %v8938
        %8989 = vmatprep.subr.bf16.mxu0 %v8946
        %8990 = vmatpush1.bf16.msra.mxu0 %v8945
        %8991 = vmatprep.subr.bf16.mxu0 0
        %8992 = vmatpush1.bf16.msra.mxu0 0
        %8993 = vmatprep.subr.bf16.mxu0 0
        %8994 = vmatpush1.bf16.msra.mxu0 0
        %8995 = vmatprep.subr.bf16.mxu0 0
        %8996 = vmatpush1.bf16.msra.mxu0 0
        %8997 = vmatprep.subr.bf16.mxu0 0
        %8998 = vmatpush1.bf16.msra.mxu0 0
        %8999 = vmatprep.subr.bf16.mxu0 0
        %9000 = vmatpush1.bf16.msra.mxu0 0
        %9001 = vmatprep.subr.bf16.mxu0 0
        %9002 = vmatpush1.bf16.msra.mxu0 0
        %9003 = vmatprep.subr.bf16.mxu0 0
        %9004 = vmatpush1.bf16.msra.mxu0 0
        %9005 = vmatprep.subr.bf16.mxu0 0
        %9006 = vmatpush1.bf16.msra.mxu0 0
        %9007 = vmatprep.subr.bf16.mxu0 0
        %9008 = vmatpush1.bf16.msra.mxu0 0
        %9009 = vmatprep.subr.bf16.mxu0 0
        %9010 = vmatpush1.bf16.msra.mxu0 0
        %9011 = vmatprep.subr.bf16.mxu0 0
        %9012 = vmatpush1.bf16.msra.mxu0 0
        %9013 = vmatprep.subr.bf16.mxu0 0
        %9014 = vmatpush1.bf16.msra.mxu0 0
        %9015 = vmatprep.mubr.bf16.mxu0 0
        %9016 = vmatmul.mubr.bf16.gmra.mrb[0].mxu0 %v8981
        %v9017 = vpop.f32.mrb[0].mxu0
        %v9018 = vadd.f32 0.0, %v9017
        %v9019 = vpop.f32.mrb[0].mxu0
        %v9020 = vadd.f32 0.0, %v9019
        %v9021 = vpop.f32.mrb[0].mxu0
        %v9022 = vpop.f32.mrb[0].mxu0
        %9023 = vdwg.mxu0
        %9024 = vmatprep.subr.bf16.mxu0 %v8927
        %9025 = vmatpush1.bf16.msra.mxu0 %v8926
        %9026 = vmatprep.subr.bf16.mxu0 %v8934
        %9027 = vmatpush1.bf16.msra.mxu0 %v8933
        %9028 = vmatprep.subr.bf16.mxu0 %v8941
        %9029 = vmatpush1.bf16.msra.mxu0 %v8940
        %9030 = vmatprep.subr.bf16.mxu0 %v8948
        %9031 = vmatpush1.bf16.msra.mxu0 %v8947
        %9032 = vmatprep.subr.bf16.mxu0 0
        %9033 = vmatpush1.bf16.msra.mxu0 0
        %9034 = vmatprep.subr.bf16.mxu0 0
        %9035 = vmatpush1.bf16.msra.mxu0 0
        %9036 = vmatprep.subr.bf16.mxu0 0
        %9037 = vmatpush1.bf16.msra.mxu0 0
        %9038 = vmatprep.subr.bf16.mxu0 0
        %9039 = vmatpush1.bf16.msra.mxu0 0
        %9040 = vmatprep.subr.bf16.mxu0 0
        %9041 = vmatpush1.bf16.msra.mxu0 0
        %9042 = vmatprep.subr.bf16.mxu0 0
        %9043 = vmatpush1.bf16.msra.mxu0 0
        %9044 = vmatprep.subr.bf16.mxu0 0
        %9045 = vmatpush1.bf16.msra.mxu0 0
        %9046 = vmatprep.subr.bf16.mxu0 0
        %9047 = vmatpush1.bf16.msra.mxu0 0
        %9048 = vmatprep.subr.bf16.mxu0 0
        %9049 = vmatpush1.bf16.msra.mxu0 0
        %9050 = vmatprep.subr.bf16.mxu0 0
        %9051 = vmatpush1.bf16.msra.mxu0 0
        %9052 = vmatprep.subr.bf16.mxu0 0
        %9053 = vmatpush1.bf16.msra.mxu0 0
        %9054 = vmatprep.subr.bf16.mxu0 0
        %9055 = vmatpush1.bf16.msra.mxu0 0
        %9056 = vmatprep.mubr.bf16.mxu0 0
        %9057 = vmatmul.mubr.bf16.gmra.mrb[0].mxu0 %v8981
        %v9058 = vpop.f32.mrb[0].mxu0
        %v9059 = vadd.f32 0.0, %v9058
        %v9060 = vpop.f32.mrb[0].mxu0
        %v9061 = vadd.f32 0.0, %v9060
        %v9062 = vpop.f32.mrb[0].mxu0
        %v9063 = vpop.f32.mrb[0].mxu0
        %9064 = vdwg.mxu0
        %9065 = vmatprep.subr.bf16.mxu0 %v8929
        %9066 = vmatpush1.bf16.msra.mxu0 %v8928
        %9067 = vmatprep.subr.bf16.mxu0 %v8936
        %9068 = vmatpush1.bf16.msra.mxu0 %v8935
        %9069 = vmatprep.subr.bf16.mxu0 %v8943
        %9070 = vmatpush1.bf16.msra.mxu0 %v8942
        %9071 = vmatprep.subr.bf16.mxu0 %v8950
        %9072 = vmatpush1.bf16.msra.mxu0 %v8949
        %9073 = vmatprep.subr.bf16.mxu0 0
        %9074 = vmatpush1.bf16.msra.mxu0 0
        %9075 = vmatprep.subr.bf16.mxu0 0
        %9076 = vmatpush1.bf16.msra.mxu0 0
        %9077 = vmatprep.subr.bf16.mxu0 0
        %9078 = vmatpush1.bf16.msra.mxu0 0
        %9079 = vmatprep.subr.bf16.mxu0 0
        %9080 = vmatpush1.bf16.msra.mxu0 0
        %9081 = vmatprep.subr.bf16.mxu0 0
        %9082 = vmatpush1.bf16.msra.mxu0 0
        %9083 = vmatprep.subr.bf16.mxu0 0
        %9084 = vmatpush1.bf16.msra.mxu0 0
        %9085 = vmatprep.subr.bf16.mxu0 0
        %9086 = vmatpush1.bf16.msra.mxu0 0
        %9087 = vmatprep.subr.bf16.mxu0 0
        %9088 = vmatpush1.bf16.msra.mxu0 0
        %9089 = vmatprep.subr.bf16.mxu0 0
        %9090 = vmatpush1.bf16.msra.mxu0 0
        %9091 = vmatprep.subr.bf16.mxu0 0
        %9092 = vmatpush1.bf16.msra.mxu0 0
        %9093 = vmatprep.subr.bf16.mxu0 0
        %9094 = vmatpush1.bf16.msra.mxu0 0
        %9095 = vmatprep.subr.bf16.mxu0 0
        %9096 = vmatpush1.bf16.msra.mxu0 0
        %9097 = vmatprep.mubr.bf16.mxu0 0
        %9098 = vmatmul.mubr.bf16.gmra.mrb[0].mxu0 %v8981
        %v9099 = vpop.f32.mrb[0].mxu0
        %v9100 = vadd.f32 0.0, %v9099
        %v9101 = vpop.f32.mrb[0].mxu0
        %v9102 = vadd.f32 0.0, %v9101
        %v9103 = vpop.f32.mrb[0].mxu0
        %v9104 = vpop.f32.mrb[0].mxu0
        %9105 = vdwg.mxu0
        %9106 = vmatprep.subr.bf16.mxu0 0
        %9107 = vmatpush1.bf16.msra.mxu0 %v8930
        %9108 = vmatprep.subr.bf16.mxu0 0
        %9109 = vmatpush1.bf16.msra.mxu0 %v8937
        %9110 = vmatprep.subr.bf16.mxu0 0
        %9111 = vmatpush1.bf16.msra.mxu0 %v8944
        %9112 = vmatprep.subr.bf16.mxu0 0
        %9113 = vmatpush1.bf16.msra.mxu0 %v8951
        %9114 = vmatprep.subr.bf16.mxu0 0
        %9115 = vmatpush1.bf16.msra.mxu0 0
        %9116 = vmatprep.subr.bf16.mxu0 0
        %9117 = vmatpush1.bf16.msra.mxu0 0
        %9118 = vmatprep.subr.bf16.mxu0 0
        %9119 = vmatpush1.bf16.msra.mxu0 0
        %9120 = vmatprep.subr.bf16.mxu0 0
        %9121 = vmatpush1.bf16.msra.mxu0 0
        %9122 = vmatprep.subr.bf16.mxu0 0
        %9123 = vmatpush1.bf16.msra.mxu0 0
        %9124 = vmatprep.subr.bf16.mxu0 0
        %9125 = vmatpush1.bf16.msra.mxu0 0
        %9126 = vmatprep.subr.bf16.mxu0 0
        %9127 = vmatpush1.bf16.msra.mxu0 0
        %9128 = vmatprep.subr.bf16.mxu0 0
        %9129 = vmatpush1.bf16.msra.mxu0 0
        %9130 = vmatprep.subr.bf16.mxu0 0
        %9131 = vmatpush1.bf16.msra.mxu0 0
        %9132 = vmatprep.subr.bf16.mxu0 0
        %9133 = vmatpush1.bf16.msra.mxu0 0
        %9134 = vmatprep.subr.bf16.mxu0 0
        %9135 = vmatpush1.bf16.msra.mxu0 0
        %9136 = vmatprep.subr.bf16.mxu0 0
        %9137 = vmatpush1.bf16.msra.mxu0 0
        %9138 = vmatprep.mubr.bf16.mxu0 0
        %9139 = vmatmul.mubr.bf16.gmra.mrb[0].mxu0 %v8981
        %v9140 = vpop.f32.mrb[0].mxu0
        %v9141 = vadd.f32 0.0, %v9140
        %v9142 = vpop.f32.mrb[0].mxu0
        %v9143 = vpop.f32.mrb[0].mxu0
        %v9144 = vpop.f32.mrb[0].mxu0
        %9145 = vdwg.mxu0
        %v9146 = vadd.f32 %v7692, %v9018
        %v9147 = vadd.f32 %v7693, %v9020
        %v9148 = vadd.f32 %v7694, %v9059
        %v9149 = vadd.f32 %v7695, %v9061
        %v9150 = vadd.f32 %v7696, %v9100
        %v9151 = vadd.f32 %v7697, %v9102
        %v9152 = vadd.f32 %v7698, %v9141
        %s9153 = scalar_lea.vmem %s352, 5152 [#allocation8]
        %v9154 = vld [vmem:[%s9153] sm:$0xff]
        %v9155 = vld [vmem:[%s9153 + $0x8] sm:$0xff]
        %v9156 = vld [vmem:[%s9153 + $0x10] sm:$0xff]
        %v9157 = vld [vmem:[%s9153 + $0x18] sm:$0xf]
        %v9158 = vld [vmem:[%s9153 + $0x1c] sm:$0xff]
        %v9159 = vld [vmem:[%s9153 + $0x24] sm:$0xff]
        %v9160 = vld [vmem:[%s9153 + $0x2c] sm:$0xff]
        %v9161 = vld [vmem:[%s9153 + $0x34] sm:$0xf]
        %v9162 = vld [vmem:[%s9153 + $0x38] sm:$0xff]
        %v9163 = vld [vmem:[%s9153 + $0x40] sm:$0xff]
        %v9164 = vld [vmem:[%s9153 + $0x48] sm:$0xff]
        %v9165 = vld [vmem:[%s9153 + $0x50] sm:$0xf]
        %v9166 = vld [vmem:[%s9153 + $0x54] sm:$0xff]
        %v9167 = vld [vmem:[%s9153 + $0x5c] sm:$0xff]
        %v9168 = vld [vmem:[%s9153 + $0x64] sm:$0xff]
        %v9169 = vld [vmem:[%s9153 + $0x6c] sm:$0xf]
        %v9170 = vld [vmem:[%s9153 + $0x70] sm:$0xff]
        %v9171 = vld [vmem:[%s9153 + $0x78] sm:$0xff]
        %v9172 = vld [vmem:[%s9153 + $0x80] sm:$0xff]
        %v9173 = vld [vmem:[%s9153 + $0x88] sm:$0xf]
        %v9174 = vld [vmem:[%s9153 + $0x8c] sm:$0xff]
        %v9175 = vld [vmem:[%s9153 + $0x94] sm:$0xff]
        %v9176 = vld [vmem:[%s9153 + $0x9c] sm:$0xff]
        %v9177 = vld [vmem:[%s9153 + $0xa4] sm:$0xf]
        %v9178 = vld [vmem:[%s9153 + $0xa8] sm:$0xff]
        %v9179 = vld [vmem:[%s9153 + $0xb0] sm:$0xff]
        %v9180 = vld [vmem:[%s9153 + $0xb8] sm:$0xff]
        %v9181 = vld [vmem:[%s9153 + $0xc0] sm:$0xf]
        %v9182 = vld [vmem:[%s9153 + $0xc4] sm:$0xff]
        %v9183 = vld [vmem:[%s9153 + $0xcc] sm:$0xff]
        %v9184 = vld [vmem:[%s9153 + $0xd4] sm:$0xff]
        %v9185 = vld [vmem:[%s9153 + $0xdc] sm:$0xf]
        %v9186 = vrot.slane %v7028, 3
        %v9219 = vunpack.c.l.b16 %v9154
        %v9220 = vunpack.c.h.b16 %v9154
        %v9221 = vunpack.c.l.b16 %v9155
        %v9222 = vunpack.c.h.b16 %v9155
        %v9223 = vunpack.c.l.b16 %v9156
        %v9224 = vunpack.c.h.b16 %v9156
        %v9225 = vunpack.c.l.b16 %v9157
        %v9226 = vunpack.c.l.b16 %v9158
        %v9227 = vunpack.c.h.b16 %v9158
        %v9228 = vunpack.c.l.b16 %v9159
        %v9229 = vunpack.c.h.b16 %v9159
        %v9230 = vunpack.c.l.b16 %v9160
        %v9231 = vunpack.c.h.b16 %v9160
        %v9232 = vunpack.c.l.b16 %v9161
        %v9233 = vunpack.c.l.b16 %v9162
        %v9234 = vunpack.c.h.b16 %v9162
        %v9235 = vunpack.c.l.b16 %v9163
        %v9236 = vunpack.c.h.b16 %v9163
        %v9237 = vunpack.c.l.b16 %v9164
        %v9238 = vunpack.c.h.b16 %v9164
        %v9239 = vunpack.c.l.b16 %v9165
        %v9240 = vunpack.c.l.b16 %v9166
        %v9241 = vunpack.c.h.b16 %v9166
        %v9242 = vunpack.c.l.b16 %v9167
        %v9243 = vunpack.c.h.b16 %v9167
        %v9244 = vunpack.c.l.b16 %v9168
        %v9245 = vunpack.c.h.b16 %v9168
        %v9246 = vunpack.c.l.b16 %v9169
        %v9247 = vunpack.c.l.b16 %v9170
        %v9248 = vunpack.c.h.b16 %v9170
        %v9249 = vunpack.c.l.b16 %v9171
        %v9250 = vunpack.c.h.b16 %v9171
        %v9251 = vunpack.c.l.b16 %v9172
        %v9252 = vunpack.c.h.b16 %v9172
        %v9253 = vunpack.c.l.b16 %v9173
        %v9254 = vunpack.c.l.b16 %v9174
        %v9255 = vunpack.c.h.b16 %v9174
        %v9256 = vunpack.c.l.b16 %v9175
        %v9257 = vunpack.c.h.b16 %v9175
        %v9258 = vunpack.c.l.b16 %v9176
        %v9259 = vunpack.c.h.b16 %v9176
        %v9260 = vunpack.c.l.b16 %v9177
        %v9261 = vunpack.c.l.b16 %v9178
        %v9262 = vunpack.c.h.b16 %v9178
        %v9263 = vunpack.c.l.b16 %v9179
        %v9264 = vunpack.c.h.b16 %v9179
        %v9265 = vunpack.c.l.b16 %v9180
        %v9266 = vunpack.c.h.b16 %v9180
        %v9267 = vunpack.c.l.b16 %v9181
        %v9268 = vunpack.c.l.b16 %v9182
        %v9269 = vunpack.c.h.b16 %v9182
        %v9270 = vunpack.c.l.b16 %v9183
        %v9271 = vunpack.c.h.b16 %v9183
        %v9272 = vunpack.c.l.b16 %v9184
        %v9273 = vunpack.c.h.b16 %v9184
        %v9274 = vunpack.c.l.b16 %v9185
        %v9275 = vpack.c.b16 %v9226, %v9219
        %v9276 = vpack.c.b16 %v9227, %v9220
        %v9277 = vpack.c.b16 %v9228, %v9221
        %v9278 = vpack.c.b16 %v9229, %v9222
        %v9279 = vpack.c.b16 %v9230, %v9223
        %v9280 = vpack.c.b16 %v9231, %v9224
        %v9281 = vpack.c.b16 %v9232, %v9225
        %v9282 = vpack.c.b16 %v9240, %v9233
        %v9283 = vpack.c.b16 %v9241, %v9234
        %v9284 = vpack.c.b16 %v9242, %v9235
        %v9285 = vpack.c.b16 %v9243, %v9236
        %v9286 = vpack.c.b16 %v9244, %v9237
        %v9287 = vpack.c.b16 %v9245, %v9238
        %v9288 = vpack.c.b16 %v9246, %v9239
        %v9289 = vpack.c.b16 %v9254, %v9247
        %v9290 = vpack.c.b16 %v9255, %v9248
        %v9291 = vpack.c.b16 %v9256, %v9249
        %v9292 = vpack.c.b16 %v9257, %v9250
        %v9293 = vpack.c.b16 %v9258, %v9251
        %v9294 = vpack.c.b16 %v9259, %v9252
        %v9295 = vpack.c.b16 %v9260, %v9253
        %v9296 = vpack.c.b16 %v9268, %v9261
        %v9297 = vpack.c.b16 %v9269, %v9262
        %v9298 = vpack.c.b16 %v9270, %v9263
        %v9299 = vpack.c.b16 %v9271, %v9264
        %v9300 = vpack.c.b16 %v9272, %v9265
        %v9301 = vpack.c.b16 %v9273, %v9266
        %v9302 = vpack.c.b16 %v9274, %v9267
        %v9332 = vsel %vm996, %v9186, 0
        %9334 = vmatprep.subr.bf16.mxu0 %v9276
        %9335 = vmatpush1.bf16.msra.mxu0 %v9275
        %9336 = vmatprep.subr.bf16.mxu0 %v9283
        %9337 = vmatpush1.bf16.msra.mxu0 %v9282
        %9338 = vmatprep.subr.bf16.mxu0 %v9290
        %9339 = vmatpush1.bf16.msra.mxu0 %v9289
        %9340 = vmatprep.subr.bf16.mxu0 %v9297
        %9341 = vmatpush1.bf16.msra.mxu0 %v9296
        %9342 = vmatprep.subr.bf16.mxu0 0
        %9343 = vmatpush1.bf16.msra.mxu0 0
        %9344 = vmatprep.subr.bf16.mxu0 0
        %9345 = vmatpush1.bf16.msra.mxu0 0
        %9346 = vmatprep.subr.bf16.mxu0 0
        %9347 = vmatpush1.bf16.msra.mxu0 0
        %9348 = vmatprep.subr.bf16.mxu0 0
        %9349 = vmatpush1.bf16.msra.mxu0 0
        %9350 = vmatprep.subr.bf16.mxu0 0
        %9351 = vmatpush1.bf16.msra.mxu0 0
        %9352 = vmatprep.subr.bf16.mxu0 0
        %9353 = vmatpush1.bf16.msra.mxu0 0
        %9354 = vmatprep.subr.bf16.mxu0 0
        %9355 = vmatpush1.bf16.msra.mxu0 0
        %9356 = vmatprep.subr.bf16.mxu0 0
        %9357 = vmatpush1.bf16.msra.mxu0 0
        %9358 = vmatprep.subr.bf16.mxu0 0
        %9359 = vmatpush1.bf16.msra.mxu0 0
        %9360 = vmatprep.subr.bf16.mxu0 0
        %9361 = vmatpush1.bf16.msra.mxu0 0
        %9362 = vmatprep.subr.bf16.mxu0 0
        %9363 = vmatpush1.bf16.msra.mxu0 0
        %9364 = vmatprep.subr.bf16.mxu0 0
        %9365 = vmatpush1.bf16.msra.mxu0 0
        %9366 = vmatprep.mubr.bf16.mxu0 0
        %9367 = vmatmul.mubr.bf16.gmra.mrb[0].mxu0 %v9332
        %v9368 = vpop.f32.mrb[0].mxu0
        %v9369 = vadd.f32 0.0, %v9368
        %v9370 = vpop.f32.mrb[0].mxu0
        %v9371 = vadd.f32 0.0, %v9370
        %v9372 = vpop.f32.mrb[0].mxu0
        %v9373 = vpop.f32.mrb[0].mxu0
        %9374 = vdwg.mxu0
        %9375 = vmatprep.subr.bf16.mxu0 %v9278
        %9376 = vmatpush1.bf16.msra.mxu0 %v9277
        %9377 = vmatprep.subr.bf16.mxu0 %v9285
        %9378 = vmatpush1.bf16.msra.mxu0 %v9284
        %9379 = vmatprep.subr.bf16.mxu0 %v9292
        %9380 = vmatpush1.bf16.msra.mxu0 %v9291
        %9381 = vmatprep.subr.bf16.mxu0 %v9299
        %9382 = vmatpush1.bf16.msra.mxu0 %v9298
        %9383 = vmatprep.subr.bf16.mxu0 0
        %9384 = vmatpush1.bf16.msra.mxu0 0
        %9385 = vmatprep.subr.bf16.mxu0 0
        %9386 = vmatpush1.bf16.msra.mxu0 0
        %9387 = vmatprep.subr.bf16.mxu0 0
        %9388 = vmatpush1.bf16.msra.mxu0 0
        %9389 = vmatprep.subr.bf16.mxu0 0
        %9390 = vmatpush1.bf16.msra.mxu0 0
        %9391 = vmatprep.subr.bf16.mxu0 0
        %9392 = vmatpush1.bf16.msra.mxu0 0
        %9393 = vmatprep.subr.bf16.mxu0 0
        %9394 = vmatpush1.bf16.msra.mxu0 0
        %9395 = vmatprep.subr.bf16.mxu0 0
        %9396 = vmatpush1.bf16.msra.mxu0 0
        %9397 = vmatprep.subr.bf16.mxu0 0
        %9398 = vmatpush1.bf16.msra.mxu0 0
        %9399 = vmatprep.subr.bf16.mxu0 0
        %9400 = vmatpush1.bf16.msra.mxu0 0
        %9401 = vmatprep.subr.bf16.mxu0 0
        %9402 = vmatpush1.bf16.msra.mxu0 0
        %9403 = vmatprep.subr.bf16.mxu0 0
        %9404 = vmatpush1.bf16.msra.mxu0 0
        %9405 = vmatprep.subr.bf16.mxu0 0
        %9406 = vmatpush1.bf16.msra.mxu0 0
        %9407 = vmatprep.mubr.bf16.mxu0 0
        %9408 = vmatmul.mubr.bf16.gmra.mrb[0].mxu0 %v9332
        %v9409 = vpop.f32.mrb[0].mxu0
        %v9410 = vadd.f32 0.0, %v9409
        %v9411 = vpop.f32.mrb[0].mxu0
        %v9412 = vadd.f32 0.0, %v9411
        %v9413 = vpop.f32.mrb[0].mxu0
        %v9414 = vpop.f32.mrb[0].mxu0
        %9415 = vdwg.mxu0
        %9416 = vmatprep.subr.bf16.mxu0 %v9280
        %9417 = vmatpush1.bf16.msra.mxu0 %v9279
        %9418 = vmatprep.subr.bf16.mxu0 %v9287
        %9419 = vmatpush1.bf16.msra.mxu0 %v9286
        %9420 = vmatprep.subr.bf16.mxu0 %v9294
        %9421 = vmatpush1.bf16.msra.mxu0 %v9293
        %9422 = vmatprep.subr.bf16.mxu0 %v9301
        %9423 = vmatpush1.bf16.msra.mxu0 %v9300
        %9424 = vmatprep.subr.bf16.mxu0 0
        %9425 = vmatpush1.bf16.msra.mxu0 0
        %9426 = vmatprep.subr.bf16.mxu0 0
        %9427 = vmatpush1.bf16.msra.mxu0 0
        %9428 = vmatprep.subr.bf16.mxu0 0
        %9429 = vmatpush1.bf16.msra.mxu0 0
        %9430 = vmatprep.subr.bf16.mxu0 0
        %9431 = vmatpush1.bf16.msra.mxu0 0
        %9432 = vmatprep.subr.bf16.mxu0 0
        %9433 = vmatpush1.bf16.msra.mxu0 0
        %9434 = vmatprep.subr.bf16.mxu0 0
        %9435 = vmatpush1.bf16.msra.mxu0 0
        %9436 = vmatprep.subr.bf16.mxu0 0
        %9437 = vmatpush1.bf16.msra.mxu0 0
        %9438 = vmatprep.subr.bf16.mxu0 0
        %9439 = vmatpush1.bf16.msra.mxu0 0
        %9440 = vmatprep.subr.bf16.mxu0 0
        %9441 = vmatpush1.bf16.msra.mxu0 0
        %9442 = vmatprep.subr.bf16.mxu0 0
        %9443 = vmatpush1.bf16.msra.mxu0 0
        %9444 = vmatprep.subr.bf16.mxu0 0
        %9445 = vmatpush1.bf16.msra.mxu0 0
        %9446 = vmatprep.subr.bf16.mxu0 0
        %9447 = vmatpush1.bf16.msra.mxu0 0
        %9448 = vmatprep.mubr.bf16.mxu0 0
        %9449 = vmatmul.mubr.bf16.gmra.mrb[0].mxu0 %v9332
        %v9450 = vpop.f32.mrb[0].mxu0
        %v9451 = vadd.f32 0.0, %v9450
        %v9452 = vpop.f32.mrb[0].mxu0
        %v9453 = vadd.f32 0.0, %v9452
        %v9454 = vpop.f32.mrb[0].mxu0
        %v9455 = vpop.f32.mrb[0].mxu0
        %9456 = vdwg.mxu0
        %9457 = vmatprep.subr.bf16.mxu0 0
        %9458 = vmatpush1.bf16.msra.mxu0 %v9281
        %9459 = vmatprep.subr.bf16.mxu0 0
        %9460 = vmatpush1.bf16.msra.mxu0 %v9288
        %9461 = vmatprep.subr.bf16.mxu0 0
        %9462 = vmatpush1.bf16.msra.mxu0 %v9295
        %9463 = vmatprep.subr.bf16.mxu0 0
        %9464 = vmatpush1.bf16.msra.mxu0 %v9302
        %9465 = vmatprep.subr.bf16.mxu0 0
        %9466 = vmatpush1.bf16.msra.mxu0 0
        %9467 = vmatprep.subr.bf16.mxu0 0
        %9468 = vmatpush1.bf16.msra.mxu0 0
        %9469 = vmatprep.subr.bf16.mxu0 0
        %9470 = vmatpush1.bf16.msra.mxu0 0
        %9471 = vmatprep.subr.bf16.mxu0 0
        %9472 = vmatpush1.bf16.msra.mxu0 0
        %9473 = vmatprep.subr.bf16.mxu0 0
        %9474 = vmatpush1.bf16.msra.mxu0 0
        %9475 = vmatprep.subr.bf16.mxu0 0
        %9476 = vmatpush1.bf16.msra.mxu0 0
        %9477 = vmatprep.subr.bf16.mxu0 0
        %9478 = vmatpush1.bf16.msra.mxu0 0
        %9479 = vmatprep.subr.bf16.mxu0 0
        %9480 = vmatpush1.bf16.msra.mxu0 0
        %9481 = vmatprep.subr.bf16.mxu0 0
        %9482 = vmatpush1.bf16.msra.mxu0 0
        %9483 = vmatprep.subr.bf16.mxu0 0
        %9484 = vmatpush1.bf16.msra.mxu0 0
        %9485 = vmatprep.subr.bf16.mxu0 0
        %9486 = vmatpush1.bf16.msra.mxu0 0
        %9487 = vmatprep.subr.bf16.mxu0 0
        %9488 = vmatpush1.bf16.msra.mxu0 0
        %9489 = vmatprep.mubr.bf16.mxu0 0
        %9490 = vmatmul.mubr.bf16.gmra.mrb[0].mxu0 %v9332
        %v9491 = vpop.f32.mrb[0].mxu0
        %v9492 = vadd.f32 0.0, %v9491
        %v9493 = vpop.f32.mrb[0].mxu0
        %v9494 = vpop.f32.mrb[0].mxu0
        %v9495 = vpop.f32.mrb[0].mxu0
        %9496 = vdwg.mxu0
        %v9497 = vadd.f32 %v8043, %v9369
        %v9498 = vadd.f32 %v8044, %v9371
        %v9499 = vadd.f32 %v8045, %v9410
        %v9500 = vadd.f32 %v8046, %v9412
        %v9501 = vadd.f32 %v8047, %v9451
        %v9502 = vadd.f32 %v8048, %v9453
        %v9503 = vadd.f32 %v8049, %v9492
        %s9504 = scalar_lea.vmem %s352, 5376 [#allocation8]
        %v9505 = vld [vmem:[%s9504] sm:$0xff]
        %v9506 = vld [vmem:[%s9504 + $0x8] sm:$0xff]
        %v9507 = vld [vmem:[%s9504 + $0x10] sm:$0xff]
        %v9508 = vld [vmem:[%s9504 + $0x18] sm:$0xf]
        %v9509 = vld [vmem:[%s9504 + $0x1c] sm:$0xff]
        %v9510 = vld [vmem:[%s9504 + $0x24] sm:$0xff]
        %v9511 = vld [vmem:[%s9504 + $0x2c] sm:$0xff]
        %v9512 = vld [vmem:[%s9504 + $0x34] sm:$0xf]
        %v9513 = vld [vmem:[%s9504 + $0x38] sm:$0xff]
        %v9514 = vld [vmem:[%s9504 + $0x40] sm:$0xff]
        %v9515 = vld [vmem:[%s9504 + $0x48] sm:$0xff]
        %v9516 = vld [vmem:[%s9504 + $0x50] sm:$0xf]
        %v9517 = vld [vmem:[%s9504 + $0x54] sm:$0xff]
        %v9518 = vld [vmem:[%s9504 + $0x5c] sm:$0xff]
        %v9519 = vld [vmem:[%s9504 + $0x64] sm:$0xff]
        %v9520 = vld [vmem:[%s9504 + $0x6c] sm:$0xf]
        %v9521 = vld [vmem:[%s9504 + $0x70] sm:$0xff]
        %v9522 = vld [vmem:[%s9504 + $0x78] sm:$0xff]
        %v9523 = vld [vmem:[%s9504 + $0x80] sm:$0xff]
        %v9524 = vld [vmem:[%s9504 + $0x88] sm:$0xf]
        %v9525 = vld [vmem:[%s9504 + $0x8c] sm:$0xff]
        %v9526 = vld [vmem:[%s9504 + $0x94] sm:$0xff]
        %v9527 = vld [vmem:[%s9504 + $0x9c] sm:$0xff]
        %v9528 = vld [vmem:[%s9504 + $0xa4] sm:$0xf]
        %v9529 = vld [vmem:[%s9504 + $0xa8] sm:$0xff]
        %v9530 = vld [vmem:[%s9504 + $0xb0] sm:$0xff]
        %v9531 = vld [vmem:[%s9504 + $0xb8] sm:$0xff]
        %v9532 = vld [vmem:[%s9504 + $0xc0] sm:$0xf]
        %v9533 = vld [vmem:[%s9504 + $0xc4] sm:$0xff]
        %v9534 = vld [vmem:[%s9504 + $0xcc] sm:$0xff]
        %v9535 = vld [vmem:[%s9504 + $0xd4] sm:$0xff]
        %v9536 = vld [vmem:[%s9504 + $0xdc] sm:$0xf]
        %v9537 = vrot.slane %v818, 4
        %v9570 = vunpack.c.l.b16 %v9505
        %v9571 = vunpack.c.h.b16 %v9505
        %v9572 = vunpack.c.l.b16 %v9506
        %v9573 = vunpack.c.h.b16 %v9506
        %v9574 = vunpack.c.l.b16 %v9507
        %v9575 = vunpack.c.h.b16 %v9507
        %v9576 = vunpack.c.l.b16 %v9508
        %v9577 = vunpack.c.l.b16 %v9509
        %v9578 = vunpack.c.h.b16 %v9509
        %v9579 = vunpack.c.l.b16 %v9510
        %v9580 = vunpack.c.h.b16 %v9510
        %v9581 = vunpack.c.l.b16 %v9511
        %v9582 = vunpack.c.h.b16 %v9511
        %v9583 = vunpack.c.l.b16 %v9512
        %v9584 = vunpack.c.l.b16 %v9513
        %v9585 = vunpack.c.h.b16 %v9513
        %v9586 = vunpack.c.l.b16 %v9514
        %v9587 = vunpack.c.h.b16 %v9514
        %v9588 = vunpack.c.l.b16 %v9515
        %v9589 = vunpack.c.h.b16 %v9515
        %v9590 = vunpack.c.l.b16 %v9516
        %v9591 = vunpack.c.l.b16 %v9517
        %v9592 = vunpack.c.h.b16 %v9517
        %v9593 = vunpack.c.l.b16 %v9518
        %v9594 = vunpack.c.h.b16 %v9518
        %v9595 = vunpack.c.l.b16 %v9519
        %v9596 = vunpack.c.h.b16 %v9519
        %v9597 = vunpack.c.l.b16 %v9520
        %v9598 = vunpack.c.l.b16 %v9521
        %v9599 = vunpack.c.h.b16 %v9521
        %v9600 = vunpack.c.l.b16 %v9522
        %v9601 = vunpack.c.h.b16 %v9522
        %v9602 = vunpack.c.l.b16 %v9523
        %v9603 = vunpack.c.h.b16 %v9523
        %v9604 = vunpack.c.l.b16 %v9524
        %v9605 = vunpack.c.l.b16 %v9525
        %v9606 = vunpack.c.h.b16 %v9525
        %v9607 = vunpack.c.l.b16 %v9526
        %v9608 = vunpack.c.h.b16 %v9526
        %v9609 = vunpack.c.l.b16 %v9527
        %v9610 = vunpack.c.h.b16 %v9527
        %v9611 = vunpack.c.l.b16 %v9528
        %v9612 = vunpack.c.l.b16 %v9529
        %v9613 = vunpack.c.h.b16 %v9529
        %v9614 = vunpack.c.l.b16 %v9530
        %v9615 = vunpack.c.h.b16 %v9530
        %v9616 = vunpack.c.l.b16 %v9531
        %v9617 = vunpack.c.h.b16 %v9531
        %v9618 = vunpack.c.l.b16 %v9532
        %v9619 = vunpack.c.l.b16 %v9533
        %v9620 = vunpack.c.h.b16 %v9533
        %v9621 = vunpack.c.l.b16 %v9534
        %v9622 = vunpack.c.h.b16 %v9534
        %v9623 = vunpack.c.l.b16 %v9535
        %v9624 = vunpack.c.h.b16 %v9535
        %v9625 = vunpack.c.l.b16 %v9536
        %v9626 = vpack.c.b16 %v9577, %v9570
        %v9627 = vpack.c.b16 %v9578, %v9571
        %v9628 = vpack.c.b16 %v9579, %v9572
        %v9629 = vpack.c.b16 %v9580, %v9573
        %v9630 = vpack.c.b16 %v9581, %v9574
        %v9631 = vpack.c.b16 %v9582, %v9575
        %v9632 = vpack.c.b16 %v9583, %v9576
        %v9633 = vpack.c.b16 %v9591, %v9584
        %v9634 = vpack.c.b16 %v9592, %v9585
        %v9635 = vpack.c.b16 %v9593, %v9586
        %v9636 = vpack.c.b16 %v9594, %v9587
        %v9637 = vpack.c.b16 %v9595, %v9588
        %v9638 = vpack.c.b16 %v9596, %v9589
        %v9639 = vpack.c.b16 %v9597, %v9590
        %v9640 = vpack.c.b16 %v9605, %v9598
        %v9641 = vpack.c.b16 %v9606, %v9599
        %v9642 = vpack.c.b16 %v9607, %v9600
        %v9643 = vpack.c.b16 %v9608, %v9601
        %v9644 = vpack.c.b16 %v9609, %v9602
        %v9645 = vpack.c.b16 %v9610, %v9603
        %v9646 = vpack.c.b16 %v9611, %v9604
        %v9647 = vpack.c.b16 %v9619, %v9612
        %v9648 = vpack.c.b16 %v9620, %v9613
        %v9649 = vpack.c.b16 %v9621, %v9614
        %v9650 = vpack.c.b16 %v9622, %v9615
        %v9651 = vpack.c.b16 %v9623, %v9616
        %v9652 = vpack.c.b16 %v9624, %v9617
        %v9653 = vpack.c.b16 %v9625, %v9618
        %v9683 = vsel %vm996, %v9537, 0
        %9685 = vmatprep.subr.bf16.mxu0 %v9627
        %9686 = vmatpush1.bf16.msra.mxu0 %v9626
        %9687 = vmatprep.subr.bf16.mxu0 %v9634
        %9688 = vmatpush1.bf16.msra.mxu0 %v9633
        %9689 = vmatprep.subr.bf16.mxu0 %v9641
        %9690 = vmatpush1.bf16.msra.mxu0 %v9640
        %9691 = vmatprep.subr.bf16.mxu0 %v9648
        %9692 = vmatpush1.bf16.msra.mxu0 %v9647
        %9693 = vmatprep.subr.bf16.mxu0 0
        %9694 = vmatpush1.bf16.msra.mxu0 0
        %9695 = vmatprep.subr.bf16.mxu0 0
        %9696 = vmatpush1.bf16.msra.mxu0 0
        %9697 = vmatprep.subr.bf16.mxu0 0
        %9698 = vmatpush1.bf16.msra.mxu0 0
        %9699 = vmatprep.subr.bf16.mxu0 0
        %9700 = vmatpush1.bf16.msra.mxu0 0
        %9701 = vmatprep.subr.bf16.mxu0 0
        %9702 = vmatpush1.bf16.msra.mxu0 0
        %9703 = vmatprep.subr.bf16.mxu0 0
        %9704 = vmatpush1.bf16.msra.mxu0 0
        %9705 = vmatprep.subr.bf16.mxu0 0
        %9706 = vmatpush1.bf16.msra.mxu0 0
        %9707 = vmatprep.subr.bf16.mxu0 0
        %9708 = vmatpush1.bf16.msra.mxu0 0
        %9709 = vmatprep.subr.bf16.mxu0 0
        %9710 = vmatpush1.bf16.msra.mxu0 0
        %9711 = vmatprep.subr.bf16.mxu0 0
        %9712 = vmatpush1.bf16.msra.mxu0 0
        %9713 = vmatprep.subr.bf16.mxu0 0
        %9714 = vmatpush1.bf16.msra.mxu0 0
        %9715 = vmatprep.subr.bf16.mxu0 0
        %9716 = vmatpush1.bf16.msra.mxu0 0
        %9717 = vmatprep.mubr.bf16.mxu0 0
        %9718 = vmatmul.mubr.bf16.gmra.mrb[0].mxu0 %v9683
        %v9719 = vpop.f32.mrb[0].mxu0
        %v9720 = vadd.f32 0.0, %v9719
        %v9721 = vpop.f32.mrb[0].mxu0
        %v9722 = vadd.f32 0.0, %v9721
        %v9723 = vpop.f32.mrb[0].mxu0
        %v9724 = vpop.f32.mrb[0].mxu0
        %9725 = vdwg.mxu0
        %9726 = vmatprep.subr.bf16.mxu0 %v9629
        %9727 = vmatpush1.bf16.msra.mxu0 %v9628
        %9728 = vmatprep.subr.bf16.mxu0 %v9636
        %9729 = vmatpush1.bf16.msra.mxu0 %v9635
        %9730 = vmatprep.subr.bf16.mxu0 %v9643
        %9731 = vmatpush1.bf16.msra.mxu0 %v9642
        %9732 = vmatprep.subr.bf16.mxu0 %v9650
        %9733 = vmatpush1.bf16.msra.mxu0 %v9649
        %9734 = vmatprep.subr.bf16.mxu0 0
        %9735 = vmatpush1.bf16.msra.mxu0 0
        %9736 = vmatprep.subr.bf16.mxu0 0
        %9737 = vmatpush1.bf16.msra.mxu0 0
        %9738 = vmatprep.subr.bf16.mxu0 0
        %9739 = vmatpush1.bf16.msra.mxu0 0
        %9740 = vmatprep.subr.bf16.mxu0 0
        %9741 = vmatpush1.bf16.msra.mxu0 0
        %9742 = vmatprep.subr.bf16.mxu0 0
        %9743 = vmatpush1.bf16.msra.mxu0 0
        %9744 = vmatprep.subr.bf16.mxu0 0
        %9745 = vmatpush1.bf16.msra.mxu0 0
        %9746 = vmatprep.subr.bf16.mxu0 0
        %9747 = vmatpush1.bf16.msra.mxu0 0
        %9748 = vmatprep.subr.bf16.mxu0 0
        %9749 = vmatpush1.bf16.msra.mxu0 0
        %9750 = vmatprep.subr.bf16.mxu0 0
        %9751 = vmatpush1.bf16.msra.mxu0 0
        %9752 = vmatprep.subr.bf16.mxu0 0
        %9753 = vmatpush1.bf16.msra.mxu0 0
        %9754 = vmatprep.subr.bf16.mxu0 0
        %9755 = vmatpush1.bf16.msra.mxu0 0
        %9756 = vmatprep.subr.bf16.mxu0 0
        %9757 = vmatpush1.bf16.msra.mxu0 0
        %9758 = vmatprep.mubr.bf16.mxu0 0
        %9759 = vmatmul.mubr.bf16.gmra.mrb[0].mxu0 %v9683
        %v9760 = vpop.f32.mrb[0].mxu0
        %v9761 = vadd.f32 0.0, %v9760
        %v9762 = vpop.f32.mrb[0].mxu0
        %v9763 = vadd.f32 0.0, %v9762
        %v9764 = vpop.f32.mrb[0].mxu0
        %v9765 = vpop.f32.mrb[0].mxu0
        %9766 = vdwg.mxu0
        %9767 = vmatprep.subr.bf16.mxu0 %v9631
        %9768 = vmatpush1.bf16.msra.mxu0 %v9630
        %9769 = vmatprep.subr.bf16.mxu0 %v9638
        %9770 = vmatpush1.bf16.msra.mxu0 %v9637
        %9771 = vmatprep.subr.bf16.mxu0 %v9645
        %9772 = vmatpush1.bf16.msra.mxu0 %v9644
        %9773 = vmatprep.subr.bf16.mxu0 %v9652
        %9774 = vmatpush1.bf16.msra.mxu0 %v9651
        %9775 = vmatprep.subr.bf16.mxu0 0
        %9776 = vmatpush1.bf16.msra.mxu0 0
        %9777 = vmatprep.subr.bf16.mxu0 0
        %9778 = vmatpush1.bf16.msra.mxu0 0
        %9779 = vmatprep.subr.bf16.mxu0 0
        %9780 = vmatpush1.bf16.msra.mxu0 0
        %9781 = vmatprep.subr.bf16.mxu0 0
        %9782 = vmatpush1.bf16.msra.mxu0 0
        %9783 = vmatprep.subr.bf16.mxu0 0
        %9784 = vmatpush1.bf16.msra.mxu0 0
        %9785 = vmatprep.subr.bf16.mxu0 0
        %9786 = vmatpush1.bf16.msra.mxu0 0
        %9787 = vmatprep.subr.bf16.mxu0 0
        %9788 = vmatpush1.bf16.msra.mxu0 0
        %9789 = vmatprep.subr.bf16.mxu0 0
        %9790 = vmatpush1.bf16.msra.mxu0 0
        %9791 = vmatprep.subr.bf16.mxu0 0
        %9792 = vmatpush1.bf16.msra.mxu0 0
        %9793 = vmatprep.subr.bf16.mxu0 0
        %9794 = vmatpush1.bf16.msra.mxu0 0
        %9795 = vmatprep.subr.bf16.mxu0 0
        %9796 = vmatpush1.bf16.msra.mxu0 0
        %9797 = vmatprep.subr.bf16.mxu0 0
        %9798 = vmatpush1.bf16.msra.mxu0 0
        %9799 = vmatprep.mubr.bf16.mxu0 0
        %9800 = vmatmul.mubr.bf16.gmra.mrb[0].mxu0 %v9683
        %v9801 = vpop.f32.mrb[0].mxu0
        %v9802 = vadd.f32 0.0, %v9801
        %v9803 = vpop.f32.mrb[0].mxu0
        %v9804 = vadd.f32 0.0, %v9803
        %v9805 = vpop.f32.mrb[0].mxu0
        %v9806 = vpop.f32.mrb[0].mxu0
        %9807 = vdwg.mxu0
        %9808 = vmatprep.subr.bf16.mxu0 0
        %9809 = vmatpush1.bf16.msra.mxu0 %v9632
        %9810 = vmatprep.subr.bf16.mxu0 0
        %9811 = vmatpush1.bf16.msra.mxu0 %v9639
        %9812 = vmatprep.subr.bf16.mxu0 0
        %9813 = vmatpush1.bf16.msra.mxu0 %v9646
        %9814 = vmatprep.subr.bf16.mxu0 0
        %9815 = vmatpush1.bf16.msra.mxu0 %v9653
        %9816 = vmatprep.subr.bf16.mxu0 0
        %9817 = vmatpush1.bf16.msra.mxu0 0
        %9818 = vmatprep.subr.bf16.mxu0 0
        %9819 = vmatpush1.bf16.msra.mxu0 0
        %9820 = vmatprep.subr.bf16.mxu0 0
        %9821 = vmatpush1.bf16.msra.mxu0 0
        %9822 = vmatprep.subr.bf16.mxu0 0
        %9823 = vmatpush1.bf16.msra.mxu0 0
        %9824 = vmatprep.subr.bf16.mxu0 0
        %9825 = vmatpush1.bf16.msra.mxu0 0
        %9826 = vmatprep.subr.bf16.mxu0 0
        %9827 = vmatpush1.bf16.msra.mxu0 0
        %9828 = vmatprep.subr.bf16.mxu0 0
        %9829 = vmatpush1.bf16.msra.mxu0 0
        %9830 = vmatprep.subr.bf16.mxu0 0
        %9831 = vmatpush1.bf16.msra.mxu0 0
        %9832 = vmatprep.subr.bf16.mxu0 0
        %9833 = vmatpush1.bf16.msra.mxu0 0
        %9834 = vmatprep.subr.bf16.mxu0 0
        %9835 = vmatpush1.bf16.msra.mxu0 0
        %9836 = vmatprep.subr.bf16.mxu0 0
        %9837 = vmatpush1.bf16.msra.mxu0 0
        %9838 = vmatprep.subr.bf16.mxu0 0
        %9839 = vmatpush1.bf16.msra.mxu0 0
        %9840 = vmatprep.mubr.bf16.mxu0 0
        %9841 = vmatmul.mubr.bf16.gmra.mrb[0].mxu0 %v9683
        %v9842 = vpop.f32.mrb[0].mxu0
        %v9843 = vadd.f32 0.0, %v9842
        %v9844 = vpop.f32.mrb[0].mxu0
        %v9845 = vpop.f32.mrb[0].mxu0
        %v9846 = vpop.f32.mrb[0].mxu0
        %9847 = vdwg.mxu0
        %v9855 = vcombine.low %v9720, %v9722
        %v9856 = vcombine.low %v9761, %v9763
        %v9857 = vcombine.low %v9802, %v9804
        %v9859 = vunpack.c.l.s4 1966171168
        %v9860 = vunpack.c.0.s8 %v9859
        %v9861 = vlaneseq
        %v9862 = vshrl.u32 %v9861, 7
        %v9863 = vsub.s32 %v9860, %v9862
        %v9864 = vrot.slane %v9855, %v9863
        %v9866 = vunpack.c.l.s4 1966171168
        %v9867 = vunpack.c.0.s8 %v9866
        %v9868 = vlaneseq
        %v9869 = vshrl.u32 %v9868, 7
        %v9870 = vsub.s32 %v9867, %v9869
        %v9871 = vrot.slane %v9856, %v9870
        %v9873 = vunpack.c.l.s4 1966171168
        %v9874 = vunpack.c.0.s8 %v9873
        %v9875 = vlaneseq
        %v9876 = vshrl.u32 %v9875, 7
        %v9877 = vsub.s32 %v9874, %v9876
        %v9878 = vrot.slane %v9857, %v9877
        %v9880 = vunpack.c.l.s4 1966171168
        %v9881 = vunpack.c.0.s8 %v9880
        %v9882 = vlaneseq
        %v9883 = vshrl.u32 %v9882, 7
        %v9884 = vsub.s32 %v9881, %v9883
        %v9885 = vrot.slane %v9843, %v9884
        %v9886 = vcombine.low %v9864, %v9871
        %v9887 = vcombine.low %v9878, %v9885
        %v9889 = vunpack.c.l.s4 1966171168
        %v9890 = vunpack.c.0.s8 %v9889
        %v9891 = vlaneseq
        %v9892 = vshrl.u32 %v9891, 7
        %v9893 = vsub.s32 %v9890, %v9892
        %v9894 = vrot.slane %v9886, %v9893
        %v9896 = vunpack.c.l.s4 1966171168
        %v9897 = vunpack.c.0.s8 %v9896
        %v9898 = vlaneseq
        %v9899 = vshrl.u32 %v9898, 7
        %v9900 = vsub.s32 %v9897, %v9899
        %v9901 = vrot.slane %v9887, %v9900
        %v9902 = vcombine.low %v9894, %v9901
        %v9904 = vadd.f32 %v8450, %v9902
        %s9905 = scalar_lea.vmem %s352, 5600 [#allocation8]
        %v9906 = vld [vmem:[%s9905] sm:$0xff]
        %v9907 = vld [vmem:[%s9905 + $0x8] sm:$0xff]
        %v9908 = vld [vmem:[%s9905 + $0x10] sm:$0xff]
        %v9909 = vld [vmem:[%s9905 + $0x18] sm:$0xf]
        %v9910 = vld [vmem:[%s9905 + $0x1c] sm:$0xff]
        %v9911 = vld [vmem:[%s9905 + $0x24] sm:$0xff]
        %v9912 = vld [vmem:[%s9905 + $0x2c] sm:$0xff]
        %v9913 = vld [vmem:[%s9905 + $0x34] sm:$0xf]
        %v9914 = vld [vmem:[%s9905 + $0x38] sm:$0xff]
        %v9915 = vld [vmem:[%s9905 + $0x40] sm:$0xff]
        %v9916 = vld [vmem:[%s9905 + $0x48] sm:$0xff]
        %v9917 = vld [vmem:[%s9905 + $0x50] sm:$0xf]
        %v9918 = vld [vmem:[%s9905 + $0x54] sm:$0xff]
        %v9919 = vld [vmem:[%s9905 + $0x5c] sm:$0xff]
        %v9920 = vld [vmem:[%s9905 + $0x64] sm:$0xff]
        %v9921 = vld [vmem:[%s9905 + $0x6c] sm:$0xf]
        %v9922 = vld [vmem:[%s9905 + $0x70] sm:$0xff]
        %v9923 = vld [vmem:[%s9905 + $0x78] sm:$0xff]
        %v9924 = vld [vmem:[%s9905 + $0x80] sm:$0xff]
        %v9925 = vld [vmem:[%s9905 + $0x88] sm:$0xf]
        %v9926 = vld [vmem:[%s9905 + $0x8c] sm:$0xff]
        %v9927 = vld [vmem:[%s9905 + $0x94] sm:$0xff]
        %v9928 = vld [vmem:[%s9905 + $0x9c] sm:$0xff]
        %v9929 = vld [vmem:[%s9905 + $0xa4] sm:$0xf]
        %v9930 = vld [vmem:[%s9905 + $0xa8] sm:$0xff]
        %v9931 = vld [vmem:[%s9905 + $0xb0] sm:$0xff]
        %v9932 = vld [vmem:[%s9905 + $0xb8] sm:$0xff]
        %v9933 = vld [vmem:[%s9905 + $0xc0] sm:$0xf]
        %v9934 = vld [vmem:[%s9905 + $0xc4] sm:$0xff]
        %v9935 = vld [vmem:[%s9905 + $0xcc] sm:$0xff]
        %v9936 = vld [vmem:[%s9905 + $0xd4] sm:$0xff]
        %v9937 = vld [vmem:[%s9905 + $0xdc] sm:$0xf]
        %v9938 = vrot.slane %v7028, 4
        %v9971 = vunpack.c.l.b16 %v9906
        %v9972 = vunpack.c.h.b16 %v9906
        %v9973 = vunpack.c.l.b16 %v9907
        %v9974 = vunpack.c.h.b16 %v9907
        %v9975 = vunpack.c.l.b16 %v9908
        %v9976 = vunpack.c.h.b16 %v9908
        %v9977 = vunpack.c.l.b16 %v9909
        %v9978 = vunpack.c.l.b16 %v9910
        %v9979 = vunpack.c.h.b16 %v9910
        %v9980 = vunpack.c.l.b16 %v9911
        %v9981 = vunpack.c.h.b16 %v9911
        %v9982 = vunpack.c.l.b16 %v9912
        %v9983 = vunpack.c.h.b16 %v9912
        %v9984 = vunpack.c.l.b16 %v9913
        %v9985 = vunpack.c.l.b16 %v9914
        %v9986 = vunpack.c.h.b16 %v9914
        %v9987 = vunpack.c.l.b16 %v9915
        %v9988 = vunpack.c.h.b16 %v9915
        %v9989 = vunpack.c.l.b16 %v9916
        %v9990 = vunpack.c.h.b16 %v9916
        %v9991 = vunpack.c.l.b16 %v9917
        %v9992 = vunpack.c.l.b16 %v9918
        %v9993 = vunpack.c.h.b16 %v9918
        %v9994 = vunpack.c.l.b16 %v9919
        %v9995 = vunpack.c.h.b16 %v9919
        %v9996 = vunpack.c.l.b16 %v9920
        %v9997 = vunpack.c.h.b16 %v9920
        %v9998 = vunpack.c.l.b16 %v9921
        %v9999 = vunpack.c.l.b16 %v9922
        %v10000 = vunpack.c.h.b16 %v9922
        %v10001 = vunpack.c.l.b16 %v9923
        %v10002 = vunpack.c.h.b16 %v9923
        %v10003 = vunpack.c.l.b16 %v9924
        %v10004 = vunpack.c.h.b16 %v9924
        %v10005 = vunpack.c.l.b16 %v9925
        %v10006 = vunpack.c.l.b16 %v9926
        %v10007 = vunpack.c.h.b16 %v9926
        %v10008 = vunpack.c.l.b16 %v9927
        %v10009 = vunpack.c.h.b16 %v9927
        %v10010 = vunpack.c.l.b16 %v9928
        %v10011 = vunpack.c.h.b16 %v9928
        %v10012 = vunpack.c.l.b16 %v9929
        %v10013 = vunpack.c.l.b16 %v9930
        %v10014 = vunpack.c.h.b16 %v9930
        %v10015 = vunpack.c.l.b16 %v9931
        %v10016 = vunpack.c.h.b16 %v9931
        %v10017 = vunpack.c.l.b16 %v9932
        %v10018 = vunpack.c.h.b16 %v9932
        %v10019 = vunpack.c.l.b16 %v9933
        %v10020 = vunpack.c.l.b16 %v9934
        %v10021 = vunpack.c.h.b16 %v9934
        %v10022 = vunpack.c.l.b16 %v9935
        %v10023 = vunpack.c.h.b16 %v9935
        %v10024 = vunpack.c.l.b16 %v9936
        %v10025 = vunpack.c.h.b16 %v9936
        %v10026 = vunpack.c.l.b16 %v9937
        %v10027 = vpack.c.b16 %v9978, %v9971
        %v10028 = vpack.c.b16 %v9979, %v9972
        %v10029 = vpack.c.b16 %v9980, %v9973
        %v10030 = vpack.c.b16 %v9981, %v9974
        %v10031 = vpack.c.b16 %v9982, %v9975
        %v10032 = vpack.c.b16 %v9983, %v9976
        %v10033 = vpack.c.b16 %v9984, %v9977
        %v10034 = vpack.c.b16 %v9992, %v9985
        %v10035 = vpack.c.b16 %v9993, %v9986
        %v10036 = vpack.c.b16 %v9994, %v9987
        %v10037 = vpack.c.b16 %v9995, %v9988
        %v10038 = vpack.c.b16 %v9996, %v9989
        %v10039 = vpack.c.b16 %v9997, %v9990
        %v10040 = vpack.c.b16 %v9998, %v9991
        %v10041 = vpack.c.b16 %v10006, %v9999
        %v10042 = vpack.c.b16 %v10007, %v10000
        %v10043 = vpack.c.b16 %v10008, %v10001
        %v10044 = vpack.c.b16 %v10009, %v10002
        %v10045 = vpack.c.b16 %v10010, %v10003
        %v10046 = vpack.c.b16 %v10011, %v10004
        %v10047 = vpack.c.b16 %v10012, %v10005
        %v10048 = vpack.c.b16 %v10020, %v10013
        %v10049 = vpack.c.b16 %v10021, %v10014
        %v10050 = vpack.c.b16 %v10022, %v10015
        %v10051 = vpack.c.b16 %v10023, %v10016
        %v10052 = vpack.c.b16 %v10024, %v10017
        %v10053 = vpack.c.b16 %v10025, %v10018
        %v10054 = vpack.c.b16 %v10026, %v10019
        %v10084 = vsel %vm996, %v9938, 0
        %10086 = vmatprep.subr.bf16.mxu0 %v10028
        %10087 = vmatpush1.bf16.msra.mxu0 %v10027
        %10088 = vmatprep.subr.bf16.mxu0 %v10035
        %10089 = vmatpush1.bf16.msra.mxu0 %v10034
        %10090 = vmatprep.subr.bf16.mxu0 %v10042
        %10091 = vmatpush1.bf16.msra.mxu0 %v10041
        %10092 = vmatprep.subr.bf16.mxu0 %v10049
        %10093 = vmatpush1.bf16.msra.mxu0 %v10048
        %10094 = vmatprep.subr.bf16.mxu0 0
        %10095 = vmatpush1.bf16.msra.mxu0 0
        %10096 = vmatprep.subr.bf16.mxu0 0
        %10097 = vmatpush1.bf16.msra.mxu0 0
        %10098 = vmatprep.subr.bf16.mxu0 0
        %10099 = vmatpush1.bf16.msra.mxu0 0
        %10100 = vmatprep.subr.bf16.mxu0 0
        %10101 = vmatpush1.bf16.msra.mxu0 0
        %10102 = vmatprep.subr.bf16.mxu0 0
        %10103 = vmatpush1.bf16.msra.mxu0 0
        %10104 = vmatprep.subr.bf16.mxu0 0
        %10105 = vmatpush1.bf16.msra.mxu0 0
        %10106 = vmatprep.subr.bf16.mxu0 0
        %10107 = vmatpush1.bf16.msra.mxu0 0
        %10108 = vmatprep.subr.bf16.mxu0 0
        %10109 = vmatpush1.bf16.msra.mxu0 0
        %10110 = vmatprep.subr.bf16.mxu0 0
        %10111 = vmatpush1.bf16.msra.mxu0 0
        %10112 = vmatprep.subr.bf16.mxu0 0
        %10113 = vmatpush1.bf16.msra.mxu0 0
        %10114 = vmatprep.subr.bf16.mxu0 0
        %10115 = vmatpush1.bf16.msra.mxu0 0
        %10116 = vmatprep.subr.bf16.mxu0 0
        %10117 = vmatpush1.bf16.msra.mxu0 0
        %10118 = vmatprep.mubr.bf16.mxu0 0
        %10119 = vmatmul.mubr.bf16.gmra.mrb[0].mxu0 %v10084
        %v10120 = vpop.f32.mrb[0].mxu0
        %v10121 = vadd.f32 0.0, %v10120
        %v10122 = vpop.f32.mrb[0].mxu0
        %v10123 = vadd.f32 0.0, %v10122
        %v10124 = vpop.f32.mrb[0].mxu0
        %v10125 = vpop.f32.mrb[0].mxu0
        %10126 = vdwg.mxu0
        %10127 = vmatprep.subr.bf16.mxu0 %v10030
        %10128 = vmatpush1.bf16.msra.mxu0 %v10029
        %10129 = vmatprep.subr.bf16.mxu0 %v10037
        %10130 = vmatpush1.bf16.msra.mxu0 %v10036
        %10131 = vmatprep.subr.bf16.mxu0 %v10044
        %10132 = vmatpush1.bf16.msra.mxu0 %v10043
        %10133 = vmatprep.subr.bf16.mxu0 %v10051
        %10134 = vmatpush1.bf16.msra.mxu0 %v10050
        %10135 = vmatprep.subr.bf16.mxu0 0
        %10136 = vmatpush1.bf16.msra.mxu0 0
        %10137 = vmatprep.subr.bf16.mxu0 0
        %10138 = vmatpush1.bf16.msra.mxu0 0
        %10139 = vmatprep.subr.bf16.mxu0 0
        %10140 = vmatpush1.bf16.msra.mxu0 0
        %10141 = vmatprep.subr.bf16.mxu0 0
        %10142 = vmatpush1.bf16.msra.mxu0 0
        %10143 = vmatprep.subr.bf16.mxu0 0
        %10144 = vmatpush1.bf16.msra.mxu0 0
        %10145 = vmatprep.subr.bf16.mxu0 0
        %10146 = vmatpush1.bf16.msra.mxu0 0
        %10147 = vmatprep.subr.bf16.mxu0 0
        %10148 = vmatpush1.bf16.msra.mxu0 0
        %10149 = vmatprep.subr.bf16.mxu0 0
        %10150 = vmatpush1.bf16.msra.mxu0 0
        %10151 = vmatprep.subr.bf16.mxu0 0
        %10152 = vmatpush1.bf16.msra.mxu0 0
        %10153 = vmatprep.subr.bf16.mxu0 0
        %10154 = vmatpush1.bf16.msra.mxu0 0
        %10155 = vmatprep.subr.bf16.mxu0 0
        %10156 = vmatpush1.bf16.msra.mxu0 0
        %10157 = vmatprep.subr.bf16.mxu0 0
        %10158 = vmatpush1.bf16.msra.mxu0 0
        %10159 = vmatprep.mubr.bf16.mxu0 0
        %10160 = vmatmul.mubr.bf16.gmra.mrb[0].mxu0 %v10084
        %v10161 = vpop.f32.mrb[0].mxu0
        %v10162 = vadd.f32 0.0, %v10161
        %v10163 = vpop.f32.mrb[0].mxu0
        %v10164 = vadd.f32 0.0, %v10163
        %v10165 = vpop.f32.mrb[0].mxu0
        %v10166 = vpop.f32.mrb[0].mxu0
        %10167 = vdwg.mxu0
        %10168 = vmatprep.subr.bf16.mxu0 %v10032
        %10169 = vmatpush1.bf16.msra.mxu0 %v10031
        %10170 = vmatprep.subr.bf16.mxu0 %v10039
        %10171 = vmatpush1.bf16.msra.mxu0 %v10038
        %10172 = vmatprep.subr.bf16.mxu0 %v10046
        %10173 = vmatpush1.bf16.msra.mxu0 %v10045
        %10174 = vmatprep.subr.bf16.mxu0 %v10053
        %10175 = vmatpush1.bf16.msra.mxu0 %v10052
        %10176 = vmatprep.subr.bf16.mxu0 0
        %10177 = vmatpush1.bf16.msra.mxu0 0
        %10178 = vmatprep.subr.bf16.mxu0 0
        %10179 = vmatpush1.bf16.msra.mxu0 0
        %10180 = vmatprep.subr.bf16.mxu0 0
        %10181 = vmatpush1.bf16.msra.mxu0 0
        %10182 = vmatprep.subr.bf16.mxu0 0
        %10183 = vmatpush1.bf16.msra.mxu0 0
        %10184 = vmatprep.subr.bf16.mxu0 0
        %10185 = vmatpush1.bf16.msra.mxu0 0
        %10186 = vmatprep.subr.bf16.mxu0 0
        %10187 = vmatpush1.bf16.msra.mxu0 0
        %10188 = vmatprep.subr.bf16.mxu0 0
        %10189 = vmatpush1.bf16.msra.mxu0 0
        %10190 = vmatprep.subr.bf16.mxu0 0
        %10191 = vmatpush1.bf16.msra.mxu0 0
        %10192 = vmatprep.subr.bf16.mxu0 0
        %10193 = vmatpush1.bf16.msra.mxu0 0
        %10194 = vmatprep.subr.bf16.mxu0 0
        %10195 = vmatpush1.bf16.msra.mxu0 0
        %10196 = vmatprep.subr.bf16.mxu0 0
        %10197 = vmatpush1.bf16.msra.mxu0 0
        %10198 = vmatprep.subr.bf16.mxu0 0
        %10199 = vmatpush1.bf16.msra.mxu0 0
        %10200 = vmatprep.mubr.bf16.mxu0 0
        %10201 = vmatmul.mubr.bf16.gmra.mrb[0].mxu0 %v10084
        %v10202 = vpop.f32.mrb[0].mxu0
        %v10203 = vadd.f32 0.0, %v10202
        %v10204 = vpop.f32.mrb[0].mxu0
        %v10205 = vadd.f32 0.0, %v10204
        %v10206 = vpop.f32.mrb[0].mxu0
        %v10207 = vpop.f32.mrb[0].mxu0
        %10208 = vdwg.mxu0
        %10209 = vmatprep.subr.bf16.mxu0 0
        %10210 = vmatpush1.bf16.msra.mxu0 %v10033
        %10211 = vmatprep.subr.bf16.mxu0 0
        %10212 = vmatpush1.bf16.msra.mxu0 %v10040
        %10213 = vmatprep.subr.bf16.mxu0 0
        %10214 = vmatpush1.bf16.msra.mxu0 %v10047
        %10215 = vmatprep.subr.bf16.mxu0 0
        %10216 = vmatpush1.bf16.msra.mxu0 %v10054
        %10217 = vmatprep.subr.bf16.mxu0 0
        %10218 = vmatpush1.bf16.msra.mxu0 0
        %10219 = vmatprep.subr.bf16.mxu0 0
        %10220 = vmatpush1.bf16.msra.mxu0 0
        %10221 = vmatprep.subr.bf16.mxu0 0
        %10222 = vmatpush1.bf16.msra.mxu0 0
        %10223 = vmatprep.subr.bf16.mxu0 0
        %10224 = vmatpush1.bf16.msra.mxu0 0
        %10225 = vmatprep.subr.bf16.mxu0 0
        %10226 = vmatpush1.bf16.msra.mxu0 0
        %10227 = vmatprep.subr.bf16.mxu0 0
        %10228 = vmatpush1.bf16.msra.mxu0 0
        %10229 = vmatprep.subr.bf16.mxu0 0
        %10230 = vmatpush1.bf16.msra.mxu0 0
        %10231 = vmatprep.subr.bf16.mxu0 0
        %10232 = vmatpush1.bf16.msra.mxu0 0
        %10233 = vmatprep.subr.bf16.mxu0 0
        %10234 = vmatpush1.bf16.msra.mxu0 0
        %10235 = vmatprep.subr.bf16.mxu0 0
        %10236 = vmatpush1.bf16.msra.mxu0 0
        %10237 = vmatprep.subr.bf16.mxu0 0
        %10238 = vmatpush1.bf16.msra.mxu0 0
        %10239 = vmatprep.subr.bf16.mxu0 0
        %10240 = vmatpush1.bf16.msra.mxu0 0
        %10241 = vmatprep.mubr.bf16.mxu0 0
        %10242 = vmatmul.mubr.bf16.gmra.mrb[0].mxu0 %v10084
        %v10243 = vpop.f32.mrb[0].mxu0
        %v10244 = vadd.f32 0.0, %v10243
        %v10245 = vpop.f32.mrb[0].mxu0
        %v10246 = vpop.f32.mrb[0].mxu0
        %v10247 = vpop.f32.mrb[0].mxu0
        %10248 = vdwg.mxu0
        %v10249 = vadd.f32 %v8795, %v10121
        %v10250 = vadd.f32 %v8796, %v10123
        %v10251 = vadd.f32 %v8797, %v10162
        %v10252 = vadd.f32 %v8798, %v10164
        %v10253 = vadd.f32 %v8799, %v10203
        %v10254 = vadd.f32 %v8800, %v10205
        %v10255 = vadd.f32 %v8801, %v10244
        %s10256 = scalar_lea.vmem %s352, 5824 [#allocation8]
        %v10257 = vld [vmem:[%s10256] sm:$0xff]
        %v10258 = vld [vmem:[%s10256 + $0x8] sm:$0xff]
        %v10259 = vld [vmem:[%s10256 + $0x10] sm:$0xff]
        %v10260 = vld [vmem:[%s10256 + $0x18] sm:$0xf]
        %v10261 = vld [vmem:[%s10256 + $0x1c] sm:$0xff]
        %v10262 = vld [vmem:[%s10256 + $0x24] sm:$0xff]
        %v10263 = vld [vmem:[%s10256 + $0x2c] sm:$0xff]
        %v10264 = vld [vmem:[%s10256 + $0x34] sm:$0xf]
        %v10265 = vld [vmem:[%s10256 + $0x38] sm:$0xff]
        %v10266 = vld [vmem:[%s10256 + $0x40] sm:$0xff]
        %v10267 = vld [vmem:[%s10256 + $0x48] sm:$0xff]
        %v10268 = vld [vmem:[%s10256 + $0x50] sm:$0xf]
        %v10269 = vld [vmem:[%s10256 + $0x54] sm:$0xff]
        %v10270 = vld [vmem:[%s10256 + $0x5c] sm:$0xff]
        %v10271 = vld [vmem:[%s10256 + $0x64] sm:$0xff]
        %v10272 = vld [vmem:[%s10256 + $0x6c] sm:$0xf]
        %v10273 = vld [vmem:[%s10256 + $0x70] sm:$0xff]
        %v10274 = vld [vmem:[%s10256 + $0x78] sm:$0xff]
        %v10275 = vld [vmem:[%s10256 + $0x80] sm:$0xff]
        %v10276 = vld [vmem:[%s10256 + $0x88] sm:$0xf]
        %v10277 = vld [vmem:[%s10256 + $0x8c] sm:$0xff]
        %v10278 = vld [vmem:[%s10256 + $0x94] sm:$0xff]
        %v10279 = vld [vmem:[%s10256 + $0x9c] sm:$0xff]
        %v10280 = vld [vmem:[%s10256 + $0xa4] sm:$0xf]
        %v10281 = vld [vmem:[%s10256 + $0xa8] sm:$0xff]
        %v10282 = vld [vmem:[%s10256 + $0xb0] sm:$0xff]
        %v10283 = vld [vmem:[%s10256 + $0xb8] sm:$0xff]
        %v10284 = vld [vmem:[%s10256 + $0xc0] sm:$0xf]
        %v10285 = vld [vmem:[%s10256 + $0xc4] sm:$0xff]
        %v10286 = vld [vmem:[%s10256 + $0xcc] sm:$0xff]
        %v10287 = vld [vmem:[%s10256 + $0xd4] sm:$0xff]
        %v10288 = vld [vmem:[%s10256 + $0xdc] sm:$0xf]
        %v10289 = vrot.slane %v818, 5
        %v10322 = vunpack.c.l.b16 %v10257
        %v10323 = vunpack.c.h.b16 %v10257
        %v10324 = vunpack.c.l.b16 %v10258
        %v10325 = vunpack.c.h.b16 %v10258
        %v10326 = vunpack.c.l.b16 %v10259
        %v10327 = vunpack.c.h.b16 %v10259
        %v10328 = vunpack.c.l.b16 %v10260
        %v10329 = vunpack.c.l.b16 %v10261
        %v10330 = vunpack.c.h.b16 %v10261
        %v10331 = vunpack.c.l.b16 %v10262
        %v10332 = vunpack.c.h.b16 %v10262
        %v10333 = vunpack.c.l.b16 %v10263
        %v10334 = vunpack.c.h.b16 %v10263
        %v10335 = vunpack.c.l.b16 %v10264
        %v10336 = vunpack.c.l.b16 %v10265
        %v10337 = vunpack.c.h.b16 %v10265
        %v10338 = vunpack.c.l.b16 %v10266
        %v10339 = vunpack.c.h.b16 %v10266
        %v10340 = vunpack.c.l.b16 %v10267
        %v10341 = vunpack.c.h.b16 %v10267
        %v10342 = vunpack.c.l.b16 %v10268
        %v10343 = vunpack.c.l.b16 %v10269
        %v10344 = vunpack.c.h.b16 %v10269
        %v10345 = vunpack.c.l.b16 %v10270
        %v10346 = vunpack.c.h.b16 %v10270
        %v10347 = vunpack.c.l.b16 %v10271
        %v10348 = vunpack.c.h.b16 %v10271
        %v10349 = vunpack.c.l.b16 %v10272
        %v10350 = vunpack.c.l.b16 %v10273
        %v10351 = vunpack.c.h.b16 %v10273
        %v10352 = vunpack.c.l.b16 %v10274
        %v10353 = vunpack.c.h.b16 %v10274
        %v10354 = vunpack.c.l.b16 %v10275
        %v10355 = vunpack.c.h.b16 %v10275
        %v10356 = vunpack.c.l.b16 %v10276
        %v10357 = vunpack.c.l.b16 %v10277
        %v10358 = vunpack.c.h.b16 %v10277
        %v10359 = vunpack.c.l.b16 %v10278
        %v10360 = vunpack.c.h.b16 %v10278
        %v10361 = vunpack.c.l.b16 %v10279
        %v10362 = vunpack.c.h.b16 %v10279
        %v10363 = vunpack.c.l.b16 %v10280
        %v10364 = vunpack.c.l.b16 %v10281
        %v10365 = vunpack.c.h.b16 %v10281
        %v10366 = vunpack.c.l.b16 %v10282
        %v10367 = vunpack.c.h.b16 %v10282
        %v10368 = vunpack.c.l.b16 %v10283
        %v10369 = vunpack.c.h.b16 %v10283
        %v10370 = vunpack.c.l.b16 %v10284
        %v10371 = vunpack.c.l.b16 %v10285
        %v10372 = vunpack.c.h.b16 %v10285
        %v10373 = vunpack.c.l.b16 %v10286
        %v10374 = vunpack.c.h.b16 %v10286
        %v10375 = vunpack.c.l.b16 %v10287
        %v10376 = vunpack.c.h.b16 %v10287
        %v10377 = vunpack.c.l.b16 %v10288
        %v10378 = vpack.c.b16 %v10329, %v10322
        %v10379 = vpack.c.b16 %v10330, %v10323
        %v10380 = vpack.c.b16 %v10331, %v10324
        %v10381 = vpack.c.b16 %v10332, %v10325
        %v10382 = vpack.c.b16 %v10333, %v10326
        %v10383 = vpack.c.b16 %v10334, %v10327
        %v10384 = vpack.c.b16 %v10335, %v10328
        %v10385 = vpack.c.b16 %v10343, %v10336
        %v10386 = vpack.c.b16 %v10344, %v10337
        %v10387 = vpack.c.b16 %v10345, %v10338
        %v10388 = vpack.c.b16 %v10346, %v10339
        %v10389 = vpack.c.b16 %v10347, %v10340
        %v10390 = vpack.c.b16 %v10348, %v10341
        %v10391 = vpack.c.b16 %v10349, %v10342
        %v10392 = vpack.c.b16 %v10357, %v10350
        %v10393 = vpack.c.b16 %v10358, %v10351
        %v10394 = vpack.c.b16 %v10359, %v10352
        %v10395 = vpack.c.b16 %v10360, %v10353
        %v10396 = vpack.c.b16 %v10361, %v10354
        %v10397 = vpack.c.b16 %v10362, %v10355
        %v10398 = vpack.c.b16 %v10363, %v10356
        %v10399 = vpack.c.b16 %v10371, %v10364
        %v10400 = vpack.c.b16 %v10372, %v10365
        %v10401 = vpack.c.b16 %v10373, %v10366
        %v10402 = vpack.c.b16 %v10374, %v10367
        %v10403 = vpack.c.b16 %v10375, %v10368
        %v10404 = vpack.c.b16 %v10376, %v10369
        %v10405 = vpack.c.b16 %v10377, %v10370
        %v10435 = vsel %vm996, %v10289, 0
        %10437 = vmatprep.subr.bf16.mxu0 %v10379
        %10438 = vmatpush1.bf16.msra.mxu0 %v10378
        %10439 = vmatprep.subr.bf16.mxu0 %v10386
        %10440 = vmatpush1.bf16.msra.mxu0 %v10385
        %10441 = vmatprep.subr.bf16.mxu0 %v10393
        %10442 = vmatpush1.bf16.msra.mxu0 %v10392
        %10443 = vmatprep.subr.bf16.mxu0 %v10400
        %10444 = vmatpush1.bf16.msra.mxu0 %v10399
        %10445 = vmatprep.subr.bf16.mxu0 0
        %10446 = vmatpush1.bf16.msra.mxu0 0
        %10447 = vmatprep.subr.bf16.mxu0 0
        %10448 = vmatpush1.bf16.msra.mxu0 0
        %10449 = vmatprep.subr.bf16.mxu0 0
        %10450 = vmatpush1.bf16.msra.mxu0 0
        %10451 = vmatprep.subr.bf16.mxu0 0
        %10452 = vmatpush1.bf16.msra.mxu0 0
        %10453 = vmatprep.subr.bf16.mxu0 0
        %10454 = vmatpush1.bf16.msra.mxu0 0
        %10455 = vmatprep.subr.bf16.mxu0 0
        %10456 = vmatpush1.bf16.msra.mxu0 0
        %10457 = vmatprep.subr.bf16.mxu0 0
        %10458 = vmatpush1.bf16.msra.mxu0 0
        %10459 = vmatprep.subr.bf16.mxu0 0
        %10460 = vmatpush1.bf16.msra.mxu0 0
        %10461 = vmatprep.subr.bf16.mxu0 0
        %10462 = vmatpush1.bf16.msra.mxu0 0
        %10463 = vmatprep.subr.bf16.mxu0 0
        %10464 = vmatpush1.bf16.msra.mxu0 0
        %10465 = vmatprep.subr.bf16.mxu0 0
        %10466 = vmatpush1.bf16.msra.mxu0 0
        %10467 = vmatprep.subr.bf16.mxu0 0
        %10468 = vmatpush1.bf16.msra.mxu0 0
        %10469 = vmatprep.mubr.bf16.mxu0 0
        %10470 = vmatmul.mubr.bf16.gmra.mrb[0].mxu0 %v10435
        %v10471 = vpop.f32.mrb[0].mxu0
        %v10472 = vadd.f32 0.0, %v10471
        %v10473 = vpop.f32.mrb[0].mxu0
        %v10474 = vadd.f32 0.0, %v10473
        %v10475 = vpop.f32.mrb[0].mxu0
        %v10476 = vpop.f32.mrb[0].mxu0
        %10477 = vdwg.mxu0
        %10478 = vmatprep.subr.bf16.mxu0 %v10381
        %10479 = vmatpush1.bf16.msra.mxu0 %v10380
        %10480 = vmatprep.subr.bf16.mxu0 %v10388
        %10481 = vmatpush1.bf16.msra.mxu0 %v10387
        %10482 = vmatprep.subr.bf16.mxu0 %v10395
        %10483 = vmatpush1.bf16.msra.mxu0 %v10394
        %10484 = vmatprep.subr.bf16.mxu0 %v10402
        %10485 = vmatpush1.bf16.msra.mxu0 %v10401
        %10486 = vmatprep.subr.bf16.mxu0 0
        %10487 = vmatpush1.bf16.msra.mxu0 0
        %10488 = vmatprep.subr.bf16.mxu0 0
        %10489 = vmatpush1.bf16.msra.mxu0 0
        %10490 = vmatprep.subr.bf16.mxu0 0
        %10491 = vmatpush1.bf16.msra.mxu0 0
        %10492 = vmatprep.subr.bf16.mxu0 0
        %10493 = vmatpush1.bf16.msra.mxu0 0
        %10494 = vmatprep.subr.bf16.mxu0 0
        %10495 = vmatpush1.bf16.msra.mxu0 0
        %10496 = vmatprep.subr.bf16.mxu0 0
        %10497 = vmatpush1.bf16.msra.mxu0 0
        %10498 = vmatprep.subr.bf16.mxu0 0
        %10499 = vmatpush1.bf16.msra.mxu0 0
        %10500 = vmatprep.subr.bf16.mxu0 0
        %10501 = vmatpush1.bf16.msra.mxu0 0
        %10502 = vmatprep.subr.bf16.mxu0 0
        %10503 = vmatpush1.bf16.msra.mxu0 0
        %10504 = vmatprep.subr.bf16.mxu0 0
        %10505 = vmatpush1.bf16.msra.mxu0 0
        %10506 = vmatprep.subr.bf16.mxu0 0
        %10507 = vmatpush1.bf16.msra.mxu0 0
        %10508 = vmatprep.subr.bf16.mxu0 0
        %10509 = vmatpush1.bf16.msra.mxu0 0
        %10510 = vmatprep.mubr.bf16.mxu0 0
        %10511 = vmatmul.mubr.bf16.gmra.mrb[0].mxu0 %v10435
        %v10512 = vpop.f32.mrb[0].mxu0
        %v10513 = vadd.f32 0.0, %v10512
        %v10514 = vpop.f32.mrb[0].mxu0
        %v10515 = vadd.f32 0.0, %v10514
        %v10516 = vpop.f32.mrb[0].mxu0
        %v10517 = vpop.f32.mrb[0].mxu0
        %10518 = vdwg.mxu0
        %10519 = vmatprep.subr.bf16.mxu0 %v10383
        %10520 = vmatpush1.bf16.msra.mxu0 %v10382
        %10521 = vmatprep.subr.bf16.mxu0 %v10390
        %10522 = vmatpush1.bf16.msra.mxu0 %v10389
        %10523 = vmatprep.subr.bf16.mxu0 %v10397
        %10524 = vmatpush1.bf16.msra.mxu0 %v10396
        %10525 = vmatprep.subr.bf16.mxu0 %v10404
        %10526 = vmatpush1.bf16.msra.mxu0 %v10403
        %10527 = vmatprep.subr.bf16.mxu0 0
        %10528 = vmatpush1.bf16.msra.mxu0 0
        %10529 = vmatprep.subr.bf16.mxu0 0
        %10530 = vmatpush1.bf16.msra.mxu0 0
        %10531 = vmatprep.subr.bf16.mxu0 0
        %10532 = vmatpush1.bf16.msra.mxu0 0
        %10533 = vmatprep.subr.bf16.mxu0 0
        %10534 = vmatpush1.bf16.msra.mxu0 0
        %10535 = vmatprep.subr.bf16.mxu0 0
        %10536 = vmatpush1.bf16.msra.mxu0 0
        %10537 = vmatprep.subr.bf16.mxu0 0
        %10538 = vmatpush1.bf16.msra.mxu0 0
        %10539 = vmatprep.subr.bf16.mxu0 0
        %10540 = vmatpush1.bf16.msra.mxu0 0
        %10541 = vmatprep.subr.bf16.mxu0 0
        %10542 = vmatpush1.bf16.msra.mxu0 0
        %10543 = vmatprep.subr.bf16.mxu0 0
        %10544 = vmatpush1.bf16.msra.mxu0 0
        %10545 = vmatprep.subr.bf16.mxu0 0
        %10546 = vmatpush1.bf16.msra.mxu0 0
        %10547 = vmatprep.subr.bf16.mxu0 0
        %10548 = vmatpush1.bf16.msra.mxu0 0
        %10549 = vmatprep.subr.bf16.mxu0 0
        %10550 = vmatpush1.bf16.msra.mxu0 0
        %10551 = vmatprep.mubr.bf16.mxu0 0
        %10552 = vmatmul.mubr.bf16.gmra.mrb[0].mxu0 %v10435
        %v10553 = vpop.f32.mrb[0].mxu0
        %v10554 = vadd.f32 0.0, %v10553
        %v10555 = vpop.f32.mrb[0].mxu0
        %v10556 = vadd.f32 0.0, %v10555
        %v10557 = vpop.f32.mrb[0].mxu0
        %v10558 = vpop.f32.mrb[0].mxu0
        %10559 = vdwg.mxu0
        %10560 = vmatprep.subr.bf16.mxu0 0
        %10561 = vmatpush1.bf16.msra.mxu0 %v10384
        %10562 = vmatprep.subr.bf16.mxu0 0
        %10563 = vmatpush1.bf16.msra.mxu0 %v10391
        %10564 = vmatprep.subr.bf16.mxu0 0
        %10565 = vmatpush1.bf16.msra.mxu0 %v10398
        %10566 = vmatprep.subr.bf16.mxu0 0
        %10567 = vmatpush1.bf16.msra.mxu0 %v10405
        %10568 = vmatprep.subr.bf16.mxu0 0
        %10569 = vmatpush1.bf16.msra.mxu0 0
        %10570 = vmatprep.subr.bf16.mxu0 0
        %10571 = vmatpush1.bf16.msra.mxu0 0
        %10572 = vmatprep.subr.bf16.mxu0 0
        %10573 = vmatpush1.bf16.msra.mxu0 0
        %10574 = vmatprep.subr.bf16.mxu0 0
        %10575 = vmatpush1.bf16.msra.mxu0 0
        %10576 = vmatprep.subr.bf16.mxu0 0
        %10577 = vmatpush1.bf16.msra.mxu0 0
        %10578 = vmatprep.subr.bf16.mxu0 0
        %10579 = vmatpush1.bf16.msra.mxu0 0
        %10580 = vmatprep.subr.bf16.mxu0 0
        %10581 = vmatpush1.bf16.msra.mxu0 0
        %10582 = vmatprep.subr.bf16.mxu0 0
        %10583 = vmatpush1.bf16.msra.mxu0 0
        %10584 = vmatprep.subr.bf16.mxu0 0
        %10585 = vmatpush1.bf16.msra.mxu0 0
        %10586 = vmatprep.subr.bf16.mxu0 0
        %10587 = vmatpush1.bf16.msra.mxu0 0
        %10588 = vmatprep.subr.bf16.mxu0 0
        %10589 = vmatpush1.bf16.msra.mxu0 0
        %10590 = vmatprep.subr.bf16.mxu0 0
        %10591 = vmatpush1.bf16.msra.mxu0 0
        %10592 = vmatprep.mubr.bf16.mxu0 0
        %10593 = vmatmul.mubr.bf16.gmra.mrb[0].mxu0 %v10435
        %v10594 = vpop.f32.mrb[0].mxu0
        %v10595 = vadd.f32 0.0, %v10594
        %v10596 = vpop.f32.mrb[0].mxu0
        %v10597 = vpop.f32.mrb[0].mxu0
        %v10598 = vpop.f32.mrb[0].mxu0
        %10599 = vdwg.mxu0
        %v10600 = vadd.f32 %v9146, %v10472
        %v10601 = vadd.f32 %v9147, %v10474
        %v10602 = vadd.f32 %v9148, %v10513
        %v10603 = vadd.f32 %v9149, %v10515
        %v10604 = vadd.f32 %v9150, %v10554
        %v10605 = vadd.f32 %v9151, %v10556
        %v10606 = vadd.f32 %v9152, %v10595
        %s10607 = scalar_lea.vmem %s352, 6048 [#allocation8]
        %v10608 = vld [vmem:[%s10607] sm:$0xff]
        %v10609 = vld [vmem:[%s10607 + $0x8] sm:$0xff]
        %v10610 = vld [vmem:[%s10607 + $0x10] sm:$0xff]
        %v10611 = vld [vmem:[%s10607 + $0x18] sm:$0xf]
        %v10612 = vld [vmem:[%s10607 + $0x1c] sm:$0xff]
        %v10613 = vld [vmem:[%s10607 + $0x24] sm:$0xff]
        %v10614 = vld [vmem:[%s10607 + $0x2c] sm:$0xff]
        %v10615 = vld [vmem:[%s10607 + $0x34] sm:$0xf]
        %v10616 = vld [vmem:[%s10607 + $0x38] sm:$0xff]
        %v10617 = vld [vmem:[%s10607 + $0x40] sm:$0xff]
        %v10618 = vld [vmem:[%s10607 + $0x48] sm:$0xff]
        %v10619 = vld [vmem:[%s10607 + $0x50] sm:$0xf]
        %v10620 = vld [vmem:[%s10607 + $0x54] sm:$0xff]
        %v10621 = vld [vmem:[%s10607 + $0x5c] sm:$0xff]
        %v10622 = vld [vmem:[%s10607 + $0x64] sm:$0xff]
        %v10623 = vld [vmem:[%s10607 + $0x6c] sm:$0xf]
        %v10624 = vld [vmem:[%s10607 + $0x70] sm:$0xff]
        %v10625 = vld [vmem:[%s10607 + $0x78] sm:$0xff]
        %v10626 = vld [vmem:[%s10607 + $0x80] sm:$0xff]
        %v10627 = vld [vmem:[%s10607 + $0x88] sm:$0xf]
        %v10628 = vld [vmem:[%s10607 + $0x8c] sm:$0xff]
        %v10629 = vld [vmem:[%s10607 + $0x94] sm:$0xff]
        %v10630 = vld [vmem:[%s10607 + $0x9c] sm:$0xff]
        %v10631 = vld [vmem:[%s10607 + $0xa4] sm:$0xf]
        %v10632 = vld [vmem:[%s10607 + $0xa8] sm:$0xff]
        %v10633 = vld [vmem:[%s10607 + $0xb0] sm:$0xff]
        %v10634 = vld [vmem:[%s10607 + $0xb8] sm:$0xff]
        %v10635 = vld [vmem:[%s10607 + $0xc0] sm:$0xf]
        %v10636 = vld [vmem:[%s10607 + $0xc4] sm:$0xff]
        %v10637 = vld [vmem:[%s10607 + $0xcc] sm:$0xff]
        %v10638 = vld [vmem:[%s10607 + $0xd4] sm:$0xff]
        %v10639 = vld [vmem:[%s10607 + $0xdc] sm:$0xf]
        %v10640 = vrot.slane %v7028, 5
        %v10673 = vunpack.c.l.b16 %v10608
        %v10674 = vunpack.c.h.b16 %v10608
        %v10675 = vunpack.c.l.b16 %v10609
        %v10676 = vunpack.c.h.b16 %v10609
        %v10677 = vunpack.c.l.b16 %v10610
        %v10678 = vunpack.c.h.b16 %v10610
        %v10679 = vunpack.c.l.b16 %v10611
        %v10680 = vunpack.c.l.b16 %v10612
        %v10681 = vunpack.c.h.b16 %v10612
        %v10682 = vunpack.c.l.b16 %v10613
        %v10683 = vunpack.c.h.b16 %v10613
        %v10684 = vunpack.c.l.b16 %v10614
        %v10685 = vunpack.c.h.b16 %v10614
        %v10686 = vunpack.c.l.b16 %v10615
        %v10687 = vunpack.c.l.b16 %v10616
        %v10688 = vunpack.c.h.b16 %v10616
        %v10689 = vunpack.c.l.b16 %v10617
        %v10690 = vunpack.c.h.b16 %v10617
        %v10691 = vunpack.c.l.b16 %v10618
        %v10692 = vunpack.c.h.b16 %v10618
        %v10693 = vunpack.c.l.b16 %v10619
        %v10694 = vunpack.c.l.b16 %v10620
        %v10695 = vunpack.c.h.b16 %v10620
        %v10696 = vunpack.c.l.b16 %v10621
        %v10697 = vunpack.c.h.b16 %v10621
        %v10698 = vunpack.c.l.b16 %v10622
        %v10699 = vunpack.c.h.b16 %v10622
        %v10700 = vunpack.c.l.b16 %v10623
        %v10701 = vunpack.c.l.b16 %v10624
        %v10702 = vunpack.c.h.b16 %v10624
        %v10703 = vunpack.c.l.b16 %v10625
        %v10704 = vunpack.c.h.b16 %v10625
        %v10705 = vunpack.c.l.b16 %v10626
        %v10706 = vunpack.c.h.b16 %v10626
        %v10707 = vunpack.c.l.b16 %v10627
        %v10708 = vunpack.c.l.b16 %v10628
        %v10709 = vunpack.c.h.b16 %v10628
        %v10710 = vunpack.c.l.b16 %v10629
        %v10711 = vunpack.c.h.b16 %v10629
        %v10712 = vunpack.c.l.b16 %v10630
        %v10713 = vunpack.c.h.b16 %v10630
        %v10714 = vunpack.c.l.b16 %v10631
        %v10715 = vunpack.c.l.b16 %v10632
        %v10716 = vunpack.c.h.b16 %v10632
        %v10717 = vunpack.c.l.b16 %v10633
        %v10718 = vunpack.c.h.b16 %v10633
        %v10719 = vunpack.c.l.b16 %v10634
        %v10720 = vunpack.c.h.b16 %v10634
        %v10721 = vunpack.c.l.b16 %v10635
        %v10722 = vunpack.c.l.b16 %v10636
        %v10723 = vunpack.c.h.b16 %v10636
        %v10724 = vunpack.c.l.b16 %v10637
        %v10725 = vunpack.c.h.b16 %v10637
        %v10726 = vunpack.c.l.b16 %v10638
        %v10727 = vunpack.c.h.b16 %v10638
        %v10728 = vunpack.c.l.b16 %v10639
        %v10729 = vpack.c.b16 %v10680, %v10673
        %v10730 = vpack.c.b16 %v10681, %v10674
        %v10731 = vpack.c.b16 %v10682, %v10675
        %v10732 = vpack.c.b16 %v10683, %v10676
        %v10733 = vpack.c.b16 %v10684, %v10677
        %v10734 = vpack.c.b16 %v10685, %v10678
        %v10735 = vpack.c.b16 %v10686, %v10679
        %v10736 = vpack.c.b16 %v10694, %v10687
        %v10737 = vpack.c.b16 %v10695, %v10688
        %v10738 = vpack.c.b16 %v10696, %v10689
        %v10739 = vpack.c.b16 %v10697, %v10690
        %v10740 = vpack.c.b16 %v10698, %v10691
        %v10741 = vpack.c.b16 %v10699, %v10692
        %v10742 = vpack.c.b16 %v10700, %v10693
        %v10743 = vpack.c.b16 %v10708, %v10701
        %v10744 = vpack.c.b16 %v10709, %v10702
        %v10745 = vpack.c.b16 %v10710, %v10703
        %v10746 = vpack.c.b16 %v10711, %v10704
        %v10747 = vpack.c.b16 %v10712, %v10705
        %v10748 = vpack.c.b16 %v10713, %v10706
        %v10749 = vpack.c.b16 %v10714, %v10707
        %v10750 = vpack.c.b16 %v10722, %v10715
        %v10751 = vpack.c.b16 %v10723, %v10716
        %v10752 = vpack.c.b16 %v10724, %v10717
        %v10753 = vpack.c.b16 %v10725, %v10718
        %v10754 = vpack.c.b16 %v10726, %v10719
        %v10755 = vpack.c.b16 %v10727, %v10720
        %v10756 = vpack.c.b16 %v10728, %v10721
        %v10786 = vsel %vm996, %v10640, 0
        %10788 = vmatprep.subr.bf16.mxu0 %v10730
        %10789 = vmatpush1.bf16.msra.mxu0 %v10729
        %10790 = vmatprep.subr.bf16.mxu0 %v10737
        %10791 = vmatpush1.bf16.msra.mxu0 %v10736
        %10792 = vmatprep.subr.bf16.mxu0 %v10744
        %10793 = vmatpush1.bf16.msra.mxu0 %v10743
        %10794 = vmatprep.subr.bf16.mxu0 %v10751
        %10795 = vmatpush1.bf16.msra.mxu0 %v10750
        %10796 = vmatprep.subr.bf16.mxu0 0
        %10797 = vmatpush1.bf16.msra.mxu0 0
        %10798 = vmatprep.subr.bf16.mxu0 0
        %10799 = vmatpush1.bf16.msra.mxu0 0
        %10800 = vmatprep.subr.bf16.mxu0 0
        %10801 = vmatpush1.bf16.msra.mxu0 0
        %10802 = vmatprep.subr.bf16.mxu0 0
        %10803 = vmatpush1.bf16.msra.mxu0 0
        %10804 = vmatprep.subr.bf16.mxu0 0
        %10805 = vmatpush1.bf16.msra.mxu0 0
        %10806 = vmatprep.subr.bf16.mxu0 0
        %10807 = vmatpush1.bf16.msra.mxu0 0
        %10808 = vmatprep.subr.bf16.mxu0 0
        %10809 = vmatpush1.bf16.msra.mxu0 0
        %10810 = vmatprep.subr.bf16.mxu0 0
        %10811 = vmatpush1.bf16.msra.mxu0 0
        %10812 = vmatprep.subr.bf16.mxu0 0
        %10813 = vmatpush1.bf16.msra.mxu0 0
        %10814 = vmatprep.subr.bf16.mxu0 0
        %10815 = vmatpush1.bf16.msra.mxu0 0
        %10816 = vmatprep.subr.bf16.mxu0 0
        %10817 = vmatpush1.bf16.msra.mxu0 0
        %10818 = vmatprep.subr.bf16.mxu0 0
        %10819 = vmatpush1.bf16.msra.mxu0 0
        %10820 = vmatprep.mubr.bf16.mxu0 0
        %10821 = vmatmul.mubr.bf16.gmra.mrb[0].mxu0 %v10786
        %v10822 = vpop.f32.mrb[0].mxu0
        %v10823 = vadd.f32 0.0, %v10822
        %v10824 = vpop.f32.mrb[0].mxu0
        %v10825 = vadd.f32 0.0, %v10824
        %v10826 = vpop.f32.mrb[0].mxu0
        %v10827 = vpop.f32.mrb[0].mxu0
        %10828 = vdwg.mxu0
        %10829 = vmatprep.subr.bf16.mxu0 %v10732
        %10830 = vmatpush1.bf16.msra.mxu0 %v10731
        %10831 = vmatprep.subr.bf16.mxu0 %v10739
        %10832 = vmatpush1.bf16.msra.mxu0 %v10738
        %10833 = vmatprep.subr.bf16.mxu0 %v10746
        %10834 = vmatpush1.bf16.msra.mxu0 %v10745
        %10835 = vmatprep.subr.bf16.mxu0 %v10753
        %10836 = vmatpush1.bf16.msra.mxu0 %v10752
        %10837 = vmatprep.subr.bf16.mxu0 0
        %10838 = vmatpush1.bf16.msra.mxu0 0
        %10839 = vmatprep.subr.bf16.mxu0 0
        %10840 = vmatpush1.bf16.msra.mxu0 0
        %10841 = vmatprep.subr.bf16.mxu0 0
        %10842 = vmatpush1.bf16.msra.mxu0 0
        %10843 = vmatprep.subr.bf16.mxu0 0
        %10844 = vmatpush1.bf16.msra.mxu0 0
        %10845 = vmatprep.subr.bf16.mxu0 0
        %10846 = vmatpush1.bf16.msra.mxu0 0
        %10847 = vmatprep.subr.bf16.mxu0 0
        %10848 = vmatpush1.bf16.msra.mxu0 0
        %10849 = vmatprep.subr.bf16.mxu0 0
        %10850 = vmatpush1.bf16.msra.mxu0 0
        %10851 = vmatprep.subr.bf16.mxu0 0
        %10852 = vmatpush1.bf16.msra.mxu0 0
        %10853 = vmatprep.subr.bf16.mxu0 0
        %10854 = vmatpush1.bf16.msra.mxu0 0
        %10855 = vmatprep.subr.bf16.mxu0 0
        %10856 = vmatpush1.bf16.msra.mxu0 0
        %10857 = vmatprep.subr.bf16.mxu0 0
        %10858 = vmatpush1.bf16.msra.mxu0 0
        %10859 = vmatprep.subr.bf16.mxu0 0
        %10860 = vmatpush1.bf16.msra.mxu0 0
        %10861 = vmatprep.mubr.bf16.mxu0 0
        %10862 = vmatmul.mubr.bf16.gmra.mrb[0].mxu0 %v10786
        %v10863 = vpop.f32.mrb[0].mxu0
        %v10864 = vadd.f32 0.0, %v10863
        %v10865 = vpop.f32.mrb[0].mxu0
        %v10866 = vadd.f32 0.0, %v10865
        %v10867 = vpop.f32.mrb[0].mxu0
        %v10868 = vpop.f32.mrb[0].mxu0
        %10869 = vdwg.mxu0
        %10870 = vmatprep.subr.bf16.mxu0 %v10734
        %10871 = vmatpush1.bf16.msra.mxu0 %v10733
        %10872 = vmatprep.subr.bf16.mxu0 %v10741
        %10873 = vmatpush1.bf16.msra.mxu0 %v10740
        %10874 = vmatprep.subr.bf16.mxu0 %v10748
        %10875 = vmatpush1.bf16.msra.mxu0 %v10747
        %10876 = vmatprep.subr.bf16.mxu0 %v10755
        %10877 = vmatpush1.bf16.msra.mxu0 %v10754
        %10878 = vmatprep.subr.bf16.mxu0 0
        %10879 = vmatpush1.bf16.msra.mxu0 0
        %10880 = vmatprep.subr.bf16.mxu0 0
        %10881 = vmatpush1.bf16.msra.mxu0 0
        %10882 = vmatprep.subr.bf16.mxu0 0
        %10883 = vmatpush1.bf16.msra.mxu0 0
        %10884 = vmatprep.subr.bf16.mxu0 0
        %10885 = vmatpush1.bf16.msra.mxu0 0
        %10886 = vmatprep.subr.bf16.mxu0 0
        %10887 = vmatpush1.bf16.msra.mxu0 0
        %10888 = vmatprep.subr.bf16.mxu0 0
        %10889 = vmatpush1.bf16.msra.mxu0 0
        %10890 = vmatprep.subr.bf16.mxu0 0
        %10891 = vmatpush1.bf16.msra.mxu0 0
        %10892 = vmatprep.subr.bf16.mxu0 0
        %10893 = vmatpush1.bf16.msra.mxu0 0
        %10894 = vmatprep.subr.bf16.mxu0 0
        %10895 = vmatpush1.bf16.msra.mxu0 0
        %10896 = vmatprep.subr.bf16.mxu0 0
        %10897 = vmatpush1.bf16.msra.mxu0 0
        %10898 = vmatprep.subr.bf16.mxu0 0
        %10899 = vmatpush1.bf16.msra.mxu0 0
        %10900 = vmatprep.subr.bf16.mxu0 0
        %10901 = vmatpush1.bf16.msra.mxu0 0
        %10902 = vmatprep.mubr.bf16.mxu0 0
        %10903 = vmatmul.mubr.bf16.gmra.mrb[0].mxu0 %v10786
        %v10904 = vpop.f32.mrb[0].mxu0
        %v10905 = vadd.f32 0.0, %v10904
        %v10906 = vpop.f32.mrb[0].mxu0
        %v10907 = vadd.f32 0.0, %v10906
        %v10908 = vpop.f32.mrb[0].mxu0
        %v10909 = vpop.f32.mrb[0].mxu0
        %10910 = vdwg.mxu0
        %10911 = vmatprep.subr.bf16.mxu0 0
        %10912 = vmatpush1.bf16.msra.mxu0 %v10735
        %10913 = vmatprep.subr.bf16.mxu0 0
        %10914 = vmatpush1.bf16.msra.mxu0 %v10742
        %10915 = vmatprep.subr.bf16.mxu0 0
        %10916 = vmatpush1.bf16.msra.mxu0 %v10749
        %10917 = vmatprep.subr.bf16.mxu0 0
        %10918 = vmatpush1.bf16.msra.mxu0 %v10756
        %10919 = vmatprep.subr.bf16.mxu0 0
        %10920 = vmatpush1.bf16.msra.mxu0 0
        %10921 = vmatprep.subr.bf16.mxu0 0
        %10922 = vmatpush1.bf16.msra.mxu0 0
        %10923 = vmatprep.subr.bf16.mxu0 0
        %10924 = vmatpush1.bf16.msra.mxu0 0
        %10925 = vmatprep.subr.bf16.mxu0 0
        %10926 = vmatpush1.bf16.msra.mxu0 0
        %10927 = vmatprep.subr.bf16.mxu0 0
        %10928 = vmatpush1.bf16.msra.mxu0 0
        %10929 = vmatprep.subr.bf16.mxu0 0
        %10930 = vmatpush1.bf16.msra.mxu0 0
        %10931 = vmatprep.subr.bf16.mxu0 0
        %10932 = vmatpush1.bf16.msra.mxu0 0
        %10933 = vmatprep.subr.bf16.mxu0 0
        %10934 = vmatpush1.bf16.msra.mxu0 0
        %10935 = vmatprep.subr.bf16.mxu0 0
        %10936 = vmatpush1.bf16.msra.mxu0 0
        %10937 = vmatprep.subr.bf16.mxu0 0
        %10938 = vmatpush1.bf16.msra.mxu0 0
        %10939 = vmatprep.subr.bf16.mxu0 0
        %10940 = vmatpush1.bf16.msra.mxu0 0
        %10941 = vmatprep.subr.bf16.mxu0 0
        %10942 = vmatpush1.bf16.msra.mxu0 0
        %10943 = vmatprep.mubr.bf16.mxu0 0
        %10944 = vmatmul.mubr.bf16.gmra.mrb[0].mxu0 %v10786
        %v10945 = vpop.f32.mrb[0].mxu0
        %v10946 = vadd.f32 0.0, %v10945
        %v10947 = vpop.f32.mrb[0].mxu0
        %v10948 = vpop.f32.mrb[0].mxu0
        %v10949 = vpop.f32.mrb[0].mxu0
        %10950 = vdwg.mxu0
        %v10951 = vadd.f32 %v9497, %v10823
        %v10952 = vadd.f32 %v9498, %v10825
        %v10953 = vadd.f32 %v9499, %v10864
        %v10954 = vadd.f32 %v9500, %v10866
        %v10955 = vadd.f32 %v9501, %v10905
        %v10956 = vadd.f32 %v9502, %v10907
        %v10957 = vadd.f32 %v9503, %v10946
        %s10958 = scalar_lea.vmem %s352, 6272 [#allocation8]
        %v10959 = vld [vmem:[%s10958] sm:$0xff]
        %v10960 = vld [vmem:[%s10958 + $0x8] sm:$0xff]
        %v10961 = vld [vmem:[%s10958 + $0x10] sm:$0xff]
        %v10962 = vld [vmem:[%s10958 + $0x18] sm:$0xf]
        %v10963 = vld [vmem:[%s10958 + $0x1c] sm:$0xff]
        %v10964 = vld [vmem:[%s10958 + $0x24] sm:$0xff]
        %v10965 = vld [vmem:[%s10958 + $0x2c] sm:$0xff]
        %v10966 = vld [vmem:[%s10958 + $0x34] sm:$0xf]
        %v10967 = vld [vmem:[%s10958 + $0x38] sm:$0xff]
        %v10968 = vld [vmem:[%s10958 + $0x40] sm:$0xff]
        %v10969 = vld [vmem:[%s10958 + $0x48] sm:$0xff]
        %v10970 = vld [vmem:[%s10958 + $0x50] sm:$0xf]
        %v10971 = vld [vmem:[%s10958 + $0x54] sm:$0xff]
        %v10972 = vld [vmem:[%s10958 + $0x5c] sm:$0xff]
        %v10973 = vld [vmem:[%s10958 + $0x64] sm:$0xff]
        %v10974 = vld [vmem:[%s10958 + $0x6c] sm:$0xf]
        %v10975 = vld [vmem:[%s10958 + $0x70] sm:$0xff]
        %v10976 = vld [vmem:[%s10958 + $0x78] sm:$0xff]
        %v10977 = vld [vmem:[%s10958 + $0x80] sm:$0xff]
        %v10978 = vld [vmem:[%s10958 + $0x88] sm:$0xf]
        %v10979 = vld [vmem:[%s10958 + $0x8c] sm:$0xff]
        %v10980 = vld [vmem:[%s10958 + $0x94] sm:$0xff]
        %v10981 = vld [vmem:[%s10958 + $0x9c] sm:$0xff]
        %v10982 = vld [vmem:[%s10958 + $0xa4] sm:$0xf]
        %v10983 = vld [vmem:[%s10958 + $0xa8] sm:$0xff]
        %v10984 = vld [vmem:[%s10958 + $0xb0] sm:$0xff]
        %v10985 = vld [vmem:[%s10958 + $0xb8] sm:$0xff]
        %v10986 = vld [vmem:[%s10958 + $0xc0] sm:$0xf]
        %v10987 = vld [vmem:[%s10958 + $0xc4] sm:$0xff]
        %v10988 = vld [vmem:[%s10958 + $0xcc] sm:$0xff]
        %v10989 = vld [vmem:[%s10958 + $0xd4] sm:$0xff]
        %v10990 = vld [vmem:[%s10958 + $0xdc] sm:$0xf]
        %v10991 = vrot.slane %v818, 6
        %v11024 = vunpack.c.l.b16 %v10959
        %v11025 = vunpack.c.h.b16 %v10959
        %v11026 = vunpack.c.l.b16 %v10960
        %v11027 = vunpack.c.h.b16 %v10960
        %v11028 = vunpack.c.l.b16 %v10961
        %v11029 = vunpack.c.h.b16 %v10961
        %v11030 = vunpack.c.l.b16 %v10962
        %v11031 = vunpack.c.l.b16 %v10963
        %v11032 = vunpack.c.h.b16 %v10963
        %v11033 = vunpack.c.l.b16 %v10964
        %v11034 = vunpack.c.h.b16 %v10964
        %v11035 = vunpack.c.l.b16 %v10965
        %v11036 = vunpack.c.h.b16 %v10965
        %v11037 = vunpack.c.l.b16 %v10966
        %v11038 = vunpack.c.l.b16 %v10967
        %v11039 = vunpack.c.h.b16 %v10967
        %v11040 = vunpack.c.l.b16 %v10968
        %v11041 = vunpack.c.h.b16 %v10968
        %v11042 = vunpack.c.l.b16 %v10969
        %v11043 = vunpack.c.h.b16 %v10969
        %v11044 = vunpack.c.l.b16 %v10970
        %v11045 = vunpack.c.l.b16 %v10971
        %v11046 = vunpack.c.h.b16 %v10971
        %v11047 = vunpack.c.l.b16 %v10972
        %v11048 = vunpack.c.h.b16 %v10972
        %v11049 = vunpack.c.l.b16 %v10973
        %v11050 = vunpack.c.h.b16 %v10973
        %v11051 = vunpack.c.l.b16 %v10974
        %v11052 = vunpack.c.l.b16 %v10975
        %v11053 = vunpack.c.h.b16 %v10975
        %v11054 = vunpack.c.l.b16 %v10976
        %v11055 = vunpack.c.h.b16 %v10976
        %v11056 = vunpack.c.l.b16 %v10977
        %v11057 = vunpack.c.h.b16 %v10977
        %v11058 = vunpack.c.l.b16 %v10978
        %v11059 = vunpack.c.l.b16 %v10979
        %v11060 = vunpack.c.h.b16 %v10979
        %v11061 = vunpack.c.l.b16 %v10980
        %v11062 = vunpack.c.h.b16 %v10980
        %v11063 = vunpack.c.l.b16 %v10981
        %v11064 = vunpack.c.h.b16 %v10981
        %v11065 = vunpack.c.l.b16 %v10982
        %v11066 = vunpack.c.l.b16 %v10983
        %v11067 = vunpack.c.h.b16 %v10983
        %v11068 = vunpack.c.l.b16 %v10984
        %v11069 = vunpack.c.h.b16 %v10984
        %v11070 = vunpack.c.l.b16 %v10985
        %v11071 = vunpack.c.h.b16 %v10985
        %v11072 = vunpack.c.l.b16 %v10986
        %v11073 = vunpack.c.l.b16 %v10987
        %v11074 = vunpack.c.h.b16 %v10987
        %v11075 = vunpack.c.l.b16 %v10988
        %v11076 = vunpack.c.h.b16 %v10988
        %v11077 = vunpack.c.l.b16 %v10989
        %v11078 = vunpack.c.h.b16 %v10989
        %v11079 = vunpack.c.l.b16 %v10990
        %v11080 = vpack.c.b16 %v11031, %v11024
        %v11081 = vpack.c.b16 %v11032, %v11025
        %v11082 = vpack.c.b16 %v11033, %v11026
        %v11083 = vpack.c.b16 %v11034, %v11027
        %v11084 = vpack.c.b16 %v11035, %v11028
        %v11085 = vpack.c.b16 %v11036, %v11029
        %v11086 = vpack.c.b16 %v11037, %v11030
        %v11087 = vpack.c.b16 %v11045, %v11038
        %v11088 = vpack.c.b16 %v11046, %v11039
        %v11089 = vpack.c.b16 %v11047, %v11040
        %v11090 = vpack.c.b16 %v11048, %v11041
        %v11091 = vpack.c.b16 %v11049, %v11042
        %v11092 = vpack.c.b16 %v11050, %v11043
        %v11093 = vpack.c.b16 %v11051, %v11044
        %v11094 = vpack.c.b16 %v11059, %v11052
        %v11095 = vpack.c.b16 %v11060, %v11053
        %v11096 = vpack.c.b16 %v11061, %v11054
        %v11097 = vpack.c.b16 %v11062, %v11055
        %v11098 = vpack.c.b16 %v11063, %v11056
        %v11099 = vpack.c.b16 %v11064, %v11057
        %v11100 = vpack.c.b16 %v11065, %v11058
        %v11101 = vpack.c.b16 %v11073, %v11066
        %v11102 = vpack.c.b16 %v11074, %v11067
        %v11103 = vpack.c.b16 %v11075, %v11068
        %v11104 = vpack.c.b16 %v11076, %v11069
        %v11105 = vpack.c.b16 %v11077, %v11070
        %v11106 = vpack.c.b16 %v11078, %v11071
        %v11107 = vpack.c.b16 %v11079, %v11072
        %v11137 = vsel %vm996, %v10991, 0
        %11139 = vmatprep.subr.bf16.mxu0 %v11081
        %11140 = vmatpush1.bf16.msra.mxu0 %v11080
        %11141 = vmatprep.subr.bf16.mxu0 %v11088
        %11142 = vmatpush1.bf16.msra.mxu0 %v11087
        %11143 = vmatprep.subr.bf16.mxu0 %v11095
        %11144 = vmatpush1.bf16.msra.mxu0 %v11094
        %11145 = vmatprep.subr.bf16.mxu0 %v11102
        %11146 = vmatpush1.bf16.msra.mxu0 %v11101
        %11147 = vmatprep.subr.bf16.mxu0 0
        %11148 = vmatpush1.bf16.msra.mxu0 0
        %11149 = vmatprep.subr.bf16.mxu0 0
        %11150 = vmatpush1.bf16.msra.mxu0 0
        %11151 = vmatprep.subr.bf16.mxu0 0
        %11152 = vmatpush1.bf16.msra.mxu0 0
        %11153 = vmatprep.subr.bf16.mxu0 0
        %11154 = vmatpush1.bf16.msra.mxu0 0
        %11155 = vmatprep.subr.bf16.mxu0 0
        %11156 = vmatpush1.bf16.msra.mxu0 0
        %11157 = vmatprep.subr.bf16.mxu0 0
        %11158 = vmatpush1.bf16.msra.mxu0 0
        %11159 = vmatprep.subr.bf16.mxu0 0
        %11160 = vmatpush1.bf16.msra.mxu0 0
        %11161 = vmatprep.subr.bf16.mxu0 0
        %11162 = vmatpush1.bf16.msra.mxu0 0
        %11163 = vmatprep.subr.bf16.mxu0 0
        %11164 = vmatpush1.bf16.msra.mxu0 0
        %11165 = vmatprep.subr.bf16.mxu0 0
        %11166 = vmatpush1.bf16.msra.mxu0 0
        %11167 = vmatprep.subr.bf16.mxu0 0
        %11168 = vmatpush1.bf16.msra.mxu0 0
        %11169 = vmatprep.subr.bf16.mxu0 0
        %11170 = vmatpush1.bf16.msra.mxu0 0
        %11171 = vmatprep.mubr.bf16.mxu0 0
        %11172 = vmatmul.mubr.bf16.gmra.mrb[0].mxu0 %v11137
        %v11173 = vpop.f32.mrb[0].mxu0
        %v11174 = vadd.f32 0.0, %v11173
        %v11175 = vpop.f32.mrb[0].mxu0
        %v11176 = vadd.f32 0.0, %v11175
        %v11177 = vpop.f32.mrb[0].mxu0
        %v11178 = vpop.f32.mrb[0].mxu0
        %11179 = vdwg.mxu0
        %11180 = vmatprep.subr.bf16.mxu0 %v11083
        %11181 = vmatpush1.bf16.msra.mxu0 %v11082
        %11182 = vmatprep.subr.bf16.mxu0 %v11090
        %11183 = vmatpush1.bf16.msra.mxu0 %v11089
        %11184 = vmatprep.subr.bf16.mxu0 %v11097
        %11185 = vmatpush1.bf16.msra.mxu0 %v11096
        %11186 = vmatprep.subr.bf16.mxu0 %v11104
        %11187 = vmatpush1.bf16.msra.mxu0 %v11103
        %11188 = vmatprep.subr.bf16.mxu0 0
        %11189 = vmatpush1.bf16.msra.mxu0 0
        %11190 = vmatprep.subr.bf16.mxu0 0
        %11191 = vmatpush1.bf16.msra.mxu0 0
        %11192 = vmatprep.subr.bf16.mxu0 0
        %11193 = vmatpush1.bf16.msra.mxu0 0
        %11194 = vmatprep.subr.bf16.mxu0 0
        %11195 = vmatpush1.bf16.msra.mxu0 0
        %11196 = vmatprep.subr.bf16.mxu0 0
        %11197 = vmatpush1.bf16.msra.mxu0 0
        %11198 = vmatprep.subr.bf16.mxu0 0
        %11199 = vmatpush1.bf16.msra.mxu0 0
        %11200 = vmatprep.subr.bf16.mxu0 0
        %11201 = vmatpush1.bf16.msra.mxu0 0
        %11202 = vmatprep.subr.bf16.mxu0 0
        %11203 = vmatpush1.bf16.msra.mxu0 0
        %11204 = vmatprep.subr.bf16.mxu0 0
        %11205 = vmatpush1.bf16.msra.mxu0 0
        %11206 = vmatprep.subr.bf16.mxu0 0
        %11207 = vmatpush1.bf16.msra.mxu0 0
        %11208 = vmatprep.subr.bf16.mxu0 0
        %11209 = vmatpush1.bf16.msra.mxu0 0
        %11210 = vmatprep.subr.bf16.mxu0 0
        %11211 = vmatpush1.bf16.msra.mxu0 0
        %11212 = vmatprep.mubr.bf16.mxu0 0
        %11213 = vmatmul.mubr.bf16.gmra.mrb[0].mxu0 %v11137
        %v11214 = vpop.f32.mrb[0].mxu0
        %v11215 = vadd.f32 0.0, %v11214
        %v11216 = vpop.f32.mrb[0].mxu0
        %v11217 = vadd.f32 0.0, %v11216
        %v11218 = vpop.f32.mrb[0].mxu0
        %v11219 = vpop.f32.mrb[0].mxu0
        %11220 = vdwg.mxu0
        %11221 = vmatprep.subr.bf16.mxu0 %v11085
        %11222 = vmatpush1.bf16.msra.mxu0 %v11084
        %11223 = vmatprep.subr.bf16.mxu0 %v11092
        %11224 = vmatpush1.bf16.msra.mxu0 %v11091
        %11225 = vmatprep.subr.bf16.mxu0 %v11099
        %11226 = vmatpush1.bf16.msra.mxu0 %v11098
        %11227 = vmatprep.subr.bf16.mxu0 %v11106
        %11228 = vmatpush1.bf16.msra.mxu0 %v11105
        %11229 = vmatprep.subr.bf16.mxu0 0
        %11230 = vmatpush1.bf16.msra.mxu0 0
        %11231 = vmatprep.subr.bf16.mxu0 0
        %11232 = vmatpush1.bf16.msra.mxu0 0
        %11233 = vmatprep.subr.bf16.mxu0 0
        %11234 = vmatpush1.bf16.msra.mxu0 0
        %11235 = vmatprep.subr.bf16.mxu0 0
        %11236 = vmatpush1.bf16.msra.mxu0 0
        %11237 = vmatprep.subr.bf16.mxu0 0
        %11238 = vmatpush1.bf16.msra.mxu0 0
        %11239 = vmatprep.subr.bf16.mxu0 0
        %11240 = vmatpush1.bf16.msra.mxu0 0
        %11241 = vmatprep.subr.bf16.mxu0 0
        %11242 = vmatpush1.bf16.msra.mxu0 0
        %11243 = vmatprep.subr.bf16.mxu0 0
        %11244 = vmatpush1.bf16.msra.mxu0 0
        %11245 = vmatprep.subr.bf16.mxu0 0
        %11246 = vmatpush1.bf16.msra.mxu0 0
        %11247 = vmatprep.subr.bf16.mxu0 0
        %11248 = vmatpush1.bf16.msra.mxu0 0
        %11249 = vmatprep.subr.bf16.mxu0 0
        %11250 = vmatpush1.bf16.msra.mxu0 0
        %11251 = vmatprep.subr.bf16.mxu0 0
        %11252 = vmatpush1.bf16.msra.mxu0 0
        %11253 = vmatprep.mubr.bf16.mxu0 0
        %11254 = vmatmul.mubr.bf16.gmra.mrb[0].mxu0 %v11137
        %v11255 = vpop.f32.mrb[0].mxu0
        %v11256 = vadd.f32 0.0, %v11255
        %v11257 = vpop.f32.mrb[0].mxu0
        %v11258 = vadd.f32 0.0, %v11257
        %v11259 = vpop.f32.mrb[0].mxu0
        %v11260 = vpop.f32.mrb[0].mxu0
        %11261 = vdwg.mxu0
        %11262 = vmatprep.subr.bf16.mxu0 0
        %11263 = vmatpush1.bf16.msra.mxu0 %v11086
        %11264 = vmatprep.subr.bf16.mxu0 0
        %11265 = vmatpush1.bf16.msra.mxu0 %v11093
        %11266 = vmatprep.subr.bf16.mxu0 0
        %11267 = vmatpush1.bf16.msra.mxu0 %v11100
        %11268 = vmatprep.subr.bf16.mxu0 0
        %11269 = vmatpush1.bf16.msra.mxu0 %v11107
        %11270 = vmatprep.subr.bf16.mxu0 0
        %11271 = vmatpush1.bf16.msra.mxu0 0
        %11272 = vmatprep.subr.bf16.mxu0 0
        %11273 = vmatpush1.bf16.msra.mxu0 0
        %11274 = vmatprep.subr.bf16.mxu0 0
        %11275 = vmatpush1.bf16.msra.mxu0 0
        %11276 = vmatprep.subr.bf16.mxu0 0
        %11277 = vmatpush1.bf16.msra.mxu0 0
        %11278 = vmatprep.subr.bf16.mxu0 0
        %11279 = vmatpush1.bf16.msra.mxu0 0
        %11280 = vmatprep.subr.bf16.mxu0 0
        %11281 = vmatpush1.bf16.msra.mxu0 0
        %11282 = vmatprep.subr.bf16.mxu0 0
        %11283 = vmatpush1.bf16.msra.mxu0 0
        %11284 = vmatprep.subr.bf16.mxu0 0
        %11285 = vmatpush1.bf16.msra.mxu0 0
        %11286 = vmatprep.subr.bf16.mxu0 0
        %11287 = vmatpush1.bf16.msra.mxu0 0
        %11288 = vmatprep.subr.bf16.mxu0 0
        %11289 = vmatpush1.bf16.msra.mxu0 0
        %11290 = vmatprep.subr.bf16.mxu0 0
        %11291 = vmatpush1.bf16.msra.mxu0 0
        %11292 = vmatprep.subr.bf16.mxu0 0
        %11293 = vmatpush1.bf16.msra.mxu0 0
        %11294 = vmatprep.mubr.bf16.mxu0 0
        %11295 = vmatmul.mubr.bf16.gmra.mrb[0].mxu0 %v11137
        %v11296 = vpop.f32.mrb[0].mxu0
        %v11297 = vadd.f32 0.0, %v11296
        %v11298 = vpop.f32.mrb[0].mxu0
        %v11299 = vpop.f32.mrb[0].mxu0
        %v11300 = vpop.f32.mrb[0].mxu0
        %11301 = vdwg.mxu0
        %v11309 = vcombine.low %v11174, %v11176
        %v11310 = vcombine.low %v11215, %v11217
        %v11311 = vcombine.low %v11256, %v11258
        %v11313 = vunpack.c.l.s4 1966171168
        %v11314 = vunpack.c.0.s8 %v11313
        %v11315 = vlaneseq
        %v11316 = vshrl.u32 %v11315, 7
        %v11317 = vsub.s32 %v11314, %v11316
        %v11318 = vrot.slane %v11309, %v11317
        %v11320 = vunpack.c.l.s4 1966171168
        %v11321 = vunpack.c.0.s8 %v11320
        %v11322 = vlaneseq
        %v11323 = vshrl.u32 %v11322, 7
        %v11324 = vsub.s32 %v11321, %v11323
        %v11325 = vrot.slane %v11310, %v11324
        %v11327 = vunpack.c.l.s4 1966171168
        %v11328 = vunpack.c.0.s8 %v11327
        %v11329 = vlaneseq
        %v11330 = vshrl.u32 %v11329, 7
        %v11331 = vsub.s32 %v11328, %v11330
        %v11332 = vrot.slane %v11311, %v11331
        %v11334 = vunpack.c.l.s4 1966171168
        %v11335 = vunpack.c.0.s8 %v11334
        %v11336 = vlaneseq
        %v11337 = vshrl.u32 %v11336, 7
        %v11338 = vsub.s32 %v11335, %v11337
        %v11339 = vrot.slane %v11297, %v11338
        %v11340 = vcombine.low %v11318, %v11325
        %v11341 = vcombine.low %v11332, %v11339
        %v11343 = vunpack.c.l.s4 1966171168
        %v11344 = vunpack.c.0.s8 %v11343
        %v11345 = vlaneseq
        %v11346 = vshrl.u32 %v11345, 7
        %v11347 = vsub.s32 %v11344, %v11346
        %v11348 = vrot.slane %v11340, %v11347
        %v11350 = vunpack.c.l.s4 1966171168
        %v11351 = vunpack.c.0.s8 %v11350
        %v11352 = vlaneseq
        %v11353 = vshrl.u32 %v11352, 7
        %v11354 = vsub.s32 %v11351, %v11353
        %v11355 = vrot.slane %v11341, %v11354
        %v11356 = vcombine.low %v11348, %v11355
        %v11358 = vadd.f32 %v9904, %v11356
        %s11359 = scalar_lea.vmem %s352, 6496 [#allocation8]
        %v11360 = vld [vmem:[%s11359] sm:$0xff]
        %v11361 = vld [vmem:[%s11359 + $0x8] sm:$0xff]
        %v11362 = vld [vmem:[%s11359 + $0x10] sm:$0xff]
        %v11363 = vld [vmem:[%s11359 + $0x18] sm:$0xf]
        %v11364 = vld [vmem:[%s11359 + $0x1c] sm:$0xff]
        %v11365 = vld [vmem:[%s11359 + $0x24] sm:$0xff]
        %v11366 = vld [vmem:[%s11359 + $0x2c] sm:$0xff]
        %v11367 = vld [vmem:[%s11359 + $0x34] sm:$0xf]
        %v11368 = vld [vmem:[%s11359 + $0x38] sm:$0xff]
        %v11369 = vld [vmem:[%s11359 + $0x40] sm:$0xff]
        %v11370 = vld [vmem:[%s11359 + $0x48] sm:$0xff]
        %v11371 = vld [vmem:[%s11359 + $0x50] sm:$0xf]
        %v11372 = vld [vmem:[%s11359 + $0x54] sm:$0xff]
        %v11373 = vld [vmem:[%s11359 + $0x5c] sm:$0xff]
        %v11374 = vld [vmem:[%s11359 + $0x64] sm:$0xff]
        %v11375 = vld [vmem:[%s11359 + $0x6c] sm:$0xf]
        %v11376 = vld [vmem:[%s11359 + $0x70] sm:$0xff]
        %v11377 = vld [vmem:[%s11359 + $0x78] sm:$0xff]
        %v11378 = vld [vmem:[%s11359 + $0x80] sm:$0xff]
        %v11379 = vld [vmem:[%s11359 + $0x88] sm:$0xf]
        %v11380 = vld [vmem:[%s11359 + $0x8c] sm:$0xff]
        %v11381 = vld [vmem:[%s11359 + $0x94] sm:$0xff]
        %v11382 = vld [vmem:[%s11359 + $0x9c] sm:$0xff]
        %v11383 = vld [vmem:[%s11359 + $0xa4] sm:$0xf]
        %v11384 = vld [vmem:[%s11359 + $0xa8] sm:$0xff]
        %v11385 = vld [vmem:[%s11359 + $0xb0] sm:$0xff]
        %v11386 = vld [vmem:[%s11359 + $0xb8] sm:$0xff]
        %v11387 = vld [vmem:[%s11359 + $0xc0] sm:$0xf]
        %v11388 = vld [vmem:[%s11359 + $0xc4] sm:$0xff]
        %v11389 = vld [vmem:[%s11359 + $0xcc] sm:$0xff]
        %v11390 = vld [vmem:[%s11359 + $0xd4] sm:$0xff]
        %v11391 = vld [vmem:[%s11359 + $0xdc] sm:$0xf]
        %v11392 = vrot.slane %v7028, 6
        %v11425 = vunpack.c.l.b16 %v11360
        %v11426 = vunpack.c.h.b16 %v11360
        %v11427 = vunpack.c.l.b16 %v11361
        %v11428 = vunpack.c.h.b16 %v11361
        %v11429 = vunpack.c.l.b16 %v11362
        %v11430 = vunpack.c.h.b16 %v11362
        %v11431 = vunpack.c.l.b16 %v11363
        %v11432 = vunpack.c.l.b16 %v11364
        %v11433 = vunpack.c.h.b16 %v11364
        %v11434 = vunpack.c.l.b16 %v11365
        %v11435 = vunpack.c.h.b16 %v11365
        %v11436 = vunpack.c.l.b16 %v11366
        %v11437 = vunpack.c.h.b16 %v11366
        %v11438 = vunpack.c.l.b16 %v11367
        %v11439 = vunpack.c.l.b16 %v11368
        %v11440 = vunpack.c.h.b16 %v11368
        %v11441 = vunpack.c.l.b16 %v11369
        %v11442 = vunpack.c.h.b16 %v11369
        %v11443 = vunpack.c.l.b16 %v11370
        %v11444 = vunpack.c.h.b16 %v11370
        %v11445 = vunpack.c.l.b16 %v11371
        %v11446 = vunpack.c.l.b16 %v11372
        %v11447 = vunpack.c.h.b16 %v11372
        %v11448 = vunpack.c.l.b16 %v11373
        %v11449 = vunpack.c.h.b16 %v11373
        %v11450 = vunpack.c.l.b16 %v11374
        %v11451 = vunpack.c.h.b16 %v11374
        %v11452 = vunpack.c.l.b16 %v11375
        %v11453 = vunpack.c.l.b16 %v11376
        %v11454 = vunpack.c.h.b16 %v11376
        %v11455 = vunpack.c.l.b16 %v11377
        %v11456 = vunpack.c.h.b16 %v11377
        %v11457 = vunpack.c.l.b16 %v11378
        %v11458 = vunpack.c.h.b16 %v11378
        %v11459 = vunpack.c.l.b16 %v11379
        %v11460 = vunpack.c.l.b16 %v11380
        %v11461 = vunpack.c.h.b16 %v11380
        %v11462 = vunpack.c.l.b16 %v11381
        %v11463 = vunpack.c.h.b16 %v11381
        %v11464 = vunpack.c.l.b16 %v11382
        %v11465 = vunpack.c.h.b16 %v11382
        %v11466 = vunpack.c.l.b16 %v11383
        %v11467 = vunpack.c.l.b16 %v11384
        %v11468 = vunpack.c.h.b16 %v11384
        %v11469 = vunpack.c.l.b16 %v11385
        %v11470 = vunpack.c.h.b16 %v11385
        %v11471 = vunpack.c.l.b16 %v11386
        %v11472 = vunpack.c.h.b16 %v11386
        %v11473 = vunpack.c.l.b16 %v11387
        %v11474 = vunpack.c.l.b16 %v11388
        %v11475 = vunpack.c.h.b16 %v11388
        %v11476 = vunpack.c.l.b16 %v11389
        %v11477 = vunpack.c.h.b16 %v11389
        %v11478 = vunpack.c.l.b16 %v11390
        %v11479 = vunpack.c.h.b16 %v11390
        %v11480 = vunpack.c.l.b16 %v11391
        %v11481 = vpack.c.b16 %v11432, %v11425
        %v11482 = vpack.c.b16 %v11433, %v11426
        %v11483 = vpack.c.b16 %v11434, %v11427
        %v11484 = vpack.c.b16 %v11435, %v11428
        %v11485 = vpack.c.b16 %v11436, %v11429
        %v11486 = vpack.c.b16 %v11437, %v11430
        %v11487 = vpack.c.b16 %v11438, %v11431
        %v11488 = vpack.c.b16 %v11446, %v11439
        %v11489 = vpack.c.b16 %v11447, %v11440
        %v11490 = vpack.c.b16 %v11448, %v11441
        %v11491 = vpack.c.b16 %v11449, %v11442
        %v11492 = vpack.c.b16 %v11450, %v11443
        %v11493 = vpack.c.b16 %v11451, %v11444
        %v11494 = vpack.c.b16 %v11452, %v11445
        %v11495 = vpack.c.b16 %v11460, %v11453
        %v11496 = vpack.c.b16 %v11461, %v11454
        %v11497 = vpack.c.b16 %v11462, %v11455
        %v11498 = vpack.c.b16 %v11463, %v11456
        %v11499 = vpack.c.b16 %v11464, %v11457
        %v11500 = vpack.c.b16 %v11465, %v11458
        %v11501 = vpack.c.b16 %v11466, %v11459
        %v11502 = vpack.c.b16 %v11474, %v11467
        %v11503 = vpack.c.b16 %v11475, %v11468
        %v11504 = vpack.c.b16 %v11476, %v11469
        %v11505 = vpack.c.b16 %v11477, %v11470
        %v11506 = vpack.c.b16 %v11478, %v11471
        %v11507 = vpack.c.b16 %v11479, %v11472
        %v11508 = vpack.c.b16 %v11480, %v11473
        %v11538 = vsel %vm996, %v11392, 0
        %11540 = vmatprep.subr.bf16.mxu0 %v11482
        %11541 = vmatpush1.bf16.msra.mxu0 %v11481
        %11542 = vmatprep.subr.bf16.mxu0 %v11489
        %11543 = vmatpush1.bf16.msra.mxu0 %v11488
        %11544 = vmatprep.subr.bf16.mxu0 %v11496
        %11545 = vmatpush1.bf16.msra.mxu0 %v11495
        %11546 = vmatprep.subr.bf16.mxu0 %v11503
        %11547 = vmatpush1.bf16.msra.mxu0 %v11502
        %11548 = vmatprep.subr.bf16.mxu0 0
        %11549 = vmatpush1.bf16.msra.mxu0 0
        %11550 = vmatprep.subr.bf16.mxu0 0
        %11551 = vmatpush1.bf16.msra.mxu0 0
        %11552 = vmatprep.subr.bf16.mxu0 0
        %11553 = vmatpush1.bf16.msra.mxu0 0
        %11554 = vmatprep.subr.bf16.mxu0 0
        %11555 = vmatpush1.bf16.msra.mxu0 0
        %11556 = vmatprep.subr.bf16.mxu0 0
        %11557 = vmatpush1.bf16.msra.mxu0 0
        %11558 = vmatprep.subr.bf16.mxu0 0
        %11559 = vmatpush1.bf16.msra.mxu0 0
        %11560 = vmatprep.subr.bf16.mxu0 0
        %11561 = vmatpush1.bf16.msra.mxu0 0
        %11562 = vmatprep.subr.bf16.mxu0 0
        %11563 = vmatpush1.bf16.msra.mxu0 0
        %11564 = vmatprep.subr.bf16.mxu0 0
        %11565 = vmatpush1.bf16.msra.mxu0 0
        %11566 = vmatprep.subr.bf16.mxu0 0
        %11567 = vmatpush1.bf16.msra.mxu0 0
        %11568 = vmatprep.subr.bf16.mxu0 0
        %11569 = vmatpush1.bf16.msra.mxu0 0
        %11570 = vmatprep.subr.bf16.mxu0 0
        %11571 = vmatpush1.bf16.msra.mxu0 0
        %11572 = vmatprep.mubr.bf16.mxu0 0
        %11573 = vmatmul.mubr.bf16.gmra.mrb[0].mxu0 %v11538
        %v11574 = vpop.f32.mrb[0].mxu0
        %v11575 = vadd.f32 0.0, %v11574
        %v11576 = vpop.f32.mrb[0].mxu0
        %v11577 = vadd.f32 0.0, %v11576
        %v11578 = vpop.f32.mrb[0].mxu0
        %v11579 = vpop.f32.mrb[0].mxu0
        %11580 = vdwg.mxu0
        %11581 = vmatprep.subr.bf16.mxu0 %v11484
        %11582 = vmatpush1.bf16.msra.mxu0 %v11483
        %11583 = vmatprep.subr.bf16.mxu0 %v11491
        %11584 = vmatpush1.bf16.msra.mxu0 %v11490
        %11585 = vmatprep.subr.bf16.mxu0 %v11498
        %11586 = vmatpush1.bf16.msra.mxu0 %v11497
        %11587 = vmatprep.subr.bf16.mxu0 %v11505
        %11588 = vmatpush1.bf16.msra.mxu0 %v11504
        %11589 = vmatprep.subr.bf16.mxu0 0
        %11590 = vmatpush1.bf16.msra.mxu0 0
        %11591 = vmatprep.subr.bf16.mxu0 0
        %11592 = vmatpush1.bf16.msra.mxu0 0
        %11593 = vmatprep.subr.bf16.mxu0 0
        %11594 = vmatpush1.bf16.msra.mxu0 0
        %11595 = vmatprep.subr.bf16.mxu0 0
        %11596 = vmatpush1.bf16.msra.mxu0 0
        %11597 = vmatprep.subr.bf16.mxu0 0
        %11598 = vmatpush1.bf16.msra.mxu0 0
        %11599 = vmatprep.subr.bf16.mxu0 0
        %11600 = vmatpush1.bf16.msra.mxu0 0
        %11601 = vmatprep.subr.bf16.mxu0 0
        %11602 = vmatpush1.bf16.msra.mxu0 0
        %11603 = vmatprep.subr.bf16.mxu0 0
        %11604 = vmatpush1.bf16.msra.mxu0 0
        %11605 = vmatprep.subr.bf16.mxu0 0
        %11606 = vmatpush1.bf16.msra.mxu0 0
        %11607 = vmatprep.subr.bf16.mxu0 0
        %11608 = vmatpush1.bf16.msra.mxu0 0
        %11609 = vmatprep.subr.bf16.mxu0 0
        %11610 = vmatpush1.bf16.msra.mxu0 0
        %11611 = vmatprep.subr.bf16.mxu0 0
        %11612 = vmatpush1.bf16.msra.mxu0 0
        %11613 = vmatprep.mubr.bf16.mxu0 0
        %11614 = vmatmul.mubr.bf16.gmra.mrb[0].mxu0 %v11538
        %v11615 = vpop.f32.mrb[0].mxu0
        %v11616 = vadd.f32 0.0, %v11615
        %v11617 = vpop.f32.mrb[0].mxu0
        %v11618 = vadd.f32 0.0, %v11617
        %v11619 = vpop.f32.mrb[0].mxu0
        %v11620 = vpop.f32.mrb[0].mxu0
        %11621 = vdwg.mxu0
        %11622 = vmatprep.subr.bf16.mxu0 %v11486
        %11623 = vmatpush1.bf16.msra.mxu0 %v11485
        %11624 = vmatprep.subr.bf16.mxu0 %v11493
        %11625 = vmatpush1.bf16.msra.mxu0 %v11492
        %11626 = vmatprep.subr.bf16.mxu0 %v11500
        %11627 = vmatpush1.bf16.msra.mxu0 %v11499
        %11628 = vmatprep.subr.bf16.mxu0 %v11507
        %11629 = vmatpush1.bf16.msra.mxu0 %v11506
        %11630 = vmatprep.subr.bf16.mxu0 0
        %11631 = vmatpush1.bf16.msra.mxu0 0
        %11632 = vmatprep.subr.bf16.mxu0 0
        %11633 = vmatpush1.bf16.msra.mxu0 0
        %11634 = vmatprep.subr.bf16.mxu0 0
        %11635 = vmatpush1.bf16.msra.mxu0 0
        %11636 = vmatprep.subr.bf16.mxu0 0
        %11637 = vmatpush1.bf16.msra.mxu0 0
        %11638 = vmatprep.subr.bf16.mxu0 0
        %11639 = vmatpush1.bf16.msra.mxu0 0
        %11640 = vmatprep.subr.bf16.mxu0 0
        %11641 = vmatpush1.bf16.msra.mxu0 0
        %11642 = vmatprep.subr.bf16.mxu0 0
        %11643 = vmatpush1.bf16.msra.mxu0 0
        %11644 = vmatprep.subr.bf16.mxu0 0
        %11645 = vmatpush1.bf16.msra.mxu0 0
        %11646 = vmatprep.subr.bf16.mxu0 0
        %11647 = vmatpush1.bf16.msra.mxu0 0
        %11648 = vmatprep.subr.bf16.mxu0 0
        %11649 = vmatpush1.bf16.msra.mxu0 0
        %11650 = vmatprep.subr.bf16.mxu0 0
        %11651 = vmatpush1.bf16.msra.mxu0 0
        %11652 = vmatprep.subr.bf16.mxu0 0
        %11653 = vmatpush1.bf16.msra.mxu0 0
        %11654 = vmatprep.mubr.bf16.mxu0 0
        %11655 = vmatmul.mubr.bf16.gmra.mrb[0].mxu0 %v11538
        %v11656 = vpop.f32.mrb[0].mxu0
        %v11657 = vadd.f32 0.0, %v11656
        %v11658 = vpop.f32.mrb[0].mxu0
        %v11659 = vadd.f32 0.0, %v11658
        %v11660 = vpop.f32.mrb[0].mxu0
        %v11661 = vpop.f32.mrb[0].mxu0
        %11662 = vdwg.mxu0
        %11663 = vmatprep.subr.bf16.mxu0 0
        %11664 = vmatpush1.bf16.msra.mxu0 %v11487
        %11665 = vmatprep.subr.bf16.mxu0 0
        %11666 = vmatpush1.bf16.msra.mxu0 %v11494
        %11667 = vmatprep.subr.bf16.mxu0 0
        %11668 = vmatpush1.bf16.msra.mxu0 %v11501
        %11669 = vmatprep.subr.bf16.mxu0 0
        %11670 = vmatpush1.bf16.msra.mxu0 %v11508
        %11671 = vmatprep.subr.bf16.mxu0 0
        %11672 = vmatpush1.bf16.msra.mxu0 0
        %11673 = vmatprep.subr.bf16.mxu0 0
        %11674 = vmatpush1.bf16.msra.mxu0 0
        %11675 = vmatprep.subr.bf16.mxu0 0
        %11676 = vmatpush1.bf16.msra.mxu0 0
        %11677 = vmatprep.subr.bf16.mxu0 0
        %11678 = vmatpush1.bf16.msra.mxu0 0
        %11679 = vmatprep.subr.bf16.mxu0 0
        %11680 = vmatpush1.bf16.msra.mxu0 0
        %11681 = vmatprep.subr.bf16.mxu0 0
        %11682 = vmatpush1.bf16.msra.mxu0 0
        %11683 = vmatprep.subr.bf16.mxu0 0
        %11684 = vmatpush1.bf16.msra.mxu0 0
        %11685 = vmatprep.subr.bf16.mxu0 0
        %11686 = vmatpush1.bf16.msra.mxu0 0
        %11687 = vmatprep.subr.bf16.mxu0 0
        %11688 = vmatpush1.bf16.msra.mxu0 0
        %11689 = vmatprep.subr.bf16.mxu0 0
        %11690 = vmatpush1.bf16.msra.mxu0 0
        %11691 = vmatprep.subr.bf16.mxu0 0
        %11692 = vmatpush1.bf16.msra.mxu0 0
        %11693 = vmatprep.subr.bf16.mxu0 0
        %11694 = vmatpush1.bf16.msra.mxu0 0
        %11695 = vmatprep.mubr.bf16.mxu0 0
        %11696 = vmatmul.mubr.bf16.gmra.mrb[0].mxu0 %v11538
        %v11697 = vpop.f32.mrb[0].mxu0
        %v11698 = vadd.f32 0.0, %v11697
        %v11699 = vpop.f32.mrb[0].mxu0
        %v11700 = vpop.f32.mrb[0].mxu0
        %v11701 = vpop.f32.mrb[0].mxu0
        %11702 = vdwg.mxu0
        %v11703 = vadd.f32 %v10249, %v11575
        %v11704 = vadd.f32 %v10250, %v11577
        %v11705 = vadd.f32 %v10251, %v11616
        %v11706 = vadd.f32 %v10252, %v11618
        %v11707 = vadd.f32 %v10253, %v11657
        %v11708 = vadd.f32 %v10254, %v11659
        %v11709 = vadd.f32 %v10255, %v11698
        %v11717 = vcombine.low %v11703, %v11704
        %v11718 = vcombine.low %v11705, %v11706
        %v11719 = vcombine.low %v11707, %v11708
        %v11721 = vunpack.c.l.s4 1966171168
        %v11722 = vunpack.c.0.s8 %v11721
        %v11723 = vlaneseq
        %v11724 = vshrl.u32 %v11723, 7
        %v11725 = vsub.s32 %v11722, %v11724
        %v11726 = vrot.slane %v11717, %v11725
        %v11728 = vunpack.c.l.s4 1966171168
        %v11729 = vunpack.c.0.s8 %v11728
        %v11730 = vlaneseq
        %v11731 = vshrl.u32 %v11730, 7
        %v11732 = vsub.s32 %v11729, %v11731
        %v11733 = vrot.slane %v11718, %v11732
        %v11735 = vunpack.c.l.s4 1966171168
        %v11736 = vunpack.c.0.s8 %v11735
        %v11737 = vlaneseq
        %v11738 = vshrl.u32 %v11737, 7
        %v11739 = vsub.s32 %v11736, %v11738
        %v11740 = vrot.slane %v11719, %v11739
        %v11742 = vunpack.c.l.s4 1966171168
        %v11743 = vunpack.c.0.s8 %v11742
        %v11744 = vlaneseq
        %v11745 = vshrl.u32 %v11744, 7
        %v11746 = vsub.s32 %v11743, %v11745
        %v11747 = vrot.slane %v11709, %v11746
        %v11748 = vcombine.low %v11726, %v11733
        %v11749 = vcombine.low %v11740, %v11747
        %v11751 = vunpack.c.l.s4 1966171168
        %v11752 = vunpack.c.0.s8 %v11751
        %v11753 = vlaneseq
        %v11754 = vshrl.u32 %v11753, 7
        %v11755 = vsub.s32 %v11752, %v11754
        %v11756 = vrot.slane %v11748, %v11755
        %v11758 = vunpack.c.l.s4 1966171168
        %v11759 = vunpack.c.0.s8 %v11758
        %v11760 = vlaneseq
        %v11761 = vshrl.u32 %v11760, 7
        %v11762 = vsub.s32 %v11759, %v11761
        %v11763 = vrot.slane %v11749, %v11762
        %v11764 = vcombine.low %v11756, %v11763
        %v11766 = vadd.f32 %v11358, %v11764
        %v11774 = vcombine.low %v10600, %v10601
        %v11775 = vcombine.low %v10602, %v10603
        %v11776 = vcombine.low %v10604, %v10605
        %v11778 = vunpack.c.l.s4 1966171168
        %v11779 = vunpack.c.0.s8 %v11778
        %v11780 = vlaneseq
        %v11781 = vshrl.u32 %v11780, 7
        %v11782 = vsub.s32 %v11779, %v11781
        %v11783 = vrot.slane %v11774, %v11782
        %v11785 = vunpack.c.l.s4 1966171168
        %v11786 = vunpack.c.0.s8 %v11785
        %v11787 = vlaneseq
        %v11788 = vshrl.u32 %v11787, 7
        %v11789 = vsub.s32 %v11786, %v11788
        %v11790 = vrot.slane %v11775, %v11789
        %v11792 = vunpack.c.l.s4 1966171168
        %v11793 = vunpack.c.0.s8 %v11792
        %v11794 = vlaneseq
        %v11795 = vshrl.u32 %v11794, 7
        %v11796 = vsub.s32 %v11793, %v11795
        %v11797 = vrot.slane %v11776, %v11796
        %v11799 = vunpack.c.l.s4 1966171168
        %v11800 = vunpack.c.0.s8 %v11799
        %v11801 = vlaneseq
        %v11802 = vshrl.u32 %v11801, 7
        %v11803 = vsub.s32 %v11800, %v11802
        %v11804 = vrot.slane %v10606, %v11803
        %v11805 = vcombine.low %v11783, %v11790
        %v11806 = vcombine.low %v11797, %v11804
        %v11808 = vunpack.c.l.s4 1966171168
        %v11809 = vunpack.c.0.s8 %v11808
        %v11810 = vlaneseq
        %v11811 = vshrl.u32 %v11810, 7
        %v11812 = vsub.s32 %v11809, %v11811
        %v11813 = vrot.slane %v11805, %v11812
        %v11815 = vunpack.c.l.s4 1966171168
        %v11816 = vunpack.c.0.s8 %v11815
        %v11817 = vlaneseq
        %v11818 = vshrl.u32 %v11817, 7
        %v11819 = vsub.s32 %v11816, %v11818
        %v11820 = vrot.slane %v11806, %v11819
        %v11821 = vcombine.low %v11813, %v11820
        %v11823 = vadd.f32 %v11766, %v11821
        %v11831 = vcombine.low %v10951, %v10952
        %v11832 = vcombine.low %v10953, %v10954
        %v11833 = vcombine.low %v10955, %v10956
        %v11835 = vunpack.c.l.s4 1966171168
        %v11836 = vunpack.c.0.s8 %v11835
        %v11837 = vlaneseq
        %v11838 = vshrl.u32 %v11837, 7
        %v11839 = vsub.s32 %v11836, %v11838
        %v11840 = vrot.slane %v11831, %v11839
        %v11842 = vunpack.c.l.s4 1966171168
        %v11843 = vunpack.c.0.s8 %v11842
        %v11844 = vlaneseq
        %v11845 = vshrl.u32 %v11844, 7
        %v11846 = vsub.s32 %v11843, %v11845
        %v11847 = vrot.slane %v11832, %v11846
        %v11849 = vunpack.c.l.s4 1966171168
        %v11850 = vunpack.c.0.s8 %v11849
        %v11851 = vlaneseq
        %v11852 = vshrl.u32 %v11851, 7
        %v11853 = vsub.s32 %v11850, %v11852
        %v11854 = vrot.slane %v11833, %v11853
        %v11856 = vunpack.c.l.s4 1966171168
        %v11857 = vunpack.c.0.s8 %v11856
        %v11858 = vlaneseq
        %v11859 = vshrl.u32 %v11858, 7
        %v11860 = vsub.s32 %v11857, %v11859
        %v11861 = vrot.slane %v10957, %v11860
        %v11862 = vcombine.low %v11840, %v11847
        %v11863 = vcombine.low %v11854, %v11861
        %v11865 = vunpack.c.l.s4 1966171168
        %v11866 = vunpack.c.0.s8 %v11865
        %v11867 = vlaneseq
        %v11868 = vshrl.u32 %v11867, 7
        %v11869 = vsub.s32 %v11866, %v11868
        %v11870 = vrot.slane %v11862, %v11869
        %v11872 = vunpack.c.l.s4 1966171168
        %v11873 = vunpack.c.0.s8 %v11872
        %v11874 = vlaneseq
        %v11875 = vshrl.u32 %v11874, 7
        %v11876 = vsub.s32 %v11873, %v11875
        %v11877 = vrot.slane %v11863, %v11876
        %v11878 = vcombine.low %v11870, %v11877
        %v11880 = vadd.f32 %v11823, %v11878
        %v11881 = vlaneseq
        %vm11882 = vcmp.ge.s32.totalorder %v11881, 0
        %vm11883 = vcmp.lt.s32.totalorder %v11881, 896
        %vm11884 = vmand %vm11882, %vm11883
        %11885 = vst.msk [vmem:[%s398] sm:$0x7f] %vm11884, %v11880
        %s11886 = sand.u32 %s213, 1
        %s11887 = scalar_lea.sflag [#allocation4], %s11886
        %s11888 = sand.u32 %s213, 1
        %s11889 = smul.addr %s11888, 7
        %s11890 = scalar_lea.vmem [#allocation11], %s11889
        // Predicated region
        $region73: #{gnn_forward.1} parent=51 // pred_check
          %p11891 = pneg %p223
        $region74: #{gnn_forward.1} parent=51 // pred_check_branch
          %11893 = sbr.rel (%p11891) target = $region76
        $region75: #{gnn_forward.1} parent=51 // pred_region
          %s11894 = smul.u32 7, %s27
          %s11896 = ssub.s32 112, 112
          %11897 = vsyncadd %s11887, %s11896
          %s11898 = smul.addr %s11894, 16
          %s11899 = scalar_lea.hbm %s8, %s11898
          %s11901 = sshll.u32 %s11890, 4
          %s11902 = int_to_ptr.vmem [resolvable:$true] %s11901
          %11904 = dma.vmem_to_hbm [thread:$0]  %s11902, 112, %s11899, %s11887
        $region76: #{gnn_forward.1} parent=51 // pred_fallthru
          _
      $region52: #{gnn_forward.1} parent=5 // pred_fallthru
        _
      %p11905 = scmp.le.s32.totalorder 2, %s22
      // Predicated region
      $region77: #{gnn_forward.1} parent=5 // pred_check
        %p11906 = pneg %p11905
      $region78: #{gnn_forward.1} parent=5 // pred_check_branch
        %11908 = sbr.rel (%p11906) target = $region80
      $region79: #{gnn_forward.1} parent=5 // pred_region
        %s11909 = ssub.s32 %s22, 2
        // Predicated region
        $region81: #{gnn_forward.1} parent=79 // pred_check
          %p11910 = pneg %p229
        $region82: #{gnn_forward.1} parent=79 // pred_check_branch
          %11912 = sbr.rel (%p11910) target = $region84
        $region83: #{gnn_forward.1} parent=79 // pred_region
          %s11913 = sand.u32 %s214, 1
          %s11914 = scalar_lea.sflag [#allocation4], %s11913
          %s11915 = sand.u32 %s214, 1
          %s11916 = smul.addr %s11915, 7
          %s11917 = scalar_lea.vmem [#allocation11], %s11916
          %11918 = dma.done %s11914, 112
        $region84: #{gnn_forward.1} parent=79 // pred_fallthru
          _
      $region80: #{gnn_forward.1} parent=5 // pred_fallthru
        _
    $region6: #{gnn_forward.1} parent=1 // loop_footer
      %s26 = sadd.s32 1, %s22
    $region7: #{gnn_forward.1} parent=1 // loop_footer_branch
      %21 = sbr.rel target = $region3
    $region8: #{gnn_forward.1} parent=1 // loop_exit
      _
    %11919 = vsyncpa [#allocation3], 1
    %s11920 = scalar_lea.sflag [#allocation3], 1
    %11921 = vsyncpa %s11920, 1
    %11922 = vsyncpa [#allocation6], 1
    %11923 = vsyncpa [#allocation9], 1
    %s11924 = scalar_lea.sflag [#allocation9], 1
    %11925 = vsyncpa %s11924, 1
    %11926 = vsyncpa [#allocation4], 1
    %s11927 = scalar_lea.sflag [#allocation4], 1
    %11928 = vsyncpa %s11927, 1

</llo_original>
